<compile_context>
chip_gen: v7x
topology: tpu7x:2x2x1
jax: 0.10.0
libtpu: 0.0.40
codegen_flags: <defaults>
</compile_context>

<pallas_src>
import functools

import numpy as np

import jax
import jax.numpy as jnp
from jax import lax
from jax.experimental import pallas as pl
from jax.experimental.pallas import tpu as pltpu

_BN_EPS = 1e-5
_VMEM_LIMIT = 64 * 1024 * 1024
_ROW_TILE = 512          # v5e/v6e-friendly tile; shrinks automatically for small inputs
_MIN_STEPS = 8           # keep >= 8 grid steps so both v7x TensorCores stay busy


def _sigmoid(x):
    # exp and the approximate reciprocal both run on the EUP slot, keeping the VALU free.
    return pl.reciprocal(1.0 + jnp.exp(-x), approx=True)


# ----------------------------------------------------------------------------- kernels
def _mm_bias_act_kernel(act, a_ref, w_ref, b_ref, o_ref):
    """o = act(a @ w + b).  a:(tm,K) bf16, w:(K,N) bf16, b:(1,N) f32."""
    acc = jnp.dot(a_ref[...], w_ref[...], preferred_element_type=jnp.float32)
    acc = acc + b_ref[...]
    if act == "relu":
        acc = jnp.maximum(acc, 0.0)
    o_ref[...] = acc.astype(o_ref.dtype)


def _mm_sig_res_kernel(a_ref, w_ref, b_ref, r_ref, o_ref):
    """Generic fallback (W % 8 != 0): o = sigmoid(a @ w + b) * r + r."""
    acc = jnp.dot(a_ref[...], w_ref[...], preferred_element_type=jnp.float32)
    gate = _sigmoid(acc + b_ref[...])
    r = r_ref[...].astype(jnp.float32)
    o_ref[...] = (gate * r + r).astype(o_ref.dtype)


def _mm_relu_proj_kernel(a_ref, w1_ref, b1_ref, w2_ref, o_ref):
    """Mid 3x3 conv + fused 1x1 projection: o = relu(a @ w1 + b1) @ w2."""
    h = jnp.dot(a_ref[...], w1_ref[...], preferred_element_type=jnp.float32) + b1_ref[...]
    h = jnp.maximum(h, 0.0).astype(w2_ref.dtype)
    o_ref[...] = jnp.dot(h, w2_ref[...], preferred_element_type=jnp.float32).astype(o_ref.dtype)


def _global_field_kernel(x_ref, w1_ref, b1_ref, w2_ref, b2_ref, o_ref):
    """GlobalFieldConv2d fused: o = sigmoid(BN(fc2(relu(BN(fc1(x)))))) * x + x."""
    x = x_ref[...]
    h = jnp.dot(x, w1_ref[...], preferred_element_type=jnp.float32) + b1_ref[...]
    h = jnp.maximum(h, 0.0).astype(w2_ref.dtype)
    z = jnp.dot(h, w2_ref[...], preferred_element_type=jnp.float32) + b2_ref[...]
    gate = _sigmoid(z)
    xf = x.astype(jnp.float32)
    o_ref[...] = (gate * xf + xf).astype(o_ref.dtype)


def _merge_kernel(x_ref, s_ref, m_ref, g_ref, w_ref, b_ref, o_ref):
    """merge_conv: relu(cat(x,s,m,g) @ W + b); concat in VMEM -> one K=4C MXU pass."""
    cat = jnp.concatenate([x_ref[...], s_ref[...], m_ref[...], g_ref[...]], axis=-1)
    acc = jnp.dot(cat, w_ref[...], preferred_element_type=jnp.float32) + b_ref[...]
    o_ref[...] = jnp.maximum(acc, 0.0).astype(o_ref.dtype)


def _short_field_kernel(hh, ww, xp_ref, w_ref, b_ref, o_ref):
    """ShortFieldConv2d fused halo conv for one image (no HBM im2col).

    xp_ref: (1, H+2, W+2, C) zero-padded bf16; w_ref: (9, Cin, Cout) bf16 tap-major
    (BN folded); b_ref: (1, Cout) f32; o_ref: (1, H*W, Cout).
    """
    cin = xp_ref.shape[-1]
    cout = w_ref.shape[2]
    acc = jnp.zeros((hh * ww, cout), jnp.float32)
    for di in range(3):
        for dj in range(3):
            tap = xp_ref[0, di:di + hh, dj:dj + ww, :].reshape(hh * ww, cin)
            acc = acc + jnp.dot(tap, w_ref[3 * di + dj],
                                preferred_element_type=jnp.float32)
    gate = _sigmoid(acc + b_ref[...])
    xc = xp_ref[0, 1:1 + hh, 1:1 + ww, :].reshape(hh * ww, cin).astype(jnp.float32)
    o_ref[0] = (gate * xc + xc).astype(o_ref.dtype)


def _upsample_w_kernel(aw_ref, v_ref, o_ref):
    """Separable bilinear 4x, W pass: o = Aw @ v  (per batch)."""
    o_ref[0] = jnp.dot(aw_ref[...], v_ref[0],
                       preferred_element_type=jnp.float32).astype(o_ref.dtype)


def _upsample_h_kernel(ah_ref, t_ref, sc_ref, sh_ref, o_ref):
    """Separable bilinear 4x, H pass + folded conv-bias/BN + ReLU."""
    u = jnp.dot(ah_ref[...], t_ref[0], preferred_element_type=jnp.float32)
    o_ref[0] = jnp.maximum(u * sc_ref[...] + sh_ref[...], 0.0).astype(o_ref.dtype)


# --------------------------------------------------------------------- pallas wrappers
def _round_up(x, m):
    return (x + m - 1) // m * m


def _row_tiling(m):
    tm = min(_ROW_TILE, max(8, _round_up(pl.cdiv(m, _MIN_STEPS), 8)))
    return tm, _round_up(m, tm)


def _cp():
    return pltpu.CompilerParams(dimension_semantics=("parallel",),
                                vmem_limit_bytes=_VMEM_LIMIT)


def _pad_rows(a, mp):
    m = a.shape[0]
    return a if m == mp else jnp.pad(a, ((0, mp - m), (0, 0)))


def matmul_bias_act(a, w, b, act, out_dtype):
    m, k = a.shape
    n = w.shape[1]
    tm, mp = _row_tiling(m)
    a = _pad_rows(a, mp)
    out = pl.pallas_call(
        functools.partial(_mm_bias_act_kernel, act),
        out_shape=jax.ShapeDtypeStruct((mp, n), out_dtype),
        grid=(mp // tm,),
        in_specs=[pl.BlockSpec((tm, k), lambda i: (i, 0)),
                  pl.BlockSpec((k, n), lambda i: (0, 0)),
                  pl.BlockSpec((1, n), lambda i: (0, 0))],
        out_specs=pl.BlockSpec((tm, n), lambda i: (i, 0)),
        compiler_params=_cp(),
    )(a, w, b.reshape(1, n))
    return out[:m]


def matmul_sig_residual(a, w, b, res, out_dtype):
    m, k = a.shape
    n = w.shape[1]
    tm, mp = _row_tiling(m)
    a = _pad_rows(a, mp)
    res = _pad_rows(res, mp)
    out = pl.pallas_call(
        _mm_sig_res_kernel,
        out_shape=jax.ShapeDtypeStruct((mp, n), out_dtype),
        grid=(mp // tm,),
        in_specs=[pl.BlockSpec((tm, k), lambda i: (i, 0)),
                  pl.BlockSpec((k, n), lambda i: (0, 0)),
                  pl.BlockSpec((1, n), lambda i: (0, 0)),
                  pl.BlockSpec((tm, n), lambda i: (i, 0))],
        out_specs=pl.BlockSpec((tm, n), lambda i: (i, 0)),
        compiler_params=_cp(),
    )(a, w, b.reshape(1, n), res)
    return out[:m]


def matmul_relu_proj(a, w1, b1, w2, out_dtype):
    m, k = a.shape
    n1 = w1.shape[1]
    n2 = w2.shape[1]
    tm, mp = _row_tiling(m)
    a = _pad_rows(a, mp)
    out = pl.pallas_call(
        _mm_relu_proj_kernel,
        out_shape=jax.ShapeDtypeStruct((mp, n2), out_dtype),
        grid=(mp // tm,),
        in_specs=[pl.BlockSpec((tm, k), lambda i: (i, 0)),
                  pl.BlockSpec((k, n1), lambda i: (0, 0)),
                  pl.BlockSpec((1, n1), lambda i: (0, 0)),
                  pl.BlockSpec((n1, n2), lambda i: (0, 0))],
        out_specs=pl.BlockSpec((tm, n2), lambda i: (i, 0)),
        compiler_params=_cp(),
    )(a, w1, b1.reshape(1, n1), w2)
    return out[:m]


def global_field(x_rows, w1, b1, w2, b2, out_dtype):
    m, c = x_rows.shape
    ci = w1.shape[1]
    tm, mp = _row_tiling(m)
    a = _pad_rows(x_rows, mp)
    out = pl.pallas_call(
        _global_field_kernel,
        out_shape=jax.ShapeDtypeStruct((mp, c), out_dtype),
        grid=(mp // tm,),
        in_specs=[pl.BlockSpec((tm, c), lambda i: (i, 0)),
                  pl.BlockSpec((c, ci), lambda i: (0, 0)),
                  pl.BlockSpec((1, ci), lambda i: (0, 0)),
                  pl.BlockSpec((ci, c), lambda i: (0, 0)),
                  pl.BlockSpec((1, c), lambda i: (0, 0))],
        out_specs=pl.BlockSpec((tm, c), lambda i: (i, 0)),
        compiler_params=_cp(),
    )(a, w1, b1.reshape(1, ci), w2, b2.reshape(1, c))
    return out[:m]


def merge_conv(x, s, mfld, g, w, b):
    m, c = x.shape
    n = w.shape[1]
    tm, mp = _row_tiling(m)
    x, s, mfld, g = [_pad_rows(t, mp) for t in (x, s, mfld, g)]
    row = pl.BlockSpec((tm, c), lambda i: (i, 0))
    out = pl.pallas_call(
        _merge_kernel,
        out_shape=jax.ShapeDtypeStruct((mp, n), jnp.float32),
        grid=(mp // tm,),
        in_specs=[row, row, row, row,
                  pl.BlockSpec((4 * c, n), lambda i: (0, 0)),
                  pl.BlockSpec((1, n), lambda i: (0, 0))],
        out_specs=pl.BlockSpec((tm, n), lambda i: (i, 0)),
        compiler_params=_cp(),
    )(x, s, mfld, g, w, b.reshape(1, n))
    return out[:m]


def short_field_conv(x_nhwc, w9, b):
    """Fused halo conv3x3 + BN + sigmoid gate + residual.  x:(B,H,W,C) -> (B*H*W,C)."""
    bsz, hh, ww, c = x_nhwc.shape
    xp = jnp.pad(x_nhwc, ((0, 0), (1, 1), (1, 1), (0, 0)))
    out = pl.pallas_call(
        functools.partial(_short_field_kernel, hh, ww),
        out_shape=jax.ShapeDtypeStruct((bsz, hh * ww, c), jnp.bfloat16),
        grid=(bsz,),
        in_specs=[pl.BlockSpec((1, hh + 2, ww + 2, c), lambda i: (i, 0, 0, 0)),
                  pl.BlockSpec((9, c, c), lambda i: (0, 0, 0)),
                  pl.BlockSpec((1, c), lambda i: (0, 0))],
        out_specs=pl.BlockSpec((1, hh * ww, c), lambda i: (i, 0, 0)),
        compiler_params=_cp(),
    )(xp, w9, b.reshape(1, c))
    return out.reshape(bsz * hh * ww, c)


def upsample4x_bn_relu(v, aw, ah, scale, shift, hh, ww):
    """Separable bilinear 4x upsample of v:(B,ho,wo,C) + folded conv-bias/BN + ReLU."""
    bsz, ho, wo, c = v.shape
    # W pass: contract over wo with (ho, C) flattened onto lanes (cheap low-res transpose).
    vt = jnp.transpose(v, (0, 2, 1, 3)).reshape(bsz, wo, ho * c)
    t = pl.pallas_call(
        _upsample_w_kernel,
        out_shape=jax.ShapeDtypeStruct((bsz, ww, ho * c), jnp.bfloat16),
        grid=(bsz,),
        in_specs=[pl.BlockSpec((ww, wo), lambda i: (0, 0)),
                  pl.BlockSpec((1, wo, ho * c), lambda i: (i, 0, 0))],
        out_specs=pl.BlockSpec((1, ww, ho * c), lambda i: (i, 0, 0)),
        compiler_params=_cp(),
    )(aw, vt)
    # H pass (+ BN scale/shift + ReLU); output lands directly in (B,H,W,C) order.
    t = jnp.transpose(t.reshape(bsz, ww, ho, c), (0, 2, 1, 3)).reshape(bsz, ho, ww * c)
    scale_t = jnp.tile(scale, ww).reshape(1, ww * c)
    shift_t = jnp.tile(shift, ww).reshape(1, ww * c)
    m = pl.pallas_call(
        _upsample_h_kernel,
        out_shape=jax.ShapeDtypeStruct((bsz, hh, ww * c), jnp.bfloat16),
        grid=(bsz,),
        in_specs=[pl.BlockSpec((hh, ho), lambda i: (0, 0)),
                  pl.BlockSpec((1, ho, ww * c), lambda i: (i, 0, 0)),
                  pl.BlockSpec((1, ww * c), lambda i: (0, 0)),
                  pl.BlockSpec((1, ww * c), lambda i: (0, 0))],
        out_specs=pl.BlockSpec((1, hh, ww * c), lambda i: (i, 0, 0)),
        compiler_params=_cp(),
    )(ah, t, scale_t, shift_t)
    return m.reshape(bsz * hh * ww, c)


# ------------------------------------------------------------------------- glue helpers
def _im2col(x, kh, kw, stride, pad):
    """x:(B,H,W,C) -> (B,Ho,Wo,kh*kw*C); tap-major (di,dj), channel-minor."""
    b, h, w, c = x.shape
    ho = (h + 2 * pad - kh) // stride + 1
    wo = (w + 2 * pad - kw) // stride + 1
    xp = jnp.pad(x, ((0, 0), (pad, pad), (pad, pad), (0, 0)))
    cols = []
    for di in range(kh):
        for dj in range(kw):
            cols.append(xp[:, di:di + stride * (ho - 1) + 1:stride,
                           dj:dj + stride * (wo - 1) + 1:stride, :])
    return jnp.concatenate(cols, axis=-1), ho, wo


def _to_mat(w):
    """PyTorch conv weight (Cout,Cin,kh,kw) -> matmul weight (kh*kw*Cin, Cout)."""
    return jnp.transpose(w, (2, 3, 1, 0)).reshape(-1, w.shape[0])


def _fold_bn(w_mat, b, bn):
    """Fold inference-mode BatchNorm into a (K, Cout) weight matrix and bias (f32)."""
    inv = bn["gamma"] / jnp.sqrt(bn["var"] + _BN_EPS)
    return w_mat * inv[None, :], (b - bn["mean"]) * inv + bn["beta"]


def _bilinear_matrix(out_size, in_size):
    """Dense 1-D bilinear interpolation operator (PyTorch align_corners=False)."""
    scale = in_size / out_size
    src = np.maximum(scale * (np.arange(out_size) + 0.5) - 0.5, 0.0)
    i0 = np.minimum(np.floor(src).astype(np.int64), in_size - 1)
    i1 = np.minimum(i0 + 1, in_size - 1)
    l1 = (src - i0).astype(np.float32)
    mat = np.zeros((out_size, in_size), np.float32)
    mat[np.arange(out_size), i0] += (1.0 - l1)
    mat[np.arange(out_size), i1] += l1
    return mat


# --------------------------------------------------------------------------- forward
def multi_field_at_conv2d(x_nchw, p):
    """MultiFieAtConv2d.forward.  x_nchw: (B, C, H, W) f32 -> (B, C, H, W) f32."""
    b, c, h, w = x_nchw.shape
    # adaptive_avg_pool2d(x, W) is identity only for square spatial input.
    assert h == w, "GlobalFieldConv2d path assumes a square spatial input"
    assert h % 4 == 0, "MidLongFieldConv2d (stride-4 conv + 4x upsample) needs H % 4 == 0"

    x = jnp.transpose(x_nchw, (0, 2, 3, 1)).astype(jnp.bfloat16)          # NHWC bf16
    rows = b * h * w
    x_rows = x.reshape(rows, c)
    bf = jnp.bfloat16

    # -------- short field: sigmoid(BN(conv3x3(x))) * x + x
    sw_flat, sb = _fold_bn(_to_mat(p["s_conv_w"]), p["s_conv_b"], p["s_bn"])
    if w % 8 == 0:
        s_rows = short_field_conv(x, sw_flat.reshape(9, c, c).astype(bf), sb)
    else:
        # TODO(synk): generic-width fallback materializes im2col in HBM (9x traffic).
        cols, _, _ = _im2col(x, 3, 3, 1, 1)
        s_rows = matmul_sig_residual(cols.reshape(rows, -1), sw_flat.astype(bf),
                                     sb, x_rows, bf)

    # -------- mid field: conv7x7 s4 -> conv3x3 -> (1x1 conv, moved pre-upsample)
    w7, b7 = _fold_bn(_to_mat(p["m_conv7_w"]), p["m_conv7_b"], p["m_bn1"])
    cols7, ho, wo = _im2col(x, 7, 7, 4, 3)
    x1 = matmul_bias_act(cols7.reshape(b * ho * wo, -1), w7.astype(bf), b7, "relu", bf)
    x1 = x1.reshape(b, ho, wo, -1)

    w3, b3 = _fold_bn(_to_mat(p["m_conv3_w"]), p["m_conv3_b"], p["m_bn3"])
    wup = _to_mat(p["m_up_w"])              # 1x1 conv weight (bias deferred past upsample)
    cols3, _, _ = _im2col(x1, 3, 3, 1, 1)
    v = matmul_relu_proj(cols3.reshape(b * ho * wo, -1), w3.astype(bf), b3,
                         wup.astype(bf), bf)

    assert 4 * ho == h and 4 * wo == w
    bn_up = p["m_bn_up"]
    inv = bn_up["gamma"] / jnp.sqrt(bn_up["var"] + _BN_EPS)
    up_scale = inv
    up_shift = (p["m_up_b"] - bn_up["mean"]) * inv + bn_up["beta"]
    ah = jnp.asarray(_bilinear_matrix(h, ho), bf)
    aw = jnp.asarray(_bilinear_matrix(w, wo), bf)
    m_rows = upsample4x_bn_relu(v.reshape(b, ho, wo, c), aw, ah, up_scale, up_shift, h, w)

    # -------- global field (adaptive_avg_pool2d(x, W) == identity for square input)
    g1w, g1b = _fold_bn(_to_mat(p["g_fc1_w"]), p["g_fc1_b"], p["g_bn1"])
    g2w, g2b = _fold_bn(_to_mat(p["g_fc2_w"]), p["g_fc2_b"], p["g_bn2"])
    g_rows = global_field(x_rows, g1w.astype(bf), g1b, g2w.astype(bf), g2b, bf)

    # -------- merge: relu(BN(conv1x1(cat(x, s, m, g))))
    mw, mb = _fold_bn(_to_mat(p["mg_w"]), p["mg_b"], p["mg_bn"])          # (4C, C)
    out_rows = merge_conv(x_rows, s_rows, m_rows, g_rows, mw.astype(bf), mb)
    return jnp.transpose(out_rows.reshape(b, h, w, c), (0, 3, 1, 2))


# ----------------------------------------------------------------------- pure-JAX ref
def _upsample_bilinear_ref(x, scale=4):
    """PyTorch nn.Upsample(scale_factor=4, mode='bilinear', align_corners=False)."""
    b, h, w, c = x.shape

    def src_idx(out_size, in_size):
        s = in_size / out_size
        src = jnp.maximum(s * (jnp.arange(out_size) + 0.5) - 0.5, 0.0)
        i0 = jnp.minimum(jnp.floor(src).astype(jnp.int32), in_size - 1)
        i1 = jnp.minimum(i0 + 1, in_size - 1)
        return i0, i1, (src - i0).astype(x.dtype)

    r0, r1, lr = src_idx(h * scale, h)
    c0, c1, lc = src_idx(w * scale, w)
    lc_ = lc[None, None, :, None]
    top = x[:, r0][:, :, c0] * (1 - lc_) + x[:, r0][:, :, c1] * lc_
    bot = x[:, r1][:, :, c0] * (1 - lc_) + x[:, r1][:, :, c1] * lc_
    lr_ = lr[None, :, None, None]
    return top * (1 - lr_) + bot * lr_


def _ref_forward(x_nchw, p):
    """Pure-JAX/XLA f32 reference mirroring the PyTorch forward (inference-mode BN)."""
    x = jnp.transpose(x_nchw, (0, 2, 3, 1)).astype(jnp.float32)

    def conv(v, wt, bias, stride=1, pad=0):
        out = lax.conv_general_dilated(
            v, jnp.transpose(wt, (2, 3, 1, 0)), (stride, stride),
            ((pad, pad), (pad, pad)),
            dimension_numbers=("NHWC", "HWIO", "NHWC"),
            precision=lax.Precision.HIGHEST)
        return out + bias

    def bn(v, q):
        return (v - q["mean"]) / jnp.sqrt(q["var"] + _BN_EPS) * q["gamma"] + q["beta"]

    relu = lambda v: jnp.maximum(v, 0.0)
    sig = jax.nn.sigmoid

    s = sig(bn(conv(x, p["s_conv_w"], p["s_conv_b"], 1, 1), p["s_bn"])) * x + x

    x1 = relu(bn(conv(x, p["m_conv7_w"], p["m_conv7_b"], 4, 3), p["m_bn1"]))
    x1 = relu(bn(conv(x1, p["m_conv3_w"], p["m_conv3_b"], 1, 1), p["m_bn3"]))
    m = relu(bn(conv(_upsample_bilinear_ref(x1, 4), p["m_up_w"], p["m_up_b"]),
                p["m_bn_up"]))

    w = x  # adaptive_avg_pool2d(x, x.shape[-1]) == identity for square input
    w = relu(bn(conv(w, p["g_fc1_w"], p["g_fc1_b"]), p["g_bn1"]))
    w = sig(bn(conv(w, p["g_fc2_w"], p["g_fc2_b"]), p["g_bn2"]))
    g = w * x + x

    out = relu(bn(conv(jnp.concatenate([x, s, m, g], axis=-1), p["mg_w"], p["mg_b"]),
                  p["mg_bn"]))
    return jnp.transpose(out, (0, 3, 1, 2))


# --------------------------------------------------------------------------- params
def init_params(key, channels):
    c = channels
    ci = max(c // 4, 32)   # GlobalFieldConv2d inter_channels
    cm = max(c // 4, 32)   # MidLongFieldConv2d channels_mid
    keys = iter(jax.random.split(key, 32))

    def conv_w(k, cout, cin, kh, kw):
        fan = cin * kh * kw
        return jax.random.normal(k, (cout, cin, kh, kw), jnp.float32) / jnp.sqrt(fan)

    def vec(k, n):
        return 0.1 * jax.random.normal(k, (n,), jnp.float32)

    def bn(k, n):
        k1, k2, k3, k4 = jax.random.split(k, 4)
        return dict(gamma=1.0 + 0.1 * jax.random.normal(k1, (n,), jnp.float32),
                    beta=0.1 * jax.random.normal(k2, (n,), jnp.float32),
                    mean=0.1 * jax.random.normal(k3, (n,), jnp.float32),
                    var=1.0 + 0.1 * jax.random.uniform(k4, (n,), jnp.float32))

    p = {}
    p["s_conv_w"], p["s_conv_b"], p["s_bn"] = conv_w(next(keys), c, c, 3, 3), vec(next(keys), c), bn(next(keys), c)
    p["m_conv7_w"], p["m_conv7_b"], p["m_bn1"] = conv_w(next(keys), cm, c, 7, 7), vec(next(keys), cm), bn(next(keys), cm)
    p["m_conv3_w"], p["m_conv3_b"], p["m_bn3"] = conv_w(next(keys), cm, cm, 3, 3), vec(next(keys), cm), bn(next(keys), cm)
    p["m_up_w"], p["m_up_b"], p["m_bn_up"] = conv_w(next(keys), c, cm, 1, 1), vec(next(keys), c), bn(next(keys), c)
    p["g_fc1_w"], p["g_fc1_b"], p["g_bn1"] = conv_w(next(keys), ci, c, 1, 1), vec(next(keys), ci), bn(next(keys), ci)
    p["g_fc2_w"], p["g_fc2_b"], p["g_bn2"] = conv_w(next(keys), c, ci, 1, 1), vec(next(keys), c), bn(next(keys), c)
    p["mg_w"], p["mg_b"], p["mg_bn"] = conv_w(next(keys), c, 4 * c, 1, 1), vec(next(keys), c), bn(next(keys), c)
    return p


if __name__ == "__main__":
    key = jax.random.PRNGKey(0)
    k_x, k_p = jax.random.split(key)
    B, C, H, W = 2, 32, 16, 16
    x = jax.random.normal(k_x, (B, C, H, W), dtype=jnp.float32)
    params = init_params(k_p, C)

    out = jax.block_until_ready(jax.jit(multi_field_at_conv2d)(x, params))
    ref = jax.block_until_ready(jax.jit(_ref_forward)(x, params))

    assert out.shape == ref.shape == (B, C, H, W)
    err = float(jnp.max(jnp.abs(out.astype(jnp.float32) - ref)))
    # bf16 MXU inputs / bf16 intermediates vs an f32 reference -> O(1e-2) expected.
    assert err < 1e-1, f"max abs err too large: {err}"
    print("KERNEL_OK")
</pallas_src>

<mosaic_0001>
module attributes {stable_mosaic.version = 11 : i64} {
  func.func @_mm_bias_act_kernel(%arg0: i32, %arg1: memref<8x1568xbf16, #tpu.memory_space<vmem>>, %arg2: memref<1568x32xbf16, #tpu.memory_space<vmem>>, %arg3: memref<1x32xf32, #tpu.memory_space<vmem>>, %arg4: memref<8x32xbf16, #tpu.memory_space<vmem>>) attributes {dimension_semantics = [#tpu.dimension_semantics<parallel>], iteration_bounds = array<i64: 4>, scalar_prefetch = 0 : i64, scratch_operands = 0 : i64, tpu.core_type = #tpu.core_type<tc>, window_params = [{transform_indices = @transform_0, window_bounds = array<i64: 8, 1568>}, {pipeline_mode = #tpu.pipeline_mode<synchronous>, transform_indices = @transform_1, window_bounds = array<i64: 1568, 32>}, {pipeline_mode = #tpu.pipeline_mode<synchronous>, transform_indices = @transform_2, window_bounds = array<i64: 1, 32>}, {transform_indices = @transform_3, window_bounds = array<i64: 8, 32>}]} {
    %c0 = arith.constant 0 : index
    %c0_0 = arith.constant 0 : index
    %0 = vector.load %arg1[%c0, %c0_0] : memref<8x1568xbf16, #tpu.memory_space<vmem>>, vector<8x1568xbf16>
    %c0_1 = arith.constant 0 : index
    %c0_2 = arith.constant 0 : index
    %1 = vector.load %arg2[%c0_1, %c0_2] : memref<1568x32xbf16, #tpu.memory_space<vmem>>, vector<1568x32xbf16>
    %cst = arith.constant dense<0.000000e+00> : vector<8x32xf32>
    %2 = tpu.matmul %0, %1, %cst {dimension_numbers = #tpu.dot_dimension_numbers<[1], [0], [0], [1], [0, 0, 1, 1], [], []>} : vector<8x1568xbf16>, vector<1568x32xbf16>, vector<8x32xf32> -> vector<8x32xf32>
    %c0_3 = arith.constant 0 : index
    %c0_4 = arith.constant 0 : index
    %3 = vector.load %arg3[%c0_3, %c0_4] : memref<1x32xf32, #tpu.memory_space<vmem>>, vector<1x32xf32>
    %4 = vector.broadcast %3 : vector<1x32xf32> to vector<8x32xf32>
    %5 = arith.addf %2, %4 : vector<8x32xf32>
    %cst_5 = arith.constant 0.000000e+00 : f32
    %6 = vector.broadcast %cst_5 : f32 to vector<8x32xf32>
    %7 = arith.maximumf %5, %6 : vector<8x32xf32>
    %8 = arith.truncf %7 : vector<8x32xf32> to vector<8x32xbf16>
    %c0_6 = arith.constant 0 : index
    %c0_7 = arith.constant 0 : index
    %9 = vector.load %arg4[%c0_6, %c0_7] : memref<8x32xbf16, #tpu.memory_space<vmem>>, vector<8x32xbf16>
    tpu.vector_store %arg4[%c0_6, %c0_7], %8 {strides = array<i32>} : memref<8x32xbf16, #tpu.memory_space<vmem>>, vector<8x32xbf16>,
    return
  }
  func.func @transform_0(%arg0: i32) -> (i32, i32) {
    %c0_i32 = arith.constant 0 : i32
    %c0_i32_0 = arith.constant 0 : i32
    return %arg0, %c0_i32 : i32, i32
  }
  func.func @transform_1(%arg0: i32) -> (i32, i32) {
    %c0_i32 = arith.constant 0 : i32
    %c0_i32_0 = arith.constant 0 : i32
    %c0_i32_1 = arith.constant 0 : i32
    return %c0_i32, %c0_i32_0 : i32, i32
  }
  func.func @transform_2(%arg0: i32) -> (i32, i32) {
    %c0_i32 = arith.constant 0 : i32
    %c0_i32_0 = arith.constant 0 : i32
    %c0_i32_1 = arith.constant 0 : i32
    return %c0_i32, %c0_i32_0 : i32, i32
  }
  func.func @transform_3(%arg0: i32) -> (i32, i32) {
    %c0_i32 = arith.constant 0 : i32
    %c0_i32_0 = arith.constant 0 : i32
    return %arg0, %c0_i32 : i32, i32
  }
}

module attributes {stable_mosaic.version = 11 : i64} {
  func.func @_upsample_w_kernel(%arg0: i32, %arg1: memref<16x4xbf16, #tpu.memory_space<vmem>>, %arg2: memref<1x4x128xbf16, #tpu.memory_space<vmem>>, %arg3: memref<1x16x128xbf16, #tpu.memory_space<vmem>>) attributes {dimension_semantics = [#tpu.dimension_semantics<parallel>], iteration_bounds = array<i64: 2>, scalar_prefetch = 0 : i64, scratch_operands = 0 : i64, tpu.core_type = #tpu.core_type<tc>, window_params = [{pipeline_mode = #tpu.pipeline_mode<synchronous>, transform_indices = @transform_0, window_bounds = array<i64: 16, 4>}, {transform_indices = @transform_1, window_bounds = array<i64: 1, 4, 128>}, {transform_indices = @transform_2, window_bounds = array<i64: 1, 16, 128>}]} {
    %c0 = arith.constant 0 : index
    %c0_0 = arith.constant 0 : index
    %0 = vector.load %arg1[%c0, %c0_0] : memref<16x4xbf16, #tpu.memory_space<vmem>>, vector<16x4xbf16>
    %c0_1 = arith.constant 0 : index
    %c0_2 = arith.constant 0 : index
    %c0_3 = arith.constant 0 : index
    %1 = vector.load %arg2[%c0_1, %c0_2, %c0_3] : memref<1x4x128xbf16, #tpu.memory_space<vmem>>, vector<1x4x128xbf16>
    %2 = vector.shape_cast %1 : vector<1x4x128xbf16> to vector<4x128xbf16>
    %cst = arith.constant dense<0.000000e+00> : vector<16x128xf32>
    %3 = tpu.matmul %0, %2, %cst {dimension_numbers = #tpu.dot_dimension_numbers<[1], [0], [0], [1], [0, 0, 1, 1], [], []>} : vector<16x4xbf16>, vector<4x128xbf16>, vector<16x128xf32> -> vector<16x128xf32>
    %4 = arith.truncf %3 : vector<16x128xf32> to vector<16x128xbf16>
    %c0_4 = arith.constant 0 : index
    %c0_5 = arith.constant 0 : index
    %c0_6 = arith.constant 0 : index
    %5 = vector.load %arg3[%c0_4, %c0_5, %c0_6] : memref<1x16x128xbf16, #tpu.memory_space<vmem>>, vector<1x16x128xbf16>
    %6 = vector.shape_cast %5 : vector<1x16x128xbf16> to vector<16x128xbf16>
    %7 = vector.shape_cast %4 : vector<16x128xbf16> to vector<1x16x128xbf16>
    tpu.vector_store %arg3[%c0_4, %c0_5, %c0_6], %7 {strides = array<i32>} : memref<1x16x128xbf16, #tpu.memory_space<vmem>>, vector<1x16x128xbf16>,
    return
  }
  func.func @transform_0(%arg0: i32) -> (i32, i32) {
    %c0_i32 = arith.constant 0 : i32
    %c0_i32_0 = arith.constant 0 : i32
    %c0_i32_1 = arith.constant 0 : i32
    return %c0_i32, %c0_i32_0 : i32, i32
  }
  func.func @transform_1(%arg0: i32) -> (i32, i32, i32) {
    %c0_i32 = arith.constant 0 : i32
    %c0_i32_0 = arith.constant 0 : i32
    %c0_i32_1 = arith.constant 0 : i32
    return %arg0, %c0_i32, %c0_i32_0 : i32, i32, i32
  }
  func.func @transform_2(%arg0: i32) -> (i32, i32, i32) {
    %c0_i32 = arith.constant 0 : i32
    %c0_i32_0 = arith.constant 0 : i32
    %c0_i32_1 = arith.constant 0 : i32
    return %arg0, %c0_i32, %c0_i32_0 : i32, i32, i32
  }
}

module attributes {stable_mosaic.version = 11 : i64} {
  func.func @_mm_relu_proj_kernel(%arg0: i32, %arg1: memref<8x288xbf16, #tpu.memory_space<vmem>>, %arg2: memref<288x32xbf16, #tpu.memory_space<vmem>>, %arg3: memref<1x32xf32, #tpu.memory_space<vmem>>, %arg4: memref<32x32xbf16, #tpu.memory_space<vmem>>, %arg5: memref<8x32xbf16, #tpu.memory_space<vmem>>) attributes {dimension_semantics = [#tpu.dimension_semantics<parallel>], iteration_bounds = array<i64: 4>, scalar_prefetch = 0 : i64, scratch_operands = 0 : i64, tpu.core_type = #tpu.core_type<tc>, window_params = [{transform_indices = @transform_0, window_bounds = array<i64: 8, 288>}, {pipeline_mode = #tpu.pipeline_mode<synchronous>, transform_indices = @transform_1, window_bounds = array<i64: 288, 32>}, {pipeline_mode = #tpu.pipeline_mode<synchronous>, transform_indices = @transform_2, window_bounds = array<i64: 1, 32>}, {pipeline_mode = #tpu.pipeline_mode<synchronous>, transform_indices = @transform_3, window_bounds = array<i64: 32, 32>}, {transform_indices = @transform_4, window_bounds = array<i64: 8, 32>}]} {
    %c0 = arith.constant 0 : index
    %c0_0 = arith.constant 0 : index
    %0 = vector.load %arg1[%c0, %c0_0] : memref<8x288xbf16, #tpu.memory_space<vmem>>, vector<8x288xbf16>
    %c0_1 = arith.constant 0 : index
    %c0_2 = arith.constant 0 : index
    %1 = vector.load %arg2[%c0_1, %c0_2] : memref<288x32xbf16, #tpu.memory_space<vmem>>, vector<288x32xbf16>
    %cst = arith.constant dense<0.000000e+00> : vector<8x32xf32>
    %2 = tpu.matmul %0, %1, %cst {dimension_numbers = #tpu.dot_dimension_numbers<[1], [0], [0], [1], [0, 0, 1, 1], [], []>} : vector<8x288xbf16>, vector<288x32xbf16>, vector<8x32xf32> -> vector<8x32xf32>
    %c0_3 = arith.constant 0 : index
    %c0_4 = arith.constant 0 : index
    %3 = vector.load %arg3[%c0_3, %c0_4] : memref<1x32xf32, #tpu.memory_space<vmem>>, vector<1x32xf32>
    %4 = vector.broadcast %3 : vector<1x32xf32> to vector<8x32xf32>
    %5 = arith.addf %2, %4 : vector<8x32xf32>
    %cst_5 = arith.constant 0.000000e+00 : f32
    %6 = vector.broadcast %cst_5 : f32 to vector<8x32xf32>
    %7 = arith.maximumf %5, %6 : vector<8x32xf32>
    %8 = arith.truncf %7 : vector<8x32xf32> to vector<8x32xbf16>
    %c0_6 = arith.constant 0 : index
    %c0_7 = arith.constant 0 : index
    %9 = vector.load %arg4[%c0_6, %c0_7] : memref<32x32xbf16, #tpu.memory_space<vmem>>, vector<32x32xbf16>
    %cst_8 = arith.constant dense<0.000000e+00> : vector<8x32xf32>
    %10 = tpu.matmul %8, %9, %cst_8 {dimension_numbers = #tpu.dot_dimension_numbers<[1], [0], [0], [1], [0, 0, 1, 1], [], []>} : vector<8x32xbf16>, vector<32x32xbf16>, vector<8x32xf32> -> vector<8x32xf32>
    %11 = arith.truncf %10 : vector<8x32xf32> to vector<8x32xbf16>
    %c0_9 = arith.constant 0 : index
    %c0_10 = arith.constant 0 : index
    %12 = vector.load %arg5[%c0_9, %c0_10] : memref<8x32xbf16, #tpu.memory_space<vmem>>, vector<8x32xbf16>
    tpu.vector_store %arg5[%c0_9, %c0_10], %11 {strides = array<i32>} : memref<8x32xbf16, #tpu.memory_space<vmem>>, vector<8x32xbf16>,
    return
  }
  func.func @transform_0(%arg0: i32) -> (i32, i32) {
    %c0_i32 = arith.constant 0 : i32
    %c0_i32_0 = arith.constant 0 : i32
    return %arg0, %c0_i32 : i32, i32
  }
  func.func @transform_1(%arg0: i32) -> (i32, i32) {
    %c0_i32 = arith.constant 0 : i32
    %c0_i32_0 = arith.constant 0 : i32
    %c0_i32_1 = arith.constant 0 : i32
    return %c0_i32, %c0_i32_0 : i32, i32
  }
  func.func @transform_2(%arg0: i32) -> (i32, i32) {
    %c0_i32 = arith.constant 0 : i32
    %c0_i32_0 = arith.constant 0 : i32
    %c0_i32_1 = arith.constant 0 : i32
    return %c0_i32, %c0_i32_0 : i32, i32
  }
  func.func @transform_3(%arg0: i32) -> (i32, i32) {
    %c0_i32 = arith.constant 0 : i32
    %c0_i32_0 = arith.constant 0 : i32
    %c0_i32_1 = arith.constant 0 : i32
    return %c0_i32, %c0_i32_0 : i32, i32
  }
  func.func @transform_4(%arg0: i32) -> (i32, i32) {
    %c0_i32 = arith.constant 0 : i32
    %c0_i32_0 = arith.constant 0 : i32
    return %arg0, %c0_i32 : i32, i32
  }
}

module attributes {stable_mosaic.version = 11 : i64} {
  func.func @_upsample_h_kernel(%arg0: i32, %arg1: memref<16x4xbf16, #tpu.memory_space<vmem>>, %arg2: memref<1x4x512xbf16, #tpu.memory_space<vmem>>, %arg3: memref<1x512xf32, #tpu.memory_space<vmem>>, %arg4: memref<1x512xf32, #tpu.memory_space<vmem>>, %arg5: memref<1x16x512xbf16, #tpu.memory_space<vmem>>) attributes {dimension_semantics = [#tpu.dimension_semantics<parallel>], iteration_bounds = array<i64: 2>, scalar_prefetch = 0 : i64, scratch_operands = 0 : i64, tpu.core_type = #tpu.core_type<tc>, window_params = [{pipeline_mode = #tpu.pipeline_mode<synchronous>, transform_indices = @transform_0, window_bounds = array<i64: 16, 4>}, {transform_indices = @transform_1, window_bounds = array<i64: 1, 4, 512>}, {pipeline_mode = #tpu.pipeline_mode<synchronous>, transform_indices = @transform_2, window_bounds = array<i64: 1, 512>}, {pipeline_mode = #tpu.pipeline_mode<synchronous>, transform_indices = @transform_3, window_bounds = array<i64: 1, 512>}, {transform_indices = @transform_4, window_bounds = array<i64: 1, 16, 512>}]} {
    %c0 = arith.constant 0 : index
    %c0_0 = arith.constant 0 : index
    %0 = vector.load %arg1[%c0, %c0_0] : memref<16x4xbf16, #tpu.memory_space<vmem>>, vector<16x4xbf16>
    %c0_1 = arith.constant 0 : index
    %c0_2 = arith.constant 0 : index
    %c0_3 = arith.constant 0 : index
    %1 = vector.load %arg2[%c0_1, %c0_2, %c0_3] : memref<1x4x512xbf16, #tpu.memory_space<vmem>>, vector<1x4x512xbf16>
    %2 = vector.shape_cast %1 : vector<1x4x512xbf16> to vector<4x512xbf16>
    %cst = arith.constant dense<0.000000e+00> : vector<16x512xf32>
    %3 = tpu.matmul %0, %2, %cst {dimension_numbers = #tpu.dot_dimension_numbers<[1], [0], [0], [1], [0, 0, 1, 1], [], []>} : vector<16x4xbf16>, vector<4x512xbf16>, vector<16x512xf32> -> vector<16x512xf32>
    %c0_4 = arith.constant 0 : index
    %c0_5 = arith.constant 0 : index
    %4 = vector.load %arg3[%c0_4, %c0_5] : memref<1x512xf32, #tpu.memory_space<vmem>>, vector<1x512xf32>
    %5 = vector.broadcast %4 : vector<1x512xf32> to vector<16x512xf32>
    %6 = arith.mulf %3, %5 : vector<16x512xf32>
    %c0_6 = arith.constant 0 : index
    %c0_7 = arith.constant 0 : index
    %7 = vector.load %arg4[%c0_6, %c0_7] : memref<1x512xf32, #tpu.memory_space<vmem>>, vector<1x512xf32>
    %8 = vector.broadcast %7 : vector<1x512xf32> to vector<16x512xf32>
    %9 = arith.addf %6, %8 : vector<16x512xf32>
    %cst_8 = arith.constant 0.000000e+00 : f32
    %10 = vector.broadcast %cst_8 : f32 to vector<16x512xf32>
    %11 = arith.maximumf %9, %10 : vector<16x512xf32>
    %12 = arith.truncf %11 : vector<16x512xf32> to vector<16x512xbf16>
    %c0_9 = arith.constant 0 : index
    %c0_10 = arith.constant 0 : index
    %c0_11 = arith.constant 0 : index
    %13 = vector.load %arg5[%c0_9, %c0_10, %c0_11] : memref<1x16x512xbf16, #tpu.memory_space<vmem>>, vector<1x16x512xbf16>
    %14 = vector.shape_cast %13 : vector<1x16x512xbf16> to vector<16x512xbf16>
    %15 = vector.shape_cast %12 : vector<16x512xbf16> to vector<1x16x512xbf16>
    tpu.vector_store %arg5[%c0_9, %c0_10, %c0_11], %15 {strides = array<i32>} : memref<1x16x512xbf16, #tpu.memory_space<vmem>>, vector<1x16x512xbf16>,
    return
  }
  func.func @transform_0(%arg0: i32) -> (i32, i32) {
    %c0_i32 = arith.constant 0 : i32
    %c0_i32_0 = arith.constant 0 : i32
    %c0_i32_1 = arith.constant 0 : i32
    return %c0_i32, %c0_i32_0 : i32, i32
  }
  func.func @transform_1(%arg0: i32) -> (i32, i32, i32) {
    %c0_i32 = arith.constant 0 : i32
    %c0_i32_0 = arith.constant 0 : i32
    %c0_i32_1 = arith.constant 0 : i32
    return %arg0, %c0_i32, %c0_i32_0 : i32, i32, i32
  }
  func.func @transform_2(%arg0: i32) -> (i32, i32) {
    %c0_i32 = arith.constant 0 : i32
    %c0_i32_0 = arith.constant 0 : i32
    %c0_i32_1 = arith.constant 0 : i32
    return %c0_i32, %c0_i32_0 : i32, i32
  }
  func.func @transform_3(%arg0: i32) -> (i32, i32) {
    %c0_i32 = arith.constant 0 : i32
    %c0_i32_0 = arith.constant 0 : i32
    %c0_i32_1 = arith.constant 0 : i32
    return %c0_i32, %c0_i32_0 : i32, i32
  }
  func.func @transform_4(%arg0: i32) -> (i32, i32, i32) {
    %c0_i32 = arith.constant 0 : i32
    %c0_i32_0 = arith.constant 0 : i32
    %c0_i32_1 = arith.constant 0 : i32
    return %arg0, %c0_i32, %c0_i32_0 : i32, i32, i32
  }
}

module attributes {stable_mosaic.version = 11 : i64} {
  func.func @_global_field_kernel(%arg0: i32, %arg1: memref<64x32xbf16, #tpu.memory_space<vmem>>, %arg2: memref<32x32xbf16, #tpu.memory_space<vmem>>, %arg3: memref<1x32xf32, #tpu.memory_space<vmem>>, %arg4: memref<32x32xbf16, #tpu.memory_space<vmem>>, %arg5: memref<1x32xf32, #tpu.memory_space<vmem>>, %arg6: memref<64x32xbf16, #tpu.memory_space<vmem>>) attributes {dimension_semantics = [#tpu.dimension_semantics<parallel>], iteration_bounds = array<i64: 8>, scalar_prefetch = 0 : i64, scratch_operands = 0 : i64, tpu.core_type = #tpu.core_type<tc>, window_params = [{transform_indices = @transform_0, window_bounds = array<i64: 64, 32>}, {pipeline_mode = #tpu.pipeline_mode<synchronous>, transform_indices = @transform_1, window_bounds = array<i64: 32, 32>}, {pipeline_mode = #tpu.pipeline_mode<synchronous>, transform_indices = @transform_2, window_bounds = array<i64: 1, 32>}, {pipeline_mode = #tpu.pipeline_mode<synchronous>, transform_indices = @transform_3, window_bounds = array<i64: 32, 32>}, {pipeline_mode = #tpu.pipeline_mode<synchronous>, transform_indices = @transform_4, window_bounds = array<i64: 1, 32>}, {transform_indices = @transform_5, window_bounds = array<i64: 64, 32>}]} {
    %c0 = arith.constant 0 : index
    %c0_0 = arith.constant 0 : index
    %0 = vector.load %arg1[%c0, %c0_0] : memref<64x32xbf16, #tpu.memory_space<vmem>>, vector<64x32xbf16>
    %c0_1 = arith.constant 0 : index
    %c0_2 = arith.constant 0 : index
    %1 = vector.load %arg2[%c0_1, %c0_2] : memref<32x32xbf16, #tpu.memory_space<vmem>>, vector<32x32xbf16>
    %cst = arith.constant dense<0.000000e+00> : vector<64x32xf32>
    %2 = tpu.matmul %0, %1, %cst {dimension_numbers = #tpu.dot_dimension_numbers<[1], [0], [0], [1], [0, 0, 1, 1], [], []>} : vector<64x32xbf16>, vector<32x32xbf16>, vector<64x32xf32> -> vector<64x32xf32>
    %c0_3 = arith.constant 0 : index
    %c0_4 = arith.constant 0 : index
    %3 = vector.load %arg3[%c0_3, %c0_4] : memref<1x32xf32, #tpu.memory_space<vmem>>, vector<1x32xf32>
    %4 = vector.broadcast %3 : vector<1x32xf32> to vector<64x32xf32>
    %5 = arith.addf %2, %4 : vector<64x32xf32>
    %cst_5 = arith.constant 0.000000e+00 : f32
    %6 = vector.broadcast %cst_5 : f32 to vector<64x32xf32>
    %7 = arith.maximumf %5, %6 : vector<64x32xf32>
    %8 = arith.truncf %7 : vector<64x32xf32> to vector<64x32xbf16>
    %c0_6 = arith.constant 0 : index
    %c0_7 = arith.constant 0 : index
    %9 = vector.load %arg4[%c0_6, %c0_7] : memref<32x32xbf16, #tpu.memory_space<vmem>>, vector<32x32xbf16>
    %cst_8 = arith.constant dense<0.000000e+00> : vector<64x32xf32>
    %10 = tpu.matmul %8, %9, %cst_8 {dimension_numbers = #tpu.dot_dimension_numbers<[1], [0], [0], [1], [0, 0, 1, 1], [], []>} : vector<64x32xbf16>, vector<32x32xbf16>, vector<64x32xf32> -> vector<64x32xf32>
    %c0_9 = arith.constant 0 : index
    %c0_10 = arith.constant 0 : index
    %11 = vector.load %arg5[%c0_9, %c0_10] : memref<1x32xf32, #tpu.memory_space<vmem>>, vector<1x32xf32>
    %12 = vector.broadcast %11 : vector<1x32xf32> to vector<64x32xf32>
    %13 = arith.addf %10, %12 : vector<64x32xf32>
    %cst_11 = arith.constant 0.000000e+00 : f32
    %14 = vector.broadcast %cst_11 : f32 to vector<64x32xf32>
    %15 = arith.subf %14, %13 : vector<64x32xf32>
    %16 = math.exp %15 : vector<64x32xf32>
    %cst_12 = arith.constant 1.000000e+00 : f32
    %17 = vector.broadcast %cst_12 : f32 to vector<64x32xf32>
    %18 = arith.addf %17, %16 : vector<64x32xf32>
    %19 = tpu.reciprocal %18 {approx = true} : vector<64x32xf32> -> vector<64x32xf32>
    %20 = arith.extf %0 : vector<64x32xbf16> to vector<64x32xf32>
    %21 = arith.mulf %19, %20 : vector<64x32xf32>
    %22 = arith.addf %21, %20 : vector<64x32xf32>
    %23 = arith.truncf %22 : vector<64x32xf32> to vector<64x32xbf16>
    %c0_13 = arith.constant 0 : index
    %c0_14 = arith.constant 0 : index
    %24 = vector.load %arg6[%c0_13, %c0_14] : memref<64x32xbf16, #tpu.memory_space<vmem>>, vector<64x32xbf16>
    tpu.vector_store %arg6[%c0_13, %c0_14], %23 {strides = array<i32>} : memref<64x32xbf16, #tpu.memory_space<vmem>>, vector<64x32xbf16>,
    return
  }
  func.func @transform_0(%arg0: i32) -> (i32, i32) {
    %c0_i32 = arith.constant 0 : i32
    %c0_i32_0 = arith.constant 0 : i32
    return %arg0, %c0_i32 : i32, i32
  }
  func.func @transform_1(%arg0: i32) -> (i32, i32) {
    %c0_i32 = arith.constant 0 : i32
    %c0_i32_0 = arith.constant 0 : i32
    %c0_i32_1 = arith.constant 0 : i32
    return %c0_i32, %c0_i32_0 : i32, i32
  }
  func.func @transform_2(%arg0: i32) -> (i32, i32) {
    %c0_i32 = arith.constant 0 : i32
    %c0_i32_0 = arith.constant 0 : i32
    %c0_i32_1 = arith.constant 0 : i32
    return %c0_i32, %c0_i32_0 : i32, i32
  }
  func.func @transform_3(%arg0: i32) -> (i32, i32) {
    %c0_i32 = arith.constant 0 : i32
    %c0_i32_0 = arith.constant 0 : i32
    %c0_i32_1 = arith.constant 0 : i32
    return %c0_i32, %c0_i32_0 : i32, i32
  }
  func.func @transform_4(%arg0: i32) -> (i32, i32) {
    %c0_i32 = arith.constant 0 : i32
    %c0_i32_0 = arith.constant 0 : i32
    %c0_i32_1 = arith.constant 0 : i32
    return %c0_i32, %c0_i32_0 : i32, i32
  }
  func.func @transform_5(%arg0: i32) -> (i32, i32) {
    %c0_i32 = arith.constant 0 : i32
    %c0_i32_0 = arith.constant 0 : i32
    return %arg0, %c0_i32 : i32, i32
  }
}

module attributes {stable_mosaic.version = 11 : i64} {
  func.func @_short_field_kernel(%arg0: i32, %arg1: memref<1x18x18x32xbf16, #tpu.memory_space<vmem>>, %arg2: memref<9x32x32xbf16, #tpu.memory_space<vmem>>, %arg3: memref<1x32xf32, #tpu.memory_space<vmem>>, %arg4: memref<1x256x32xbf16, #tpu.memory_space<vmem>>) attributes {dimension_semantics = [#tpu.dimension_semantics<parallel>], iteration_bounds = array<i64: 2>, scalar_prefetch = 0 : i64, scratch_operands = 0 : i64, tpu.core_type = #tpu.core_type<tc>, window_params = [{transform_indices = @transform_0, window_bounds = array<i64: 1, 18, 18, 32>}, {pipeline_mode = #tpu.pipeline_mode<synchronous>, transform_indices = @transform_1, window_bounds = array<i64: 9, 32, 32>}, {pipeline_mode = #tpu.pipeline_mode<synchronous>, transform_indices = @transform_2, window_bounds = array<i64: 1, 32>}, {transform_indices = @transform_3, window_bounds = array<i64: 1, 256, 32>}]} {
    %cst = arith.constant 0.000000e+00 : f32
    %0 = vector.broadcast %cst : f32 to vector<256x32xf32>
    %c0 = arith.constant 0 : index
    %c0_0 = arith.constant 0 : index
    %c0_1 = arith.constant 0 : index
    %c0_2 = arith.constant 0 : index
    %1 = vector.load %arg1[%c0, %c0_0, %c0_1, %c0_2] : memref<1x18x18x32xbf16, #tpu.memory_space<vmem>>, vector<1x16x16x32xbf16>
    %2 = vector.shape_cast %1 : vector<1x16x16x32xbf16> to vector<16x16x32xbf16>
    %3 = vector.shape_cast %2 : vector<16x16x32xbf16> to vector<256x32xbf16>
    %c0_3 = arith.constant 0 : index
    %c0_4 = arith.constant 0 : index
    %c0_5 = arith.constant 0 : index
    %4 = vector.load %arg2[%c0_3, %c0_4, %c0_5] : memref<9x32x32xbf16, #tpu.memory_space<vmem>>, vector<1x32x32xbf16>
    %5 = vector.shape_cast %4 : vector<1x32x32xbf16> to vector<32x32xbf16>
    %cst_6 = arith.constant dense<0.000000e+00> : vector<256x32xf32>
    %6 = tpu.matmul %3, %5, %cst_6 {dimension_numbers = #tpu.dot_dimension_numbers<[1], [0], [0], [1], [0, 0, 1, 1], [], []>} : vector<256x32xbf16>, vector<32x32xbf16>, vector<256x32xf32> -> vector<256x32xf32>
    %7 = arith.addf %0, %6 : vector<256x32xf32>
    %c0_7 = arith.constant 0 : index
    %c0_8 = arith.constant 0 : index
    %c1 = arith.constant 1 : index
    %c0_9 = arith.constant 0 : index
    %8 = vector.load %arg1[%c0_7, %c0_8, %c1, %c0_9] : memref<1x18x18x32xbf16, #tpu.memory_space<vmem>>, vector<1x16x16x32xbf16>
    %9 = vector.shape_cast %8 : vector<1x16x16x32xbf16> to vector<16x16x32xbf16>
    %10 = vector.shape_cast %9 : vector<16x16x32xbf16> to vector<256x32xbf16>
    %c1_10 = arith.constant 1 : index
    %c0_11 = arith.constant 0 : index
    %c0_12 = arith.constant 0 : index
    %11 = vector.load %arg2[%c1_10, %c0_11, %c0_12] : memref<9x32x32xbf16, #tpu.memory_space<vmem>>, vector<1x32x32xbf16>
    %12 = vector.shape_cast %11 : vector<1x32x32xbf16> to vector<32x32xbf16>
    %cst_13 = arith.constant dense<0.000000e+00> : vector<256x32xf32>
    %13 = tpu.matmul %10, %12, %cst_13 {dimension_numbers = #tpu.dot_dimension_numbers<[1], [0], [0], [1], [0, 0, 1, 1], [], []>} : vector<256x32xbf16>, vector<32x32xbf16>, vector<256x32xf32> -> vector<256x32xf32>
    %14 = arith.addf %7, %13 : vector<256x32xf32>
    %c0_14 = arith.constant 0 : index
    %c0_15 = arith.constant 0 : index
    %c2 = arith.constant 2 : index
    %c0_16 = arith.constant 0 : index
    %15 = vector.load %arg1[%c0_14, %c0_15, %c2, %c0_16] : memref<1x18x18x32xbf16, #tpu.memory_space<vmem>>, vector<1x16x16x32xbf16>
    %16 = vector.shape_cast %15 : vector<1x16x16x32xbf16> to vector<16x16x32xbf16>
    %17 = vector.shape_cast %16 : vector<16x16x32xbf16> to vector<256x32xbf16>
    %c2_17 = arith.constant 2 : index
    %c0_18 = arith.constant 0 : index
    %c0_19 = arith.constant 0 : index
    %18 = vector.load %arg2[%c2_17, %c0_18, %c0_19] : memref<9x32x32xbf16, #tpu.memory_space<vmem>>, vector<1x32x32xbf16>
    %19 = vector.shape_cast %18 : vector<1x32x32xbf16> to vector<32x32xbf16>
    %cst_20 = arith.constant dense<0.000000e+00> : vector<256x32xf32>
    %20 = tpu.matmul %17, %19, %cst_20 {dimension_numbers = #tpu.dot_dimension_numbers<[1], [0], [0], [1], [0, 0, 1, 1], [], []>} : vector<256x32xbf16>, vector<32x32xbf16>, vector<256x32xf32> -> vector<256x32xf32>
    %21 = arith.addf %14, %20 : vector<256x32xf32>
    %c0_21 = arith.constant 0 : index
    %c1_22 = arith.constant 1 : index
    %c0_23 = arith.constant 0 : index
    %c0_24 = arith.constant 0 : index
    %22 = vector.load %arg1[%c0_21, %c1_22, %c0_23, %c0_24] : memref<1x18x18x32xbf16, #tpu.memory_space<vmem>>, vector<1x16x16x32xbf16>
    %23 = vector.shape_cast %22 : vector<1x16x16x32xbf16> to vector<16x16x32xbf16>
    %24 = vector.shape_cast %23 : vector<16x16x32xbf16> to vector<256x32xbf16>
    %c3 = arith.constant 3 : index
    %c0_25 = arith.constant 0 : index
    %c0_26 = arith.constant 0 : index
    %25 = vector.load %arg2[%c3, %c0_25, %c0_26] : memref<9x32x32xbf16, #tpu.memory_space<vmem>>, vector<1x32x32xbf16>
    %26 = vector.shape_cast %25 : vector<1x32x32xbf16> to vector<32x32xbf16>
    %cst_27 = arith.constant dense<0.000000e+00> : vector<256x32xf32>
    %27 = tpu.matmul %24, %26, %cst_27 {dimension_numbers = #tpu.dot_dimension_numbers<[1], [0], [0], [1], [0, 0, 1, 1], [], []>} : vector<256x32xbf16>, vector<32x32xbf16>, vector<256x32xf32> -> vector<256x32xf32>
    %28 = arith.addf %21, %27 : vector<256x32xf32>
    %c0_28 = arith.constant 0 : index
    %c1_29 = arith.constant 1 : index
    %c1_30 = arith.constant 1 : index
    %c0_31 = arith.constant 0 : index
    %29 = vector.load %arg1[%c0_28, %c1_29, %c1_30, %c0_31] : memref<1x18x18x32xbf16, #tpu.memory_space<vmem>>, vector<1x16x16x32xbf16>
    %30 = vector.shape_cast %29 : vector<1x16x16x32xbf16> to vector<16x16x32xbf16>
    %31 = vector.shape_cast %30 : vector<16x16x32xbf16> to vector<256x32xbf16>
    %c4 = arith.constant 4 : index
    %c0_32 = arith.constant 0 : index
    %c0_33 = arith.constant 0 : index
    %32 = vector.load %arg2[%c4, %c0_32, %c0_33] : memref<9x32x32xbf16, #tpu.memory_space<vmem>>, vector<1x32x32xbf16>
    %33 = vector.shape_cast %32 : vector<1x32x32xbf16> to vector<32x32xbf16>
    %cst_34 = arith.constant dense<0.000000e+00> : vector<256x32xf32>
    %34 = tpu.matmul %31, %33, %cst_34 {dimension_numbers = #tpu.dot_dimension_numbers<[1], [0], [0], [1], [0, 0, 1, 1], [], []>} : vector<256x32xbf16>, vector<32x32xbf16>, vector<256x32xf32> -> vector<256x32xf32>
    %35 = arith.addf %28, %34 : vector<256x32xf32>
    %c0_35 = arith.constant 0 : index
    %c1_36 = arith.constant 1 : index
    %c2_37 = arith.constant 2 : index
    %c0_38 = arith.constant 0 : index
    %36 = vector.load %arg1[%c0_35, %c1_36, %c2_37, %c0_38] : memref<1x18x18x32xbf16, #tpu.memory_space<vmem>>, vector<1x16x16x32xbf16>
    %37 = vector.shape_cast %36 : vector<1x16x16x32xbf16> to vector<16x16x32xbf16>
    %38 = vector.shape_cast %37 : vector<16x16x32xbf16> to vector<256x32xbf16>
    %c5 = arith.constant 5 : index
    %c0_39 = arith.constant 0 : index
    %c0_40 = arith.constant 0 : index
    %39 = vector.load %arg2[%c5, %c0_39, %c0_40] : memref<9x32x32xbf16, #tpu.memory_space<vmem>>, vector<1x32x32xbf16>
    %40 = vector.shape_cast %39 : vector<1x32x32xbf16> to vector<32x32xbf16>
    %cst_41 = arith.constant dense<0.000000e+00> : vector<256x32xf32>
    %41 = tpu.matmul %38, %40, %cst_41 {dimension_numbers = #tpu.dot_dimension_numbers<[1], [0], [0], [1], [0, 0, 1, 1], [], []>} : vector<256x32xbf16>, vector<32x32xbf16>, vector<256x32xf32> -> vector<256x32xf32>
    %42 = arith.addf %35, %41 : vector<256x32xf32>
    %c0_42 = arith.constant 0 : index
    %c2_43 = arith.constant 2 : index
    %c0_44 = arith.constant 0 : index
    %c0_45 = arith.constant 0 : index
    %43 = vector.load %arg1[%c0_42, %c2_43, %c0_44, %c0_45] : memref<1x18x18x32xbf16, #tpu.memory_space<vmem>>, vector<1x16x16x32xbf16>
    %44 = vector.shape_cast %43 : vector<1x16x16x32xbf16> to vector<16x16x32xbf16>
    %45 = vector.shape_cast %44 : vector<16x16x32xbf16> to vector<256x32xbf16>
    %c6 = arith.constant 6 : index
    %c0_46 = arith.constant 0 : index
    %c0_47 = arith.constant 0 : index
    %46 = vector.load %arg2[%c6, %c0_46, %c0_47] : memref<9x32x32xbf16, #tpu.memory_space<vmem>>, vector<1x32x32xbf16>
    %47 = vector.shape_cast %46 : vector<1x32x32xbf16> to vector<32x32xbf16>
    %cst_48 = arith.constant dense<0.000000e+00> : vector<256x32xf32>
    %48 = tpu.matmul %45, %47, %cst_48 {dimension_numbers = #tpu.dot_dimension_numbers<[1], [0], [0], [1], [0, 0, 1, 1], [], []>} : vector<256x32xbf16>, vector<32x32xbf16>, vector<256x32xf32> -> vector<256x32xf32>
    %49 = arith.addf %42, %48 : vector<256x32xf32>
    %c0_49 = arith.constant 0 : index
    %c2_50 = arith.constant 2 : index
    %c1_51 = arith.constant 1 : index
    %c0_52 = arith.constant 0 : index
    %50 = vector.load %arg1[%c0_49, %c2_50, %c1_51, %c0_52] : memref<1x18x18x32xbf16, #tpu.memory_space<vmem>>, vector<1x16x16x32xbf16>
    %51 = vector.shape_cast %50 : vector<1x16x16x32xbf16> to vector<16x16x32xbf16>
    %52 = vector.shape_cast %51 : vector<16x16x32xbf16> to vector<256x32xbf16>
    %c7 = arith.constant 7 : index
    %c0_53 = arith.constant 0 : index
    %c0_54 = arith.constant 0 : index
    %53 = vector.load %arg2[%c7, %c0_53, %c0_54] : memref<9x32x32xbf16, #tpu.memory_space<vmem>>, vector<1x32x32xbf16>
    %54 = vector.shape_cast %53 : vector<1x32x32xbf16> to vector<32x32xbf16>
    %cst_55 = arith.constant dense<0.000000e+00> : vector<256x32xf32>
    %55 = tpu.matmul %52, %54, %cst_55 {dimension_numbers = #tpu.dot_dimension_numbers<[1], [0], [0], [1], [0, 0, 1, 1], [], []>} : vector<256x32xbf16>, vector<32x32xbf16>, vector<256x32xf32> -> vector<256x32xf32>
    %56 = arith.addf %49, %55 : vector<256x32xf32>
    %c0_56 = arith.constant 0 : index
    %c2_57 = arith.constant 2 : index
    %c2_58 = arith.constant 2 : index
    %c0_59 = arith.constant 0 : index
    %57 = vector.load %arg1[%c0_56, %c2_57, %c2_58, %c0_59] : memref<1x18x18x32xbf16, #tpu.memory_space<vmem>>, vector<1x16x16x32xbf16>
    %58 = vector.shape_cast %57 : vector<1x16x16x32xbf16> to vector<16x16x32xbf16>
    %59 = vector.shape_cast %58 : vector<16x16x32xbf16> to vector<256x32xbf16>
    %c8 = arith.constant 8 : index
    %c0_60 = arith.constant 0 : index
    %c0_61 = arith.constant 0 : index
    %60 = vector.load %arg2[%c8, %c0_60, %c0_61] : memref<9x32x32xbf16, #tpu.memory_space<vmem>>, vector<1x32x32xbf16>
    %61 = vector.shape_cast %60 : vector<1x32x32xbf16> to vector<32x32xbf16>
    %cst_62 = arith.constant dense<0.000000e+00> : vector<256x32xf32>
    %62 = tpu.matmul %59, %61, %cst_62 {dimension_numbers = #tpu.dot_dimension_numbers<[1], [0], [0], [1], [0, 0, 1, 1], [], []>} : vector<256x32xbf16>, vector<32x32xbf16>, vector<256x32xf32> -> vector<256x32xf32>
    %63 = arith.addf %56, %62 : vector<256x32xf32>
    %c0_63 = arith.constant 0 : index
    %c0_64 = arith.constant 0 : index
    %64 = vector.load %arg3[%c0_63, %c0_64] : memref<1x32xf32, #tpu.memory_space<vmem>>, vector<1x32xf32>
    %65 = vector.broadcast %64 : vector<1x32xf32> to vector<256x32xf32>
    %66 = arith.addf %63, %65 : vector<256x32xf32>
    %cst_65 = arith.constant 0.000000e+00 : f32
    %67 = vector.broadcast %cst_65 : f32 to vector<256x32xf32>
    %68 = arith.subf %67, %66 : vector<256x32xf32>
    %69 = math.exp %68 : vector<256x32xf32>
    %cst_66 = arith.constant 1.000000e+00 : f32
    %70 = vector.broadcast %cst_66 : f32 to vector<256x32xf32>
    %71 = arith.addf %70, %69 : vector<256x32xf32>
    %72 = tpu.reciprocal %71 {approx = true} : vector<256x32xf32> -> vector<256x32xf32>
    %c0_67 = arith.constant 0 : index
    %c1_68 = arith.constant 1 : index
    %c1_69 = arith.constant 1 : index
    %c0_70 = arith.constant 0 : index
    %73 = vector.load %arg1[%c0_67, %c1_68, %c1_69, %c0_70] : memref<1x18x18x32xbf16, #tpu.memory_space<vmem>>, vector<1x16x16x32xbf16>
    %74 = vector.shape_cast %73 : vector<1x16x16x32xbf16> to vector<16x16x32xbf16>
    %75 = vector.shape_cast %74 : vector<16x16x32xbf16> to vector<256x32xbf16>
    %76 = arith.extf %75 : vector<256x32xbf16> to vector<256x32xf32>
    %77 = arith.mulf %72, %76 : vector<256x32xf32>
    %78 = arith.addf %77, %76 : vector<256x32xf32>
    %79 = arith.truncf %78 : vector<256x32xf32> to vector<256x32xbf16>
    %c0_71 = arith.constant 0 : index
    %c0_72 = arith.constant 0 : index
    %c0_73 = arith.constant 0 : index
    %80 = vector.load %arg4[%c0_71, %c0_72, %c0_73] : memref<1x256x32xbf16, #tpu.memory_space<vmem>>, vector<1x256x32xbf16>
    %81 = vector.shape_cast %80 : vector<1x256x32xbf16> to vector<256x32xbf16>
    %82 = vector.shape_cast %79 : vector<256x32xbf16> to vector<1x256x32xbf16>
    tpu.vector_store %arg4[%c0_71, %c0_72, %c0_73], %82 {strides = array<i32>} : memref<1x256x32xbf16, #tpu.memory_space<vmem>>, vector<1x256x32xbf16>,
    return
  }
  func.func @transform_0(%arg0: i32) -> (i32, i32, i32, i32) {
    %c0_i32 = arith.constant 0 : i32
    %c0_i32_0 = arith.constant 0 : i32
    %c0_i32_1 = arith.constant 0 : i32
    %c0_i32_2 = arith.constant 0 : i32
    return %arg0, %c0_i32, %c0_i32_0, %c0_i32_1 : i32, i32, i32, i32
  }
  func.func @transform_1(%arg0: i32) -> (i32, i32, i32) {
    %c0_i32 = arith.constant 0 : i32
    %c0_i32_0 = arith.constant 0 : i32
    %c0_i32_1 = arith.constant 0 : i32
    %c0_i32_2 = arith.constant 0 : i32
    return %c0_i32, %c0_i32_0, %c0_i32_1 : i32, i32, i32
  }
  func.func @transform_2(%arg0: i32) -> (i32, i32) {
    %c0_i32 = arith.constant 0 : i32
    %c0_i32_0 = arith.constant 0 : i32
    %c0_i32_1 = arith.constant 0 : i32
    return %c0_i32, %c0_i32_0 : i32, i32
  }
  func.func @transform_3(%arg0: i32) -> (i32, i32, i32) {
    %c0_i32 = arith.constant 0 : i32
    %c0_i32_0 = arith.constant 0 : i32
    %c0_i32_1 = arith.constant 0 : i32
    return %arg0, %c0_i32, %c0_i32_0 : i32, i32, i32
  }
}

module attributes {stable_mosaic.version = 11 : i64} {
  func.func @_merge_kernel(%arg0: i32, %arg1: memref<64x32xbf16, #tpu.memory_space<vmem>>, %arg2: memref<64x32xbf16, #tpu.memory_space<vmem>>, %arg3: memref<64x32xbf16, #tpu.memory_space<vmem>>, %arg4: memref<64x32xbf16, #tpu.memory_space<vmem>>, %arg5: memref<128x32xbf16, #tpu.memory_space<vmem>>, %arg6: memref<1x32xf32, #tpu.memory_space<vmem>>, %arg7: memref<64x32xf32, #tpu.memory_space<vmem>>) attributes {dimension_semantics = [#tpu.dimension_semantics<parallel>], iteration_bounds = array<i64: 8>, scalar_prefetch = 0 : i64, scratch_operands = 0 : i64, tpu.core_type = #tpu.core_type<tc>, window_params = [{transform_indices = @transform_0, window_bounds = array<i64: 64, 32>}, {transform_indices = @transform_1, window_bounds = array<i64: 64, 32>}, {transform_indices = @transform_2, window_bounds = array<i64: 64, 32>}, {transform_indices = @transform_3, window_bounds = array<i64: 64, 32>}, {pipeline_mode = #tpu.pipeline_mode<synchronous>, transform_indices = @transform_4, window_bounds = array<i64: 128, 32>}, {pipeline_mode = #tpu.pipeline_mode<synchronous>, transform_indices = @transform_5, window_bounds = array<i64: 1, 32>}, {transform_indices = @transform_6, window_bounds = array<i64: 64, 32>}]} {
    %c0 = arith.constant 0 : index
    %c0_0 = arith.constant 0 : index
    %0 = vector.load %arg1[%c0, %c0_0] : memref<64x32xbf16, #tpu.memory_space<vmem>>, vector<64x32xbf16>
    %c0_1 = arith.constant 0 : index
    %c0_2 = arith.constant 0 : index
    %1 = vector.load %arg2[%c0_1, %c0_2] : memref<64x32xbf16, #tpu.memory_space<vmem>>, vector<64x32xbf16>
    %c0_3 = arith.constant 0 : index
    %c0_4 = arith.constant 0 : index
    %2 = vector.load %arg3[%c0_3, %c0_4] : memref<64x32xbf16, #tpu.memory_space<vmem>>, vector<64x32xbf16>
    %c0_5 = arith.constant 0 : index
    %c0_6 = arith.constant 0 : index
    %3 = vector.load %arg4[%c0_5, %c0_6] : memref<64x32xbf16, #tpu.memory_space<vmem>>, vector<64x32xbf16>
    %4 = tpu.concatenate %0, %1, %2, %3 in 1 : vector<64x32xbf16>, vector<64x32xbf16>, vector<64x32xbf16>, vector<64x32xbf16> -> vector<64x128xbf16>
    %c0_7 = arith.constant 0 : index
    %c0_8 = arith.constant 0 : index
    %5 = vector.load %arg5[%c0_7, %c0_8] : memref<128x32xbf16, #tpu.memory_space<vmem>>, vector<128x32xbf16>
    %cst = arith.constant dense<0.000000e+00> : vector<64x32xf32>
    %6 = tpu.matmul %4, %5, %cst {dimension_numbers = #tpu.dot_dimension_numbers<[1], [0], [0], [1], [0, 0, 1, 1], [], []>} : vector<64x128xbf16>, vector<128x32xbf16>, vector<64x32xf32> -> vector<64x32xf32>
    %c0_9 = arith.constant 0 : index
    %c0_10 = arith.constant 0 : index
    %7 = vector.load %arg6[%c0_9, %c0_10] : memref<1x32xf32, #tpu.memory_space<vmem>>, vector<1x32xf32>
    %8 = vector.broadcast %7 : vector<1x32xf32> to vector<64x32xf32>
    %9 = arith.addf %6, %8 : vector<64x32xf32>
    %cst_11 = arith.constant 0.000000e+00 : f32
    %10 = vector.broadcast %cst_11 : f32 to vector<64x32xf32>
    %11 = arith.maximumf %9, %10 : vector<64x32xf32>
    %c0_12 = arith.constant 0 : index
    %c0_13 = arith.constant 0 : index
    %12 = vector.load %arg7[%c0_12, %c0_13] : memref<64x32xf32, #tpu.memory_space<vmem>>, vector<64x32xf32>
    tpu.vector_store %arg7[%c0_12, %c0_13], %11 {strides = array<i32>} : memref<64x32xf32, #tpu.memory_space<vmem>>, vector<64x32xf32>,
    return
  }
  func.func @transform_0(%arg0: i32) -> (i32, i32) {
    %c0_i32 = arith.constant 0 : i32
    %c0_i32_0 = arith.constant 0 : i32
    return %arg0, %c0_i32 : i32, i32
  }
  func.func @transform_1(%arg0: i32) -> (i32, i32) {
    %c0_i32 = arith.constant 0 : i32
    %c0_i32_0 = arith.constant 0 : i32
    return %arg0, %c0_i32 : i32, i32
  }
  func.func @transform_2(%arg0: i32) -> (i32, i32) {
    %c0_i32 = arith.constant 0 : i32
    %c0_i32_0 = arith.constant 0 : i32
    return %arg0, %c0_i32 : i32, i32
  }
  func.func @transform_3(%arg0: i32) -> (i32, i32) {
    %c0_i32 = arith.constant 0 : i32
    %c0_i32_0 = arith.constant 0 : i32
    return %arg0, %c0_i32 : i32, i32
  }
  func.func @transform_4(%arg0: i32) -> (i32, i32) {
    %c0_i32 = arith.constant 0 : i32
    %c0_i32_0 = arith.constant 0 : i32
    %c0_i32_1 = arith.constant 0 : i32
    return %c0_i32, %c0_i32_0 : i32, i32
  }
  func.func @transform_5(%arg0: i32) -> (i32, i32) {
    %c0_i32 = arith.constant 0 : i32
    %c0_i32_0 = arith.constant 0 : i32
    %c0_i32_1 = arith.constant 0 : i32
    return %c0_i32, %c0_i32_0 : i32, i32
  }
  func.func @transform_6(%arg0: i32) -> (i32, i32) {
    %c0_i32 = arith.constant 0 : i32
    %c0_i32_0 = arith.constant 0 : i32
    return %arg0, %c0_i32 : i32, i32
  }
}

</mosaic_0001>

<llo_original>
// kernel: tile.13
$region0: #{tile.13}
  #allocation0 [shape = 's32[1]{0}', space=sflag, size = 0x4, scoped, tag = 'scoped memory for tile.13']
  %s0 = inlined_call_operand.vmem [shape: f32[32], index: 0, kind: input, shape index: {}]
  %s1 = inlined_call_operand.vmem [shape: f32[16,32], index: 1, kind: output, shape index: {}]
  // Predicated region
  $region2: #{tile.13} parent=0 // pred_check
    _
  $region3: #{tile.13} parent=0 // pred_check_branch
    %3 = sbr.rel (0) target = $region5
  $region4: #{tile.13} parent=0 // pred_region
    _
  $region5: #{tile.13} parent=0 // pred_fallthru
    _
  %v4 = vld [vmem:[%s0] ss:$0 sm:$0xff]
  %5 = vst [vmem:[%s1] sm:$0xff] %v4
  %s6 = scalar_lea.vmem %s1, 8
  %7 = vst [vmem:[%s6] sm:$0xff] %v4

// kernel: multi_field_at_conv2d.10
$region0: #{multi_field_at_conv2d.10}
  #allocation0 [shape = 'u32[]', space=smem, size = 0x4, offset = 0x4, fixed_abs, tag = 'smem constant byte address 0x4 - core index']
  #allocation1 [shape = 'u32[144,128]{1,0:T(1,128)}', space=vmem, size = 0x12000, scoped, tag = 'internal scratch']
  %s0 = inlined_call_operand.hbm [shape: bf16[16,4], index: 0, kind: input, shape index: {}]
  %s1 = inlined_call_operand.hbm [shape: bf16[2,4,128], index: 1, kind: input, shape index: {}]
  %s2 = inlined_call_operand.hbm [shape: bf16[2,16,128], index: 2, kind: output, shape index: {}]
  %s3 = sld [smem:[#allocation0]]
  $region49: #{multi_field_at_conv2d.10} parent=0
    _
  %s5 = ssub.s32 1, %s3
  %s6 = scalar_select 0, %s5, %s3
  $region1: #{multi_field_at_conv2d.10} parent=0
    #allocation2 [shape = 'u8[4096]{0}', space=vmem, size = 0x1000, scoped, tag = 'input window, operand 0, single buffered']
    #allocation3 [shape = 's32[2]{0}', space=sflag, size = 0x8, scoped, tag = 'scoped memory for multi_field_at_conv2d.10']
    #allocation4 [shape = 's32[2]{0}', space=sflag, size = 0x8, scoped, tag = 'scoped memory for multi_field_at_conv2d.10']
    #allocation5 [shape = 'u8[2048]{0}', space=vmem, size = 0x800, scoped, tag = 'input window, operand 1']
    #allocation6 [shape = 's32[2]{0}', space=sflag, size = 0x8, scoped, tag = 'scoped memory for multi_field_at_conv2d.10']
    #allocation7 [shape = 'u8[8192]{0}', space=vmem, size = 0x2000, scoped, tag = 'output window, operand 0']
    %7 = vsyncpa [#allocation3], 0
    %8 = vsyncpa [#allocation6], 0
    %s9 = scalar_lea.sflag [#allocation6], 1
    %10 = vsyncpa %s9, 0
    %11 = vsyncpa [#allocation4], 0
    %s12 = scalar_lea.sflag [#allocation4], 1
    %13 = vsyncpa %s12, 0
    loop: start=0, step=1, limit=4
    $region2: #{multi_field_at_conv2d.10} parent=1 // loop_pre_header
      _
    $region3: #{multi_field_at_conv2d.10} parent=1 // loop_header
      %s15 = sphi 0, %s19
      %p16 = scmp.ge.s32.totalorder %s15, 4
      %s23 = sphi 0, %s23
      %s25 = sphi 0, %s23
      %s26 = sphi 0, %s25
      %s40 = sphi 0, %s26
      %s46 = sphi 0, %s48
      %s49 = sphi 0, %s46
      %s50 = sphi 0, %s49
      %s66 = sphi 0, %s50
      %s72 = sphi 0, %s74
      %s75 = sphi 0, %s72
      %s76 = sphi 0, %s75
      %s92 = sphi 0, %s76
    $region4: #{multi_field_at_conv2d.10} parent=1 // loop_header_branch
      %18 = sbr.rel (%p16) target = $region8
    $region5: #{multi_field_at_conv2d.10} parent=1 // loop_body
      %s20 = ssub.s32 %s15, 1
      %s21 = ssub.s32 %s15, 2
      %s22 = sadd.s32 %s15, 1
      %s24 = sadd.s32 %s23, 1
      %p27 = scmp.eq.s32.totalorder %s15, 1
      %p28 = scmp.ne.s32.totalorder %s23, %s25
      %p29 = scmp.eq.s32.totalorder %s15, 0
      %p30 = por %p28, %p29
      %p31 = scmp.ne.s32.totalorder %s23, %s25
      %p32 = scmp.eq.s32.totalorder %s20, 1
      %p33 = por %p31, %p32
      %p34 = scmp.ne.s32.totalorder %s25, %s26
      %p35 = scmp.eq.s32.totalorder %s20, 0
      %p36 = por %p34, %p35
      %p37 = scmp.ne.s32.totalorder %s25, %s26
      %p38 = scmp.eq.s32.totalorder %s21, 1
      %p39 = por %p37, %p38
      %p41 = scmp.ne.s32.totalorder %s26, %s40
      %p42 = scmp.eq.s32.totalorder %s21, 0
      %p43 = por %p41, %p42
      %s44 = ssub.s32 %s15, %s22
      %p45 = scmp.eq.s32.totalorder %s44, 0
      %s47 = sadd.s32 %s46, 1
      %s48 = scalar_select %p45, %s46, %s47
      %p51 = pneg %p45
      %p52 = scmp.eq.s32.totalorder %s15, 1
      %p53 = por %p51, %p52
      %p54 = scmp.ne.s32.totalorder %s46, %s49
      %p55 = scmp.eq.s32.totalorder %s15, 0
      %p56 = por %p54, %p55
      %p57 = scmp.ne.s32.totalorder %s46, %s49
      %p58 = scmp.eq.s32.totalorder %s20, 1
      %p59 = por %p57, %p58
      %p60 = scmp.ne.s32.totalorder %s49, %s50
      %p61 = scmp.eq.s32.totalorder %s20, 0
      %p62 = por %p60, %p61
      %p63 = scmp.ne.s32.totalorder %s49, %s50
      %p64 = scmp.eq.s32.totalorder %s21, 1
      %p65 = por %p63, %p64
      %p67 = scmp.ne.s32.totalorder %s50, %s66
      %p68 = scmp.eq.s32.totalorder %s21, 0
      %p69 = por %p67, %p68
      %s70 = ssub.s32 %s15, %s22
      %p71 = scmp.eq.s32.totalorder %s70, 0
      %s73 = sadd.s32 %s72, 1
      %s74 = scalar_select %p71, %s72, %s73
      %p77 = pneg %p71
      %p78 = scmp.eq.s32.totalorder %s15, 1
      %p79 = por %p77, %p78
      %p80 = scmp.ne.s32.totalorder %s72, %s75
      %p81 = scmp.eq.s32.totalorder %s15, 0
      %p82 = por %p80, %p81
      %p83 = scmp.ne.s32.totalorder %s72, %s75
      %p84 = scmp.eq.s32.totalorder %s20, 1
      %p85 = por %p83, %p84
      %p86 = scmp.ne.s32.totalorder %s75, %s76
      %p87 = scmp.eq.s32.totalorder %s20, 0
      %p88 = por %p86, %p87
      %p89 = scmp.ne.s32.totalorder %s75, %s76
      %p90 = scmp.eq.s32.totalorder %s21, 1
      %p91 = por %p89, %p90
      %p93 = scmp.ne.s32.totalorder %s76, %s92
      %p94 = scmp.eq.s32.totalorder %s21, 0
      %p95 = por %p93, %p94
      %p96 = scmp.le.s32.totalorder 1, %s15
      %p97 = scmp.lt.s32.totalorder %s15, 3
      %p98 = pnand %p96, %p97
      %p99 = pneg %p98
      // Predicated region
      $region9: #{multi_field_at_conv2d.10} parent=5 // pred_check
        _
      $region10: #{multi_field_at_conv2d.10} parent=5 // pred_check_branch
        %101 = sbr.rel (%p98) target = $region12
      $region11: #{multi_field_at_conv2d.10} parent=5 // pred_region
        %s102 = ssub.s32 %s15, 1
        // Predicated region
        $region13: #{multi_field_at_conv2d.10} parent=11 // pred_check
          %p103 = pneg %p36
        $region14: #{multi_field_at_conv2d.10} parent=11 // pred_check_branch
          %105 = sbr.rel (%p103) target = $region16
        $region15: #{multi_field_at_conv2d.10} parent=11 // pred_region
          %s107 = ssub.s32 128, 128
          %108 = vsyncadd [#allocation3], %s107
          %s109 = sshll.u32 [#allocation2], 4
          %s110 = int_to_ptr.vmem [resolvable:$true] %s109
          %115 = dma.hbm_to_vmem [thread:$0]  %s0, 128, %s110, [#allocation3], 64, 64, 4
        $region16: #{multi_field_at_conv2d.10} parent=11 // pred_fallthru
          _
      $region12: #{multi_field_at_conv2d.10} parent=5 // pred_fallthru
        _
      %p116 = scmp.lt.s32.totalorder %s15, 2
      // Predicated region
      $region17: #{multi_field_at_conv2d.10} parent=5 // pred_check
        %p117 = pneg %p116
      $region18: #{multi_field_at_conv2d.10} parent=5 // pred_check_branch
        %119 = sbr.rel (%p117) target = $region20
      $region19: #{multi_field_at_conv2d.10} parent=5 // pred_region
        // Predicated region
        $region21: #{multi_field_at_conv2d.10} parent=19 // pred_check
          %p120 = pneg %p56
        $region22: #{multi_field_at_conv2d.10} parent=19 // pred_check_branch
          %122 = sbr.rel (%p120) target = $region24
        $region23: #{multi_field_at_conv2d.10} parent=19 // pred_region
          %s123 = sand.u32 %s46, 1
          %s124 = scalar_lea.sflag [#allocation6], %s123
          %s125 = sand.u32 %s46, 1
          %s126 = smul.addr %s125, 2
          %s127 = scalar_lea.vmem [#allocation5], %s126
          %s129 = ssub.s32 32, 32
          %130 = vsyncadd %s124, %s129
          %s131 = smul.addr %s15, 32
          %s132 = scalar_lea.hbm %s1, %s131
          %s134 = sshll.u32 %s127, 4
          %s135 = int_to_ptr.vmem [resolvable:$true] %s134
          %137 = dma.hbm_to_vmem [thread:$0]  %s132, 32, %s135, %s124
        $region24: #{multi_field_at_conv2d.10} parent=19 // pred_fallthru
          _
      $region20: #{multi_field_at_conv2d.10} parent=5 // pred_fallthru
        _
      %p138 = scmp.le.s32.totalorder 1, %s15
      %p139 = scmp.lt.s32.totalorder %s15, 3
      %p140 = pnand %p138, %p139
      %p141 = pneg %p140
      // Predicated region
      $region25: #{multi_field_at_conv2d.10} parent=5 // pred_check
        _
      $region26: #{multi_field_at_conv2d.10} parent=5 // pred_check_branch
        %143 = sbr.rel (%p140) target = $region28
      $region27: #{multi_field_at_conv2d.10} parent=5 // pred_region
        %s144 = ssub.s32 %s15, 1
        // Predicated region
        $region29: #{multi_field_at_conv2d.10} parent=27 // pred_check
          %p145 = pneg %p36
        $region30: #{multi_field_at_conv2d.10} parent=27 // pred_check_branch
          %147 = sbr.rel (%p145) target = $region32
        $region31: #{multi_field_at_conv2d.10} parent=27 // pred_region
          %148 = dma.done [#allocation3], 128
        $region32: #{multi_field_at_conv2d.10} parent=27 // pred_fallthru
          _
        %s149 = sand.u32 %s49, 1
        %s150 = scalar_lea.sflag [#allocation6], %s149
        %s151 = sand.u32 %s49, 1
        %s152 = smul.addr %s151, 2
        %s153 = scalar_lea.vmem [#allocation5], %s152
        // Predicated region
        $region33: #{multi_field_at_conv2d.10} parent=27 // pred_check
          %p154 = pneg %p62
        $region34: #{multi_field_at_conv2d.10} parent=27 // pred_check_branch
          %156 = sbr.rel (%p154) target = $region36
        $region35: #{multi_field_at_conv2d.10} parent=27 // pred_region
          %157 = dma.done %s150, 32
        $region36: #{multi_field_at_conv2d.10} parent=27 // pred_fallthru
          _
        %p158 = pneg %p36
        %p159 = pneg %p33
        %s160 = sand.u32 %s49, 1
        %s161 = scalar_lea.sflag [#allocation6], %s160
        %s162 = sand.u32 %s49, 1
        %s163 = smul.addr %s162, 2
        %s164 = scalar_lea.vmem [#allocation5], %s163
        %p165 = pneg %p62
        %p166 = pneg %p59
        %p167 = pneg %p88
        %p168 = pneg %p85
        %s169 = sand.u32 %s75, 1
        %s170 = scalar_lea.sflag [#allocation4], %s169
        %s171 = sand.u32 %s75, 1
        %s172 = smul.addr %s171, 8
        %s173 = scalar_lea.vmem [#allocation7], %s172
        %v175 = vld [vmem:[#allocation2] sm:$0xf]
        %v176 = vld [vmem:[#allocation2 + $0x4] sm:$0xf]
        %v177 = vld [vmem:[%s153] sm:$0x3]
        %v180 = vunpack.c.l.b16 %v175
        %v181 = vunpack.c.l.b16 %v176
        %v182 = vpack.c.b16 %v181, %v180
        %vm183 = vcmask 31744
        %v185 = vsel %vm183, %v182, 0
        %vm187 = vcmask 1041408
        %v189 = vsel %vm187, %v177, 0
        %191 = vmatprep.subr.bf16.mxu0 0
        %192 = vmatpush1.bf16.msra.mxu0 %v189
        %193 = vmatprep.subr.bf16.mxu0 0
        %194 = vmatpush1.bf16.msra.mxu0 0
        %195 = vmatprep.subr.bf16.mxu0 0
        %196 = vmatpush1.bf16.msra.mxu0 0
        %197 = vmatprep.subr.bf16.mxu0 0
        %198 = vmatpush1.bf16.msra.mxu0 0
        %199 = vmatprep.subr.bf16.mxu0 0
        %200 = vmatpush1.bf16.msra.mxu0 0
        %201 = vmatprep.subr.bf16.mxu0 0
        %202 = vmatpush1.bf16.msra.mxu0 0
        %203 = vmatprep.subr.bf16.mxu0 0
        %204 = vmatpush1.bf16.msra.mxu0 0
        %205 = vmatprep.subr.bf16.mxu0 0
        %206 = vmatpush1.bf16.msra.mxu0 0
        %207 = vmatprep.subr.bf16.mxu0 0
        %208 = vmatpush1.bf16.msra.mxu0 0
        %209 = vmatprep.subr.bf16.mxu0 0
        %210 = vmatpush1.bf16.msra.mxu0 0
        %211 = vmatprep.subr.bf16.mxu0 0
        %212 = vmatpush1.bf16.msra.mxu0 0
        %213 = vmatprep.subr.bf16.mxu0 0
        %214 = vmatpush1.bf16.msra.mxu0 0
        %215 = vmatprep.subr.bf16.mxu0 0
        %216 = vmatpush1.bf16.msra.mxu0 0
        %217 = vmatprep.subr.bf16.mxu0 0
        %218 = vmatpush1.bf16.msra.mxu0 0
        %219 = vmatprep.subr.bf16.mxu0 0
        %220 = vmatpush1.bf16.msra.mxu0 0
        %221 = vmatprep.subr.bf16.mxu0 0
        %222 = vmatpush1.bf16.msra.mxu0 0
        %223 = vmatprep.mubr.bf16.mxu0 0
        %224 = vmatmul.mubr.bf16.gmra.mrb[0].mxu0 %v185
        %v225 = vpop.f32.mrb[0].mxu0
        %v226 = vadd.f32 0.0, %v225
        %v227 = vpop.f32.mrb[0].mxu0
        %v228 = vpop.f32.mrb[0].mxu0
        %v229 = vadd.f32 0.0, %v228
        %v230 = vpop.f32.mrb[0].mxu0
        %231 = vdwg.mxu0
        %v232 = vpack.c.bf16 %v229, %v226
        %v234 = vunpack.c.l.b16 %v232
        %v235 = vunpack.c.h.b16 %v232
        %v236 = vpack.c.b16 %v234, %v234
        %v237 = vpack.c.b16 %v235, %v235
        %240 = vst [vmem:[%s173] sm:$0xf] %v236
        %241 = vst [vmem:[%s173 + $0x4] sm:$0xf] %v237
        %s242 = sand.u32 %s75, 1
        %s243 = scalar_lea.sflag [#allocation4], %s242
        %s244 = sand.u32 %s75, 1
        %s245 = smul.addr %s244, 8
        %s246 = scalar_lea.vmem [#allocation7], %s245
        // Predicated region
        $region37: #{multi_field_at_conv2d.10} parent=27 // pred_check
          %p247 = pneg %p85
        $region38: #{multi_field_at_conv2d.10} parent=27 // pred_check_branch
          %249 = sbr.rel (%p247) target = $region40
        $region39: #{multi_field_at_conv2d.10} parent=27 // pred_region
          %s251 = ssub.s32 128, 128
          %252 = vsyncadd %s243, %s251
          %s253 = smul.addr %s20, 2
          %s254 = smul.addr %s253, 64
          %s255 = scalar_lea.hbm %s2, %s254
          %s256 = sshll.u32 %s246, 4
          %s257 = int_to_ptr.vmem [resolvable:$true] %s256
          %262 = dma.vmem_to_hbm [thread:$0]  %s257, 128, %s255, %s243, 64, 64, 4
        $region40: #{multi_field_at_conv2d.10} parent=27 // pred_fallthru
          _
      $region28: #{multi_field_at_conv2d.10} parent=5 // pred_fallthru
        _
      %p263 = scmp.le.s32.totalorder 2, %s15
      // Predicated region
      $region41: #{multi_field_at_conv2d.10} parent=5 // pred_check
        %p264 = pneg %p263
      $region42: #{multi_field_at_conv2d.10} parent=5 // pred_check_branch
        %266 = sbr.rel (%p264) target = $region44
      $region43: #{multi_field_at_conv2d.10} parent=5 // pred_region
        %s267 = ssub.s32 %s15, 2
        // Predicated region
        $region45: #{multi_field_at_conv2d.10} parent=43 // pred_check
          %p268 = pneg %p91
        $region46: #{multi_field_at_conv2d.10} parent=43 // pred_check_branch
          %270 = sbr.rel (%p268) target = $region48
        $region47: #{multi_field_at_conv2d.10} parent=43 // pred_region
          %s271 = sand.u32 %s76, 1
          %s272 = scalar_lea.sflag [#allocation4], %s271
          %s273 = sand.u32 %s76, 1
          %s274 = smul.addr %s273, 8
          %s275 = scalar_lea.vmem [#allocation7], %s274
          %276 = dma.done %s272, 128
        $region48: #{multi_field_at_conv2d.10} parent=43 // pred_fallthru
          _
      $region44: #{multi_field_at_conv2d.10} parent=5 // pred_fallthru
        _
    $region6: #{multi_field_at_conv2d.10} parent=1 // loop_footer
      %s19 = sadd.s32 1, %s15
    $region7: #{multi_field_at_conv2d.10} parent=1 // loop_footer_branch
      %14 = sbr.rel target = $region3
    $region8: #{multi_field_at_conv2d.10} parent=1 // loop_exit
      _
    %277 = vsyncpa [#allocation3], 1
    %s278 = scalar_lea.sflag [#allocation3], 1
    %279 = vsyncpa %s278, 1
    %280 = vsyncpa [#allocation6], 1
    %s281 = scalar_lea.sflag [#allocation6], 1
    %282 = vsyncpa %s281, 1
    %283 = vsyncpa [#allocation4], 1
    %s284 = scalar_lea.sflag [#allocation4], 1
    %285 = vsyncpa %s284, 1

// kernel: tile.14
$region0: #{tile.14}
  %s0 = inlined_call_operand.vmem [shape: f32[16,32], index: 0, kind: input, shape index: {}]
  %s1 = inlined_call_operand.hbm [shape: f32[1,512], index: 1, kind: output, shape index: {}]
  $region1: #{tile.14} parent=0
    #allocation0 [shape = 'u8[2048]{0}', space=vmem, size = 0x800, scoped, tag = 'operand span for operand 1']
    #allocation1 [shape = 's32[1]{0}', space=sflag, size = 0x4, scoped, tag = 'scoped memory for tile.14']
    #allocation2 [shape = 'u8[16384]{0}', space=vmem, size = 0x4000, scoped, tag = 'scoped mem for output reshape']
    %2 = vsyncpa [#allocation1], 0
    %v3 = vld [vmem:[%s0] ss:$4 sm:$0xf]
    %vm4 = vcmask 261120
    %5 = vst.msk [vmem:[#allocation2] ss:$8 sm:$0xf] %vm4, %v3
    %s6 = scalar_lea.vmem %s0, 3
    %v7 = vld [vmem:[%s6] ss:$4 sm:$0xf]
    %8 = vrot.lane.b32.xlu0 %v7, 96
    %v9 = vpop.permute.xlu0 %8
    %vm10 = vcmask 1048320
    %11 = vst.msk [vmem:[#allocation2] ss:$8 sm:$0xf] %vm10, %v9
    %s12 = scalar_lea.vmem %s0, 2
    %v13 = vld [vmem:[%s12] ss:$4 sm:$0xf]
    %14 = vrot.lane.b32.xlu0 %v13, 64
    %v15 = vpop.permute.xlu0 %14
    %vm16 = vcmask 785920
    %17 = vst.msk [vmem:[#allocation2] ss:$8 sm:$0xf] %vm16, %v15
    %s18 = scalar_lea.vmem %s0, 1
    %v19 = vld [vmem:[%s18] ss:$4 sm:$0xf]
    %20 = vrot.lane.b32.xlu0 %v19, 32
    %v21 = vpop.permute.xlu0 %20
    %vm22 = vcmask 523520
    %23 = vst.msk [vmem:[#allocation2] ss:$8 sm:$0xf] %vm22, %v21
    %s25 = sshllo.u32 0, 1
    %v27 = vld [vmem:[#allocation2] sm:%s25]
    %s28 = sshllo.u32 0, 1
    %29 = vst [vmem:[#allocation0] sm:%s28] %v27
    %s30 = scalar_lea.vmem [#allocation2], 8
    %v31 = vld [vmem:[%s30] sm:%s25]
    %s32 = sshllo.u32 0, 1
    %s33 = scalar_lea.vmem [#allocation0], 1
    %34 = vst [vmem:[%s33] sm:%s32] %v31
    %s35 = scalar_lea.vmem [#allocation2], 16
    %v36 = vld [vmem:[%s35] sm:%s25]
    %s37 = sshllo.u32 0, 1
    %s38 = smul.addr 1, 2
    %s39 = scalar_lea.vmem [#allocation0], %s38
    %40 = vst [vmem:[%s39] sm:%s37] %v36
    %s41 = scalar_lea.vmem [#allocation2], 24
    %v42 = vld [vmem:[%s41] sm:%s25]
    %s43 = sshllo.u32 0, 1
    %s44 = smul.addr 1, 3
    %s45 = scalar_lea.vmem [#allocation0], %s44
    %46 = vst [vmem:[%s45] sm:%s43] %v42
    %s48 = ssub.s32 64, 64
    %49 = vsyncadd [#allocation1], %s48
    %s51 = sshll.u32 [#allocation0], 4
    %s52 = int_to_ptr.vmem [resolvable:$true] %s51
    %54 = dma.vmem_to_hbm [thread:$0]  %s52, 64, %s1, [#allocation1]
    %55 = dma.done [#allocation1], 64
    %56 = vsyncpa [#allocation1], 1

// kernel: multi_field_at_conv2d.8
$region0: #{multi_field_at_conv2d.8}
  #allocation0 [shape = 'u32[]', space=smem, size = 0x4, offset = 0x4, fixed_abs, tag = 'smem constant byte address 0x4 - core index']
  #allocation1 [shape = 'u32[144,128]{1,0:T(1,128)}', space=vmem, size = 0x12000, scoped, tag = 'internal scratch']
  %s0 = inlined_call_operand.hbm [shape: bf16[32,1568], index: 0, kind: input, shape index: {}]
  %s1 = inlined_call_operand.hbm [shape: bf16[1568,32], index: 1, kind: input, shape index: {}]
  %s2 = inlined_call_operand.hbm [shape: f32[1,32], index: 2, kind: input, shape index: {}]
  %s3 = inlined_call_operand.hbm [shape: bf16[32,32], index: 3, kind: output, shape index: {}]
  %s4 = sld [smem:[#allocation0]]
  $region57: #{multi_field_at_conv2d.8} parent=0
    _
  %s6 = ssub.s32 1, %s4
  %s7 = scalar_select 0, %s6, %s4
  $region1: #{multi_field_at_conv2d.8} parent=0
    #allocation2 [shape = 'u8[53248]{0}', space=vmem, size = 0xd000, scoped, tag = 'input window, operand 0']
    #allocation3 [shape = 's32[2]{0}', space=sflag, size = 0x8, scoped, tag = 'scoped memory for multi_field_at_conv2d.8']
    #allocation4 [shape = 's32[2]{0}', space=sflag, size = 0x8, scoped, tag = 'scoped memory for multi_field_at_conv2d.8']
    #allocation5 [shape = 'u8[401408]{0}', space=vmem, size = 0x62000, scoped, tag = 'input window, operand 1, single buffered']
    #allocation6 [shape = 's32[1]{0}', space=sflag, size = 0x4, scoped, tag = 'scoped memory for multi_field_at_conv2d.8']
    #allocation7 [shape = 'u8[512]{0}', space=vmem, size = 0x400, scoped, tag = 'input window, operand 2, single buffered']
    #allocation8 [shape = 'u8[4096]{0}', space=vmem, size = 0x1000, scoped, tag = 'output window, operand 0']
    %8 = vsyncpa [#allocation3], 0
    %s9 = scalar_lea.sflag [#allocation3], 1
    %10 = vsyncpa %s9, 0
    %11 = vsyncpa [#allocation6], 0
    %12 = vsyncpa [#allocation4], 0
    %s13 = scalar_lea.sflag [#allocation4], 1
    %14 = vsyncpa %s13, 0
    loop: start=0, step=1, limit=6
    $region2: #{multi_field_at_conv2d.8} parent=1 // loop_pre_header
      _
    $region3: #{multi_field_at_conv2d.8} parent=1 // loop_header
      %s16 = sphi 0, %s20
      %p17 = scmp.ge.s32.totalorder %s16, 6
      %s26 = sphi 0, %s28
      %s29 = sphi 0, %s26
      %s30 = sphi 0, %s29
      %s46 = sphi 0, %s30
      %s50 = sphi 0, %s50
      %s52 = sphi 0, %s50
      %s53 = sphi 0, %s52
      %s67 = sphi 0, %s53
      %s71 = sphi 0, %s71
      %s73 = sphi 0, %s71
      %s74 = sphi 0, %s73
      %s88 = sphi 0, %s74
      %s94 = sphi 0, %s96
      %s97 = sphi 0, %s94
      %s98 = sphi 0, %s97
      %s114 = sphi 0, %s98
    $region4: #{multi_field_at_conv2d.8} parent=1 // loop_header_branch
      %19 = sbr.rel (%p17) target = $region8
    $region5: #{multi_field_at_conv2d.8} parent=1 // loop_body
      %s21 = ssub.s32 %s16, 1
      %s22 = ssub.s32 %s16, 2
      %s23 = sadd.s32 %s16, 1
      %s24 = ssub.s32 %s16, %s23
      %p25 = scmp.eq.s32.totalorder %s24, 0
      %s27 = sadd.s32 %s26, 1
      %s28 = scalar_select %p25, %s26, %s27
      %p31 = pneg %p25
      %p32 = scmp.eq.s32.totalorder %s16, 3
      %p33 = por %p31, %p32
      %p34 = scmp.ne.s32.totalorder %s26, %s29
      %p35 = scmp.eq.s32.totalorder %s16, 0
      %p36 = por %p34, %p35
      %p37 = scmp.ne.s32.totalorder %s26, %s29
      %p38 = scmp.eq.s32.totalorder %s21, 3
      %p39 = por %p37, %p38
      %p40 = scmp.ne.s32.totalorder %s29, %s30
      %p41 = scmp.eq.s32.totalorder %s21, 0
      %p42 = por %p40, %p41
      %p43 = scmp.ne.s32.totalorder %s29, %s30
      %p44 = scmp.eq.s32.totalorder %s22, 3
      %p45 = por %p43, %p44
      %p47 = scmp.ne.s32.totalorder %s30, %s46
      %p48 = scmp.eq.s32.totalorder %s22, 0
      %p49 = por %p47, %p48
      %s51 = sadd.s32 %s50, 1
      %p54 = scmp.eq.s32.totalorder %s16, 3
      %p55 = scmp.ne.s32.totalorder %s50, %s52
      %p56 = scmp.eq.s32.totalorder %s16, 0
      %p57 = por %p55, %p56
      %p58 = scmp.ne.s32.totalorder %s50, %s52
      %p59 = scmp.eq.s32.totalorder %s21, 3
      %p60 = por %p58, %p59
      %p61 = scmp.ne.s32.totalorder %s52, %s53
      %p62 = scmp.eq.s32.totalorder %s21, 0
      %p63 = por %p61, %p62
      %p64 = scmp.ne.s32.totalorder %s52, %s53
      %p65 = scmp.eq.s32.totalorder %s22, 3
      %p66 = por %p64, %p65
      %p68 = scmp.ne.s32.totalorder %s53, %s67
      %p69 = scmp.eq.s32.totalorder %s22, 0
      %p70 = por %p68, %p69
      %s72 = sadd.s32 %s71, 1
      %p75 = scmp.eq.s32.totalorder %s16, 3
      %p76 = scmp.ne.s32.totalorder %s71, %s73
      %p77 = scmp.eq.s32.totalorder %s16, 0
      %p78 = por %p76, %p77
      %p79 = scmp.ne.s32.totalorder %s71, %s73
      %p80 = scmp.eq.s32.totalorder %s21, 3
      %p81 = por %p79, %p80
      %p82 = scmp.ne.s32.totalorder %s73, %s74
      %p83 = scmp.eq.s32.totalorder %s21, 0
      %p84 = por %p82, %p83
      %p85 = scmp.ne.s32.totalorder %s73, %s74
      %p86 = scmp.eq.s32.totalorder %s22, 3
      %p87 = por %p85, %p86
      %p89 = scmp.ne.s32.totalorder %s74, %s88
      %p90 = scmp.eq.s32.totalorder %s22, 0
      %p91 = por %p89, %p90
      %s92 = ssub.s32 %s16, %s23
      %p93 = scmp.eq.s32.totalorder %s92, 0
      %s95 = sadd.s32 %s94, 1
      %s96 = scalar_select %p93, %s94, %s95
      %p99 = pneg %p93
      %p100 = scmp.eq.s32.totalorder %s16, 3
      %p101 = por %p99, %p100
      %p102 = scmp.ne.s32.totalorder %s94, %s97
      %p103 = scmp.eq.s32.totalorder %s16, 0
      %p104 = por %p102, %p103
      %p105 = scmp.ne.s32.totalorder %s94, %s97
      %p106 = scmp.eq.s32.totalorder %s21, 3
      %p107 = por %p105, %p106
      %p108 = scmp.ne.s32.totalorder %s97, %s98
      %p109 = scmp.eq.s32.totalorder %s21, 0
      %p110 = por %p108, %p109
      %p111 = scmp.ne.s32.totalorder %s97, %s98
      %p112 = scmp.eq.s32.totalorder %s22, 3
      %p113 = por %p111, %p112
      %p115 = scmp.ne.s32.totalorder %s98, %s114
      %p116 = scmp.eq.s32.totalorder %s22, 0
      %p117 = por %p115, %p116
      %p118 = scmp.le.s32.totalorder 1, %s16
      %p119 = scmp.lt.s32.totalorder %s16, 5
      %p120 = pnand %p118, %p119
      %p121 = pneg %p120
      // Predicated region
      $region9: #{multi_field_at_conv2d.8} parent=5 // pred_check
        _
      $region10: #{multi_field_at_conv2d.8} parent=5 // pred_check_branch
        %123 = sbr.rel (%p120) target = $region12
      $region11: #{multi_field_at_conv2d.8} parent=5 // pred_region
        %s124 = ssub.s32 %s16, 1
        // Predicated region
        $region13: #{multi_field_at_conv2d.8} parent=11 // pred_check
          %p125 = pneg %p63
        $region14: #{multi_field_at_conv2d.8} parent=11 // pred_check_branch
          %127 = sbr.rel (%p125) target = $region16
        $region15: #{multi_field_at_conv2d.8} parent=11 // pred_region
          %s129 = ssub.s32 12544, 12544
          %130 = vsyncadd [#allocation6], %s129
          %s131 = sshll.u32 [#allocation5], 4
          %s132 = int_to_ptr.vmem [resolvable:$true] %s131
          %137 = dma.hbm_to_vmem [thread:$0]  %s1, 12544, %s132, [#allocation6], 64, 64, 4
        $region16: #{multi_field_at_conv2d.8} parent=11 // pred_fallthru
          _
        // Predicated region
        $region17: #{multi_field_at_conv2d.8} parent=11 // pred_check
          %p138 = pneg %p84
        $region18: #{multi_field_at_conv2d.8} parent=11 // pred_check_branch
          %140 = sbr.rel (%p138) target = $region20
        $region19: #{multi_field_at_conv2d.8} parent=11 // pred_region
          %s142 = ssub.s32 16, 16
          %143 = vsyncadd [#allocation6], %s142
          %s145 = sshll.u32 [#allocation7], 4
          %s146 = int_to_ptr.vmem [resolvable:$true] %s145
          %148 = dma.hbm_to_vmem [thread:$0]  %s2, 16, %s146, [#allocation6]
        $region20: #{multi_field_at_conv2d.8} parent=11 // pred_fallthru
          _
      $region12: #{multi_field_at_conv2d.8} parent=5 // pred_fallthru
        _
      %p149 = scmp.lt.s32.totalorder %s16, 4
      // Predicated region
      $region21: #{multi_field_at_conv2d.8} parent=5 // pred_check
        %p150 = pneg %p149
      $region22: #{multi_field_at_conv2d.8} parent=5 // pred_check_branch
        %152 = sbr.rel (%p150) target = $region24
      $region23: #{multi_field_at_conv2d.8} parent=5 // pred_region
        // Predicated region
        $region25: #{multi_field_at_conv2d.8} parent=23 // pred_check
          %p153 = pneg %p36
        $region26: #{multi_field_at_conv2d.8} parent=23 // pred_check_branch
          %155 = sbr.rel (%p153) target = $region28
        $region27: #{multi_field_at_conv2d.8} parent=23 // pred_region
          %s156 = sand.u32 %s26, 1
          %s157 = scalar_lea.sflag [#allocation3], %s156
          %s158 = sand.u32 %s26, 1
          %s159 = smul.addr %s158, 52
          %s160 = scalar_lea.vmem [#allocation2], %s159
          %s162 = ssub.s32 832, 832
          %163 = vsyncadd %s157, %s162
          %s164 = smul.addr %s16, 13
          %s165 = smul.addr %s164, 64
          %s166 = scalar_lea.hbm %s0, %s165
          %s168 = sshll.u32 %s160, 4
          %s169 = int_to_ptr.vmem [resolvable:$true] %s168
          %171 = dma.hbm_to_vmem [thread:$0]  %s166, 832, %s169, %s157
        $region28: #{multi_field_at_conv2d.8} parent=23 // pred_fallthru
          _
      $region24: #{multi_field_at_conv2d.8} parent=5 // pred_fallthru
        _
      %p172 = scmp.le.s32.totalorder 1, %s16
      %p173 = scmp.lt.s32.totalorder %s16, 5
      %p174 = pnand %p172, %p173
      %p175 = pneg %p174
      // Predicated region
      $region29: #{multi_field_at_conv2d.8} parent=5 // pred_check
        _
      $region30: #{multi_field_at_conv2d.8} parent=5 // pred_check_branch
        %177 = sbr.rel (%p174) target = $region32
      $region31: #{multi_field_at_conv2d.8} parent=5 // pred_region
        %s178 = ssub.s32 %s16, 1
        %s179 = sand.u32 %s29, 1
        %s180 = scalar_lea.sflag [#allocation3], %s179
        %s181 = sand.u32 %s29, 1
        %s182 = smul.addr %s181, 52
        %s183 = scalar_lea.vmem [#allocation2], %s182
        // Predicated region
        $region33: #{multi_field_at_conv2d.8} parent=31 // pred_check
          %p184 = pneg %p42
        $region34: #{multi_field_at_conv2d.8} parent=31 // pred_check_branch
          %186 = sbr.rel (%p184) target = $region36
        $region35: #{multi_field_at_conv2d.8} parent=31 // pred_region
          %187 = dma.done %s180, 832
        $region36: #{multi_field_at_conv2d.8} parent=31 // pred_fallthru
          _
        // Predicated region
        $region37: #{multi_field_at_conv2d.8} parent=31 // pred_check
          %p188 = pneg %p63
        $region38: #{multi_field_at_conv2d.8} parent=31 // pred_check_branch
          %190 = sbr.rel (%p188) target = $region40
        $region39: #{multi_field_at_conv2d.8} parent=31 // pred_region
          %191 = dma.done [#allocation6], 12544
        $region40: #{multi_field_at_conv2d.8} parent=31 // pred_fallthru
          _
        // Predicated region
        $region41: #{multi_field_at_conv2d.8} parent=31 // pred_check
          %p192 = pneg %p84
        $region42: #{multi_field_at_conv2d.8} parent=31 // pred_check_branch
          %194 = sbr.rel (%p192) target = $region44
        $region43: #{multi_field_at_conv2d.8} parent=31 // pred_region
          %195 = dma.done [#allocation6], 16
        $region44: #{multi_field_at_conv2d.8} parent=31 // pred_fallthru
          _
        %s196 = sand.u32 %s29, 1
        %s197 = scalar_lea.sflag [#allocation3], %s196
        %s198 = sand.u32 %s29, 1
        %s199 = smul.addr %s198, 52
        %s200 = scalar_lea.vmem [#allocation2], %s199
        %p201 = pneg %p42
        %p202 = pneg %p39
        %p203 = pneg %p63
        %p204 = pneg %p60
        %p205 = pneg %p84
        %p206 = pneg %p81
        %p207 = pneg %p110
        %p208 = pneg %p107
        %s209 = sand.u32 %s97, 1
        %s210 = scalar_lea.sflag [#allocation4], %s209
        %s211 = sand.u32 %s97, 1
        %s212 = smul.addr %s211, 4
        %s213 = scalar_lea.vmem [#allocation8], %s212
        %v215 = vld [vmem:[%s183] sm:$0xff]
        %v216 = vld [vmem:[%s183 + $0x8] sm:$0xff]
        %v217 = vld [vmem:[%s183 + $0x10] sm:$0xff]
        %v218 = vld [vmem:[%s183 + $0x18] sm:$0xff]
        %v219 = vld [vmem:[%s183 + $0x20] sm:$0xff]
        %v220 = vld [vmem:[%s183 + $0x28] sm:$0xff]
        %v221 = vld [vmem:[%s183 + $0x30] sm:$0xf]
        %v222 = vld [vmem:[#allocation5] sm:$0xf]
        %v223 = vld [vmem:[#allocation5 + $0x4] sm:$0xf]
        %v224 = vld [vmem:[#allocation5 + $0x8] sm:$0xf]
        %v225 = vld [vmem:[#allocation5 + $0xc] sm:$0xf]
        %v226 = vld [vmem:[#allocation5 + $0x10] sm:$0xf]
        %v227 = vld [vmem:[#allocation5 + $0x14] sm:$0xf]
        %v228 = vld [vmem:[#allocation5 + $0x18] sm:$0xf]
        %v229 = vld [vmem:[#allocation5 + $0x1c] sm:$0xf]
        %v230 = vld [vmem:[#allocation5 + $0x20] sm:$0xf]
        %v231 = vld [vmem:[#allocation5 + $0x24] sm:$0xf]
        %v232 = vld [vmem:[#allocation5 + $0x28] sm:$0xf]
        %v233 = vld [vmem:[#allocation5 + $0x2c] sm:$0xf]
        %v234 = vld [vmem:[#allocation5 + $0x30] sm:$0xf]
        %v235 = vld [vmem:[#allocation5 + $0x34] sm:$0xf]
        %v236 = vld [vmem:[#allocation5 + $0x38] sm:$0xf]
        %v237 = vld [vmem:[#allocation5 + $0x3c] sm:$0xf]
        %v238 = vld [vmem:[#allocation5 + $0x40] sm:$0xf]
        %v239 = vld [vmem:[#allocation5 + $0x44] sm:$0xf]
        %v240 = vld [vmem:[#allocation5 + $0x48] sm:$0xf]
        %v241 = vld [vmem:[#allocation5 + $0x4c] sm:$0xf]
        %v242 = vld [vmem:[#allocation5 + $0x50] sm:$0xf]
        %v243 = vld [vmem:[#allocation5 + $0x54] sm:$0xf]
        %v244 = vld [vmem:[#allocation5 + $0x58] sm:$0xf]
        %v245 = vld [vmem:[#allocation5 + $0x5c] sm:$0xf]
        %v246 = vld [vmem:[#allocation5 + $0x60] sm:$0xf]
        %v247 = vld [vmem:[#allocation5 + $0x64] sm:$0xf]
        %v248 = vld [vmem:[#allocation5 + $0x68] sm:$0xf]
        %v249 = vld [vmem:[#allocation5 + $0x6c] sm:$0xf]
        %v250 = vld [vmem:[#allocation5 + $0x70] sm:$0xf]
        %v251 = vld [vmem:[#allocation5 + $0x74] sm:$0xf]
        %v252 = vld [vmem:[#allocation5 + $0x78] sm:$0xf]
        %v253 = vld [vmem:[#allocation5 + $0x7c] sm:$0xf]
        %v254 = vld [vmem:[#allocation5 + $0x80] sm:$0xf]
        %v255 = vld [vmem:[#allocation5 + $0x84] sm:$0xf]
        %v256 = vld [vmem:[#allocation5 + $0x88] sm:$0xf]
        %v257 = vld [vmem:[#allocation5 + $0x8c] sm:$0xf]
        %v258 = vld [vmem:[#allocation5 + $0x90] sm:$0xf]
        %v259 = vld [vmem:[#allocation5 + $0x94] sm:$0xf]
        %v260 = vld [vmem:[#allocation5 + $0x98] sm:$0xf]
        %v261 = vld [vmem:[#allocation5 + $0x9c] sm:$0xf]
        %v262 = vld [vmem:[#allocation5 + $0xa0] sm:$0xf]
        %v263 = vld [vmem:[#allocation5 + $0xa4] sm:$0xf]
        %v264 = vld [vmem:[#allocation5 + $0xa8] sm:$0xf]
        %v265 = vld [vmem:[#allocation5 + $0xac] sm:$0xf]
        %v266 = vld [vmem:[#allocation5 + $0xb0] sm:$0xf]
        %v267 = vld [vmem:[#allocation5 + $0xb4] sm:$0xf]
        %v268 = vld [vmem:[#allocation5 + $0xb8] sm:$0xf]
        %v269 = vld [vmem:[#allocation5 + $0xbc] sm:$0xf]
        %v270 = vld [vmem:[#allocation5 + $0xc0] sm:$0xf]
        %v271 = vld [vmem:[#allocation5 + $0xc4] sm:$0xf]
        %v272 = vld [vmem:[#allocation5 + $0xc8] sm:$0xf]
        %v273 = vld [vmem:[#allocation5 + $0xcc] sm:$0xf]
        %v274 = vld [vmem:[#allocation5 + $0xd0] sm:$0xf]
        %v275 = vld [vmem:[#allocation5 + $0xd4] sm:$0xf]
        %v276 = vld [vmem:[#allocation5 + $0xd8] sm:$0xf]
        %v277 = vld [vmem:[#allocation5 + $0xdc] sm:$0xf]
        %v278 = vld [vmem:[#allocation5 + $0xe0] sm:$0xf]
        %v279 = vld [vmem:[#allocation5 + $0xe4] sm:$0xf]
        %v280 = vld [vmem:[#allocation5 + $0xe8] sm:$0xf]
        %v281 = vld [vmem:[#allocation5 + $0xec] sm:$0xf]
        %v282 = vld [vmem:[#allocation5 + $0xf0] sm:$0xf]
        %v283 = vld [vmem:[#allocation5 + $0xf4] sm:$0xf]
        %v284 = vld [vmem:[#allocation5 + $0xf8] sm:$0xf]
        %v285 = vld [vmem:[#allocation5 + $0xfc] sm:$0xf]
        %v286 = vld [vmem:[#allocation5 + $0x100] sm:$0xf]
        %v287 = vld [vmem:[#allocation5 + $0x104] sm:$0xf]
        %v288 = vld [vmem:[#allocation5 + $0x108] sm:$0xf]
        %v289 = vld [vmem:[#allocation5 + $0x10c] sm:$0xf]
        %v290 = vld [vmem:[#allocation5 + $0x110] sm:$0xf]
        %v291 = vld [vmem:[#allocation5 + $0x114] sm:$0xf]
        %v292 = vld [vmem:[#allocation5 + $0x118] sm:$0xf]
        %v293 = vld [vmem:[#allocation5 + $0x11c] sm:$0xf]
        %v294 = vld [vmem:[#allocation5 + $0x120] sm:$0xf]
        %v295 = vld [vmem:[#allocation5 + $0x124] sm:$0xf]
        %v296 = vld [vmem:[#allocation5 + $0x128] sm:$0xf]
        %v297 = vld [vmem:[#allocation5 + $0x12c] sm:$0xf]
        %v298 = vld [vmem:[#allocation5 + $0x130] sm:$0xf]
        %v299 = vld [vmem:[#allocation5 + $0x134] sm:$0xf]
        %v300 = vld [vmem:[#allocation5 + $0x138] sm:$0xf]
        %v301 = vld [vmem:[#allocation5 + $0x13c] sm:$0xf]
        %v302 = vld [vmem:[#allocation5 + $0x140] sm:$0xf]
        %v303 = vld [vmem:[#allocation5 + $0x144] sm:$0xf]
        %v304 = vld [vmem:[#allocation5 + $0x148] sm:$0xf]
        %v305 = vld [vmem:[#allocation5 + $0x14c] sm:$0xf]
        %v306 = vld [vmem:[#allocation5 + $0x150] sm:$0xf]
        %v307 = vld [vmem:[#allocation5 + $0x154] sm:$0xf]
        %v308 = vld [vmem:[#allocation5 + $0x158] sm:$0xf]
        %v309 = vld [vmem:[#allocation5 + $0x15c] sm:$0xf]
        %v310 = vld [vmem:[#allocation5 + $0x160] sm:$0xf]
        %v311 = vld [vmem:[#allocation5 + $0x164] sm:$0xf]
        %v312 = vld [vmem:[#allocation5 + $0x168] sm:$0xf]
        %v313 = vld [vmem:[#allocation5 + $0x16c] sm:$0xf]
        %v314 = vld [vmem:[#allocation5 + $0x170] sm:$0xf]
        %v315 = vld [vmem:[#allocation5 + $0x174] sm:$0xf]
        %v316 = vld [vmem:[#allocation5 + $0x178] sm:$0xf]
        %v317 = vld [vmem:[#allocation5 + $0x17c] sm:$0xf]
        %v318 = vld [vmem:[#allocation5 + $0x180] sm:$0xf]
        %v319 = vld [vmem:[#allocation5 + $0x184] sm:$0xf]
        %v320 = vld [vmem:[#allocation5 + $0x188] sm:$0xf]
        %v321 = vld [vmem:[#allocation5 + $0x18c] sm:$0xf]
        %v322 = vld [vmem:[#allocation5 + $0x190] sm:$0xf]
        %v323 = vld [vmem:[#allocation5 + $0x194] sm:$0xf]
        %v324 = vld [vmem:[#allocation5 + $0x198] sm:$0xf]
        %v325 = vld [vmem:[#allocation5 + $0x19c] sm:$0xf]
        %v326 = vld [vmem:[#allocation5 + $0x1a0] sm:$0xf]
        %v327 = vld [vmem:[#allocation5 + $0x1a4] sm:$0xf]
        %v328 = vld [vmem:[#allocation5 + $0x1a8] sm:$0xf]
        %v329 = vld [vmem:[#allocation5 + $0x1ac] sm:$0xf]
        %v330 = vld [vmem:[#allocation5 + $0x1b0] sm:$0xf]
        %v331 = vld [vmem:[#allocation5 + $0x1b4] sm:$0xf]
        %v332 = vld [vmem:[#allocation5 + $0x1b8] sm:$0xf]
        %v333 = vld [vmem:[#allocation5 + $0x1bc] sm:$0xf]
        %v334 = vld [vmem:[#allocation5 + $0x1c0] sm:$0xf]
        %v335 = vld [vmem:[#allocation5 + $0x1c4] sm:$0xf]
        %v336 = vld [vmem:[#allocation5 + $0x1c8] sm:$0xf]
        %v337 = vld [vmem:[#allocation5 + $0x1cc] sm:$0xf]
        %v338 = vld [vmem:[#allocation5 + $0x1d0] sm:$0xf]
        %v339 = vld [vmem:[#allocation5 + $0x1d4] sm:$0xf]
        %v340 = vld [vmem:[#allocation5 + $0x1d8] sm:$0xf]
        %v341 = vld [vmem:[#allocation5 + $0x1dc] sm:$0xf]
        %v342 = vld [vmem:[#allocation5 + $0x1e0] sm:$0xf]
        %v343 = vld [vmem:[#allocation5 + $0x1e4] sm:$0xf]
        %v344 = vld [vmem:[#allocation5 + $0x1e8] sm:$0xf]
        %v345 = vld [vmem:[#allocation5 + $0x1ec] sm:$0xf]
        %v346 = vld [vmem:[#allocation5 + $0x1f0] sm:$0xf]
        %v347 = vld [vmem:[#allocation5 + $0x1f4] sm:$0xf]
        %v348 = vld [vmem:[#allocation5 + $0x1f8] sm:$0xf]
        %v349 = vld [vmem:[#allocation5 + $0x1fc] sm:$0xf]
        %v350 = vld [vmem:[#allocation5 + $0x200] sm:$0xf]
        %v351 = vld [vmem:[#allocation5 + $0x204] sm:$0xf]
        %v352 = vld [vmem:[#allocation5 + $0x208] sm:$0xf]
        %v353 = vld [vmem:[#allocation5 + $0x20c] sm:$0xf]
        %v354 = vld [vmem:[#allocation5 + $0x210] sm:$0xf]
        %v355 = vld [vmem:[#allocation5 + $0x214] sm:$0xf]
        %v356 = vld [vmem:[#allocation5 + $0x218] sm:$0xf]
        %v357 = vld [vmem:[#allocation5 + $0x21c] sm:$0xf]
        %v358 = vld [vmem:[#allocation5 + $0x220] sm:$0xf]
        %v359 = vld [vmem:[#allocation5 + $0x224] sm:$0xf]
        %v360 = vld [vmem:[#allocation5 + $0x228] sm:$0xf]
        %v361 = vld [vmem:[#allocation5 + $0x22c] sm:$0xf]
        %v362 = vld [vmem:[#allocation5 + $0x230] sm:$0xf]
        %v363 = vld [vmem:[#allocation5 + $0x234] sm:$0xf]
        %v364 = vld [vmem:[#allocation5 + $0x238] sm:$0xf]
        %v365 = vld [vmem:[#allocation5 + $0x23c] sm:$0xf]
        %v366 = vld [vmem:[#allocation5 + $0x240] sm:$0xf]
        %v367 = vld [vmem:[#allocation5 + $0x244] sm:$0xf]
        %v368 = vld [vmem:[#allocation5 + $0x248] sm:$0xf]
        %v369 = vld [vmem:[#allocation5 + $0x24c] sm:$0xf]
        %v370 = vld [vmem:[#allocation5 + $0x250] sm:$0xf]
        %v371 = vld [vmem:[#allocation5 + $0x254] sm:$0xf]
        %v372 = vld [vmem:[#allocation5 + $0x258] sm:$0xf]
        %v373 = vld [vmem:[#allocation5 + $0x25c] sm:$0xf]
        %v374 = vld [vmem:[#allocation5 + $0x260] sm:$0xf]
        %v375 = vld [vmem:[#allocation5 + $0x264] sm:$0xf]
        %v376 = vld [vmem:[#allocation5 + $0x268] sm:$0xf]
        %v377 = vld [vmem:[#allocation5 + $0x26c] sm:$0xf]
        %v378 = vld [vmem:[#allocation5 + $0x270] sm:$0xf]
        %v379 = vld [vmem:[#allocation5 + $0x274] sm:$0xf]
        %v380 = vld [vmem:[#allocation5 + $0x278] sm:$0xf]
        %v381 = vld [vmem:[#allocation5 + $0x27c] sm:$0xf]
        %v382 = vld [vmem:[#allocation5 + $0x280] sm:$0xf]
        %v383 = vld [vmem:[#allocation5 + $0x284] sm:$0xf]
        %v384 = vld [vmem:[#allocation5 + $0x288] sm:$0xf]
        %v385 = vld [vmem:[#allocation5 + $0x28c] sm:$0xf]
        %v386 = vld [vmem:[#allocation5 + $0x290] sm:$0xf]
        %v387 = vld [vmem:[#allocation5 + $0x294] sm:$0xf]
        %v388 = vld [vmem:[#allocation5 + $0x298] sm:$0xf]
        %v389 = vld [vmem:[#allocation5 + $0x29c] sm:$0xf]
        %v390 = vld [vmem:[#allocation5 + $0x2a0] sm:$0xf]
        %v391 = vld [vmem:[#allocation5 + $0x2a4] sm:$0xf]
        %v392 = vld [vmem:[#allocation5 + $0x2a8] sm:$0xf]
        %v393 = vld [vmem:[#allocation5 + $0x2ac] sm:$0xf]
        %v394 = vld [vmem:[#allocation5 + $0x2b0] sm:$0xf]
        %v395 = vld [vmem:[#allocation5 + $0x2b4] sm:$0xf]
        %v396 = vld [vmem:[#allocation5 + $0x2b8] sm:$0xf]
        %v397 = vld [vmem:[#allocation5 + $0x2bc] sm:$0xf]
        %v398 = vld [vmem:[#allocation5 + $0x2c0] sm:$0xf]
        %v399 = vld [vmem:[#allocation5 + $0x2c4] sm:$0xf]
        %v400 = vld [vmem:[#allocation5 + $0x2c8] sm:$0xf]
        %v401 = vld [vmem:[#allocation5 + $0x2cc] sm:$0xf]
        %v402 = vld [vmem:[#allocation5 + $0x2d0] sm:$0xf]
        %v403 = vld [vmem:[#allocation5 + $0x2d4] sm:$0xf]
        %v404 = vld [vmem:[#allocation5 + $0x2d8] sm:$0xf]
        %v405 = vld [vmem:[#allocation5 + $0x2dc] sm:$0xf]
        %v406 = vld [vmem:[#allocation5 + $0x2e0] sm:$0xf]
        %v407 = vld [vmem:[#allocation5 + $0x2e4] sm:$0xf]
        %v408 = vld [vmem:[#allocation5 + $0x2e8] sm:$0xf]
        %v409 = vld [vmem:[#allocation5 + $0x2ec] sm:$0xf]
        %v410 = vld [vmem:[#allocation5 + $0x2f0] sm:$0xf]
        %v411 = vld [vmem:[#allocation5 + $0x2f4] sm:$0xf]
        %v412 = vld [vmem:[#allocation5 + $0x2f8] sm:$0xf]
        %v413 = vld [vmem:[#allocation5 + $0x2fc] sm:$0xf]
        %v414 = vld [vmem:[#allocation5 + $0x300] sm:$0xf]
        %v415 = vld [vmem:[#allocation5 + $0x304] sm:$0xf]
        %v416 = vld [vmem:[#allocation5 + $0x308] sm:$0xf]
        %v417 = vld [vmem:[#allocation5 + $0x30c] sm:$0xf]
        %v418 = vld [vmem:[#allocation7] sm:$0x1]
        %v420 = vlaneseq
        %v421 = vshrl.u32 %v420, 7
        %v422 = vsub.s32 0, %v421
        %v423 = vrot.slane %v418, %v422
        %v432 = vunpack.c.l.b16 %v215
        %v433 = vunpack.c.h.b16 %v215
        %v434 = vunpack.c.l.b16 %v216
        %v435 = vunpack.c.h.b16 %v216
        %v436 = vunpack.c.l.b16 %v217
        %v437 = vunpack.c.h.b16 %v217
        %v438 = vunpack.c.l.b16 %v218
        %v439 = vunpack.c.h.b16 %v218
        %v440 = vunpack.c.l.b16 %v219
        %v441 = vunpack.c.h.b16 %v219
        %v442 = vunpack.c.l.b16 %v220
        %v443 = vunpack.c.h.b16 %v220
        %v444 = vunpack.c.l.b16 %v221
        %v445 = vpack.c.b16 %v432, %v432
        %v446 = vpack.c.b16 %v433, %v433
        %v447 = vpack.c.b16 %v434, %v434
        %v448 = vpack.c.b16 %v435, %v435
        %v449 = vpack.c.b16 %v436, %v436
        %v450 = vpack.c.b16 %v437, %v437
        %v451 = vpack.c.b16 %v438, %v438
        %v452 = vpack.c.b16 %v439, %v439
        %v453 = vpack.c.b16 %v440, %v440
        %v454 = vpack.c.b16 %v441, %v441
        %v455 = vpack.c.b16 %v442, %v442
        %v456 = vpack.c.b16 %v443, %v443
        %v457 = vpack.c.b16 %v444, %v444
        %v666 = vunpack.c.l.b16 %v222
        %v667 = vunpack.c.l.b16 %v223
        %v668 = vunpack.c.l.b16 %v224
        %v669 = vunpack.c.l.b16 %v225
        %v670 = vunpack.c.l.b16 %v226
        %v671 = vunpack.c.l.b16 %v227
        %v672 = vunpack.c.l.b16 %v228
        %v673 = vunpack.c.l.b16 %v229
        %v674 = vunpack.c.l.b16 %v230
        %v675 = vunpack.c.l.b16 %v231
        %v676 = vunpack.c.l.b16 %v232
        %v677 = vunpack.c.l.b16 %v233
        %v678 = vunpack.c.l.b16 %v234
        %v679 = vunpack.c.l.b16 %v235
        %v680 = vunpack.c.l.b16 %v236
        %v681 = vunpack.c.l.b16 %v237
        %v682 = vunpack.c.l.b16 %v238
        %v683 = vunpack.c.l.b16 %v239
        %v684 = vunpack.c.l.b16 %v240
        %v685 = vunpack.c.l.b16 %v241
        %v686 = vunpack.c.l.b16 %v242
        %v687 = vunpack.c.l.b16 %v243
        %v688 = vunpack.c.l.b16 %v244
        %v689 = vunpack.c.l.b16 %v245
        %v690 = vunpack.c.l.b16 %v246
        %v691 = vunpack.c.l.b16 %v247
        %v692 = vunpack.c.l.b16 %v248
        %v693 = vunpack.c.l.b16 %v249
        %v694 = vunpack.c.l.b16 %v250
        %v695 = vunpack.c.l.b16 %v251
        %v696 = vunpack.c.l.b16 %v252
        %v697 = vunpack.c.l.b16 %v253
        %v698 = vunpack.c.l.b16 %v254
        %v699 = vunpack.c.l.b16 %v255
        %v700 = vunpack.c.l.b16 %v256
        %v701 = vunpack.c.l.b16 %v257
        %v702 = vunpack.c.l.b16 %v258
        %v703 = vunpack.c.l.b16 %v259
        %v704 = vunpack.c.l.b16 %v260
        %v705 = vunpack.c.l.b16 %v261
        %v706 = vunpack.c.l.b16 %v262
        %v707 = vunpack.c.l.b16 %v263
        %v708 = vunpack.c.l.b16 %v264
        %v709 = vunpack.c.l.b16 %v265
        %v710 = vunpack.c.l.b16 %v266
        %v711 = vunpack.c.l.b16 %v267
        %v712 = vunpack.c.l.b16 %v268
        %v713 = vunpack.c.l.b16 %v269
        %v714 = vunpack.c.l.b16 %v270
        %v715 = vunpack.c.l.b16 %v271
        %v716 = vunpack.c.l.b16 %v272
        %v717 = vunpack.c.l.b16 %v273
        %v718 = vunpack.c.l.b16 %v274
        %v719 = vunpack.c.l.b16 %v275
        %v720 = vunpack.c.l.b16 %v276
        %v721 = vunpack.c.l.b16 %v277
        %v722 = vunpack.c.l.b16 %v278
        %v723 = vunpack.c.l.b16 %v279
        %v724 = vunpack.c.l.b16 %v280
        %v725 = vunpack.c.l.b16 %v281
        %v726 = vunpack.c.l.b16 %v282
        %v727 = vunpack.c.l.b16 %v283
        %v728 = vunpack.c.l.b16 %v284
        %v729 = vunpack.c.l.b16 %v285
        %v730 = vunpack.c.l.b16 %v286
        %v731 = vunpack.c.l.b16 %v287
        %v732 = vunpack.c.l.b16 %v288
        %v733 = vunpack.c.l.b16 %v289
        %v734 = vunpack.c.l.b16 %v290
        %v735 = vunpack.c.l.b16 %v291
        %v736 = vunpack.c.l.b16 %v292
        %v737 = vunpack.c.l.b16 %v293
        %v738 = vunpack.c.l.b16 %v294
        %v739 = vunpack.c.l.b16 %v295
        %v740 = vunpack.c.l.b16 %v296
        %v741 = vunpack.c.l.b16 %v297
        %v742 = vunpack.c.l.b16 %v298
        %v743 = vunpack.c.l.b16 %v299
        %v744 = vunpack.c.l.b16 %v300
        %v745 = vunpack.c.l.b16 %v301
        %v746 = vunpack.c.l.b16 %v302
        %v747 = vunpack.c.l.b16 %v303
        %v748 = vunpack.c.l.b16 %v304
        %v749 = vunpack.c.l.b16 %v305
        %v750 = vunpack.c.l.b16 %v306
        %v751 = vunpack.c.l.b16 %v307
        %v752 = vunpack.c.l.b16 %v308
        %v753 = vunpack.c.l.b16 %v309
        %v754 = vunpack.c.l.b16 %v310
        %v755 = vunpack.c.l.b16 %v311
        %v756 = vunpack.c.l.b16 %v312
        %v757 = vunpack.c.l.b16 %v313
        %v758 = vunpack.c.l.b16 %v314
        %v759 = vunpack.c.l.b16 %v315
        %v760 = vunpack.c.l.b16 %v316
        %v761 = vunpack.c.l.b16 %v317
        %v762 = vunpack.c.l.b16 %v318
        %v763 = vunpack.c.l.b16 %v319
        %v764 = vunpack.c.l.b16 %v320
        %v765 = vunpack.c.l.b16 %v321
        %v766 = vunpack.c.l.b16 %v322
        %v767 = vunpack.c.l.b16 %v323
        %v768 = vunpack.c.l.b16 %v324
        %v769 = vunpack.c.l.b16 %v325
        %v770 = vunpack.c.l.b16 %v326
        %v771 = vunpack.c.l.b16 %v327
        %v772 = vunpack.c.l.b16 %v328
        %v773 = vunpack.c.l.b16 %v329
        %v774 = vunpack.c.l.b16 %v330
        %v775 = vunpack.c.l.b16 %v331
        %v776 = vunpack.c.l.b16 %v332
        %v777 = vunpack.c.l.b16 %v333
        %v778 = vunpack.c.l.b16 %v334
        %v779 = vunpack.c.l.b16 %v335
        %v780 = vunpack.c.l.b16 %v336
        %v781 = vunpack.c.l.b16 %v337
        %v782 = vunpack.c.l.b16 %v338
        %v783 = vunpack.c.l.b16 %v339
        %v784 = vunpack.c.l.b16 %v340
        %v785 = vunpack.c.l.b16 %v341
        %v786 = vunpack.c.l.b16 %v342
        %v787 = vunpack.c.l.b16 %v343
        %v788 = vunpack.c.l.b16 %v344
        %v789 = vunpack.c.l.b16 %v345
        %v790 = vunpack.c.l.b16 %v346
        %v791 = vunpack.c.l.b16 %v347
        %v792 = vunpack.c.l.b16 %v348
        %v793 = vunpack.c.l.b16 %v349
        %v794 = vunpack.c.l.b16 %v350
        %v795 = vunpack.c.l.b16 %v351
        %v796 = vunpack.c.l.b16 %v352
        %v797 = vunpack.c.l.b16 %v353
        %v798 = vunpack.c.l.b16 %v354
        %v799 = vunpack.c.l.b16 %v355
        %v800 = vunpack.c.l.b16 %v356
        %v801 = vunpack.c.l.b16 %v357
        %v802 = vunpack.c.l.b16 %v358
        %v803 = vunpack.c.l.b16 %v359
        %v804 = vunpack.c.l.b16 %v360
        %v805 = vunpack.c.l.b16 %v361
        %v806 = vunpack.c.l.b16 %v362
        %v807 = vunpack.c.l.b16 %v363
        %v808 = vunpack.c.l.b16 %v364
        %v809 = vunpack.c.l.b16 %v365
        %v810 = vunpack.c.l.b16 %v366
        %v811 = vunpack.c.l.b16 %v367
        %v812 = vunpack.c.l.b16 %v368
        %v813 = vunpack.c.l.b16 %v369
        %v814 = vunpack.c.l.b16 %v370
        %v815 = vunpack.c.l.b16 %v371
        %v816 = vunpack.c.l.b16 %v372
        %v817 = vunpack.c.l.b16 %v373
        %v818 = vunpack.c.l.b16 %v374
        %v819 = vunpack.c.l.b16 %v375
        %v820 = vunpack.c.l.b16 %v376
        %v821 = vunpack.c.l.b16 %v377
        %v822 = vunpack.c.l.b16 %v378
        %v823 = vunpack.c.l.b16 %v379
        %v824 = vunpack.c.l.b16 %v380
        %v825 = vunpack.c.l.b16 %v381
        %v826 = vunpack.c.l.b16 %v382
        %v827 = vunpack.c.l.b16 %v383
        %v828 = vunpack.c.l.b16 %v384
        %v829 = vunpack.c.l.b16 %v385
        %v830 = vunpack.c.l.b16 %v386
        %v831 = vunpack.c.l.b16 %v387
        %v832 = vunpack.c.l.b16 %v388
        %v833 = vunpack.c.l.b16 %v389
        %v834 = vunpack.c.l.b16 %v390
        %v835 = vunpack.c.l.b16 %v391
        %v836 = vunpack.c.l.b16 %v392
        %v837 = vunpack.c.l.b16 %v393
        %v838 = vunpack.c.l.b16 %v394
        %v839 = vunpack.c.l.b16 %v395
        %v840 = vunpack.c.l.b16 %v396
        %v841 = vunpack.c.l.b16 %v397
        %v842 = vunpack.c.l.b16 %v398
        %v843 = vunpack.c.l.b16 %v399
        %v844 = vunpack.c.l.b16 %v400
        %v845 = vunpack.c.l.b16 %v401
        %v846 = vunpack.c.l.b16 %v402
        %v847 = vunpack.c.l.b16 %v403
        %v848 = vunpack.c.l.b16 %v404
        %v849 = vunpack.c.l.b16 %v405
        %v850 = vunpack.c.l.b16 %v406
        %v851 = vunpack.c.l.b16 %v407
        %v852 = vunpack.c.l.b16 %v408
        %v853 = vunpack.c.l.b16 %v409
        %v854 = vunpack.c.l.b16 %v410
        %v855 = vunpack.c.l.b16 %v411
        %v856 = vunpack.c.l.b16 %v412
        %v857 = vunpack.c.l.b16 %v413
        %v858 = vunpack.c.l.b16 %v414
        %v859 = vunpack.c.l.b16 %v415
        %v860 = vunpack.c.l.b16 %v416
        %v861 = vunpack.c.l.b16 %v417
        %v862 = vpack.c.b16 %v667, %v666
        %v863 = vpack.c.b16 %v669, %v668
        %v864 = vpack.c.b16 %v671, %v670
        %v865 = vpack.c.b16 %v673, %v672
        %v866 = vpack.c.b16 %v675, %v674
        %v867 = vpack.c.b16 %v677, %v676
        %v868 = vpack.c.b16 %v679, %v678
        %v869 = vpack.c.b16 %v681, %v680
        %v870 = vpack.c.b16 %v683, %v682
        %v871 = vpack.c.b16 %v685, %v684
        %v872 = vpack.c.b16 %v687, %v686
        %v873 = vpack.c.b16 %v689, %v688
        %v874 = vpack.c.b16 %v691, %v690
        %v875 = vpack.c.b16 %v693, %v692
        %v876 = vpack.c.b16 %v695, %v694
        %v877 = vpack.c.b16 %v697, %v696
        %v878 = vpack.c.b16 %v699, %v698
        %v879 = vpack.c.b16 %v701, %v700
        %v880 = vpack.c.b16 %v703, %v702
        %v881 = vpack.c.b16 %v705, %v704
        %v882 = vpack.c.b16 %v707, %v706
        %v883 = vpack.c.b16 %v709, %v708
        %v884 = vpack.c.b16 %v711, %v710
        %v885 = vpack.c.b16 %v713, %v712
        %v886 = vpack.c.b16 %v715, %v714
        %v887 = vpack.c.b16 %v717, %v716
        %v888 = vpack.c.b16 %v719, %v718
        %v889 = vpack.c.b16 %v721, %v720
        %v890 = vpack.c.b16 %v723, %v722
        %v891 = vpack.c.b16 %v725, %v724
        %v892 = vpack.c.b16 %v727, %v726
        %v893 = vpack.c.b16 %v729, %v728
        %v894 = vpack.c.b16 %v731, %v730
        %v895 = vpack.c.b16 %v733, %v732
        %v896 = vpack.c.b16 %v735, %v734
        %v897 = vpack.c.b16 %v737, %v736
        %v898 = vpack.c.b16 %v739, %v738
        %v899 = vpack.c.b16 %v741, %v740
        %v900 = vpack.c.b16 %v743, %v742
        %v901 = vpack.c.b16 %v745, %v744
        %v902 = vpack.c.b16 %v747, %v746
        %v903 = vpack.c.b16 %v749, %v748
        %v904 = vpack.c.b16 %v751, %v750
        %v905 = vpack.c.b16 %v753, %v752
        %v906 = vpack.c.b16 %v755, %v754
        %v907 = vpack.c.b16 %v757, %v756
        %v908 = vpack.c.b16 %v759, %v758
        %v909 = vpack.c.b16 %v761, %v760
        %v910 = vpack.c.b16 %v763, %v762
        %v911 = vpack.c.b16 %v765, %v764
        %v912 = vpack.c.b16 %v767, %v766
        %v913 = vpack.c.b16 %v769, %v768
        %v914 = vpack.c.b16 %v771, %v770
        %v915 = vpack.c.b16 %v773, %v772
        %v916 = vpack.c.b16 %v775, %v774
        %v917 = vpack.c.b16 %v777, %v776
        %v918 = vpack.c.b16 %v779, %v778
        %v919 = vpack.c.b16 %v781, %v780
        %v920 = vpack.c.b16 %v783, %v782
        %v921 = vpack.c.b16 %v785, %v784
        %v922 = vpack.c.b16 %v787, %v786
        %v923 = vpack.c.b16 %v789, %v788
        %v924 = vpack.c.b16 %v791, %v790
        %v925 = vpack.c.b16 %v793, %v792
        %v926 = vpack.c.b16 %v795, %v794
        %v927 = vpack.c.b16 %v797, %v796
        %v928 = vpack.c.b16 %v799, %v798
        %v929 = vpack.c.b16 %v801, %v800
        %v930 = vpack.c.b16 %v803, %v802
        %v931 = vpack.c.b16 %v805, %v804
        %v932 = vpack.c.b16 %v807, %v806
        %v933 = vpack.c.b16 %v809, %v808
        %v934 = vpack.c.b16 %v811, %v810
        %v935 = vpack.c.b16 %v813, %v812
        %v936 = vpack.c.b16 %v815, %v814
        %v937 = vpack.c.b16 %v817, %v816
        %v938 = vpack.c.b16 %v819, %v818
        %v939 = vpack.c.b16 %v821, %v820
        %v940 = vpack.c.b16 %v823, %v822
        %v941 = vpack.c.b16 %v825, %v824
        %v942 = vpack.c.b16 %v827, %v826
        %v943 = vpack.c.b16 %v829, %v828
        %v944 = vpack.c.b16 %v831, %v830
        %v945 = vpack.c.b16 %v833, %v832
        %v946 = vpack.c.b16 %v835, %v834
        %v947 = vpack.c.b16 %v837, %v836
        %v948 = vpack.c.b16 %v839, %v838
        %v949 = vpack.c.b16 %v841, %v840
        %v950 = vpack.c.b16 %v843, %v842
        %v951 = vpack.c.b16 %v845, %v844
        %v952 = vpack.c.b16 %v847, %v846
        %v953 = vpack.c.b16 %v849, %v848
        %v954 = vpack.c.b16 %v851, %v850
        %v955 = vpack.c.b16 %v853, %v852
        %v956 = vpack.c.b16 %v855, %v854
        %v957 = vpack.c.b16 %v857, %v856
        %v958 = vpack.c.b16 %v859, %v858
        %v959 = vpack.c.b16 %v861, %v860
        %vm1058 = vcmask 261120
        %v1060 = vsel %vm1058, %v457, 0
        %1062 = vmatprep.subr.bf16.mxu0 0
        %1063 = vmatpush1.bf16.msra.mxu0 %v862
        %1064 = vmatprep.subr.bf16.mxu0 0
        %1065 = vmatpush1.bf16.msra.mxu0 %v863
        %1066 = vmatprep.subr.bf16.mxu0 0
        %1067 = vmatpush1.bf16.msra.mxu0 %v864
        %1068 = vmatprep.subr.bf16.mxu0 0
        %1069 = vmatpush1.bf16.msra.mxu0 %v865
        %1070 = vmatprep.subr.bf16.mxu0 0
        %1071 = vmatpush1.bf16.msra.mxu0 %v866
        %1072 = vmatprep.subr.bf16.mxu0 0
        %1073 = vmatpush1.bf16.msra.mxu0 %v867
        %1074 = vmatprep.subr.bf16.mxu0 0
        %1075 = vmatpush1.bf16.msra.mxu0 %v868
        %1076 = vmatprep.subr.bf16.mxu0 0
        %1077 = vmatpush1.bf16.msra.mxu0 %v869
        %1078 = vmatprep.subr.bf16.mxu0 0
        %1079 = vmatpush1.bf16.msra.mxu0 %v870
        %1080 = vmatprep.subr.bf16.mxu0 0
        %1081 = vmatpush1.bf16.msra.mxu0 %v871
        %1082 = vmatprep.subr.bf16.mxu0 0
        %1083 = vmatpush1.bf16.msra.mxu0 %v872
        %1084 = vmatprep.subr.bf16.mxu0 0
        %1085 = vmatpush1.bf16.msra.mxu0 %v873
        %1086 = vmatprep.subr.bf16.mxu0 0
        %1087 = vmatpush1.bf16.msra.mxu0 %v874
        %1088 = vmatprep.subr.bf16.mxu0 0
        %1089 = vmatpush1.bf16.msra.mxu0 %v875
        %1090 = vmatprep.subr.bf16.mxu0 0
        %1091 = vmatpush1.bf16.msra.mxu0 %v876
        %1092 = vmatprep.subr.bf16.mxu0 0
        %1093 = vmatpush1.bf16.msra.mxu0 %v877
        %1094 = vmatprep.mubr.bf16.mxu0 %v446
        %1095 = vmatmul.mubr.bf16.gmra.mrb[0].mxu0 %v445
        %v1096 = vpop.f32.mrb[0].mxu0
        %v1097 = vadd.f32 %v423, %v1096
        %v1098 = vpop.f32.mrb[0].mxu0
        %v1099 = vpop.f32.mrb[0].mxu0
        %v1100 = vpop.f32.mrb[0].mxu0
        %1101 = vdwg.mxu0
        %1102 = vmatprep.subr.bf16.mxu0 0
        %1103 = vmatpush1.bf16.msra.mxu0 %v878
        %1104 = vmatprep.subr.bf16.mxu0 0
        %1105 = vmatpush1.bf16.msra.mxu0 %v879
        %1106 = vmatprep.subr.bf16.mxu0 0
        %1107 = vmatpush1.bf16.msra.mxu0 %v880
        %1108 = vmatprep.subr.bf16.mxu0 0
        %1109 = vmatpush1.bf16.msra.mxu0 %v881
        %1110 = vmatprep.subr.bf16.mxu0 0
        %1111 = vmatpush1.bf16.msra.mxu0 %v882
        %1112 = vmatprep.subr.bf16.mxu0 0
        %1113 = vmatpush1.bf16.msra.mxu0 %v883
        %1114 = vmatprep.subr.bf16.mxu0 0
        %1115 = vmatpush1.bf16.msra.mxu0 %v884
        %1116 = vmatprep.subr.bf16.mxu0 0
        %1117 = vmatpush1.bf16.msra.mxu0 %v885
        %1118 = vmatprep.subr.bf16.mxu0 0
        %1119 = vmatpush1.bf16.msra.mxu0 %v886
        %1120 = vmatprep.subr.bf16.mxu0 0
        %1121 = vmatpush1.bf16.msra.mxu0 %v887
        %1122 = vmatprep.subr.bf16.mxu0 0
        %1123 = vmatpush1.bf16.msra.mxu0 %v888
        %1124 = vmatprep.subr.bf16.mxu0 0
        %1125 = vmatpush1.bf16.msra.mxu0 %v889
        %1126 = vmatprep.subr.bf16.mxu0 0
        %1127 = vmatpush1.bf16.msra.mxu0 %v890
        %1128 = vmatprep.subr.bf16.mxu0 0
        %1129 = vmatpush1.bf16.msra.mxu0 %v891
        %1130 = vmatprep.subr.bf16.mxu0 0
        %1131 = vmatpush1.bf16.msra.mxu0 %v892
        %1132 = vmatprep.subr.bf16.mxu0 0
        %1133 = vmatpush1.bf16.msra.mxu0 %v893
        %1134 = vmatprep.mubr.bf16.mxu0 %v448
        %1135 = vmatmul.mubr.bf16.gmra.mrb[0].mxu0 %v447
        %v1136 = vpop.f32.mrb[0].mxu0
        %v1137 = vadd.f32 %v1097, %v1136
        %v1138 = vpop.f32.mrb[0].mxu0
        %v1139 = vpop.f32.mrb[0].mxu0
        %v1140 = vpop.f32.mrb[0].mxu0
        %1141 = vdwg.mxu0
        %1142 = vmatprep.subr.bf16.mxu0 0
        %1143 = vmatpush1.bf16.msra.mxu0 %v894
        %1144 = vmatprep.subr.bf16.mxu0 0
        %1145 = vmatpush1.bf16.msra.mxu0 %v895
        %1146 = vmatprep.subr.bf16.mxu0 0
        %1147 = vmatpush1.bf16.msra.mxu0 %v896
        %1148 = vmatprep.subr.bf16.mxu0 0
        %1149 = vmatpush1.bf16.msra.mxu0 %v897
        %1150 = vmatprep.subr.bf16.mxu0 0
        %1151 = vmatpush1.bf16.msra.mxu0 %v898
        %1152 = vmatprep.subr.bf16.mxu0 0
        %1153 = vmatpush1.bf16.msra.mxu0 %v899
        %1154 = vmatprep.subr.bf16.mxu0 0
        %1155 = vmatpush1.bf16.msra.mxu0 %v900
        %1156 = vmatprep.subr.bf16.mxu0 0
        %1157 = vmatpush1.bf16.msra.mxu0 %v901
        %1158 = vmatprep.subr.bf16.mxu0 0
        %1159 = vmatpush1.bf16.msra.mxu0 %v902
        %1160 = vmatprep.subr.bf16.mxu0 0
        %1161 = vmatpush1.bf16.msra.mxu0 %v903
        %1162 = vmatprep.subr.bf16.mxu0 0
        %1163 = vmatpush1.bf16.msra.mxu0 %v904
        %1164 = vmatprep.subr.bf16.mxu0 0
        %1165 = vmatpush1.bf16.msra.mxu0 %v905
        %1166 = vmatprep.subr.bf16.mxu0 0
        %1167 = vmatpush1.bf16.msra.mxu0 %v906
        %1168 = vmatprep.subr.bf16.mxu0 0
        %1169 = vmatpush1.bf16.msra.mxu0 %v907
        %1170 = vmatprep.subr.bf16.mxu0 0
        %1171 = vmatpush1.bf16.msra.mxu0 %v908
        %1172 = vmatprep.subr.bf16.mxu0 0
        %1173 = vmatpush1.bf16.msra.mxu0 %v909
        %1174 = vmatprep.mubr.bf16.mxu0 %v450
        %1175 = vmatmul.mubr.bf16.gmra.mrb[0].mxu0 %v449
        %v1176 = vpop.f32.mrb[0].mxu0
        %v1177 = vadd.f32 %v1137, %v1176
        %v1178 = vpop.f32.mrb[0].mxu0
        %v1179 = vpop.f32.mrb[0].mxu0
        %v1180 = vpop.f32.mrb[0].mxu0
        %1181 = vdwg.mxu0
        %1182 = vmatprep.subr.bf16.mxu0 0
        %1183 = vmatpush1.bf16.msra.mxu0 %v910
        %1184 = vmatprep.subr.bf16.mxu0 0
        %1185 = vmatpush1.bf16.msra.mxu0 %v911
        %1186 = vmatprep.subr.bf16.mxu0 0
        %1187 = vmatpush1.bf16.msra.mxu0 %v912
        %1188 = vmatprep.subr.bf16.mxu0 0
        %1189 = vmatpush1.bf16.msra.mxu0 %v913
        %1190 = vmatprep.subr.bf16.mxu0 0
        %1191 = vmatpush1.bf16.msra.mxu0 %v914
        %1192 = vmatprep.subr.bf16.mxu0 0
        %1193 = vmatpush1.bf16.msra.mxu0 %v915
        %1194 = vmatprep.subr.bf16.mxu0 0
        %1195 = vmatpush1.bf16.msra.mxu0 %v916
        %1196 = vmatprep.subr.bf16.mxu0 0
        %1197 = vmatpush1.bf16.msra.mxu0 %v917
        %1198 = vmatprep.subr.bf16.mxu0 0
        %1199 = vmatpush1.bf16.msra.mxu0 %v918
        %1200 = vmatprep.subr.bf16.mxu0 0
        %1201 = vmatpush1.bf16.msra.mxu0 %v919
        %1202 = vmatprep.subr.bf16.mxu0 0
        %1203 = vmatpush1.bf16.msra.mxu0 %v920
        %1204 = vmatprep.subr.bf16.mxu0 0
        %1205 = vmatpush1.bf16.msra.mxu0 %v921
        %1206 = vmatprep.subr.bf16.mxu0 0
        %1207 = vmatpush1.bf16.msra.mxu0 %v922
        %1208 = vmatprep.subr.bf16.mxu0 0
        %1209 = vmatpush1.bf16.msra.mxu0 %v923
        %1210 = vmatprep.subr.bf16.mxu0 0
        %1211 = vmatpush1.bf16.msra.mxu0 %v924
        %1212 = vmatprep.subr.bf16.mxu0 0
        %1213 = vmatpush1.bf16.msra.mxu0 %v925
        %1214 = vmatprep.mubr.bf16.mxu0 %v452
        %1215 = vmatmul.mubr.bf16.gmra.mrb[0].mxu0 %v451
        %v1216 = vpop.f32.mrb[0].mxu0
        %v1217 = vadd.f32 %v1177, %v1216
        %v1218 = vpop.f32.mrb[0].mxu0
        %v1219 = vpop.f32.mrb[0].mxu0
        %v1220 = vpop.f32.mrb[0].mxu0
        %1221 = vdwg.mxu0
        %1222 = vmatprep.subr.bf16.mxu0 0
        %1223 = vmatpush1.bf16.msra.mxu0 %v926
        %1224 = vmatprep.subr.bf16.mxu0 0
        %1225 = vmatpush1.bf16.msra.mxu0 %v927
        %1226 = vmatprep.subr.bf16.mxu0 0
        %1227 = vmatpush1.bf16.msra.mxu0 %v928
        %1228 = vmatprep.subr.bf16.mxu0 0
        %1229 = vmatpush1.bf16.msra.mxu0 %v929
        %1230 = vmatprep.subr.bf16.mxu0 0
        %1231 = vmatpush1.bf16.msra.mxu0 %v930
        %1232 = vmatprep.subr.bf16.mxu0 0
        %1233 = vmatpush1.bf16.msra.mxu0 %v931
        %1234 = vmatprep.subr.bf16.mxu0 0
        %1235 = vmatpush1.bf16.msra.mxu0 %v932
        %1236 = vmatprep.subr.bf16.mxu0 0
        %1237 = vmatpush1.bf16.msra.mxu0 %v933
        %1238 = vmatprep.subr.bf16.mxu0 0
        %1239 = vmatpush1.bf16.msra.mxu0 %v934
        %1240 = vmatprep.subr.bf16.mxu0 0
        %1241 = vmatpush1.bf16.msra.mxu0 %v935
        %1242 = vmatprep.subr.bf16.mxu0 0
        %1243 = vmatpush1.bf16.msra.mxu0 %v936
        %1244 = vmatprep.subr.bf16.mxu0 0
        %1245 = vmatpush1.bf16.msra.mxu0 %v937
        %1246 = vmatprep.subr.bf16.mxu0 0
        %1247 = vmatpush1.bf16.msra.mxu0 %v938
        %1248 = vmatprep.subr.bf16.mxu0 0
        %1249 = vmatpush1.bf16.msra.mxu0 %v939
        %1250 = vmatprep.subr.bf16.mxu0 0
        %1251 = vmatpush1.bf16.msra.mxu0 %v940
        %1252 = vmatprep.subr.bf16.mxu0 0
        %1253 = vmatpush1.bf16.msra.mxu0 %v941
        %1254 = vmatprep.mubr.bf16.mxu0 %v454
        %1255 = vmatmul.mubr.bf16.gmra.mrb[0].mxu0 %v453
        %v1256 = vpop.f32.mrb[0].mxu0
        %v1257 = vadd.f32 %v1217, %v1256
        %v1258 = vpop.f32.mrb[0].mxu0
        %v1259 = vpop.f32.mrb[0].mxu0
        %v1260 = vpop.f32.mrb[0].mxu0
        %1261 = vdwg.mxu0
        %1262 = vmatprep.subr.bf16.mxu0 0
        %1263 = vmatpush1.bf16.msra.mxu0 %v942
        %1264 = vmatprep.subr.bf16.mxu0 0
        %1265 = vmatpush1.bf16.msra.mxu0 %v943
        %1266 = vmatprep.subr.bf16.mxu0 0
        %1267 = vmatpush1.bf16.msra.mxu0 %v944
        %1268 = vmatprep.subr.bf16.mxu0 0
        %1269 = vmatpush1.bf16.msra.mxu0 %v945
        %1270 = vmatprep.subr.bf16.mxu0 0
        %1271 = vmatpush1.bf16.msra.mxu0 %v946
        %1272 = vmatprep.subr.bf16.mxu0 0
        %1273 = vmatpush1.bf16.msra.mxu0 %v947
        %1274 = vmatprep.subr.bf16.mxu0 0
        %1275 = vmatpush1.bf16.msra.mxu0 %v948
        %1276 = vmatprep.subr.bf16.mxu0 0
        %1277 = vmatpush1.bf16.msra.mxu0 %v949
        %1278 = vmatprep.subr.bf16.mxu0 0
        %1279 = vmatpush1.bf16.msra.mxu0 %v950
        %1280 = vmatprep.subr.bf16.mxu0 0
        %1281 = vmatpush1.bf16.msra.mxu0 %v951
        %1282 = vmatprep.subr.bf16.mxu0 0
        %1283 = vmatpush1.bf16.msra.mxu0 %v952
        %1284 = vmatprep.subr.bf16.mxu0 0
        %1285 = vmatpush1.bf16.msra.mxu0 %v953
        %1286 = vmatprep.subr.bf16.mxu0 0
        %1287 = vmatpush1.bf16.msra.mxu0 %v954
        %1288 = vmatprep.subr.bf16.mxu0 0
        %1289 = vmatpush1.bf16.msra.mxu0 %v955
        %1290 = vmatprep.subr.bf16.mxu0 0
        %1291 = vmatpush1.bf16.msra.mxu0 %v956
        %1292 = vmatprep.subr.bf16.mxu0 0
        %1293 = vmatpush1.bf16.msra.mxu0 %v957
        %1294 = vmatprep.mubr.bf16.mxu0 %v456
        %1295 = vmatmul.mubr.bf16.gmra.mrb[0].mxu0 %v455
        %v1296 = vpop.f32.mrb[0].mxu0
        %v1297 = vadd.f32 %v1257, %v1296
        %v1298 = vpop.f32.mrb[0].mxu0
        %v1299 = vpop.f32.mrb[0].mxu0
        %v1300 = vpop.f32.mrb[0].mxu0
        %1301 = vdwg.mxu0
        %1302 = vmatprep.subr.bf16.mxu0 0
        %1303 = vmatpush1.bf16.msra.mxu0 %v958
        %1304 = vmatprep.subr.bf16.mxu0 0
        %1305 = vmatpush1.bf16.msra.mxu0 %v959
        %1306 = vmatprep.subr.bf16.mxu0 0
        %1307 = vmatpush1.bf16.msra.mxu0 0
        %1308 = vmatprep.subr.bf16.mxu0 0
        %1309 = vmatpush1.bf16.msra.mxu0 0
        %1310 = vmatprep.subr.bf16.mxu0 0
        %1311 = vmatpush1.bf16.msra.mxu0 0
        %1312 = vmatprep.subr.bf16.mxu0 0
        %1313 = vmatpush1.bf16.msra.mxu0 0
        %1314 = vmatprep.subr.bf16.mxu0 0
        %1315 = vmatpush1.bf16.msra.mxu0 0
        %1316 = vmatprep.subr.bf16.mxu0 0
        %1317 = vmatpush1.bf16.msra.mxu0 0
        %1318 = vmatprep.subr.bf16.mxu0 0
        %1319 = vmatpush1.bf16.msra.mxu0 0
        %1320 = vmatprep.subr.bf16.mxu0 0
        %1321 = vmatpush1.bf16.msra.mxu0 0
        %1322 = vmatprep.subr.bf16.mxu0 0
        %1323 = vmatpush1.bf16.msra.mxu0 0
        %1324 = vmatprep.subr.bf16.mxu0 0
        %1325 = vmatpush1.bf16.msra.mxu0 0
        %1326 = vmatprep.subr.bf16.mxu0 0
        %1327 = vmatpush1.bf16.msra.mxu0 0
        %1328 = vmatprep.subr.bf16.mxu0 0
        %1329 = vmatpush1.bf16.msra.mxu0 0
        %1330 = vmatprep.subr.bf16.mxu0 0
        %1331 = vmatpush1.bf16.msra.mxu0 0
        %1332 = vmatprep.subr.bf16.mxu0 0
        %1333 = vmatpush1.bf16.msra.mxu0 0
        %1334 = vmatprep.mubr.bf16.mxu0 0
        %1335 = vmatmul.mubr.bf16.gmra.mrb[0].mxu0 %v1060
        %v1336 = vpop.f32.mrb[0].mxu0
        %v1337 = vadd.f32 %v1297, %v1336
        %v1338 = vpop.f32.mrb[0].mxu0
        %v1339 = vpop.f32.mrb[0].mxu0
        %v1340 = vpop.f32.mrb[0].mxu0
        %1341 = vdwg.mxu0
        %v1342 = vmax.f32 %v1337, 0.0
        %v1343 = vpack.c.bf16 %v1342, %v1342
        %vm1344 = vcmask 257024
        %1345 = vst.msk [vmem:[%s213] sm:$0xf] %vm1344, %v1343
        %s1346 = sand.u32 %s97, 1
        %s1347 = scalar_lea.sflag [#allocation4], %s1346
        %s1348 = sand.u32 %s97, 1
        %s1349 = smul.addr %s1348, 4
        %s1350 = scalar_lea.vmem [#allocation8], %s1349
        // Predicated region
        $region45: #{multi_field_at_conv2d.8} parent=31 // pred_check
          %p1351 = pneg %p107
        $region46: #{multi_field_at_conv2d.8} parent=31 // pred_check_branch
          %1353 = sbr.rel (%p1351) target = $region48
        $region47: #{multi_field_at_conv2d.8} parent=31 // pred_region
          %s1355 = ssub.s32 64, 64
          %1356 = vsyncadd %s1347, %s1355
          %s1357 = smul.addr %s21, 64
          %s1358 = scalar_lea.hbm %s3, %s1357
          %s1360 = sshll.u32 %s1350, 4
          %s1361 = int_to_ptr.vmem [resolvable:$true] %s1360
          %1363 = dma.vmem_to_hbm [thread:$0]  %s1361, 64, %s1358, %s1347
        $region48: #{multi_field_at_conv2d.8} parent=31 // pred_fallthru
          _
      $region32: #{multi_field_at_conv2d.8} parent=5 // pred_fallthru
        _
      %p1364 = scmp.le.s32.totalorder 2, %s16
      // Predicated region
      $region49: #{multi_field_at_conv2d.8} parent=5 // pred_check
        %p1365 = pneg %p1364
      $region50: #{multi_field_at_conv2d.8} parent=5 // pred_check_branch
        %1367 = sbr.rel (%p1365) target = $region52
      $region51: #{multi_field_at_conv2d.8} parent=5 // pred_region
        %s1368 = ssub.s32 %s16, 2
        // Predicated region
        $region53: #{multi_field_at_conv2d.8} parent=51 // pred_check
          %p1369 = pneg %p113
        $region54: #{multi_field_at_conv2d.8} parent=51 // pred_check_branch
          %1371 = sbr.rel (%p1369) target = $region56
        $region55: #{multi_field_at_conv2d.8} parent=51 // pred_region
          %s1372 = sand.u32 %s98, 1
          %s1373 = scalar_lea.sflag [#allocation4], %s1372
          %s1374 = sand.u32 %s98, 1
          %s1375 = smul.addr %s1374, 4
          %s1376 = scalar_lea.vmem [#allocation8], %s1375
          %1377 = dma.done %s1373, 64
        $region56: #{multi_field_at_conv2d.8} parent=51 // pred_fallthru
          _
      $region52: #{multi_field_at_conv2d.8} parent=5 // pred_fallthru
        _
    $region6: #{multi_field_at_conv2d.8} parent=1 // loop_footer
      %s20 = sadd.s32 1, %s16
    $region7: #{multi_field_at_conv2d.8} parent=1 // loop_footer_branch
      %15 = sbr.rel target = $region3
    $region8: #{multi_field_at_conv2d.8} parent=1 // loop_exit
      _
    %1378 = vsyncpa [#allocation3], 1
    %s1379 = scalar_lea.sflag [#allocation3], 1
    %1380 = vsyncpa %s1379, 1
    %1381 = vsyncpa [#allocation6], 1
    %1382 = vsyncpa [#allocation4], 1
    %s1383 = scalar_lea.sflag [#allocation4], 1
    %1384 = vsyncpa %s1383, 1

// kernel: multi_field_at_conv2d.9
$region0: #{multi_field_at_conv2d.9}
  #allocation0 [shape = 'u32[]', space=smem, size = 0x4, offset = 0x4, fixed_abs, tag = 'smem constant byte address 0x4 - core index']
  #allocation1 [shape = 'u32[144,128]{1,0:T(1,128)}', space=vmem, size = 0x12000, scoped, tag = 'internal scratch']
  %s0 = inlined_call_operand.hbm [shape: bf16[32,288], index: 0, kind: input, shape index: {}]
  %s1 = inlined_call_operand.hbm [shape: bf16[288,32], index: 1, kind: input, shape index: {}]
  %s2 = inlined_call_operand.hbm [shape: f32[1,32], index: 2, kind: input, shape index: {}]
  %s3 = inlined_call_operand.hbm [shape: bf16[32,32], index: 3, kind: input, shape index: {}]
  %s4 = inlined_call_operand.hbm [shape: bf16[32,32], index: 4, kind: output, shape index: {}]
  %s5 = sld [smem:[#allocation0]]
  $region65: #{multi_field_at_conv2d.9} parent=0
    _
  %s7 = ssub.s32 1, %s5
  %s8 = scalar_select 0, %s7, %s5
  $region1: #{multi_field_at_conv2d.9} parent=0
    #allocation2 [shape = 'u8[12288]{0}', space=vmem, size = 0x3000, scoped, tag = 'input window, operand 0']
    #allocation3 [shape = 's32[2]{0}', space=sflag, size = 0x8, scoped, tag = 'scoped memory for multi_field_at_conv2d.9']
    #allocation4 [shape = 's32[2]{0}', space=sflag, size = 0x8, scoped, tag = 'scoped memory for multi_field_at_conv2d.9']
    #allocation5 [shape = 'u8[73728]{0}', space=vmem, size = 0x12000, scoped, tag = 'input window, operand 1, single buffered']
    #allocation6 [shape = 's32[1]{0}', space=sflag, size = 0x4, scoped, tag = 'scoped memory for multi_field_at_conv2d.9']
    #allocation7 [shape = 'u8[512]{0}', space=vmem, size = 0x400, scoped, tag = 'input window, operand 2, single buffered']
    #allocation8 [shape = 'u8[8192]{0}', space=vmem, size = 0x2000, scoped, tag = 'input window, operand 3, single buffered']
    #allocation9 [shape = 's32[1]{0}', space=sflag, size = 0x4, scoped, tag = 'scoped memory for multi_field_at_conv2d.9']
    #allocation10 [shape = 'u8[4096]{0}', space=vmem, size = 0x1000, scoped, tag = 'output window, operand 0']
    %9 = vsyncpa [#allocation3], 0
    %s10 = scalar_lea.sflag [#allocation3], 1
    %11 = vsyncpa %s10, 0
    %12 = vsyncpa [#allocation6], 0
    %13 = vsyncpa [#allocation9], 0
    %14 = vsyncpa [#allocation4], 0
    %s15 = scalar_lea.sflag [#allocation4], 1
    %16 = vsyncpa %s15, 0
    loop: start=0, step=1, limit=6
    $region2: #{multi_field_at_conv2d.9} parent=1 // loop_pre_header
      _
    $region3: #{multi_field_at_conv2d.9} parent=1 // loop_header
      %s18 = sphi 0, %s22
      %p19 = scmp.ge.s32.totalorder %s18, 6
      %s28 = sphi 0, %s30
      %s31 = sphi 0, %s28
      %s32 = sphi 0, %s31
      %s48 = sphi 0, %s32
      %s52 = sphi 0, %s52
      %s54 = sphi 0, %s52
      %s55 = sphi 0, %s54
      %s69 = sphi 0, %s55
      %s73 = sphi 0, %s73
      %s75 = sphi 0, %s73
      %s76 = sphi 0, %s75
      %s90 = sphi 0, %s76
      %s94 = sphi 0, %s94
      %s96 = sphi 0, %s94
      %s97 = sphi 0, %s96
      %s111 = sphi 0, %s97
      %s117 = sphi 0, %s119
      %s120 = sphi 0, %s117
      %s121 = sphi 0, %s120
      %s137 = sphi 0, %s121
    $region4: #{multi_field_at_conv2d.9} parent=1 // loop_header_branch
      %21 = sbr.rel (%p19) target = $region8
    $region5: #{multi_field_at_conv2d.9} parent=1 // loop_body
      %s23 = ssub.s32 %s18, 1
      %s24 = ssub.s32 %s18, 2
      %s25 = sadd.s32 %s18, 1
      %s26 = ssub.s32 %s18, %s25
      %p27 = scmp.eq.s32.totalorder %s26, 0
      %s29 = sadd.s32 %s28, 1
      %s30 = scalar_select %p27, %s28, %s29
      %p33 = pneg %p27
      %p34 = scmp.eq.s32.totalorder %s18, 3
      %p35 = por %p33, %p34
      %p36 = scmp.ne.s32.totalorder %s28, %s31
      %p37 = scmp.eq.s32.totalorder %s18, 0
      %p38 = por %p36, %p37
      %p39 = scmp.ne.s32.totalorder %s28, %s31
      %p40 = scmp.eq.s32.totalorder %s23, 3
      %p41 = por %p39, %p40
      %p42 = scmp.ne.s32.totalorder %s31, %s32
      %p43 = scmp.eq.s32.totalorder %s23, 0
      %p44 = por %p42, %p43
      %p45 = scmp.ne.s32.totalorder %s31, %s32
      %p46 = scmp.eq.s32.totalorder %s24, 3
      %p47 = por %p45, %p46
      %p49 = scmp.ne.s32.totalorder %s32, %s48
      %p50 = scmp.eq.s32.totalorder %s24, 0
      %p51 = por %p49, %p50
      %s53 = sadd.s32 %s52, 1
      %p56 = scmp.eq.s32.totalorder %s18, 3
      %p57 = scmp.ne.s32.totalorder %s52, %s54
      %p58 = scmp.eq.s32.totalorder %s18, 0
      %p59 = por %p57, %p58
      %p60 = scmp.ne.s32.totalorder %s52, %s54
      %p61 = scmp.eq.s32.totalorder %s23, 3
      %p62 = por %p60, %p61
      %p63 = scmp.ne.s32.totalorder %s54, %s55
      %p64 = scmp.eq.s32.totalorder %s23, 0
      %p65 = por %p63, %p64
      %p66 = scmp.ne.s32.totalorder %s54, %s55
      %p67 = scmp.eq.s32.totalorder %s24, 3
      %p68 = por %p66, %p67
      %p70 = scmp.ne.s32.totalorder %s55, %s69
      %p71 = scmp.eq.s32.totalorder %s24, 0
      %p72 = por %p70, %p71
      %s74 = sadd.s32 %s73, 1
      %p77 = scmp.eq.s32.totalorder %s18, 3
      %p78 = scmp.ne.s32.totalorder %s73, %s75
      %p79 = scmp.eq.s32.totalorder %s18, 0
      %p80 = por %p78, %p79
      %p81 = scmp.ne.s32.totalorder %s73, %s75
      %p82 = scmp.eq.s32.totalorder %s23, 3
      %p83 = por %p81, %p82
      %p84 = scmp.ne.s32.totalorder %s75, %s76
      %p85 = scmp.eq.s32.totalorder %s23, 0
      %p86 = por %p84, %p85
      %p87 = scmp.ne.s32.totalorder %s75, %s76
      %p88 = scmp.eq.s32.totalorder %s24, 3
      %p89 = por %p87, %p88
      %p91 = scmp.ne.s32.totalorder %s76, %s90
      %p92 = scmp.eq.s32.totalorder %s24, 0
      %p93 = por %p91, %p92
      %s95 = sadd.s32 %s94, 1
      %p98 = scmp.eq.s32.totalorder %s18, 3
      %p99 = scmp.ne.s32.totalorder %s94, %s96
      %p100 = scmp.eq.s32.totalorder %s18, 0
      %p101 = por %p99, %p100
      %p102 = scmp.ne.s32.totalorder %s94, %s96
      %p103 = scmp.eq.s32.totalorder %s23, 3
      %p104 = por %p102, %p103
      %p105 = scmp.ne.s32.totalorder %s96, %s97
      %p106 = scmp.eq.s32.totalorder %s23, 0
      %p107 = por %p105, %p106
      %p108 = scmp.ne.s32.totalorder %s96, %s97
      %p109 = scmp.eq.s32.totalorder %s24, 3
      %p110 = por %p108, %p109
      %p112 = scmp.ne.s32.totalorder %s97, %s111
      %p113 = scmp.eq.s32.totalorder %s24, 0
      %p114 = por %p112, %p113
      %s115 = ssub.s32 %s18, %s25
      %p116 = scmp.eq.s32.totalorder %s115, 0
      %s118 = sadd.s32 %s117, 1
      %s119 = scalar_select %p116, %s117, %s118
      %p122 = pneg %p116
      %p123 = scmp.eq.s32.totalorder %s18, 3
      %p124 = por %p122, %p123
      %p125 = scmp.ne.s32.totalorder %s117, %s120
      %p126 = scmp.eq.s32.totalorder %s18, 0
      %p127 = por %p125, %p126
      %p128 = scmp.ne.s32.totalorder %s117, %s120
      %p129 = scmp.eq.s32.totalorder %s23, 3
      %p130 = por %p128, %p129
      %p131 = scmp.ne.s32.totalorder %s120, %s121
      %p132 = scmp.eq.s32.totalorder %s23, 0
      %p133 = por %p131, %p132
      %p134 = scmp.ne.s32.totalorder %s120, %s121
      %p135 = scmp.eq.s32.totalorder %s24, 3
      %p136 = por %p134, %p135
      %p138 = scmp.ne.s32.totalorder %s121, %s137
      %p139 = scmp.eq.s32.totalorder %s24, 0
      %p140 = por %p138, %p139
      %p141 = scmp.le.s32.totalorder 1, %s18
      %p142 = scmp.lt.s32.totalorder %s18, 5
      %p143 = pnand %p141, %p142
      %p144 = pneg %p143
      // Predicated region
      $region9: #{multi_field_at_conv2d.9} parent=5 // pred_check
        _
      $region10: #{multi_field_at_conv2d.9} parent=5 // pred_check_branch
        %146 = sbr.rel (%p143) target = $region12
      $region11: #{multi_field_at_conv2d.9} parent=5 // pred_region
        %s147 = ssub.s32 %s18, 1
        // Predicated region
        $region13: #{multi_field_at_conv2d.9} parent=11 // pred_check
          %p148 = pneg %p65
        $region14: #{multi_field_at_conv2d.9} parent=11 // pred_check_branch
          %150 = sbr.rel (%p148) target = $region16
        $region15: #{multi_field_at_conv2d.9} parent=11 // pred_region
          %s152 = ssub.s32 2304, 2304
          %153 = vsyncadd [#allocation6], %s152
          %s154 = sshll.u32 [#allocation5], 4
          %s155 = int_to_ptr.vmem [resolvable:$true] %s154
          %160 = dma.hbm_to_vmem [thread:$0]  %s1, 2304, %s155, [#allocation6], 64, 64, 4
        $region16: #{multi_field_at_conv2d.9} parent=11 // pred_fallthru
          _
        // Predicated region
        $region17: #{multi_field_at_conv2d.9} parent=11 // pred_check
          %p161 = pneg %p86
        $region18: #{multi_field_at_conv2d.9} parent=11 // pred_check_branch
          %163 = sbr.rel (%p161) target = $region20
        $region19: #{multi_field_at_conv2d.9} parent=11 // pred_region
          %s165 = ssub.s32 16, 16
          %166 = vsyncadd [#allocation6], %s165
          %s168 = sshll.u32 [#allocation7], 4
          %s169 = int_to_ptr.vmem [resolvable:$true] %s168
          %171 = dma.hbm_to_vmem [thread:$0]  %s2, 16, %s169, [#allocation6]
        $region20: #{multi_field_at_conv2d.9} parent=11 // pred_fallthru
          _
        // Predicated region
        $region21: #{multi_field_at_conv2d.9} parent=11 // pred_check
          %p172 = pneg %p107
        $region22: #{multi_field_at_conv2d.9} parent=11 // pred_check_branch
          %174 = sbr.rel (%p172) target = $region24
        $region23: #{multi_field_at_conv2d.9} parent=11 // pred_region
          %s176 = ssub.s32 256, 256
          %177 = vsyncadd [#allocation9], %s176
          %s178 = sshll.u32 [#allocation8], 4
          %s179 = int_to_ptr.vmem [resolvable:$true] %s178
          %184 = dma.hbm_to_vmem [thread:$0]  %s3, 256, %s179, [#allocation9], 64, 64, 4
        $region24: #{multi_field_at_conv2d.9} parent=11 // pred_fallthru
          _
      $region12: #{multi_field_at_conv2d.9} parent=5 // pred_fallthru
        _
      %p185 = scmp.lt.s32.totalorder %s18, 4
      // Predicated region
      $region25: #{multi_field_at_conv2d.9} parent=5 // pred_check
        %p186 = pneg %p185
      $region26: #{multi_field_at_conv2d.9} parent=5 // pred_check_branch
        %188 = sbr.rel (%p186) target = $region28
      $region27: #{multi_field_at_conv2d.9} parent=5 // pred_region
        // Predicated region
        $region29: #{multi_field_at_conv2d.9} parent=27 // pred_check
          %p189 = pneg %p38
        $region30: #{multi_field_at_conv2d.9} parent=27 // pred_check_branch
          %191 = sbr.rel (%p189) target = $region32
        $region31: #{multi_field_at_conv2d.9} parent=27 // pred_region
          %s192 = sand.u32 %s28, 1
          %s193 = scalar_lea.sflag [#allocation3], %s192
          %s194 = sand.u32 %s28, 1
          %s195 = smul.addr %s194, 12
          %s196 = scalar_lea.vmem [#allocation2], %s195
          %s198 = ssub.s32 192, 192
          %199 = vsyncadd %s193, %s198
          %s200 = smul.addr %s18, 3
          %s201 = smul.addr %s200, 64
          %s202 = scalar_lea.hbm %s0, %s201
          %s204 = sshll.u32 %s196, 4
          %s205 = int_to_ptr.vmem [resolvable:$true] %s204
          %207 = dma.hbm_to_vmem [thread:$0]  %s202, 192, %s205, %s193
        $region32: #{multi_field_at_conv2d.9} parent=27 // pred_fallthru
          _
      $region28: #{multi_field_at_conv2d.9} parent=5 // pred_fallthru
        _
      %p208 = scmp.le.s32.totalorder 1, %s18
      %p209 = scmp.lt.s32.totalorder %s18, 5
      %p210 = pnand %p208, %p209
      %p211 = pneg %p210
      // Predicated region
      $region33: #{multi_field_at_conv2d.9} parent=5 // pred_check
        _
      $region34: #{multi_field_at_conv2d.9} parent=5 // pred_check_branch
        %213 = sbr.rel (%p210) target = $region36
      $region35: #{multi_field_at_conv2d.9} parent=5 // pred_region
        %s214 = ssub.s32 %s18, 1
        %s215 = sand.u32 %s31, 1
        %s216 = scalar_lea.sflag [#allocation3], %s215
        %s217 = sand.u32 %s31, 1
        %s218 = smul.addr %s217, 12
        %s219 = scalar_lea.vmem [#allocation2], %s218
        // Predicated region
        $region37: #{multi_field_at_conv2d.9} parent=35 // pred_check
          %p220 = pneg %p44
        $region38: #{multi_field_at_conv2d.9} parent=35 // pred_check_branch
          %222 = sbr.rel (%p220) target = $region40
        $region39: #{multi_field_at_conv2d.9} parent=35 // pred_region
          %223 = dma.done %s216, 192
        $region40: #{multi_field_at_conv2d.9} parent=35 // pred_fallthru
          _
        // Predicated region
        $region41: #{multi_field_at_conv2d.9} parent=35 // pred_check
          %p224 = pneg %p65
        $region42: #{multi_field_at_conv2d.9} parent=35 // pred_check_branch
          %226 = sbr.rel (%p224) target = $region44
        $region43: #{multi_field_at_conv2d.9} parent=35 // pred_region
          %227 = dma.done [#allocation6], 2304
        $region44: #{multi_field_at_conv2d.9} parent=35 // pred_fallthru
          _
        // Predicated region
        $region45: #{multi_field_at_conv2d.9} parent=35 // pred_check
          %p228 = pneg %p86
        $region46: #{multi_field_at_conv2d.9} parent=35 // pred_check_branch
          %230 = sbr.rel (%p228) target = $region48
        $region47: #{multi_field_at_conv2d.9} parent=35 // pred_region
          %231 = dma.done [#allocation6], 16
        $region48: #{multi_field_at_conv2d.9} parent=35 // pred_fallthru
          _
        // Predicated region
        $region49: #{multi_field_at_conv2d.9} parent=35 // pred_check
          %p232 = pneg %p107
        $region50: #{multi_field_at_conv2d.9} parent=35 // pred_check_branch
          %234 = sbr.rel (%p232) target = $region52
        $region51: #{multi_field_at_conv2d.9} parent=35 // pred_region
          %235 = dma.done [#allocation9], 256
        $region52: #{multi_field_at_conv2d.9} parent=35 // pred_fallthru
          _
        %s236 = sand.u32 %s31, 1
        %s237 = scalar_lea.sflag [#allocation3], %s236
        %s238 = sand.u32 %s31, 1
        %s239 = smul.addr %s238, 12
        %s240 = scalar_lea.vmem [#allocation2], %s239
        %p241 = pneg %p44
        %p242 = pneg %p41
        %p243 = pneg %p65
        %p244 = pneg %p62
        %p245 = pneg %p86
        %p246 = pneg %p83
        %p247 = pneg %p107
        %p248 = pneg %p104
        %p249 = pneg %p133
        %p250 = pneg %p130
        %s251 = sand.u32 %s120, 1
        %s252 = scalar_lea.sflag [#allocation4], %s251
        %s253 = sand.u32 %s120, 1
        %s254 = smul.addr %s253, 4
        %s255 = scalar_lea.vmem [#allocation10], %s254
        %v257 = vld [vmem:[%s219] sm:$0xff]
        %v258 = vld [vmem:[%s219 + $0x8] sm:$0xf]
        %v259 = vld [vmem:[#allocation5] sm:$0xf]
        %v260 = vld [vmem:[#allocation5 + $0x4] sm:$0xf]
        %v261 = vld [vmem:[#allocation5 + $0x8] sm:$0xf]
        %v262 = vld [vmem:[#allocation5 + $0xc] sm:$0xf]
        %v263 = vld [vmem:[#allocation5 + $0x10] sm:$0xf]
        %v264 = vld [vmem:[#allocation5 + $0x14] sm:$0xf]
        %v265 = vld [vmem:[#allocation5 + $0x18] sm:$0xf]
        %v266 = vld [vmem:[#allocation5 + $0x1c] sm:$0xf]
        %v267 = vld [vmem:[#allocation5 + $0x20] sm:$0xf]
        %v268 = vld [vmem:[#allocation5 + $0x24] sm:$0xf]
        %v269 = vld [vmem:[#allocation5 + $0x28] sm:$0xf]
        %v270 = vld [vmem:[#allocation5 + $0x2c] sm:$0xf]
        %v271 = vld [vmem:[#allocation5 + $0x30] sm:$0xf]
        %v272 = vld [vmem:[#allocation5 + $0x34] sm:$0xf]
        %v273 = vld [vmem:[#allocation5 + $0x38] sm:$0xf]
        %v274 = vld [vmem:[#allocation5 + $0x3c] sm:$0xf]
        %v275 = vld [vmem:[#allocation5 + $0x40] sm:$0xf]
        %v276 = vld [vmem:[#allocation5 + $0x44] sm:$0xf]
        %v277 = vld [vmem:[#allocation5 + $0x48] sm:$0xf]
        %v278 = vld [vmem:[#allocation5 + $0x4c] sm:$0xf]
        %v279 = vld [vmem:[#allocation5 + $0x50] sm:$0xf]
        %v280 = vld [vmem:[#allocation5 + $0x54] sm:$0xf]
        %v281 = vld [vmem:[#allocation5 + $0x58] sm:$0xf]
        %v282 = vld [vmem:[#allocation5 + $0x5c] sm:$0xf]
        %v283 = vld [vmem:[#allocation5 + $0x60] sm:$0xf]
        %v284 = vld [vmem:[#allocation5 + $0x64] sm:$0xf]
        %v285 = vld [vmem:[#allocation5 + $0x68] sm:$0xf]
        %v286 = vld [vmem:[#allocation5 + $0x6c] sm:$0xf]
        %v287 = vld [vmem:[#allocation5 + $0x70] sm:$0xf]
        %v288 = vld [vmem:[#allocation5 + $0x74] sm:$0xf]
        %v289 = vld [vmem:[#allocation5 + $0x78] sm:$0xf]
        %v290 = vld [vmem:[#allocation5 + $0x7c] sm:$0xf]
        %v291 = vld [vmem:[#allocation5 + $0x80] sm:$0xf]
        %v292 = vld [vmem:[#allocation5 + $0x84] sm:$0xf]
        %v293 = vld [vmem:[#allocation5 + $0x88] sm:$0xf]
        %v294 = vld [vmem:[#allocation5 + $0x8c] sm:$0xf]
        %v295 = vld [vmem:[#allocation7] sm:$0x1]
        %v297 = vlaneseq
        %v298 = vshrl.u32 %v297, 7
        %v299 = vsub.s32 0, %v298
        %v300 = vrot.slane %v295, %v299
        %v304 = vunpack.c.l.b16 %v257
        %v305 = vunpack.c.h.b16 %v257
        %v306 = vunpack.c.l.b16 %v258
        %v307 = vpack.c.b16 %v304, %v304
        %v308 = vpack.c.b16 %v305, %v305
        %v309 = vpack.c.b16 %v306, %v306
        %v348 = vunpack.c.l.b16 %v259
        %v349 = vunpack.c.l.b16 %v260
        %v350 = vunpack.c.l.b16 %v261
        %v351 = vunpack.c.l.b16 %v262
        %v352 = vunpack.c.l.b16 %v263
        %v353 = vunpack.c.l.b16 %v264
        %v354 = vunpack.c.l.b16 %v265
        %v355 = vunpack.c.l.b16 %v266
        %v356 = vunpack.c.l.b16 %v267
        %v357 = vunpack.c.l.b16 %v268
        %v358 = vunpack.c.l.b16 %v269
        %v359 = vunpack.c.l.b16 %v270
        %v360 = vunpack.c.l.b16 %v271
        %v361 = vunpack.c.l.b16 %v272
        %v362 = vunpack.c.l.b16 %v273
        %v363 = vunpack.c.l.b16 %v274
        %v364 = vunpack.c.l.b16 %v275
        %v365 = vunpack.c.l.b16 %v276
        %v366 = vunpack.c.l.b16 %v277
        %v367 = vunpack.c.l.b16 %v278
        %v368 = vunpack.c.l.b16 %v279
        %v369 = vunpack.c.l.b16 %v280
        %v370 = vunpack.c.l.b16 %v281
        %v371 = vunpack.c.l.b16 %v282
        %v372 = vunpack.c.l.b16 %v283
        %v373 = vunpack.c.l.b16 %v284
        %v374 = vunpack.c.l.b16 %v285
        %v375 = vunpack.c.l.b16 %v286
        %v376 = vunpack.c.l.b16 %v287
        %v377 = vunpack.c.l.b16 %v288
        %v378 = vunpack.c.l.b16 %v289
        %v379 = vunpack.c.l.b16 %v290
        %v380 = vunpack.c.l.b16 %v291
        %v381 = vunpack.c.l.b16 %v292
        %v382 = vunpack.c.l.b16 %v293
        %v383 = vunpack.c.l.b16 %v294
        %v384 = vpack.c.b16 %v349, %v348
        %v385 = vpack.c.b16 %v351, %v350
        %v386 = vpack.c.b16 %v353, %v352
        %v387 = vpack.c.b16 %v355, %v354
        %v388 = vpack.c.b16 %v357, %v356
        %v389 = vpack.c.b16 %v359, %v358
        %v390 = vpack.c.b16 %v361, %v360
        %v391 = vpack.c.b16 %v363, %v362
        %v392 = vpack.c.b16 %v365, %v364
        %v393 = vpack.c.b16 %v367, %v366
        %v394 = vpack.c.b16 %v369, %v368
        %v395 = vpack.c.b16 %v371, %v370
        %v396 = vpack.c.b16 %v373, %v372
        %v397 = vpack.c.b16 %v375, %v374
        %v398 = vpack.c.b16 %v377, %v376
        %v399 = vpack.c.b16 %v379, %v378
        %v400 = vpack.c.b16 %v381, %v380
        %v401 = vpack.c.b16 %v383, %v382
        %vm420 = vcmask 261120
        %v422 = vsel %vm420, %v309, 0
        %424 = vmatprep.subr.bf16.mxu0 0
        %425 = vmatpush1.bf16.msra.mxu0 %v384
        %426 = vmatprep.subr.bf16.mxu0 0
        %427 = vmatpush1.bf16.msra.mxu0 %v385
        %428 = vmatprep.subr.bf16.mxu0 0
        %429 = vmatpush1.bf16.msra.mxu0 %v386
        %430 = vmatprep.subr.bf16.mxu0 0
        %431 = vmatpush1.bf16.msra.mxu0 %v387
        %432 = vmatprep.subr.bf16.mxu0 0
        %433 = vmatpush1.bf16.msra.mxu0 %v388
        %434 = vmatprep.subr.bf16.mxu0 0
        %435 = vmatpush1.bf16.msra.mxu0 %v389
        %436 = vmatprep.subr.bf16.mxu0 0
        %437 = vmatpush1.bf16.msra.mxu0 %v390
        %438 = vmatprep.subr.bf16.mxu0 0
        %439 = vmatpush1.bf16.msra.mxu0 %v391
        %440 = vmatprep.subr.bf16.mxu0 0
        %441 = vmatpush1.bf16.msra.mxu0 %v392
        %442 = vmatprep.subr.bf16.mxu0 0
        %443 = vmatpush1.bf16.msra.mxu0 %v393
        %444 = vmatprep.subr.bf16.mxu0 0
        %445 = vmatpush1.bf16.msra.mxu0 %v394
        %446 = vmatprep.subr.bf16.mxu0 0
        %447 = vmatpush1.bf16.msra.mxu0 %v395
        %448 = vmatprep.subr.bf16.mxu0 0
        %449 = vmatpush1.bf16.msra.mxu0 %v396
        %450 = vmatprep.subr.bf16.mxu0 0
        %451 = vmatpush1.bf16.msra.mxu0 %v397
        %452 = vmatprep.subr.bf16.mxu0 0
        %453 = vmatpush1.bf16.msra.mxu0 %v398
        %454 = vmatprep.subr.bf16.mxu0 0
        %455 = vmatpush1.bf16.msra.mxu0 %v399
        %456 = vmatprep.mubr.bf16.mxu0 %v308
        %457 = vmatmul.mubr.bf16.gmra.mrb[0].mxu0 %v307
        %v458 = vpop.f32.mrb[0].mxu0
        %v459 = vadd.f32 %v300, %v458
        %v460 = vpop.f32.mrb[0].mxu0
        %v461 = vpop.f32.mrb[0].mxu0
        %v462 = vpop.f32.mrb[0].mxu0
        %463 = vdwg.mxu0
        %464 = vmatprep.subr.bf16.mxu0 0
        %465 = vmatpush1.bf16.msra.mxu0 %v400
        %466 = vmatprep.subr.bf16.mxu0 0
        %467 = vmatpush1.bf16.msra.mxu0 %v401
        %468 = vmatprep.subr.bf16.mxu0 0
        %469 = vmatpush1.bf16.msra.mxu0 0
        %470 = vmatprep.subr.bf16.mxu0 0
        %471 = vmatpush1.bf16.msra.mxu0 0
        %472 = vmatprep.subr.bf16.mxu0 0
        %473 = vmatpush1.bf16.msra.mxu0 0
        %474 = vmatprep.subr.bf16.mxu0 0
        %475 = vmatpush1.bf16.msra.mxu0 0
        %476 = vmatprep.subr.bf16.mxu0 0
        %477 = vmatpush1.bf16.msra.mxu0 0
        %478 = vmatprep.subr.bf16.mxu0 0
        %479 = vmatpush1.bf16.msra.mxu0 0
        %480 = vmatprep.subr.bf16.mxu0 0
        %481 = vmatpush1.bf16.msra.mxu0 0
        %482 = vmatprep.subr.bf16.mxu0 0
        %483 = vmatpush1.bf16.msra.mxu0 0
        %484 = vmatprep.subr.bf16.mxu0 0
        %485 = vmatpush1.bf16.msra.mxu0 0
        %486 = vmatprep.subr.bf16.mxu0 0
        %487 = vmatpush1.bf16.msra.mxu0 0
        %488 = vmatprep.subr.bf16.mxu0 0
        %489 = vmatpush1.bf16.msra.mxu0 0
        %490 = vmatprep.subr.bf16.mxu0 0
        %491 = vmatpush1.bf16.msra.mxu0 0
        %492 = vmatprep.subr.bf16.mxu0 0
        %493 = vmatpush1.bf16.msra.mxu0 0
        %494 = vmatprep.subr.bf16.mxu0 0
        %495 = vmatpush1.bf16.msra.mxu0 0
        %496 = vmatprep.mubr.bf16.mxu0 0
        %497 = vmatmul.mubr.bf16.gmra.mrb[0].mxu0 %v422
        %v498 = vpop.f32.mrb[0].mxu0
        %v499 = vadd.f32 %v459, %v498
        %v500 = vpop.f32.mrb[0].mxu0
        %v501 = vpop.f32.mrb[0].mxu0
        %v502 = vpop.f32.mrb[0].mxu0
        %503 = vdwg.mxu0
        %v504 = vmax.f32 %v499, 0.0
        %v505 = vpack.c.bf16 %v504, %v504
        %v506 = vld [vmem:[#allocation8] sm:$0xf]
        %v507 = vld [vmem:[#allocation8 + $0x4] sm:$0xf]
        %v508 = vld [vmem:[#allocation8 + $0x8] sm:$0xf]
        %v509 = vld [vmem:[#allocation8 + $0xc] sm:$0xf]
        %v514 = vunpack.c.l.b16 %v506
        %v515 = vunpack.c.l.b16 %v507
        %v516 = vunpack.c.l.b16 %v508
        %v517 = vunpack.c.l.b16 %v509
        %v518 = vpack.c.b16 %v515, %v514
        %v519 = vpack.c.b16 %v517, %v516
        %v523 = vsel %vm420, %v505, 0
        %525 = vmatprep.subr.bf16.mxu0 0
        %526 = vmatpush1.bf16.msra.mxu0 %v518
        %527 = vmatprep.subr.bf16.mxu0 0
        %528 = vmatpush1.bf16.msra.mxu0 %v519
        %529 = vmatprep.subr.bf16.mxu0 0
        %530 = vmatpush1.bf16.msra.mxu0 0
        %531 = vmatprep.subr.bf16.mxu0 0
        %532 = vmatpush1.bf16.msra.mxu0 0
        %533 = vmatprep.subr.bf16.mxu0 0
        %534 = vmatpush1.bf16.msra.mxu0 0
        %535 = vmatprep.subr.bf16.mxu0 0
        %536 = vmatpush1.bf16.msra.mxu0 0
        %537 = vmatprep.subr.bf16.mxu0 0
        %538 = vmatpush1.bf16.msra.mxu0 0
        %539 = vmatprep.subr.bf16.mxu0 0
        %540 = vmatpush1.bf16.msra.mxu0 0
        %541 = vmatprep.subr.bf16.mxu0 0
        %542 = vmatpush1.bf16.msra.mxu0 0
        %543 = vmatprep.subr.bf16.mxu0 0
        %544 = vmatpush1.bf16.msra.mxu0 0
        %545 = vmatprep.subr.bf16.mxu0 0
        %546 = vmatpush1.bf16.msra.mxu0 0
        %547 = vmatprep.subr.bf16.mxu0 0
        %548 = vmatpush1.bf16.msra.mxu0 0
        %549 = vmatprep.subr.bf16.mxu0 0
        %550 = vmatpush1.bf16.msra.mxu0 0
        %551 = vmatprep.subr.bf16.mxu0 0
        %552 = vmatpush1.bf16.msra.mxu0 0
        %553 = vmatprep.subr.bf16.mxu0 0
        %554 = vmatpush1.bf16.msra.mxu0 0
        %555 = vmatprep.subr.bf16.mxu0 0
        %556 = vmatpush1.bf16.msra.mxu0 0
        %557 = vmatprep.mubr.bf16.mxu0 0
        %558 = vmatmul.mubr.bf16.gmra.mrb[0].mxu0 %v523
        %v559 = vpop.f32.mrb[0].mxu0
        %v560 = vadd.f32 0.0, %v559
        %v561 = vpop.f32.mrb[0].mxu0
        %v562 = vpop.f32.mrb[0].mxu0
        %v563 = vpop.f32.mrb[0].mxu0
        %564 = vdwg.mxu0
        %v565 = vpack.c.bf16 %v560, %v560
        %vm566 = vcmask 257024
        %567 = vst.msk [vmem:[%s255] sm:$0xf] %vm566, %v565
        %s568 = sand.u32 %s120, 1
        %s569 = scalar_lea.sflag [#allocation4], %s568
        %s570 = sand.u32 %s120, 1
        %s571 = smul.addr %s570, 4
        %s572 = scalar_lea.vmem [#allocation10], %s571
        // Predicated region
        $region53: #{multi_field_at_conv2d.9} parent=35 // pred_check
          %p573 = pneg %p130
        $region54: #{multi_field_at_conv2d.9} parent=35 // pred_check_branch
          %575 = sbr.rel (%p573) target = $region56
        $region55: #{multi_field_at_conv2d.9} parent=35 // pred_region
          %s577 = ssub.s32 64, 64
          %578 = vsyncadd %s569, %s577
          %s579 = smul.addr %s23, 64
          %s580 = scalar_lea.hbm %s4, %s579
          %s582 = sshll.u32 %s572, 4
          %s583 = int_to_ptr.vmem [resolvable:$true] %s582
          %585 = dma.vmem_to_hbm [thread:$0]  %s583, 64, %s580, %s569
        $region56: #{multi_field_at_conv2d.9} parent=35 // pred_fallthru
          _
      $region36: #{multi_field_at_conv2d.9} parent=5 // pred_fallthru
        _
      %p586 = scmp.le.s32.totalorder 2, %s18
      // Predicated region
      $region57: #{multi_field_at_conv2d.9} parent=5 // pred_check
        %p587 = pneg %p586
      $region58: #{multi_field_at_conv2d.9} parent=5 // pred_check_branch
        %589 = sbr.rel (%p587) target = $region60
      $region59: #{multi_field_at_conv2d.9} parent=5 // pred_region
        %s590 = ssub.s32 %s18, 2
        // Predicated region
        $region61: #{multi_field_at_conv2d.9} parent=59 // pred_check
          %p591 = pneg %p136
        $region62: #{multi_field_at_conv2d.9} parent=59 // pred_check_branch
          %593 = sbr.rel (%p591) target = $region64
        $region63: #{multi_field_at_conv2d.9} parent=59 // pred_region
          %s594 = sand.u32 %s121, 1
          %s595 = scalar_lea.sflag [#allocation4], %s594
          %s596 = sand.u32 %s121, 1
          %s597 = smul.addr %s596, 4
          %s598 = scalar_lea.vmem [#allocation10], %s597
          %599 = dma.done %s595, 64
        $region64: #{multi_field_at_conv2d.9} parent=59 // pred_fallthru
          _
      $region60: #{multi_field_at_conv2d.9} parent=5 // pred_fallthru
        _
    $region6: #{multi_field_at_conv2d.9} parent=1 // loop_footer
      %s22 = sadd.s32 1, %s18
    $region7: #{multi_field_at_conv2d.9} parent=1 // loop_footer_branch
      %17 = sbr.rel target = $region3
    $region8: #{multi_field_at_conv2d.9} parent=1 // loop_exit
      _
    %600 = vsyncpa [#allocation3], 1
    %s601 = scalar_lea.sflag [#allocation3], 1
    %602 = vsyncpa %s601, 1
    %603 = vsyncpa [#allocation6], 1
    %604 = vsyncpa [#allocation9], 1
    %605 = vsyncpa [#allocation4], 1
    %s606 = scalar_lea.sflag [#allocation4], 1
    %607 = vsyncpa %s606, 1

// kernel: multi_field_at_conv2d.11
$region0: #{multi_field_at_conv2d.11}
  #allocation0 [shape = 'u32[]', space=smem, size = 0x4, offset = 0x4, fixed_abs, tag = 'smem constant byte address 0x4 - core index']
  #allocation1 [shape = 'u32[144,128]{1,0:T(1,128)}', space=vmem, size = 0x12000, scoped, tag = 'internal scratch']
  %s0 = inlined_call_operand.hbm [shape: bf16[16,4], index: 0, kind: input, shape index: {}]
  %s1 = inlined_call_operand.hbm [shape: bf16[2,4,512], index: 1, kind: input, shape index: {}]
  %s2 = inlined_call_operand.hbm [shape: f32[1,512], index: 2, kind: input, shape index: {}]
  %s3 = inlined_call_operand.hbm [shape: f32[1,512], index: 3, kind: input, shape index: {}]
  %s4 = inlined_call_operand.hbm [shape: bf16[2,16,512], index: 4, kind: output, shape index: {}]
  %s5 = sld [smem:[#allocation0]]
  $region65: #{multi_field_at_conv2d.11} parent=0
    _
  %s7 = ssub.s32 1, %s5
  %s8 = scalar_select 0, %s7, %s5
  $region1: #{multi_field_at_conv2d.11} parent=0
    #allocation2 [shape = 'u8[4096]{0}', space=vmem, size = 0x1000, scoped, tag = 'input window, operand 0, single buffered']
    #allocation3 [shape = 's32[2]{0}', space=sflag, size = 0x8, scoped, tag = 'scoped memory for multi_field_at_conv2d.11']
    #allocation4 [shape = 's32[2]{0}', space=sflag, size = 0x8, scoped, tag = 'scoped memory for multi_field_at_conv2d.11']
    #allocation5 [shape = 'u8[8192]{0}', space=vmem, size = 0x2000, scoped, tag = 'input window, operand 1']
    #allocation6 [shape = 's32[2]{0}', space=sflag, size = 0x8, scoped, tag = 'scoped memory for multi_field_at_conv2d.11']
    #allocation7 [shape = 'u8[2048]{0}', space=vmem, size = 0x800, scoped, tag = 'input window, operand 2, single buffered']
    #allocation8 [shape = 'u8[2048]{0}', space=vmem, size = 0x800, scoped, tag = 'input window, operand 3, single buffered']
    #allocation9 [shape = 's32[1]{0}', space=sflag, size = 0x4, scoped, tag = 'scoped memory for multi_field_at_conv2d.11']
    #allocation10 [shape = 'u8[32768]{0}', space=vmem, size = 0x8000, scoped, tag = 'output window, operand 0']
    %9 = vsyncpa [#allocation3], 0
    %10 = vsyncpa [#allocation6], 0
    %s11 = scalar_lea.sflag [#allocation6], 1
    %12 = vsyncpa %s11, 0
    %13 = vsyncpa [#allocation9], 0
    %14 = vsyncpa [#allocation4], 0
    %s15 = scalar_lea.sflag [#allocation4], 1
    %16 = vsyncpa %s15, 0
    loop: start=0, step=1, limit=4
    $region2: #{multi_field_at_conv2d.11} parent=1 // loop_pre_header
      _
    $region3: #{multi_field_at_conv2d.11} parent=1 // loop_header
      %s18 = sphi 0, %s22
      %p19 = scmp.ge.s32.totalorder %s18, 4
      %s26 = sphi 0, %s26
      %s28 = sphi 0, %s26
      %s29 = sphi 0, %s28
      %s43 = sphi 0, %s29
      %s49 = sphi 0, %s51
      %s52 = sphi 0, %s49
      %s53 = sphi 0, %s52
      %s69 = sphi 0, %s53
      %s73 = sphi 0, %s73
      %s75 = sphi 0, %s73
      %s76 = sphi 0, %s75
      %s90 = sphi 0, %s76
      %s94 = sphi 0, %s94
      %s96 = sphi 0, %s94
      %s97 = sphi 0, %s96
      %s111 = sphi 0, %s97
      %s117 = sphi 0, %s119
      %s120 = sphi 0, %s117
      %s121 = sphi 0, %s120
      %s137 = sphi 0, %s121
    $region4: #{multi_field_at_conv2d.11} parent=1 // loop_header_branch
      %21 = sbr.rel (%p19) target = $region8
    $region5: #{multi_field_at_conv2d.11} parent=1 // loop_body
      %s23 = ssub.s32 %s18, 1
      %s24 = ssub.s32 %s18, 2
      %s25 = sadd.s32 %s18, 1
      %s27 = sadd.s32 %s26, 1
      %p30 = scmp.eq.s32.totalorder %s18, 1
      %p31 = scmp.ne.s32.totalorder %s26, %s28
      %p32 = scmp.eq.s32.totalorder %s18, 0
      %p33 = por %p31, %p32
      %p34 = scmp.ne.s32.totalorder %s26, %s28
      %p35 = scmp.eq.s32.totalorder %s23, 1
      %p36 = por %p34, %p35
      %p37 = scmp.ne.s32.totalorder %s28, %s29
      %p38 = scmp.eq.s32.totalorder %s23, 0
      %p39 = por %p37, %p38
      %p40 = scmp.ne.s32.totalorder %s28, %s29
      %p41 = scmp.eq.s32.totalorder %s24, 1
      %p42 = por %p40, %p41
      %p44 = scmp.ne.s32.totalorder %s29, %s43
      %p45 = scmp.eq.s32.totalorder %s24, 0
      %p46 = por %p44, %p45
      %s47 = ssub.s32 %s18, %s25
      %p48 = scmp.eq.s32.totalorder %s47, 0
      %s50 = sadd.s32 %s49, 1
      %s51 = scalar_select %p48, %s49, %s50
      %p54 = pneg %p48
      %p55 = scmp.eq.s32.totalorder %s18, 1
      %p56 = por %p54, %p55
      %p57 = scmp.ne.s32.totalorder %s49, %s52
      %p58 = scmp.eq.s32.totalorder %s18, 0
      %p59 = por %p57, %p58
      %p60 = scmp.ne.s32.totalorder %s49, %s52
      %p61 = scmp.eq.s32.totalorder %s23, 1
      %p62 = por %p60, %p61
      %p63 = scmp.ne.s32.totalorder %s52, %s53
      %p64 = scmp.eq.s32.totalorder %s23, 0
      %p65 = por %p63, %p64
      %p66 = scmp.ne.s32.totalorder %s52, %s53
      %p67 = scmp.eq.s32.totalorder %s24, 1
      %p68 = por %p66, %p67
      %p70 = scmp.ne.s32.totalorder %s53, %s69
      %p71 = scmp.eq.s32.totalorder %s24, 0
      %p72 = por %p70, %p71
      %s74 = sadd.s32 %s73, 1
      %p77 = scmp.eq.s32.totalorder %s18, 1
      %p78 = scmp.ne.s32.totalorder %s73, %s75
      %p79 = scmp.eq.s32.totalorder %s18, 0
      %p80 = por %p78, %p79
      %p81 = scmp.ne.s32.totalorder %s73, %s75
      %p82 = scmp.eq.s32.totalorder %s23, 1
      %p83 = por %p81, %p82
      %p84 = scmp.ne.s32.totalorder %s75, %s76
      %p85 = scmp.eq.s32.totalorder %s23, 0
      %p86 = por %p84, %p85
      %p87 = scmp.ne.s32.totalorder %s75, %s76
      %p88 = scmp.eq.s32.totalorder %s24, 1
      %p89 = por %p87, %p88
      %p91 = scmp.ne.s32.totalorder %s76, %s90
      %p92 = scmp.eq.s32.totalorder %s24, 0
      %p93 = por %p91, %p92
      %s95 = sadd.s32 %s94, 1
      %p98 = scmp.eq.s32.totalorder %s18, 1
      %p99 = scmp.ne.s32.totalorder %s94, %s96
      %p100 = scmp.eq.s32.totalorder %s18, 0
      %p101 = por %p99, %p100
      %p102 = scmp.ne.s32.totalorder %s94, %s96
      %p103 = scmp.eq.s32.totalorder %s23, 1
      %p104 = por %p102, %p103
      %p105 = scmp.ne.s32.totalorder %s96, %s97
      %p106 = scmp.eq.s32.totalorder %s23, 0
      %p107 = por %p105, %p106
      %p108 = scmp.ne.s32.totalorder %s96, %s97
      %p109 = scmp.eq.s32.totalorder %s24, 1
      %p110 = por %p108, %p109
      %p112 = scmp.ne.s32.totalorder %s97, %s111
      %p113 = scmp.eq.s32.totalorder %s24, 0
      %p114 = por %p112, %p113
      %s115 = ssub.s32 %s18, %s25
      %p116 = scmp.eq.s32.totalorder %s115, 0
      %s118 = sadd.s32 %s117, 1
      %s119 = scalar_select %p116, %s117, %s118
      %p122 = pneg %p116
      %p123 = scmp.eq.s32.totalorder %s18, 1
      %p124 = por %p122, %p123
      %p125 = scmp.ne.s32.totalorder %s117, %s120
      %p126 = scmp.eq.s32.totalorder %s18, 0
      %p127 = por %p125, %p126
      %p128 = scmp.ne.s32.totalorder %s117, %s120
      %p129 = scmp.eq.s32.totalorder %s23, 1
      %p130 = por %p128, %p129
      %p131 = scmp.ne.s32.totalorder %s120, %s121
      %p132 = scmp.eq.s32.totalorder %s23, 0
      %p133 = por %p131, %p132
      %p134 = scmp.ne.s32.totalorder %s120, %s121
      %p135 = scmp.eq.s32.totalorder %s24, 1
      %p136 = por %p134, %p135
      %p138 = scmp.ne.s32.totalorder %s121, %s137
      %p139 = scmp.eq.s32.totalorder %s24, 0
      %p140 = por %p138, %p139
      %p141 = scmp.le.s32.totalorder 1, %s18
      %p142 = scmp.lt.s32.totalorder %s18, 3
      %p143 = pnand %p141, %p142
      %p144 = pneg %p143
      // Predicated region
      $region9: #{multi_field_at_conv2d.11} parent=5 // pred_check
        _
      $region10: #{multi_field_at_conv2d.11} parent=5 // pred_check_branch
        %146 = sbr.rel (%p143) target = $region12
      $region11: #{multi_field_at_conv2d.11} parent=5 // pred_region
        %s147 = ssub.s32 %s18, 1
        // Predicated region
        $region13: #{multi_field_at_conv2d.11} parent=11 // pred_check
          %p148 = pneg %p39
        $region14: #{multi_field_at_conv2d.11} parent=11 // pred_check_branch
          %150 = sbr.rel (%p148) target = $region16
        $region15: #{multi_field_at_conv2d.11} parent=11 // pred_region
          %s152 = ssub.s32 128, 128
          %153 = vsyncadd [#allocation3], %s152
          %s154 = sshll.u32 [#allocation2], 4
          %s155 = int_to_ptr.vmem [resolvable:$true] %s154
          %160 = dma.hbm_to_vmem [thread:$0]  %s0, 128, %s155, [#allocation3], 64, 64, 4
        $region16: #{multi_field_at_conv2d.11} parent=11 // pred_fallthru
          _
        // Predicated region
        $region17: #{multi_field_at_conv2d.11} parent=11 // pred_check
          %p161 = pneg %p86
        $region18: #{multi_field_at_conv2d.11} parent=11 // pred_check_branch
          %163 = sbr.rel (%p161) target = $region20
        $region19: #{multi_field_at_conv2d.11} parent=11 // pred_region
          %s165 = ssub.s32 64, 64
          %166 = vsyncadd [#allocation6], %s165
          %s168 = sshll.u32 [#allocation7], 4
          %s169 = int_to_ptr.vmem [resolvable:$true] %s168
          %171 = dma.hbm_to_vmem [thread:$0]  %s2, 64, %s169, [#allocation6]
        $region20: #{multi_field_at_conv2d.11} parent=11 // pred_fallthru
          _
        // Predicated region
        $region21: #{multi_field_at_conv2d.11} parent=11 // pred_check
          %p172 = pneg %p107
        $region22: #{multi_field_at_conv2d.11} parent=11 // pred_check_branch
          %174 = sbr.rel (%p172) target = $region24
        $region23: #{multi_field_at_conv2d.11} parent=11 // pred_region
          %s176 = ssub.s32 64, 64
          %177 = vsyncadd [#allocation9], %s176
          %s179 = sshll.u32 [#allocation8], 4
          %s180 = int_to_ptr.vmem [resolvable:$true] %s179
          %182 = dma.hbm_to_vmem [thread:$0]  %s3, 64, %s180, [#allocation9]
        $region24: #{multi_field_at_conv2d.11} parent=11 // pred_fallthru
          _
      $region12: #{multi_field_at_conv2d.11} parent=5 // pred_fallthru
        _
      %p183 = scmp.lt.s32.totalorder %s18, 2
      // Predicated region
      $region25: #{multi_field_at_conv2d.11} parent=5 // pred_check
        %p184 = pneg %p183
      $region26: #{multi_field_at_conv2d.11} parent=5 // pred_check_branch
        %186 = sbr.rel (%p184) target = $region28
      $region27: #{multi_field_at_conv2d.11} parent=5 // pred_region
        // Predicated region
        $region29: #{multi_field_at_conv2d.11} parent=27 // pred_check
          %p187 = pneg %p59
        $region30: #{multi_field_at_conv2d.11} parent=27 // pred_check_branch
          %189 = sbr.rel (%p187) target = $region32
        $region31: #{multi_field_at_conv2d.11} parent=27 // pred_region
          %s190 = sand.u32 %s18, 1
          %s191 = scalar_lea.sflag [#allocation6], %s190
          %s192 = sand.u32 %s49, 1
          %s193 = smul.addr %s192, 8
          %s194 = scalar_lea.vmem [#allocation5], %s193
          %s196 = ssub.s32 128, 128
          %197 = vsyncadd %s191, %s196
          %s198 = smul.addr %s18, 4
          %s199 = smul.addr %s198, 32
          %s200 = scalar_lea.hbm %s1, %s199
          %s202 = sshll.u32 %s194, 4
          %s203 = int_to_ptr.vmem [resolvable:$true] %s202
          %205 = dma.hbm_to_vmem [thread:$0]  %s200, 128, %s203, %s191
        $region32: #{multi_field_at_conv2d.11} parent=27 // pred_fallthru
          _
      $region28: #{multi_field_at_conv2d.11} parent=5 // pred_fallthru
        _
      %p206 = scmp.le.s32.totalorder 1, %s18
      %p207 = scmp.lt.s32.totalorder %s18, 3
      %p208 = pnand %p206, %p207
      %p209 = pneg %p208
      // Predicated region
      $region33: #{multi_field_at_conv2d.11} parent=5 // pred_check
        _
      $region34: #{multi_field_at_conv2d.11} parent=5 // pred_check_branch
        %211 = sbr.rel (%p208) target = $region36
      $region35: #{multi_field_at_conv2d.11} parent=5 // pred_region
        %s212 = ssub.s32 %s18, 1
        // Predicated region
        $region37: #{multi_field_at_conv2d.11} parent=35 // pred_check
          %p213 = pneg %p39
        $region38: #{multi_field_at_conv2d.11} parent=35 // pred_check_branch
          %215 = sbr.rel (%p213) target = $region40
        $region39: #{multi_field_at_conv2d.11} parent=35 // pred_region
          %216 = dma.done [#allocation3], 128
        $region40: #{multi_field_at_conv2d.11} parent=35 // pred_fallthru
          _
        %s217 = sand.u32 %s23, 1
        %s218 = scalar_lea.sflag [#allocation6], %s217
        %s219 = sand.u32 %s52, 1
        %s220 = smul.addr %s219, 8
        %s221 = scalar_lea.vmem [#allocation5], %s220
        // Predicated region
        $region41: #{multi_field_at_conv2d.11} parent=35 // pred_check
          %p222 = pneg %p65
        $region42: #{multi_field_at_conv2d.11} parent=35 // pred_check_branch
          %224 = sbr.rel (%p222) target = $region44
        $region43: #{multi_field_at_conv2d.11} parent=35 // pred_region
          %225 = dma.done %s218, 128
        $region44: #{multi_field_at_conv2d.11} parent=35 // pred_fallthru
          _
        // Predicated region
        $region45: #{multi_field_at_conv2d.11} parent=35 // pred_check
          %p226 = pneg %p86
        $region46: #{multi_field_at_conv2d.11} parent=35 // pred_check_branch
          %228 = sbr.rel (%p226) target = $region48
        $region47: #{multi_field_at_conv2d.11} parent=35 // pred_region
          %229 = dma.done [#allocation6], 64
        $region48: #{multi_field_at_conv2d.11} parent=35 // pred_fallthru
          _
        // Predicated region
        $region49: #{multi_field_at_conv2d.11} parent=35 // pred_check
          %p230 = pneg %p107
        $region50: #{multi_field_at_conv2d.11} parent=35 // pred_check_branch
          %232 = sbr.rel (%p230) target = $region52
        $region51: #{multi_field_at_conv2d.11} parent=35 // pred_region
          %233 = dma.done [#allocation9], 64
        $region52: #{multi_field_at_conv2d.11} parent=35 // pred_fallthru
          _
        %p234 = pneg %p39
        %p235 = pneg %p36
        %s236 = sand.u32 %s23, 1
        %s237 = scalar_lea.sflag [#allocation6], %s236
        %s238 = sand.u32 %s52, 1
        %s239 = smul.addr %s238, 8
        %s240 = scalar_lea.vmem [#allocation5], %s239
        %p241 = pneg %p65
        %p242 = pneg %p62
        %p243 = pneg %p86
        %p244 = pneg %p83
        %p245 = pneg %p107
        %p246 = pneg %p104
        %p247 = pneg %p133
        %p248 = pneg %p130
        %s249 = sand.u32 %s120, 1
        %s250 = scalar_lea.sflag [#allocation4], %s249
        %s251 = sand.u32 %s120, 1
        %s252 = smul.addr %s251, 32
        %s253 = scalar_lea.vmem [#allocation10], %s252
        %v255 = vld [vmem:[#allocation2] sm:$0xf]
        %v256 = vld [vmem:[#allocation2 + $0x4] sm:$0xf]
        %v257 = vld [vmem:[%s221] sm:$0xff]
        %v260 = vunpack.c.l.b16 %v255
        %v261 = vunpack.c.l.b16 %v256
        %v262 = vpack.c.b16 %v261, %v260
        %v264 = vcombine.high %v257, %v257
        %v266 = vunpack.c.l.s4 1983009808
        %v267 = vunpack.c.0.s8 %v266
        %v268 = vlaneseq
        %v269 = vshrl.u32 %v268, 7
        %v270 = vsub.s32 %v267, %v269
        %v271 = vrot.slane %v257, %v270
        %v273 = vunpack.c.l.s4 1983009808
        %v274 = vunpack.c.0.s8 %v273
        %v275 = vlaneseq
        %v276 = vshrl.u32 %v275, 7
        %v277 = vsub.s32 %v274, %v276
        %v278 = vrot.slane %v264, %v277
        %v279 = vcombine.high %v271, %v271
        %v280 = vcombine.high %v278, %v278
        %vm281 = vcmask 31744
        %v283 = vsel %vm281, %v262, 0
        %vm285 = vcmask 1041408
        %v287 = vsel %vm285, %v271, 0
        %v290 = vsel %vm285, %v279, 0
        %v293 = vsel %vm285, %v278, 0
        %v296 = vsel %vm285, %v280, 0
        %298 = vmatprep.subr.bf16.mxu0 %v290
        %299 = vmatpush1.bf16.msra.mxu0 %v287
        %300 = vmatprep.subr.bf16.mxu0 0
        %301 = vmatpush1.bf16.msra.mxu0 0
        %302 = vmatprep.subr.bf16.mxu0 0
        %303 = vmatpush1.bf16.msra.mxu0 0
        %304 = vmatprep.subr.bf16.mxu0 0
        %305 = vmatpush1.bf16.msra.mxu0 0
        %306 = vmatprep.subr.bf16.mxu0 0
        %307 = vmatpush1.bf16.msra.mxu0 0
        %308 = vmatprep.subr.bf16.mxu0 0
        %309 = vmatpush1.bf16.msra.mxu0 0
        %310 = vmatprep.subr.bf16.mxu0 0
        %311 = vmatpush1.bf16.msra.mxu0 0
        %312 = vmatprep.subr.bf16.mxu0 0
        %313 = vmatpush1.bf16.msra.mxu0 0
        %314 = vmatprep.subr.bf16.mxu0 0
        %315 = vmatpush1.bf16.msra.mxu0 0
        %316 = vmatprep.subr.bf16.mxu0 0
        %317 = vmatpush1.bf16.msra.mxu0 0
        %318 = vmatprep.subr.bf16.mxu0 0
        %319 = vmatpush1.bf16.msra.mxu0 0
        %320 = vmatprep.subr.bf16.mxu0 0
        %321 = vmatpush1.bf16.msra.mxu0 0
        %322 = vmatprep.subr.bf16.mxu0 0
        %323 = vmatpush1.bf16.msra.mxu0 0
        %324 = vmatprep.subr.bf16.mxu0 0
        %325 = vmatpush1.bf16.msra.mxu0 0
        %326 = vmatprep.subr.bf16.mxu0 0
        %327 = vmatpush1.bf16.msra.mxu0 0
        %328 = vmatprep.subr.bf16.mxu0 0
        %329 = vmatpush1.bf16.msra.mxu0 0
        %330 = vmatprep.mubr.bf16.mxu0 0
        %331 = vmatmul.mubr.bf16.gmra.mrb[0].mxu0 %v283
        %v332 = vpop.f32.mrb[0].mxu0
        %v333 = vadd.f32 0.0, %v332
        %v334 = vpop.f32.mrb[0].mxu0
        %v335 = vadd.f32 0.0, %v334
        %v336 = vpop.f32.mrb[0].mxu0
        %v337 = vadd.f32 0.0, %v336
        %v338 = vpop.f32.mrb[0].mxu0
        %v339 = vadd.f32 0.0, %v338
        %340 = vdwg.mxu0
        %341 = vmatprep.subr.bf16.mxu0 %v296
        %342 = vmatpush1.bf16.msra.mxu0 %v293
        %343 = vmatprep.subr.bf16.mxu0 0
        %344 = vmatpush1.bf16.msra.mxu0 0
        %345 = vmatprep.subr.bf16.mxu0 0
        %346 = vmatpush1.bf16.msra.mxu0 0
        %347 = vmatprep.subr.bf16.mxu0 0
        %348 = vmatpush1.bf16.msra.mxu0 0
        %349 = vmatprep.subr.bf16.mxu0 0
        %350 = vmatpush1.bf16.msra.mxu0 0
        %351 = vmatprep.subr.bf16.mxu0 0
        %352 = vmatpush1.bf16.msra.mxu0 0
        %353 = vmatprep.subr.bf16.mxu0 0
        %354 = vmatpush1.bf16.msra.mxu0 0
        %355 = vmatprep.subr.bf16.mxu0 0
        %356 = vmatpush1.bf16.msra.mxu0 0
        %357 = vmatprep.subr.bf16.mxu0 0
        %358 = vmatpush1.bf16.msra.mxu0 0
        %359 = vmatprep.subr.bf16.mxu0 0
        %360 = vmatpush1.bf16.msra.mxu0 0
        %361 = vmatprep.subr.bf16.mxu0 0
        %362 = vmatpush1.bf16.msra.mxu0 0
        %363 = vmatprep.subr.bf16.mxu0 0
        %364 = vmatpush1.bf16.msra.mxu0 0
        %365 = vmatprep.subr.bf16.mxu0 0
        %366 = vmatpush1.bf16.msra.mxu0 0
        %367 = vmatprep.subr.bf16.mxu0 0
        %368 = vmatpush1.bf16.msra.mxu0 0
        %369 = vmatprep.subr.bf16.mxu0 0
        %370 = vmatpush1.bf16.msra.mxu0 0
        %371 = vmatprep.subr.bf16.mxu0 0
        %372 = vmatpush1.bf16.msra.mxu0 0
        %373 = vmatprep.mubr.bf16.mxu0 0
        %374 = vmatmul.mubr.bf16.gmra.mrb[0].mxu0 %v283
        %v375 = vpop.f32.mrb[0].mxu0
        %v376 = vadd.f32 0.0, %v375
        %v377 = vpop.f32.mrb[0].mxu0
        %v378 = vadd.f32 0.0, %v377
        %v379 = vpop.f32.mrb[0].mxu0
        %v380 = vadd.f32 0.0, %v379
        %v381 = vpop.f32.mrb[0].mxu0
        %v382 = vadd.f32 0.0, %v381
        %383 = vdwg.mxu0
        %v384 = vld [vmem:[#allocation7] sm:$0xf]
        %v386 = vlaneseq
        %v387 = vshrl.u32 %v386, 7
        %v388 = vsub.s32 0, %v387
        %v389 = vrot.slane %v384, %v388
        %v390 = vlaneseq
        %v391 = vshrl.u32 %v390, 7
        %v392 = vsub.s32 1, %v391
        %v393 = vrot.slane %v384, %v392
        %v394 = vlaneseq
        %v395 = vshrl.u32 %v394, 7
        %v396 = vsub.s32 2, %v395
        %v397 = vrot.slane %v384, %v396
        %v398 = vlaneseq
        %v399 = vshrl.u32 %v398, 7
        %v400 = vsub.s32 3, %v399
        %v401 = vrot.slane %v384, %v400
        %v406 = vmul.f32 %v333, %v389
        %v407 = vmul.f32 %v335, %v393
        %v408 = vmul.f32 %v376, %v397
        %v409 = vmul.f32 %v378, %v401
        %v410 = vmul.f32 %v337, %v389
        %v411 = vmul.f32 %v339, %v393
        %v412 = vmul.f32 %v380, %v397
        %v413 = vmul.f32 %v382, %v401
        %v414 = vld [vmem:[#allocation8] sm:$0xf]
        %v416 = vlaneseq
        %v417 = vshrl.u32 %v416, 7
        %v418 = vsub.s32 0, %v417
        %v419 = vrot.slane %v414, %v418
        %v420 = vlaneseq
        %v421 = vshrl.u32 %v420, 7
        %v422 = vsub.s32 1, %v421
        %v423 = vrot.slane %v414, %v422
        %v424 = vlaneseq
        %v425 = vshrl.u32 %v424, 7
        %v426 = vsub.s32 2, %v425
        %v427 = vrot.slane %v414, %v426
        %v428 = vlaneseq
        %v429 = vshrl.u32 %v428, 7
        %v430 = vsub.s32 3, %v429
        %v431 = vrot.slane %v414, %v430
        %v436 = vadd.f32 %v406, %v419
        %v437 = vadd.f32 %v407, %v423
        %v438 = vadd.f32 %v408, %v427
        %v439 = vadd.f32 %v409, %v431
        %v440 = vadd.f32 %v410, %v419
        %v441 = vadd.f32 %v411, %v423
        %v442 = vadd.f32 %v412, %v427
        %v443 = vadd.f32 %v413, %v431
        %v444 = vmax.f32 %v436, 0.0
        %v445 = vmax.f32 %v437, 0.0
        %v446 = vmax.f32 %v438, 0.0
        %v447 = vmax.f32 %v439, 0.0
        %v448 = vmax.f32 %v440, 0.0
        %v449 = vmax.f32 %v441, 0.0
        %v450 = vmax.f32 %v442, 0.0
        %v451 = vmax.f32 %v443, 0.0
        %v452 = vpack.c.bf16 %v448, %v444
        %v453 = vpack.c.bf16 %v449, %v445
        %v454 = vpack.c.bf16 %v450, %v446
        %v455 = vpack.c.bf16 %v451, %v447
        %v460 = vunpack.c.l.b16 %v452
        %v461 = vunpack.c.l.b16 %v453
        %v462 = vunpack.c.l.b16 %v454
        %v463 = vunpack.c.l.b16 %v455
        %v464 = vunpack.c.h.b16 %v452
        %v465 = vunpack.c.h.b16 %v453
        %v466 = vunpack.c.h.b16 %v454
        %v467 = vunpack.c.h.b16 %v455
        %v468 = vpack.c.b16 %v461, %v460
        %v469 = vpack.c.b16 %v463, %v462
        %v470 = vpack.c.b16 %v465, %v464
        %v471 = vpack.c.b16 %v467, %v466
        %476 = vst [vmem:[%s253] sm:$0xff] %v468
        %477 = vst [vmem:[%s253 + $0x8] sm:$0xff] %v469
        %478 = vst [vmem:[%s253 + $0x10] sm:$0xff] %v470
        %479 = vst [vmem:[%s253 + $0x18] sm:$0xff] %v471
        %s480 = sand.u32 %s120, 1
        %s481 = scalar_lea.sflag [#allocation4], %s480
        %s482 = sand.u32 %s120, 1
        %s483 = smul.addr %s482, 32
        %s484 = scalar_lea.vmem [#allocation10], %s483
        // Predicated region
        $region53: #{multi_field_at_conv2d.11} parent=35 // pred_check
          %p485 = pneg %p130
        $region54: #{multi_field_at_conv2d.11} parent=35 // pred_check_branch
          %487 = sbr.rel (%p485) target = $region56
        $region55: #{multi_field_at_conv2d.11} parent=35 // pred_region
          %s489 = ssub.s32 512, 512
          %490 = vsyncadd %s481, %s489
          %s491 = smul.addr %s23, 8
          %s492 = smul.addr %s491, 64
          %s493 = scalar_lea.hbm %s4, %s492
          %s494 = sshll.u32 %s484, 4
          %s495 = int_to_ptr.vmem [resolvable:$true] %s494
          %500 = dma.vmem_to_hbm [thread:$0]  %s495, 512, %s493, %s481, 256, 256, 16
        $region56: #{multi_field_at_conv2d.11} parent=35 // pred_fallthru
          _
      $region36: #{multi_field_at_conv2d.11} parent=5 // pred_fallthru
        _
      %p501 = scmp.le.s32.totalorder 2, %s18
      // Predicated region
      $region57: #{multi_field_at_conv2d.11} parent=5 // pred_check
        %p502 = pneg %p501
      $region58: #{multi_field_at_conv2d.11} parent=5 // pred_check_branch
        %504 = sbr.rel (%p502) target = $region60
      $region59: #{multi_field_at_conv2d.11} parent=5 // pred_region
        %s505 = ssub.s32 %s18, 2
        // Predicated region
        $region61: #{multi_field_at_conv2d.11} parent=59 // pred_check
          %p506 = pneg %p136
        $region62: #{multi_field_at_conv2d.11} parent=59 // pred_check_branch
          %508 = sbr.rel (%p506) target = $region64
        $region63: #{multi_field_at_conv2d.11} parent=59 // pred_region
          %s509 = sand.u32 %s121, 1
          %s510 = scalar_lea.sflag [#allocation4], %s509
          %s511 = sand.u32 %s121, 1
          %s512 = smul.addr %s511, 32
          %s513 = scalar_lea.vmem [#allocation10], %s512
          %514 = dma.done %s510, 512
        $region64: #{multi_field_at_conv2d.11} parent=59 // pred_fallthru
          _
      $region60: #{multi_field_at_conv2d.11} parent=5 // pred_fallthru
        _
    $region6: #{multi_field_at_conv2d.11} parent=1 // loop_footer
      %s22 = sadd.s32 1, %s18
    $region7: #{multi_field_at_conv2d.11} parent=1 // loop_footer_branch
      %17 = sbr.rel target = $region3
    $region8: #{multi_field_at_conv2d.11} parent=1 // loop_exit
      _
    %515 = vsyncpa [#allocation3], 1
    %s516 = scalar_lea.sflag [#allocation3], 1
    %517 = vsyncpa %s516, 1
    %518 = vsyncpa [#allocation6], 1
    %s519 = scalar_lea.sflag [#allocation6], 1
    %520 = vsyncpa %s519, 1
    %521 = vsyncpa [#allocation9], 1
    %522 = vsyncpa [#allocation4], 1
    %s523 = scalar_lea.sflag [#allocation4], 1
    %524 = vsyncpa %s523, 1

// kernel: multi_field_at_conv2d.12
$region0: #{multi_field_at_conv2d.12}
  #allocation0 [shape = 'u32[]', space=smem, size = 0x4, offset = 0x4, fixed_abs, tag = 'smem constant byte address 0x4 - core index']
  #allocation1 [shape = 'u32[144,128]{1,0:T(1,128)}', space=vmem, size = 0x12000, scoped, tag = 'internal scratch']
  %s0 = inlined_call_operand.hbm [shape: bf16[512,32], index: 0, kind: input, shape index: {}]
  %s1 = inlined_call_operand.hbm [shape: bf16[32,32], index: 1, kind: input, shape index: {}]
  %s2 = inlined_call_operand.hbm [shape: f32[1,32], index: 2, kind: input, shape index: {}]
  %s3 = inlined_call_operand.hbm [shape: bf16[32,32], index: 3, kind: input, shape index: {}]
  %s4 = inlined_call_operand.hbm [shape: f32[1,32], index: 4, kind: input, shape index: {}]
  %s5 = inlined_call_operand.hbm [shape: bf16[512,32], index: 5, kind: output, shape index: {}]
  %s6 = sld [smem:[#allocation0]]
  $region73: #{multi_field_at_conv2d.12} parent=0
    _
  %s8 = ssub.s32 1, %s6
  %s9 = scalar_select 0, %s8, %s6
  $region1: #{multi_field_at_conv2d.12} parent=0
    #allocation2 [shape = 'u8[32768]{0}', space=vmem, size = 0x8000, scoped, tag = 'input window, operand 0']
    #allocation3 [shape = 's32[2]{0}', space=sflag, size = 0x8, scoped, tag = 'scoped memory for multi_field_at_conv2d.12']
    #allocation4 [shape = 's32[2]{0}', space=sflag, size = 0x8, scoped, tag = 'scoped memory for multi_field_at_conv2d.12']
    #allocation5 [shape = 'u8[8192]{0}', space=vmem, size = 0x2000, scoped, tag = 'input window, operand 1, single buffered']
    #allocation6 [shape = 's32[1]{0}', space=sflag, size = 0x4, scoped, tag = 'scoped memory for multi_field_at_conv2d.12']
    #allocation7 [shape = 'u8[512]{0}', space=vmem, size = 0x400, scoped, tag = 'input window, operand 2, single buffered']
    #allocation8 [shape = 'u8[8192]{0}', space=vmem, size = 0x2000, scoped, tag = 'input window, operand 3, single buffered']
    #allocation9 [shape = 's32[1]{0}', space=sflag, size = 0x4, scoped, tag = 'scoped memory for multi_field_at_conv2d.12']
    #allocation10 [shape = 'u8[512]{0}', space=vmem, size = 0x400, scoped, tag = 'input window, operand 4, single buffered']
    #allocation11 [shape = 'u8[32768]{0}', space=vmem, size = 0x8000, scoped, tag = 'output window, operand 0']
    %10 = vsyncpa [#allocation3], 0
    %s11 = scalar_lea.sflag [#allocation3], 1
    %12 = vsyncpa %s11, 0
    %13 = vsyncpa [#allocation6], 0
    %14 = vsyncpa [#allocation9], 0
    %15 = vsyncpa [#allocation4], 0
    %s16 = scalar_lea.sflag [#allocation4], 1
    %17 = vsyncpa %s16, 0
    loop: start=0, step=1, limit=10
    $region2: #{multi_field_at_conv2d.12} parent=1 // loop_pre_header
      _
    $region3: #{multi_field_at_conv2d.12} parent=1 // loop_header
      %s19 = sphi 0, %s23
      %p20 = scmp.ge.s32.totalorder %s19, 10
      %s29 = sphi 0, %s31
      %s32 = sphi 0, %s29
      %s33 = sphi 0, %s32
      %s49 = sphi 0, %s33
      %s53 = sphi 0, %s53
      %s55 = sphi 0, %s53
      %s56 = sphi 0, %s55
      %s70 = sphi 0, %s56
      %s74 = sphi 0, %s74
      %s76 = sphi 0, %s74
      %s77 = sphi 0, %s76
      %s91 = sphi 0, %s77
      %s95 = sphi 0, %s95
      %s97 = sphi 0, %s95
      %s98 = sphi 0, %s97
      %s112 = sphi 0, %s98
      %s116 = sphi 0, %s116
      %s118 = sphi 0, %s116
      %s119 = sphi 0, %s118
      %s133 = sphi 0, %s119
      %s139 = sphi 0, %s141
      %s142 = sphi 0, %s139
      %s143 = sphi 0, %s142
      %s159 = sphi 0, %s143
    $region4: #{multi_field_at_conv2d.12} parent=1 // loop_header_branch
      %22 = sbr.rel (%p20) target = $region8
    $region5: #{multi_field_at_conv2d.12} parent=1 // loop_body
      %s24 = ssub.s32 %s19, 1
      %s25 = ssub.s32 %s19, 2
      %s26 = sadd.s32 %s19, 1
      %s27 = ssub.s32 %s19, %s26
      %p28 = scmp.eq.s32.totalorder %s27, 0
      %s30 = sadd.s32 %s29, 1
      %s31 = scalar_select %p28, %s29, %s30
      %p34 = pneg %p28
      %p35 = scmp.eq.s32.totalorder %s19, 7
      %p36 = por %p34, %p35
      %p37 = scmp.ne.s32.totalorder %s29, %s32
      %p38 = scmp.eq.s32.totalorder %s19, 0
      %p39 = por %p37, %p38
      %p40 = scmp.ne.s32.totalorder %s29, %s32
      %p41 = scmp.eq.s32.totalorder %s24, 7
      %p42 = por %p40, %p41
      %p43 = scmp.ne.s32.totalorder %s32, %s33
      %p44 = scmp.eq.s32.totalorder %s24, 0
      %p45 = por %p43, %p44
      %p46 = scmp.ne.s32.totalorder %s32, %s33
      %p47 = scmp.eq.s32.totalorder %s25, 7
      %p48 = por %p46, %p47
      %p50 = scmp.ne.s32.totalorder %s33, %s49
      %p51 = scmp.eq.s32.totalorder %s25, 0
      %p52 = por %p50, %p51
      %s54 = sadd.s32 %s53, 1
      %p57 = scmp.eq.s32.totalorder %s19, 7
      %p58 = scmp.ne.s32.totalorder %s53, %s55
      %p59 = scmp.eq.s32.totalorder %s19, 0
      %p60 = por %p58, %p59
      %p61 = scmp.ne.s32.totalorder %s53, %s55
      %p62 = scmp.eq.s32.totalorder %s24, 7
      %p63 = por %p61, %p62
      %p64 = scmp.ne.s32.totalorder %s55, %s56
      %p65 = scmp.eq.s32.totalorder %s24, 0
      %p66 = por %p64, %p65
      %p67 = scmp.ne.s32.totalorder %s55, %s56
      %p68 = scmp.eq.s32.totalorder %s25, 7
      %p69 = por %p67, %p68
      %p71 = scmp.ne.s32.totalorder %s56, %s70
      %p72 = scmp.eq.s32.totalorder %s25, 0
      %p73 = por %p71, %p72
      %s75 = sadd.s32 %s74, 1
      %p78 = scmp.eq.s32.totalorder %s19, 7
      %p79 = scmp.ne.s32.totalorder %s74, %s76
      %p80 = scmp.eq.s32.totalorder %s19, 0
      %p81 = por %p79, %p80
      %p82 = scmp.ne.s32.totalorder %s74, %s76
      %p83 = scmp.eq.s32.totalorder %s24, 7
      %p84 = por %p82, %p83
      %p85 = scmp.ne.s32.totalorder %s76, %s77
      %p86 = scmp.eq.s32.totalorder %s24, 0
      %p87 = por %p85, %p86
      %p88 = scmp.ne.s32.totalorder %s76, %s77
      %p89 = scmp.eq.s32.totalorder %s25, 7
      %p90 = por %p88, %p89
      %p92 = scmp.ne.s32.totalorder %s77, %s91
      %p93 = scmp.eq.s32.totalorder %s25, 0
      %p94 = por %p92, %p93
      %s96 = sadd.s32 %s95, 1
      %p99 = scmp.eq.s32.totalorder %s19, 7
      %p100 = scmp.ne.s32.totalorder %s95, %s97
      %p101 = scmp.eq.s32.totalorder %s19, 0
      %p102 = por %p100, %p101
      %p103 = scmp.ne.s32.totalorder %s95, %s97
      %p104 = scmp.eq.s32.totalorder %s24, 7
      %p105 = por %p103, %p104
      %p106 = scmp.ne.s32.totalorder %s97, %s98
      %p107 = scmp.eq.s32.totalorder %s24, 0
      %p108 = por %p106, %p107
      %p109 = scmp.ne.s32.totalorder %s97, %s98
      %p110 = scmp.eq.s32.totalorder %s25, 7
      %p111 = por %p109, %p110
      %p113 = scmp.ne.s32.totalorder %s98, %s112
      %p114 = scmp.eq.s32.totalorder %s25, 0
      %p115 = por %p113, %p114
      %s117 = sadd.s32 %s116, 1
      %p120 = scmp.eq.s32.totalorder %s19, 7
      %p121 = scmp.ne.s32.totalorder %s116, %s118
      %p122 = scmp.eq.s32.totalorder %s19, 0
      %p123 = por %p121, %p122
      %p124 = scmp.ne.s32.totalorder %s116, %s118
      %p125 = scmp.eq.s32.totalorder %s24, 7
      %p126 = por %p124, %p125
      %p127 = scmp.ne.s32.totalorder %s118, %s119
      %p128 = scmp.eq.s32.totalorder %s24, 0
      %p129 = por %p127, %p128
      %p130 = scmp.ne.s32.totalorder %s118, %s119
      %p131 = scmp.eq.s32.totalorder %s25, 7
      %p132 = por %p130, %p131
      %p134 = scmp.ne.s32.totalorder %s119, %s133
      %p135 = scmp.eq.s32.totalorder %s25, 0
      %p136 = por %p134, %p135
      %s137 = ssub.s32 %s19, %s26
      %p138 = scmp.eq.s32.totalorder %s137, 0
      %s140 = sadd.s32 %s139, 1
      %s141 = scalar_select %p138, %s139, %s140
      %p144 = pneg %p138
      %p145 = scmp.eq.s32.totalorder %s19, 7
      %p146 = por %p144, %p145
      %p147 = scmp.ne.s32.totalorder %s139, %s142
      %p148 = scmp.eq.s32.totalorder %s19, 0
      %p149 = por %p147, %p148
      %p150 = scmp.ne.s32.totalorder %s139, %s142
      %p151 = scmp.eq.s32.totalorder %s24, 7
      %p152 = por %p150, %p151
      %p153 = scmp.ne.s32.totalorder %s142, %s143
      %p154 = scmp.eq.s32.totalorder %s24, 0
      %p155 = por %p153, %p154
      %p156 = scmp.ne.s32.totalorder %s142, %s143
      %p157 = scmp.eq.s32.totalorder %s25, 7
      %p158 = por %p156, %p157
      %p160 = scmp.ne.s32.totalorder %s143, %s159
      %p161 = scmp.eq.s32.totalorder %s25, 0
      %p162 = por %p160, %p161
      %p163 = scmp.le.s32.totalorder 1, %s19
      %p164 = scmp.lt.s32.totalorder %s19, 9
      %p165 = pnand %p163, %p164
      %p166 = pneg %p165
      // Predicated region
      $region9: #{multi_field_at_conv2d.12} parent=5 // pred_check
        _
      $region10: #{multi_field_at_conv2d.12} parent=5 // pred_check_branch
        %168 = sbr.rel (%p165) target = $region12
      $region11: #{multi_field_at_conv2d.12} parent=5 // pred_region
        %s169 = ssub.s32 %s19, 1
        // Predicated region
        $region13: #{multi_field_at_conv2d.12} parent=11 // pred_check
          %p170 = pneg %p66
        $region14: #{multi_field_at_conv2d.12} parent=11 // pred_check_branch
          %172 = sbr.rel (%p170) target = $region16
        $region15: #{multi_field_at_conv2d.12} parent=11 // pred_region
          %s174 = ssub.s32 256, 256
          %175 = vsyncadd [#allocation6], %s174
          %s176 = sshll.u32 [#allocation5], 4
          %s177 = int_to_ptr.vmem [resolvable:$true] %s176
          %182 = dma.hbm_to_vmem [thread:$0]  %s1, 256, %s177, [#allocation6], 64, 64, 4
        $region16: #{multi_field_at_conv2d.12} parent=11 // pred_fallthru
          _
        // Predicated region
        $region17: #{multi_field_at_conv2d.12} parent=11 // pred_check
          %p183 = pneg %p87
        $region18: #{multi_field_at_conv2d.12} parent=11 // pred_check_branch
          %185 = sbr.rel (%p183) target = $region20
        $region19: #{multi_field_at_conv2d.12} parent=11 // pred_region
          %s187 = ssub.s32 16, 16
          %188 = vsyncadd [#allocation6], %s187
          %s190 = sshll.u32 [#allocation7], 4
          %s191 = int_to_ptr.vmem [resolvable:$true] %s190
          %193 = dma.hbm_to_vmem [thread:$0]  %s2, 16, %s191, [#allocation6]
        $region20: #{multi_field_at_conv2d.12} parent=11 // pred_fallthru
          _
        // Predicated region
        $region21: #{multi_field_at_conv2d.12} parent=11 // pred_check
          %p194 = pneg %p108
        $region22: #{multi_field_at_conv2d.12} parent=11 // pred_check_branch
          %196 = sbr.rel (%p194) target = $region24
        $region23: #{multi_field_at_conv2d.12} parent=11 // pred_region
          %s198 = ssub.s32 256, 256
          %199 = vsyncadd [#allocation9], %s198
          %s200 = sshll.u32 [#allocation8], 4
          %s201 = int_to_ptr.vmem [resolvable:$true] %s200
          %206 = dma.hbm_to_vmem [thread:$0]  %s3, 256, %s201, [#allocation9], 64, 64, 4
        $region24: #{multi_field_at_conv2d.12} parent=11 // pred_fallthru
          _
        // Predicated region
        $region25: #{multi_field_at_conv2d.12} parent=11 // pred_check
          %p207 = pneg %p129
        $region26: #{multi_field_at_conv2d.12} parent=11 // pred_check_branch
          %209 = sbr.rel (%p207) target = $region28
        $region27: #{multi_field_at_conv2d.12} parent=11 // pred_region
          %s211 = ssub.s32 16, 16
          %212 = vsyncadd [#allocation9], %s211
          %s214 = sshll.u32 [#allocation10], 4
          %s215 = int_to_ptr.vmem [resolvable:$true] %s214
          %217 = dma.hbm_to_vmem [thread:$0]  %s4, 16, %s215, [#allocation9]
        $region28: #{multi_field_at_conv2d.12} parent=11 // pred_fallthru
          _
      $region12: #{multi_field_at_conv2d.12} parent=5 // pred_fallthru
        _
      %p218 = scmp.lt.s32.totalorder %s19, 8
      // Predicated region
      $region29: #{multi_field_at_conv2d.12} parent=5 // pred_check
        %p219 = pneg %p218
      $region30: #{multi_field_at_conv2d.12} parent=5 // pred_check_branch
        %221 = sbr.rel (%p219) target = $region32
      $region31: #{multi_field_at_conv2d.12} parent=5 // pred_region
        // Predicated region
        $region33: #{multi_field_at_conv2d.12} parent=31 // pred_check
          %p222 = pneg %p39
        $region34: #{multi_field_at_conv2d.12} parent=31 // pred_check_branch
          %224 = sbr.rel (%p222) target = $region36
        $region35: #{multi_field_at_conv2d.12} parent=31 // pred_region
          %s225 = sand.u32 %s29, 1
          %s226 = scalar_lea.sflag [#allocation3], %s225
          %s227 = sand.u32 %s29, 1
          %s228 = smul.addr %s227, 32
          %s229 = scalar_lea.vmem [#allocation2], %s228
          %s230 = smul.u32 8, %s19
          %s232 = ssub.s32 512, 512
          %233 = vsyncadd %s226, %s232
          %s234 = smul.addr %s230, 64
          %s235 = scalar_lea.hbm %s0, %s234
          %s236 = sshll.u32 %s229, 4
          %s237 = int_to_ptr.vmem [resolvable:$true] %s236
          %242 = dma.hbm_to_vmem [thread:$0]  %s235, 512, %s237, %s226, 64, 64, 4
        $region36: #{multi_field_at_conv2d.12} parent=31 // pred_fallthru
          _
      $region32: #{multi_field_at_conv2d.12} parent=5 // pred_fallthru
        _
      %p243 = scmp.le.s32.totalorder 1, %s19
      %p244 = scmp.lt.s32.totalorder %s19, 9
      %p245 = pnand %p243, %p244
      %p246 = pneg %p245
      // Predicated region
      $region37: #{multi_field_at_conv2d.12} parent=5 // pred_check
        _
      $region38: #{multi_field_at_conv2d.12} parent=5 // pred_check_branch
        %248 = sbr.rel (%p245) target = $region40
      $region39: #{multi_field_at_conv2d.12} parent=5 // pred_region
        %s249 = ssub.s32 %s19, 1
        %s250 = sand.u32 %s32, 1
        %s251 = scalar_lea.sflag [#allocation3], %s250
        %s252 = sand.u32 %s32, 1
        %s253 = smul.addr %s252, 32
        %s254 = scalar_lea.vmem [#allocation2], %s253
        // Predicated region
        $region41: #{multi_field_at_conv2d.12} parent=39 // pred_check
          %p255 = pneg %p45
        $region42: #{multi_field_at_conv2d.12} parent=39 // pred_check_branch
          %257 = sbr.rel (%p255) target = $region44
        $region43: #{multi_field_at_conv2d.12} parent=39 // pred_region
          %258 = dma.done %s251, 512
        $region44: #{multi_field_at_conv2d.12} parent=39 // pred_fallthru
          _
        // Predicated region
        $region45: #{multi_field_at_conv2d.12} parent=39 // pred_check
          %p259 = pneg %p66
        $region46: #{multi_field_at_conv2d.12} parent=39 // pred_check_branch
          %261 = sbr.rel (%p259) target = $region48
        $region47: #{multi_field_at_conv2d.12} parent=39 // pred_region
          %262 = dma.done [#allocation6], 256
        $region48: #{multi_field_at_conv2d.12} parent=39 // pred_fallthru
          _
        // Predicated region
        $region49: #{multi_field_at_conv2d.12} parent=39 // pred_check
          %p263 = pneg %p87
        $region50: #{multi_field_at_conv2d.12} parent=39 // pred_check_branch
          %265 = sbr.rel (%p263) target = $region52
        $region51: #{multi_field_at_conv2d.12} parent=39 // pred_region
          %266 = dma.done [#allocation6], 16
        $region52: #{multi_field_at_conv2d.12} parent=39 // pred_fallthru
          _
        // Predicated region
        $region53: #{multi_field_at_conv2d.12} parent=39 // pred_check
          %p267 = pneg %p108
        $region54: #{multi_field_at_conv2d.12} parent=39 // pred_check_branch
          %269 = sbr.rel (%p267) target = $region56
        $region55: #{multi_field_at_conv2d.12} parent=39 // pred_region
          %270 = dma.done [#allocation9], 256
        $region56: #{multi_field_at_conv2d.12} parent=39 // pred_fallthru
          _
        // Predicated region
        $region57: #{multi_field_at_conv2d.12} parent=39 // pred_check
          %p271 = pneg %p129
        $region58: #{multi_field_at_conv2d.12} parent=39 // pred_check_branch
          %273 = sbr.rel (%p271) target = $region60
        $region59: #{multi_field_at_conv2d.12} parent=39 // pred_region
          %274 = dma.done [#allocation9], 16
        $region60: #{multi_field_at_conv2d.12} parent=39 // pred_fallthru
          _
        %s275 = sand.u32 %s32, 1
        %s276 = scalar_lea.sflag [#allocation3], %s275
        %s277 = sand.u32 %s32, 1
        %s278 = smul.addr %s277, 32
        %s279 = scalar_lea.vmem [#allocation2], %s278
        %p280 = pneg %p45
        %p281 = pneg %p42
        %p282 = pneg %p66
        %p283 = pneg %p63
        %p284 = pneg %p87
        %p285 = pneg %p84
        %p286 = pneg %p108
        %p287 = pneg %p105
        %p288 = pneg %p129
        %p289 = pneg %p126
        %p290 = pneg %p155
        %p291 = pneg %p152
        %s292 = sand.u32 %s142, 1
        %s293 = scalar_lea.sflag [#allocation4], %s292
        %s294 = sand.u32 %s142, 1
        %s295 = smul.addr %s294, 32
        %s296 = scalar_lea.vmem [#allocation11], %s295
        %s297 = smul.u32 8, %s24
        %s298 = smul.u32 8, %s24
        %v300 = vld [vmem:[%s254] sm:$0xf]
        %v301 = vld [vmem:[%s254 + $0x4] sm:$0xf]
        %v302 = vld [vmem:[%s254 + $0x8] sm:$0xf]
        %v303 = vld [vmem:[%s254 + $0xc] sm:$0xf]
        %v304 = vld [vmem:[%s254 + $0x10] sm:$0xf]
        %v305 = vld [vmem:[%s254 + $0x14] sm:$0xf]
        %v306 = vld [vmem:[%s254 + $0x18] sm:$0xf]
        %v307 = vld [vmem:[%s254 + $0x1c] sm:$0xf]
        %v308 = vld [vmem:[#allocation5] sm:$0xf]
        %v309 = vld [vmem:[#allocation5 + $0x4] sm:$0xf]
        %v310 = vld [vmem:[#allocation5 + $0x8] sm:$0xf]
        %v311 = vld [vmem:[#allocation5 + $0xc] sm:$0xf]
        %v312 = vld [vmem:[#allocation7] sm:$0x1]
        %v314 = vlaneseq
        %v315 = vshrl.u32 %v314, 7
        %v316 = vsub.s32 0, %v315
        %v317 = vrot.slane %v312, %v316
        %v327 = vunpack.c.l.b16 %v300
        %v328 = vunpack.c.l.b16 %v301
        %v329 = vunpack.c.l.b16 %v302
        %v330 = vunpack.c.l.b16 %v303
        %v331 = vunpack.c.l.b16 %v304
        %v332 = vunpack.c.l.b16 %v305
        %v333 = vunpack.c.l.b16 %v306
        %v334 = vunpack.c.l.b16 %v307
        %v335 = vpack.c.b16 %v328, %v327
        %v336 = vpack.c.b16 %v330, %v329
        %v337 = vpack.c.b16 %v332, %v331
        %v338 = vpack.c.b16 %v334, %v333
        %v343 = vunpack.c.l.b16 %v308
        %v344 = vunpack.c.l.b16 %v309
        %v345 = vunpack.c.l.b16 %v310
        %v346 = vunpack.c.l.b16 %v311
        %v347 = vpack.c.b16 %v344, %v343
        %v348 = vpack.c.b16 %v346, %v345
        %vm351 = vcmask 261120
        %v353 = vsel %vm351, %v335, 0
        %v356 = vsel %vm351, %v336, 0
        %v359 = vsel %vm351, %v337, 0
        %v362 = vsel %vm351, %v338, 0
        %364 = vmatprep.subr.bf16.mxu0 0
        %365 = vmatpush1.bf16.msra.mxu0 %v347
        %366 = vmatprep.subr.bf16.mxu0 0
        %367 = vmatpush1.bf16.msra.mxu0 %v348
        %368 = vmatprep.subr.bf16.mxu0 0
        %369 = vmatpush1.bf16.msra.mxu0 0
        %370 = vmatprep.subr.bf16.mxu0 0
        %371 = vmatpush1.bf16.msra.mxu0 0
        %372 = vmatprep.subr.bf16.mxu0 0
        %373 = vmatpush1.bf16.msra.mxu0 0
        %374 = vmatprep.subr.bf16.mxu0 0
        %375 = vmatpush1.bf16.msra.mxu0 0
        %376 = vmatprep.subr.bf16.mxu0 0
        %377 = vmatpush1.bf16.msra.mxu0 0
        %378 = vmatprep.subr.bf16.mxu0 0
        %379 = vmatpush1.bf16.msra.mxu0 0
        %380 = vmatprep.subr.bf16.mxu0 0
        %381 = vmatpush1.bf16.msra.mxu0 0
        %382 = vmatprep.subr.bf16.mxu0 0
        %383 = vmatpush1.bf16.msra.mxu0 0
        %384 = vmatprep.subr.bf16.mxu0 0
        %385 = vmatpush1.bf16.msra.mxu0 0
        %386 = vmatprep.subr.bf16.mxu0 0
        %387 = vmatpush1.bf16.msra.mxu0 0
        %388 = vmatprep.subr.bf16.mxu0 0
        %389 = vmatpush1.bf16.msra.mxu0 0
        %390 = vmatprep.subr.bf16.mxu0 0
        %391 = vmatpush1.bf16.msra.mxu0 0
        %392 = vmatprep.subr.bf16.mxu0 0
        %393 = vmatpush1.bf16.msra.mxu0 0
        %394 = vmatprep.subr.bf16.mxu0 0
        %395 = vmatpush1.bf16.msra.mxu0 0
        %396 = vmatprep.mubr.bf16.mxu0 0
        %397 = vmatmul.mubr.bf16.gmra.mrb[0].mxu0 %v353
        %v398 = vpop.f32.mrb[0].mxu0
        %v399 = vadd.f32 %v317, %v398
        %v400 = vpop.f32.mrb[0].mxu0
        %v401 = vpop.f32.mrb[0].mxu0
        %v402 = vadd.f32 %v317, %v401
        %v403 = vpop.f32.mrb[0].mxu0
        %404 = vmatprep.mubr.bf16.mxu0 0
        %405 = vmatmul.mubr.bf16.gmra.mrb[0].mxu0 %v356
        %v406 = vpop.f32.mrb[0].mxu0
        %v407 = vadd.f32 %v317, %v406
        %v408 = vpop.f32.mrb[0].mxu0
        %v409 = vpop.f32.mrb[0].mxu0
        %v410 = vadd.f32 %v317, %v409
        %v411 = vpop.f32.mrb[0].mxu0
        %412 = vmatprep.mubr.bf16.mxu0 0
        %413 = vmatmul.mubr.bf16.gmra.mrb[0].mxu0 %v359
        %v414 = vpop.f32.mrb[0].mxu0
        %v415 = vadd.f32 %v317, %v414
        %v416 = vpop.f32.mrb[0].mxu0
        %v417 = vpop.f32.mrb[0].mxu0
        %v418 = vadd.f32 %v317, %v417
        %v419 = vpop.f32.mrb[0].mxu0
        %420 = vmatprep.mubr.bf16.mxu0 0
        %421 = vmatmul.mubr.bf16.gmra.mrb[0].mxu0 %v362
        %v422 = vpop.f32.mrb[0].mxu0
        %v423 = vadd.f32 %v317, %v422
        %v424 = vpop.f32.mrb[0].mxu0
        %v425 = vpop.f32.mrb[0].mxu0
        %v426 = vadd.f32 %v317, %v425
        %v427 = vpop.f32.mrb[0].mxu0
        %428 = vdwg.mxu0
        %v429 = vmax.f32 %v399, 0.0
        %v430 = vmax.f32 %v402, 0.0
        %v431 = vmax.f32 %v407, 0.0
        %v432 = vmax.f32 %v410, 0.0
        %v433 = vmax.f32 %v415, 0.0
        %v434 = vmax.f32 %v418, 0.0
        %v435 = vmax.f32 %v423, 0.0
        %v436 = vmax.f32 %v426, 0.0
        %v437 = vpack.c.bf16 %v430, %v429
        %v438 = vpack.c.bf16 %v432, %v431
        %v439 = vpack.c.bf16 %v434, %v433
        %v440 = vpack.c.bf16 %v436, %v435
        %v441 = vld [vmem:[#allocation8] sm:$0xf]
        %v442 = vld [vmem:[#allocation8 + $0x4] sm:$0xf]
        %v443 = vld [vmem:[#allocation8 + $0x8] sm:$0xf]
        %v444 = vld [vmem:[#allocation8 + $0xc] sm:$0xf]
        %v445 = vld [vmem:[#allocation10] sm:$0x1]
        %v447 = vlaneseq
        %v448 = vshrl.u32 %v447, 7
        %v449 = vsub.s32 0, %v448
        %v450 = vrot.slane %v445, %v449
        %v456 = vunpack.c.l.b16 %v441
        %v457 = vunpack.c.l.b16 %v442
        %v458 = vunpack.c.l.b16 %v443
        %v459 = vunpack.c.l.b16 %v444
        %v460 = vpack.c.b16 %v457, %v456
        %v461 = vpack.c.b16 %v459, %v458
        %v465 = vsel %vm351, %v437, 0
        %v468 = vsel %vm351, %v438, 0
        %v471 = vsel %vm351, %v439, 0
        %v474 = vsel %vm351, %v440, 0
        %476 = vmatprep.subr.bf16.mxu0 0
        %477 = vmatpush1.bf16.msra.mxu0 %v460
        %478 = vmatprep.subr.bf16.mxu0 0
        %479 = vmatpush1.bf16.msra.mxu0 %v461
        %480 = vmatprep.subr.bf16.mxu0 0
        %481 = vmatpush1.bf16.msra.mxu0 0
        %482 = vmatprep.subr.bf16.mxu0 0
        %483 = vmatpush1.bf16.msra.mxu0 0
        %484 = vmatprep.subr.bf16.mxu0 0
        %485 = vmatpush1.bf16.msra.mxu0 0
        %486 = vmatprep.subr.bf16.mxu0 0
        %487 = vmatpush1.bf16.msra.mxu0 0
        %488 = vmatprep.subr.bf16.mxu0 0
        %489 = vmatpush1.bf16.msra.mxu0 0
        %490 = vmatprep.subr.bf16.mxu0 0
        %491 = vmatpush1.bf16.msra.mxu0 0
        %492 = vmatprep.subr.bf16.mxu0 0
        %493 = vmatpush1.bf16.msra.mxu0 0
        %494 = vmatprep.subr.bf16.mxu0 0
        %495 = vmatpush1.bf16.msra.mxu0 0
        %496 = vmatprep.subr.bf16.mxu0 0
        %497 = vmatpush1.bf16.msra.mxu0 0
        %498 = vmatprep.subr.bf16.mxu0 0
        %499 = vmatpush1.bf16.msra.mxu0 0
        %500 = vmatprep.subr.bf16.mxu0 0
        %501 = vmatpush1.bf16.msra.mxu0 0
        %502 = vmatprep.subr.bf16.mxu0 0
        %503 = vmatpush1.bf16.msra.mxu0 0
        %504 = vmatprep.subr.bf16.mxu0 0
        %505 = vmatpush1.bf16.msra.mxu0 0
        %506 = vmatprep.subr.bf16.mxu0 0
        %507 = vmatpush1.bf16.msra.mxu0 0
        %508 = vmatprep.mubr.bf16.mxu0 0
        %509 = vmatmul.mubr.bf16.gmra.mrb[0].mxu0 %v465
        %v510 = vpop.f32.mrb[0].mxu0
        %v511 = vadd.f32 %v450, %v510
        %v512 = vpop.f32.mrb[0].mxu0
        %v513 = vpop.f32.mrb[0].mxu0
        %v514 = vadd.f32 %v450, %v513
        %v515 = vpop.f32.mrb[0].mxu0
        %516 = vmatprep.mubr.bf16.mxu0 0
        %517 = vmatmul.mubr.bf16.gmra.mrb[0].mxu0 %v468
        %v518 = vpop.f32.mrb[0].mxu0
        %v519 = vadd.f32 %v450, %v518
        %v520 = vpop.f32.mrb[0].mxu0
        %v521 = vpop.f32.mrb[0].mxu0
        %v522 = vadd.f32 %v450, %v521
        %v523 = vpop.f32.mrb[0].mxu0
        %524 = vmatprep.mubr.bf16.mxu0 0
        %525 = vmatmul.mubr.bf16.gmra.mrb[0].mxu0 %v471
        %v526 = vpop.f32.mrb[0].mxu0
        %v527 = vadd.f32 %v450, %v526
        %v528 = vpop.f32.mrb[0].mxu0
        %v529 = vpop.f32.mrb[0].mxu0
        %v530 = vadd.f32 %v450, %v529
        %v531 = vpop.f32.mrb[0].mxu0
        %532 = vmatprep.mubr.bf16.mxu0 0
        %533 = vmatmul.mubr.bf16.gmra.mrb[0].mxu0 %v474
        %v534 = vpop.f32.mrb[0].mxu0
        %v535 = vadd.f32 %v450, %v534
        %v536 = vpop.f32.mrb[0].mxu0
        %v537 = vpop.f32.mrb[0].mxu0
        %v538 = vadd.f32 %v450, %v537
        %v539 = vpop.f32.mrb[0].mxu0
        %540 = vdwg.mxu0
        %v541 = vsub.f32 0.0, %v511
        %v542 = vsub.f32 0.0, %v514
        %v543 = vsub.f32 0.0, %v519
        %v544 = vsub.f32 0.0, %v522
        %v545 = vsub.f32 0.0, %v527
        %v546 = vsub.f32 0.0, %v530
        %v547 = vsub.f32 0.0, %v535
        %v548 = vsub.f32 0.0, %v538
        %v549 = vmul.f32 %v541, 1.442695
        %v550 = vpow.pop %v549
        %v551 = vmul.f32 %v542, 1.442695
        %v552 = vpow.pop %v551
        %v553 = vmul.f32 %v543, 1.442695
        %v554 = vpow.pop %v553
        %v555 = vmul.f32 %v544, 1.442695
        %v556 = vpow.pop %v555
        %v557 = vmul.f32 %v545, 1.442695
        %v558 = vpow.pop %v557
        %v559 = vmul.f32 %v546, 1.442695
        %v560 = vpow.pop %v559
        %v561 = vmul.f32 %v547, 1.442695
        %v562 = vpow.pop %v561
        %v563 = vmul.f32 %v548, 1.442695
        %v564 = vpow.pop %v563
        %v565 = vadd.f32 %v550, 1.0
        %v566 = vadd.f32 %v552, 1.0
        %v567 = vadd.f32 %v554, 1.0
        %v568 = vadd.f32 %v556, 1.0
        %v569 = vadd.f32 %v558, 1.0
        %v570 = vadd.f32 %v560, 1.0
        %v571 = vadd.f32 %v562, 1.0
        %v572 = vadd.f32 %v564, 1.0
        %v573 = vrcp.pop %v565
        %v574 = vrcp.pop %v566
        %v575 = vrcp.pop %v567
        %v576 = vrcp.pop %v568
        %v577 = vrcp.pop %v569
        %v578 = vrcp.pop %v570
        %v579 = vrcp.pop %v571
        %v580 = vrcp.pop %v572
        %v581 = vunpack.c.l.bf16 %v300
        %v582 = vunpack.c.l.bf16 %v301
        %v583 = vunpack.c.l.bf16 %v302
        %v584 = vunpack.c.l.bf16 %v303
        %v585 = vunpack.c.l.bf16 %v304
        %v586 = vunpack.c.l.bf16 %v305
        %v587 = vunpack.c.l.bf16 %v306
        %v588 = vunpack.c.l.bf16 %v307
        %v589 = vmul.f32 %v573, %v581
        %v590 = vmul.f32 %v574, %v582
        %v591 = vmul.f32 %v575, %v583
        %v592 = vmul.f32 %v576, %v584
        %v593 = vmul.f32 %v577, %v585
        %v594 = vmul.f32 %v578, %v586
        %v595 = vmul.f32 %v579, %v587
        %v596 = vmul.f32 %v580, %v588
        %v597 = vadd.f32 %v589, %v581
        %v598 = vadd.f32 %v590, %v582
        %v599 = vadd.f32 %v591, %v583
        %v600 = vadd.f32 %v592, %v584
        %v601 = vadd.f32 %v593, %v585
        %v602 = vadd.f32 %v594, %v586
        %v603 = vadd.f32 %v595, %v587
        %v604 = vadd.f32 %v596, %v588
        %v605 = vpack.c.bf16 %v598, %v597
        %v606 = vpack.c.bf16 %v600, %v599
        %v607 = vpack.c.bf16 %v602, %v601
        %v608 = vpack.c.bf16 %v604, %v603
        %v613 = vunpack.c.l.b16 %v605
        %v614 = vunpack.c.h.b16 %v605
        %v615 = vunpack.c.l.b16 %v606
        %v616 = vunpack.c.h.b16 %v606
        %v617 = vunpack.c.l.b16 %v607
        %v618 = vunpack.c.h.b16 %v607
        %v619 = vunpack.c.l.b16 %v608
        %v620 = vunpack.c.h.b16 %v608
        %v621 = vpack.c.b16 %v613, %v613
        %v622 = vpack.c.b16 %v614, %v614
        %v623 = vpack.c.b16 %v615, %v615
        %v624 = vpack.c.b16 %v616, %v616
        %v625 = vpack.c.b16 %v617, %v617
        %v626 = vpack.c.b16 %v618, %v618
        %v627 = vpack.c.b16 %v619, %v619
        %v628 = vpack.c.b16 %v620, %v620
        %vm637 = vcmask 257024
        %638 = vst.msk [vmem:[%s296] sm:$0xf] %vm637, %v621
        %639 = vst.msk [vmem:[%s296 + $0x4] sm:$0xf] %vm637, %v622
        %640 = vst.msk [vmem:[%s296 + $0x8] sm:$0xf] %vm637, %v623
        %641 = vst.msk [vmem:[%s296 + $0xc] sm:$0xf] %vm637, %v624
        %642 = vst.msk [vmem:[%s296 + $0x10] sm:$0xf] %vm637, %v625
        %643 = vst.msk [vmem:[%s296 + $0x14] sm:$0xf] %vm637, %v626
        %644 = vst.msk [vmem:[%s296 + $0x18] sm:$0xf] %vm637, %v627
        %645 = vst.msk [vmem:[%s296 + $0x1c] sm:$0xf] %vm637, %v628
        %s646 = sand.u32 %s142, 1
        %s647 = scalar_lea.sflag [#allocation4], %s646
        %s648 = sand.u32 %s142, 1
        %s649 = smul.addr %s648, 32
        %s650 = scalar_lea.vmem [#allocation11], %s649
        // Predicated region
        $region61: #{multi_field_at_conv2d.12} parent=39 // pred_check
          %p651 = pneg %p152
        $region62: #{multi_field_at_conv2d.12} parent=39 // pred_check_branch
          %653 = sbr.rel (%p651) target = $region64
        $region63: #{multi_field_at_conv2d.12} parent=39 // pred_region
          %s654 = smul.u32 8, %s24
          %s656 = ssub.s32 512, 512
          %657 = vsyncadd %s647, %s656
          %s658 = smul.addr %s654, 64
          %s659 = scalar_lea.hbm %s5, %s658
          %s660 = sshll.u32 %s650, 4
          %s661 = int_to_ptr.vmem [resolvable:$true] %s660
          %666 = dma.vmem_to_hbm [thread:$0]  %s661, 512, %s659, %s647, 64, 64, 4
        $region64: #{multi_field_at_conv2d.12} parent=39 // pred_fallthru
          _
      $region40: #{multi_field_at_conv2d.12} parent=5 // pred_fallthru
        _
      %p667 = scmp.le.s32.totalorder 2, %s19
      // Predicated region
      $region65: #{multi_field_at_conv2d.12} parent=5 // pred_check
        %p668 = pneg %p667
      $region66: #{multi_field_at_conv2d.12} parent=5 // pred_check_branch
        %670 = sbr.rel (%p668) target = $region68
      $region67: #{multi_field_at_conv2d.12} parent=5 // pred_region
        %s671 = ssub.s32 %s19, 2
        // Predicated region
        $region69: #{multi_field_at_conv2d.12} parent=67 // pred_check
          %p672 = pneg %p158
        $region70: #{multi_field_at_conv2d.12} parent=67 // pred_check_branch
          %674 = sbr.rel (%p672) target = $region72
        $region71: #{multi_field_at_conv2d.12} parent=67 // pred_region
          %s675 = sand.u32 %s143, 1
          %s676 = scalar_lea.sflag [#allocation4], %s675
          %s677 = sand.u32 %s143, 1
          %s678 = smul.addr %s677, 32
          %s679 = scalar_lea.vmem [#allocation11], %s678
          %680 = dma.done %s676, 512
        $region72: #{multi_field_at_conv2d.12} parent=67 // pred_fallthru
          _
      $region68: #{multi_field_at_conv2d.12} parent=5 // pred_fallthru
        _
    $region6: #{multi_field_at_conv2d.12} parent=1 // loop_footer
      %s23 = sadd.s32 1, %s19
    $region7: #{multi_field_at_conv2d.12} parent=1 // loop_footer_branch
      %18 = sbr.rel target = $region3
    $region8: #{multi_field_at_conv2d.12} parent=1 // loop_exit
      _
    %681 = vsyncpa [#allocation3], 1
    %s682 = scalar_lea.sflag [#allocation3], 1
    %683 = vsyncpa %s682, 1
    %684 = vsyncpa [#allocation6], 1
    %685 = vsyncpa [#allocation9], 1
    %686 = vsyncpa [#allocation4], 1
    %s687 = scalar_lea.sflag [#allocation4], 1
    %688 = vsyncpa %s687, 1

// kernel: multi_field_at_conv2d.13
$region0: #{multi_field_at_conv2d.13}
  #allocation0 [shape = 'u32[]', space=smem, size = 0x4, offset = 0x4, fixed_abs, tag = 'smem constant byte address 0x4 - core index']
  #allocation1 [shape = 'u32[144,128]{1,0:T(1,128)}', space=vmem, size = 0x12000, scoped, tag = 'internal scratch']
  %s0 = inlined_call_operand.hbm [shape: bf16[512,32], index: 0, kind: input, shape index: {}]
  %s1 = inlined_call_operand.hbm [shape: bf16[512,32], index: 1, kind: input, shape index: {}]
  %s2 = inlined_call_operand.hbm [shape: bf16[512,32], index: 2, kind: input, shape index: {}]
  %s3 = inlined_call_operand.hbm [shape: bf16[512,32], index: 3, kind: input, shape index: {}]
  %s4 = inlined_call_operand.hbm [shape: bf16[128,32], index: 4, kind: input, shape index: {}]
  %s5 = inlined_call_operand.hbm [shape: f32[1,32], index: 5, kind: input, shape index: {}]
  %s6 = inlined_call_operand.hbm [shape: f32[512,32], index: 6, kind: output, shape index: {}]
  %s7 = sld [smem:[#allocation0]]
  $region81: #{multi_field_at_conv2d.13} parent=0
    _
  %s9 = ssub.s32 1, %s7
  %s10 = scalar_select 0, %s9, %s7
  $region1: #{multi_field_at_conv2d.13} parent=0
    #allocation2 [shape = 'u8[32768]{0}', space=vmem, size = 0x8000, scoped, tag = 'input window, operand 0']
    #allocation3 [shape = 's32[2]{0}', space=sflag, size = 0x8, scoped, tag = 'scoped memory for multi_field_at_conv2d.13']
    #allocation4 [shape = 's32[2]{0}', space=sflag, size = 0x8, scoped, tag = 'scoped memory for multi_field_at_conv2d.13']
    #allocation5 [shape = 'u8[32768]{0}', space=vmem, size = 0x8000, scoped, tag = 'input window, operand 1']
    #allocation6 [shape = 's32[2]{0}', space=sflag, size = 0x8, scoped, tag = 'scoped memory for multi_field_at_conv2d.13']
    #allocation7 [shape = 'u8[32768]{0}', space=vmem, size = 0x8000, scoped, tag = 'input window, operand 2']
    #allocation8 [shape = 'u8[32768]{0}', space=vmem, size = 0x8000, scoped, tag = 'input window, operand 3']
    #allocation9 [shape = 's32[2]{0}', space=sflag, size = 0x8, scoped, tag = 'scoped memory for multi_field_at_conv2d.13']
    #allocation10 [shape = 'u8[32768]{0}', space=vmem, size = 0x8000, scoped, tag = 'input window, operand 4, single buffered']
    #allocation11 [shape = 'u8[512]{0}', space=vmem, size = 0x400, scoped, tag = 'input window, operand 5, single buffered']
    #allocation12 [shape = 's32[1]{0}', space=sflag, size = 0x4, scoped, tag = 'scoped memory for multi_field_at_conv2d.13']
    #allocation13 [shape = 'u8[65536]{0}', space=vmem, size = 0x10000, scoped, tag = 'output window, operand 0']
    %11 = vsyncpa [#allocation3], 0
    %s12 = scalar_lea.sflag [#allocation3], 1
    %13 = vsyncpa %s12, 0
    %14 = vsyncpa [#allocation6], 0
    %s15 = scalar_lea.sflag [#allocation6], 1
    %16 = vsyncpa %s15, 0
    %17 = vsyncpa [#allocation9], 0
    %s18 = scalar_lea.sflag [#allocation9], 1
    %19 = vsyncpa %s18, 0
    %20 = vsyncpa [#allocation12], 0
    %21 = vsyncpa [#allocation4], 0
    %s22 = scalar_lea.sflag [#allocation4], 1
    %23 = vsyncpa %s22, 0
    loop: start=0, step=1, limit=10
    $region2: #{multi_field_at_conv2d.13} parent=1 // loop_pre_header
      _
    $region3: #{multi_field_at_conv2d.13} parent=1 // loop_header
      %s25 = sphi 0, %s29
      %p26 = scmp.ge.s32.totalorder %s25, 10
      %s35 = sphi 0, %s37
      %s38 = sphi 0, %s35
      %s39 = sphi 0, %s38
      %s55 = sphi 0, %s39
      %s61 = sphi 0, %s63
      %s64 = sphi 0, %s61
      %s65 = sphi 0, %s64
      %s81 = sphi 0, %s65
      %s87 = sphi 0, %s89
      %s90 = sphi 0, %s87
      %s91 = sphi 0, %s90
      %s107 = sphi 0, %s91
      %s113 = sphi 0, %s115
      %s116 = sphi 0, %s113
      %s117 = sphi 0, %s116
      %s133 = sphi 0, %s117
      %s137 = sphi 0, %s137
      %s139 = sphi 0, %s137
      %s140 = sphi 0, %s139
      %s154 = sphi 0, %s140
      %s158 = sphi 0, %s158
      %s160 = sphi 0, %s158
      %s161 = sphi 0, %s160
      %s175 = sphi 0, %s161
      %s181 = sphi 0, %s183
      %s184 = sphi 0, %s181
      %s185 = sphi 0, %s184
      %s201 = sphi 0, %s185
    $region4: #{multi_field_at_conv2d.13} parent=1 // loop_header_branch
      %28 = sbr.rel (%p26) target = $region8
    $region5: #{multi_field_at_conv2d.13} parent=1 // loop_body
      %s30 = ssub.s32 %s25, 1
      %s31 = ssub.s32 %s25, 2
      %s32 = sadd.s32 %s25, 1
      %s33 = ssub.s32 %s25, %s32
      %p34 = scmp.eq.s32.totalorder %s33, 0
      %s36 = sadd.s32 %s35, 1
      %s37 = scalar_select %p34, %s35, %s36
      %p40 = pneg %p34
      %p41 = scmp.eq.s32.totalorder %s25, 7
      %p42 = por %p40, %p41
      %p43 = scmp.ne.s32.totalorder %s35, %s38
      %p44 = scmp.eq.s32.totalorder %s25, 0
      %p45 = por %p43, %p44
      %p46 = scmp.ne.s32.totalorder %s35, %s38
      %p47 = scmp.eq.s32.totalorder %s30, 7
      %p48 = por %p46, %p47
      %p49 = scmp.ne.s32.totalorder %s38, %s39
      %p50 = scmp.eq.s32.totalorder %s30, 0
      %p51 = por %p49, %p50
      %p52 = scmp.ne.s32.totalorder %s38, %s39
      %p53 = scmp.eq.s32.totalorder %s31, 7
      %p54 = por %p52, %p53
      %p56 = scmp.ne.s32.totalorder %s39, %s55
      %p57 = scmp.eq.s32.totalorder %s31, 0
      %p58 = por %p56, %p57
      %s59 = ssub.s32 %s25, %s32
      %p60 = scmp.eq.s32.totalorder %s59, 0
      %s62 = sadd.s32 %s61, 1
      %s63 = scalar_select %p60, %s61, %s62
      %p66 = pneg %p60
      %p67 = scmp.eq.s32.totalorder %s25, 7
      %p68 = por %p66, %p67
      %p69 = scmp.ne.s32.totalorder %s61, %s64
      %p70 = scmp.eq.s32.totalorder %s25, 0
      %p71 = por %p69, %p70
      %p72 = scmp.ne.s32.totalorder %s61, %s64
      %p73 = scmp.eq.s32.totalorder %s30, 7
      %p74 = por %p72, %p73
      %p75 = scmp.ne.s32.totalorder %s64, %s65
      %p76 = scmp.eq.s32.totalorder %s30, 0
      %p77 = por %p75, %p76
      %p78 = scmp.ne.s32.totalorder %s64, %s65
      %p79 = scmp.eq.s32.totalorder %s31, 7
      %p80 = por %p78, %p79
      %p82 = scmp.ne.s32.totalorder %s65, %s81
      %p83 = scmp.eq.s32.totalorder %s31, 0
      %p84 = por %p82, %p83
      %s85 = ssub.s32 %s25, %s32
      %p86 = scmp.eq.s32.totalorder %s85, 0
      %s88 = sadd.s32 %s87, 1
      %s89 = scalar_select %p86, %s87, %s88
      %p92 = pneg %p86
      %p93 = scmp.eq.s32.totalorder %s25, 7
      %p94 = por %p92, %p93
      %p95 = scmp.ne.s32.totalorder %s87, %s90
      %p96 = scmp.eq.s32.totalorder %s25, 0
      %p97 = por %p95, %p96
      %p98 = scmp.ne.s32.totalorder %s87, %s90
      %p99 = scmp.eq.s32.totalorder %s30, 7
      %p100 = por %p98, %p99
      %p101 = scmp.ne.s32.totalorder %s90, %s91
      %p102 = scmp.eq.s32.totalorder %s30, 0
      %p103 = por %p101, %p102
      %p104 = scmp.ne.s32.totalorder %s90, %s91
      %p105 = scmp.eq.s32.totalorder %s31, 7
      %p106 = por %p104, %p105
      %p108 = scmp.ne.s32.totalorder %s91, %s107
      %p109 = scmp.eq.s32.totalorder %s31, 0
      %p110 = por %p108, %p109
      %s111 = ssub.s32 %s25, %s32
      %p112 = scmp.eq.s32.totalorder %s111, 0
      %s114 = sadd.s32 %s113, 1
      %s115 = scalar_select %p112, %s113, %s114
      %p118 = pneg %p112
      %p119 = scmp.eq.s32.totalorder %s25, 7
      %p120 = por %p118, %p119
      %p121 = scmp.ne.s32.totalorder %s113, %s116
      %p122 = scmp.eq.s32.totalorder %s25, 0
      %p123 = por %p121, %p122
      %p124 = scmp.ne.s32.totalorder %s113, %s116
      %p125 = scmp.eq.s32.totalorder %s30, 7
      %p126 = por %p124, %p125
      %p127 = scmp.ne.s32.totalorder %s116, %s117
      %p128 = scmp.eq.s32.totalorder %s30, 0
      %p129 = por %p127, %p128
      %p130 = scmp.ne.s32.totalorder %s116, %s117
      %p131 = scmp.eq.s32.totalorder %s31, 7
      %p132 = por %p130, %p131
      %p134 = scmp.ne.s32.totalorder %s117, %s133
      %p135 = scmp.eq.s32.totalorder %s31, 0
      %p136 = por %p134, %p135
      %s138 = sadd.s32 %s137, 1
      %p141 = scmp.eq.s32.totalorder %s25, 7
      %p142 = scmp.ne.s32.totalorder %s137, %s139
      %p143 = scmp.eq.s32.totalorder %s25, 0
      %p144 = por %p142, %p143
      %p145 = scmp.ne.s32.totalorder %s137, %s139
      %p146 = scmp.eq.s32.totalorder %s30, 7
      %p147 = por %p145, %p146
      %p148 = scmp.ne.s32.totalorder %s139, %s140
      %p149 = scmp.eq.s32.totalorder %s30, 0
      %p150 = por %p148, %p149
      %p151 = scmp.ne.s32.totalorder %s139, %s140
      %p152 = scmp.eq.s32.totalorder %s31, 7
      %p153 = por %p151, %p152
      %p155 = scmp.ne.s32.totalorder %s140, %s154
      %p156 = scmp.eq.s32.totalorder %s31, 0
      %p157 = por %p155, %p156
      %s159 = sadd.s32 %s158, 1
      %p162 = scmp.eq.s32.totalorder %s25, 7
      %p163 = scmp.ne.s32.totalorder %s158, %s160
      %p164 = scmp.eq.s32.totalorder %s25, 0
      %p165 = por %p163, %p164
      %p166 = scmp.ne.s32.totalorder %s158, %s160
      %p167 = scmp.eq.s32.totalorder %s30, 7
      %p168 = por %p166, %p167
      %p169 = scmp.ne.s32.totalorder %s160, %s161
      %p170 = scmp.eq.s32.totalorder %s30, 0
      %p171 = por %p169, %p170
      %p172 = scmp.ne.s32.totalorder %s160, %s161
      %p173 = scmp.eq.s32.totalorder %s31, 7
      %p174 = por %p172, %p173
      %p176 = scmp.ne.s32.totalorder %s161, %s175
      %p177 = scmp.eq.s32.totalorder %s31, 0
      %p178 = por %p176, %p177
      %s179 = ssub.s32 %s25, %s32
      %p180 = scmp.eq.s32.totalorder %s179, 0
      %s182 = sadd.s32 %s181, 1
      %s183 = scalar_select %p180, %s181, %s182
      %p186 = pneg %p180
      %p187 = scmp.eq.s32.totalorder %s25, 7
      %p188 = por %p186, %p187
      %p189 = scmp.ne.s32.totalorder %s181, %s184
      %p190 = scmp.eq.s32.totalorder %s25, 0
      %p191 = por %p189, %p190
      %p192 = scmp.ne.s32.totalorder %s181, %s184
      %p193 = scmp.eq.s32.totalorder %s30, 7
      %p194 = por %p192, %p193
      %p195 = scmp.ne.s32.totalorder %s184, %s185
      %p196 = scmp.eq.s32.totalorder %s30, 0
      %p197 = por %p195, %p196
      %p198 = scmp.ne.s32.totalorder %s184, %s185
      %p199 = scmp.eq.s32.totalorder %s31, 7
      %p200 = por %p198, %p199
      %p202 = scmp.ne.s32.totalorder %s185, %s201
      %p203 = scmp.eq.s32.totalorder %s31, 0
      %p204 = por %p202, %p203
      %p205 = scmp.le.s32.totalorder 1, %s25
      %p206 = scmp.lt.s32.totalorder %s25, 9
      %p207 = pnand %p205, %p206
      %p208 = pneg %p207
      // Predicated region
      $region9: #{multi_field_at_conv2d.13} parent=5 // pred_check
        _
      $region10: #{multi_field_at_conv2d.13} parent=5 // pred_check_branch
        %210 = sbr.rel (%p207) target = $region12
      $region11: #{multi_field_at_conv2d.13} parent=5 // pred_region
        %s211 = ssub.s32 %s25, 1
        // Predicated region
        $region13: #{multi_field_at_conv2d.13} parent=11 // pred_check
          %p212 = pneg %p150
        $region14: #{multi_field_at_conv2d.13} parent=11 // pred_check_branch
          %214 = sbr.rel (%p212) target = $region16
        $region15: #{multi_field_at_conv2d.13} parent=11 // pred_region
          %s216 = ssub.s32 1024, 1024
          %217 = vsyncadd [#allocation9], %s216
          %s218 = sshll.u32 [#allocation10], 4
          %s219 = int_to_ptr.vmem [resolvable:$true] %s218
          %224 = dma.hbm_to_vmem [thread:$0]  %s4, 1024, %s219, [#allocation9], 64, 64, 4
        $region16: #{multi_field_at_conv2d.13} parent=11 // pred_fallthru
          _
        // Predicated region
        $region17: #{multi_field_at_conv2d.13} parent=11 // pred_check
          %p225 = pneg %p171
        $region18: #{multi_field_at_conv2d.13} parent=11 // pred_check_branch
          %227 = sbr.rel (%p225) target = $region20
        $region19: #{multi_field_at_conv2d.13} parent=11 // pred_region
          %s229 = ssub.s32 16, 16
          %230 = vsyncadd [#allocation12], %s229
          %s232 = sshll.u32 [#allocation11], 4
          %s233 = int_to_ptr.vmem [resolvable:$true] %s232
          %235 = dma.hbm_to_vmem [thread:$0]  %s5, 16, %s233, [#allocation12]
        $region20: #{multi_field_at_conv2d.13} parent=11 // pred_fallthru
          _
      $region12: #{multi_field_at_conv2d.13} parent=5 // pred_fallthru
        _
      %p236 = scmp.lt.s32.totalorder %s25, 8
      // Predicated region
      $region21: #{multi_field_at_conv2d.13} parent=5 // pred_check
        %p237 = pneg %p236
      $region22: #{multi_field_at_conv2d.13} parent=5 // pred_check_branch
        %239 = sbr.rel (%p237) target = $region24
      $region23: #{multi_field_at_conv2d.13} parent=5 // pred_region
        // Predicated region
        $region25: #{multi_field_at_conv2d.13} parent=23 // pred_check
          %p240 = pneg %p45
        $region26: #{multi_field_at_conv2d.13} parent=23 // pred_check_branch
          %242 = sbr.rel (%p240) target = $region28
        $region27: #{multi_field_at_conv2d.13} parent=23 // pred_region
          %s243 = sand.u32 %s35, 1
          %s244 = scalar_lea.sflag [#allocation3], %s243
          %s245 = sand.u32 %s35, 1
          %s246 = smul.addr %s245, 32
          %s247 = scalar_lea.vmem [#allocation2], %s246
          %s248 = smul.u32 8, %s25
          %s250 = ssub.s32 512, 512
          %251 = vsyncadd %s244, %s250
          %s252 = smul.addr %s248, 64
          %s253 = scalar_lea.hbm %s0, %s252
          %s254 = sshll.u32 %s247, 4
          %s255 = int_to_ptr.vmem [resolvable:$true] %s254
          %260 = dma.hbm_to_vmem [thread:$0]  %s253, 512, %s255, %s244, 64, 64, 4
        $region28: #{multi_field_at_conv2d.13} parent=23 // pred_fallthru
          _
        // Predicated region
        $region29: #{multi_field_at_conv2d.13} parent=23 // pred_check
          %p261 = pneg %p71
        $region30: #{multi_field_at_conv2d.13} parent=23 // pred_check_branch
          %263 = sbr.rel (%p261) target = $region32
        $region31: #{multi_field_at_conv2d.13} parent=23 // pred_region
          %s264 = sand.u32 %s25, 1
          %s265 = scalar_lea.sflag [#allocation6], %s264
          %s266 = sand.u32 %s61, 1
          %s267 = smul.addr %s266, 32
          %s268 = scalar_lea.vmem [#allocation5], %s267
          %s269 = smul.u32 8, %s25
          %s271 = ssub.s32 512, 512
          %272 = vsyncadd %s265, %s271
          %s273 = smul.addr %s269, 64
          %s274 = scalar_lea.hbm %s1, %s273
          %s275 = sshll.u32 %s268, 4
          %s276 = int_to_ptr.vmem [resolvable:$true] %s275
          %281 = dma.hbm_to_vmem [thread:$0]  %s274, 512, %s276, %s265, 64, 64, 4
        $region32: #{multi_field_at_conv2d.13} parent=23 // pred_fallthru
          _
        // Predicated region
        $region33: #{multi_field_at_conv2d.13} parent=23 // pred_check
          %p282 = pneg %p97
        $region34: #{multi_field_at_conv2d.13} parent=23 // pred_check_branch
          %284 = sbr.rel (%p282) target = $region36
        $region35: #{multi_field_at_conv2d.13} parent=23 // pred_region
          %s285 = sand.u32 %s25, 1
          %s286 = scalar_lea.sflag [#allocation6], %s285
          %s287 = sand.u32 %s87, 1
          %s288 = smul.addr %s287, 32
          %s289 = scalar_lea.vmem [#allocation7], %s288
          %s290 = smul.u32 8, %s25
          %s292 = ssub.s32 512, 512
          %293 = vsyncadd %s286, %s292
          %s294 = smul.addr %s290, 64
          %s295 = scalar_lea.hbm %s2, %s294
          %s296 = sshll.u32 %s289, 4
          %s297 = int_to_ptr.vmem [resolvable:$true] %s296
          %302 = dma.hbm_to_vmem [thread:$0]  %s295, 512, %s297, %s286, 64, 64, 4
        $region36: #{multi_field_at_conv2d.13} parent=23 // pred_fallthru
          _
        // Predicated region
        $region37: #{multi_field_at_conv2d.13} parent=23 // pred_check
          %p303 = pneg %p123
        $region38: #{multi_field_at_conv2d.13} parent=23 // pred_check_branch
          %305 = sbr.rel (%p303) target = $region40
        $region39: #{multi_field_at_conv2d.13} parent=23 // pred_region
          %s306 = sand.u32 %s25, 1
          %s307 = scalar_lea.sflag [#allocation9], %s306
          %s308 = sand.u32 %s113, 1
          %s309 = smul.addr %s308, 32
          %s310 = scalar_lea.vmem [#allocation8], %s309
          %s311 = smul.u32 8, %s25
          %s313 = ssub.s32 512, 512
          %314 = vsyncadd %s307, %s313
          %s315 = smul.addr %s311, 64
          %s316 = scalar_lea.hbm %s3, %s315
          %s317 = sshll.u32 %s310, 4
          %s318 = int_to_ptr.vmem [resolvable:$true] %s317
          %323 = dma.hbm_to_vmem [thread:$0]  %s316, 512, %s318, %s307, 64, 64, 4
        $region40: #{multi_field_at_conv2d.13} parent=23 // pred_fallthru
          _
      $region24: #{multi_field_at_conv2d.13} parent=5 // pred_fallthru
        _
      %p324 = scmp.le.s32.totalorder 1, %s25
      %p325 = scmp.lt.s32.totalorder %s25, 9
      %p326 = pnand %p324, %p325
      %p327 = pneg %p326
      // Predicated region
      $region41: #{multi_field_at_conv2d.13} parent=5 // pred_check
        _
      $region42: #{multi_field_at_conv2d.13} parent=5 // pred_check_branch
        %329 = sbr.rel (%p326) target = $region44
      $region43: #{multi_field_at_conv2d.13} parent=5 // pred_region
        %s330 = ssub.s32 %s25, 1
        %s331 = sand.u32 %s38, 1
        %s332 = scalar_lea.sflag [#allocation3], %s331
        %s333 = sand.u32 %s38, 1
        %s334 = smul.addr %s333, 32
        %s335 = scalar_lea.vmem [#allocation2], %s334
        // Predicated region
        $region45: #{multi_field_at_conv2d.13} parent=43 // pred_check
          %p336 = pneg %p51
        $region46: #{multi_field_at_conv2d.13} parent=43 // pred_check_branch
          %338 = sbr.rel (%p336) target = $region48
        $region47: #{multi_field_at_conv2d.13} parent=43 // pred_region
          %339 = dma.done %s332, 512
        $region48: #{multi_field_at_conv2d.13} parent=43 // pred_fallthru
          _
        %s340 = sand.u32 %s30, 1
        %s341 = scalar_lea.sflag [#allocation6], %s340
        %s342 = sand.u32 %s64, 1
        %s343 = smul.addr %s342, 32
        %s344 = scalar_lea.vmem [#allocation5], %s343
        // Predicated region
        $region49: #{multi_field_at_conv2d.13} parent=43 // pred_check
          %p345 = pneg %p77
        $region50: #{multi_field_at_conv2d.13} parent=43 // pred_check_branch
          %347 = sbr.rel (%p345) target = $region52
        $region51: #{multi_field_at_conv2d.13} parent=43 // pred_region
          %348 = dma.done %s341, 512
        $region52: #{multi_field_at_conv2d.13} parent=43 // pred_fallthru
          _
        %s349 = sand.u32 %s30, 1
        %s350 = scalar_lea.sflag [#allocation6], %s349
        %s351 = sand.u32 %s90, 1
        %s352 = smul.addr %s351, 32
        %s353 = scalar_lea.vmem [#allocation7], %s352
        // Predicated region
        $region53: #{multi_field_at_conv2d.13} parent=43 // pred_check
          %p354 = pneg %p103
        $region54: #{multi_field_at_conv2d.13} parent=43 // pred_check_branch
          %356 = sbr.rel (%p354) target = $region56
        $region55: #{multi_field_at_conv2d.13} parent=43 // pred_region
          %357 = dma.done %s350, 512
        $region56: #{multi_field_at_conv2d.13} parent=43 // pred_fallthru
          _
        %s358 = sand.u32 %s30, 1
        %s359 = scalar_lea.sflag [#allocation9], %s358
        %s360 = sand.u32 %s116, 1
        %s361 = smul.addr %s360, 32
        %s362 = scalar_lea.vmem [#allocation8], %s361
        // Predicated region
        $region57: #{multi_field_at_conv2d.13} parent=43 // pred_check
          %p363 = pneg %p129
        $region58: #{multi_field_at_conv2d.13} parent=43 // pred_check_branch
          %365 = sbr.rel (%p363) target = $region60
        $region59: #{multi_field_at_conv2d.13} parent=43 // pred_region
          %366 = dma.done %s359, 512
        $region60: #{multi_field_at_conv2d.13} parent=43 // pred_fallthru
          _
        // Predicated region
        $region61: #{multi_field_at_conv2d.13} parent=43 // pred_check
          %p367 = pneg %p150
        $region62: #{multi_field_at_conv2d.13} parent=43 // pred_check_branch
          %369 = sbr.rel (%p367) target = $region64
        $region63: #{multi_field_at_conv2d.13} parent=43 // pred_region
          %370 = dma.done [#allocation9], 1024
        $region64: #{multi_field_at_conv2d.13} parent=43 // pred_fallthru
          _
        // Predicated region
        $region65: #{multi_field_at_conv2d.13} parent=43 // pred_check
          %p371 = pneg %p171
        $region66: #{multi_field_at_conv2d.13} parent=43 // pred_check_branch
          %373 = sbr.rel (%p371) target = $region68
        $region67: #{multi_field_at_conv2d.13} parent=43 // pred_region
          %374 = dma.done [#allocation12], 16
        $region68: #{multi_field_at_conv2d.13} parent=43 // pred_fallthru
          _
        %s375 = sand.u32 %s38, 1
        %s376 = scalar_lea.sflag [#allocation3], %s375
        %s377 = sand.u32 %s38, 1
        %s378 = smul.addr %s377, 32
        %s379 = scalar_lea.vmem [#allocation2], %s378
        %p380 = pneg %p51
        %p381 = pneg %p48
        %s382 = sand.u32 %s30, 1
        %s383 = scalar_lea.sflag [#allocation6], %s382
        %s384 = sand.u32 %s64, 1
        %s385 = smul.addr %s384, 32
        %s386 = scalar_lea.vmem [#allocation5], %s385
        %p387 = pneg %p77
        %p388 = pneg %p74
        %s389 = sand.u32 %s30, 1
        %s390 = scalar_lea.sflag [#allocation6], %s389
        %s391 = sand.u32 %s90, 1
        %s392 = smul.addr %s391, 32
        %s393 = scalar_lea.vmem [#allocation7], %s392
        %p394 = pneg %p103
        %p395 = pneg %p100
        %s396 = sand.u32 %s30, 1
        %s397 = scalar_lea.sflag [#allocation9], %s396
        %s398 = sand.u32 %s116, 1
        %s399 = smul.addr %s398, 32
        %s400 = scalar_lea.vmem [#allocation8], %s399
        %p401 = pneg %p129
        %p402 = pneg %p126
        %p403 = pneg %p150
        %p404 = pneg %p147
        %p405 = pneg %p171
        %p406 = pneg %p168
        %p407 = pneg %p197
        %p408 = pneg %p194
        %s409 = sand.u32 %s184, 1
        %s410 = scalar_lea.sflag [#allocation4], %s409
        %s411 = sand.u32 %s184, 1
        %s412 = smul.addr %s411, 64
        %s413 = scalar_lea.vmem [#allocation13], %s412
        %s414 = smul.u32 8, %s30
        %s415 = smul.u32 8, %s30
        %s416 = smul.u32 8, %s30
        %s417 = smul.u32 8, %s30
        %s418 = smul.u32 8, %s30
        %v420 = vld [vmem:[%s335] sm:$0xf]
        %v421 = vld [vmem:[%s335 + $0x4] sm:$0xf]
        %v422 = vld [vmem:[%s335 + $0x8] sm:$0xf]
        %v423 = vld [vmem:[%s335 + $0xc] sm:$0xf]
        %v424 = vld [vmem:[%s335 + $0x10] sm:$0xf]
        %v425 = vld [vmem:[%s335 + $0x14] sm:$0xf]
        %v426 = vld [vmem:[%s335 + $0x18] sm:$0xf]
        %v427 = vld [vmem:[%s335 + $0x1c] sm:$0xf]
        %v428 = vld [vmem:[%s344] sm:$0xf]
        %v429 = vld [vmem:[%s344 + $0x4] sm:$0xf]
        %v430 = vld [vmem:[%s344 + $0x8] sm:$0xf]
        %v431 = vld [vmem:[%s344 + $0xc] sm:$0xf]
        %v432 = vld [vmem:[%s344 + $0x10] sm:$0xf]
        %v433 = vld [vmem:[%s344 + $0x14] sm:$0xf]
        %v434 = vld [vmem:[%s344 + $0x18] sm:$0xf]
        %v435 = vld [vmem:[%s344 + $0x1c] sm:$0xf]
        %v436 = vld [vmem:[%s353] sm:$0xf]
        %v437 = vld [vmem:[%s353 + $0x4] sm:$0xf]
        %v438 = vld [vmem:[%s353 + $0x8] sm:$0xf]
        %v439 = vld [vmem:[%s353 + $0xc] sm:$0xf]
        %v440 = vld [vmem:[%s353 + $0x10] sm:$0xf]
        %v441 = vld [vmem:[%s353 + $0x14] sm:$0xf]
        %v442 = vld [vmem:[%s353 + $0x18] sm:$0xf]
        %v443 = vld [vmem:[%s353 + $0x1c] sm:$0xf]
        %v444 = vld [vmem:[%s362] sm:$0xf]
        %v445 = vld [vmem:[%s362 + $0x4] sm:$0xf]
        %v446 = vld [vmem:[%s362 + $0x8] sm:$0xf]
        %v447 = vld [vmem:[%s362 + $0xc] sm:$0xf]
        %v448 = vld [vmem:[%s362 + $0x10] sm:$0xf]
        %v449 = vld [vmem:[%s362 + $0x14] sm:$0xf]
        %v450 = vld [vmem:[%s362 + $0x18] sm:$0xf]
        %v451 = vld [vmem:[%s362 + $0x1c] sm:$0xf]
        %v460 = vunpack.c.l.b16 %v420
        %v461 = vunpack.c.l.b16 %v421
        %v462 = vunpack.c.l.b16 %v422
        %v463 = vunpack.c.l.b16 %v423
        %v464 = vunpack.c.l.b16 %v424
        %v465 = vunpack.c.l.b16 %v425
        %v466 = vunpack.c.l.b16 %v426
        %v467 = vunpack.c.l.b16 %v427
        %v468 = vpack.c.b16 %v461, %v460
        %v469 = vpack.c.b16 %v463, %v462
        %v470 = vpack.c.b16 %v465, %v464
        %v471 = vpack.c.b16 %v467, %v466
        %v480 = vunpack.c.l.b16 %v428
        %v481 = vunpack.c.l.b16 %v429
        %v482 = vunpack.c.l.b16 %v430
        %v483 = vunpack.c.l.b16 %v431
        %v484 = vunpack.c.l.b16 %v432
        %v485 = vunpack.c.l.b16 %v433
        %v486 = vunpack.c.l.b16 %v434
        %v487 = vunpack.c.l.b16 %v435
        %v488 = vpack.c.b16 %v481, %v480
        %v489 = vpack.c.b16 %v483, %v482
        %v490 = vpack.c.b16 %v485, %v484
        %v491 = vpack.c.b16 %v487, %v486
        %492 = vrot.lane.b32.xlu0 %v488, 32
        %v493 = vpop.permute.xlu0 %492
        %494 = vrot.lane.b32.xlu0 %v489, 32
        %v495 = vpop.permute.xlu0 %494
        %496 = vrot.lane.b32.xlu0 %v490, 32
        %v497 = vpop.permute.xlu0 %496
        %498 = vrot.lane.b32.xlu0 %v491, 32
        %v499 = vpop.permute.xlu0 %498
        %v508 = vunpack.c.l.b16 %v436
        %v509 = vunpack.c.l.b16 %v437
        %v510 = vunpack.c.l.b16 %v438
        %v511 = vunpack.c.l.b16 %v439
        %v512 = vunpack.c.l.b16 %v440
        %v513 = vunpack.c.l.b16 %v441
        %v514 = vunpack.c.l.b16 %v442
        %v515 = vunpack.c.l.b16 %v443
        %v516 = vpack.c.b16 %v509, %v508
        %v517 = vpack.c.b16 %v511, %v510
        %v518 = vpack.c.b16 %v513, %v512
        %v519 = vpack.c.b16 %v515, %v514
        %520 = vrot.lane.b32.xlu0 %v516, 64
        %v521 = vpop.permute.xlu0 %520
        %522 = vrot.lane.b32.xlu0 %v517, 64
        %v523 = vpop.permute.xlu0 %522
        %524 = vrot.lane.b32.xlu0 %v518, 64
        %v525 = vpop.permute.xlu0 %524
        %526 = vrot.lane.b32.xlu0 %v519, 64
        %v527 = vpop.permute.xlu0 %526
        %v536 = vunpack.c.l.b16 %v444
        %v537 = vunpack.c.l.b16 %v445
        %v538 = vunpack.c.l.b16 %v446
        %v539 = vunpack.c.l.b16 %v447
        %v540 = vunpack.c.l.b16 %v448
        %v541 = vunpack.c.l.b16 %v449
        %v542 = vunpack.c.l.b16 %v450
        %v543 = vunpack.c.l.b16 %v451
        %v544 = vpack.c.b16 %v537, %v536
        %v545 = vpack.c.b16 %v539, %v538
        %v546 = vpack.c.b16 %v541, %v540
        %v547 = vpack.c.b16 %v543, %v542
        %548 = vrot.lane.b32.xlu0 %v544, 96
        %v549 = vpop.permute.xlu0 %548
        %550 = vrot.lane.b32.xlu0 %v545, 96
        %v551 = vpop.permute.xlu0 %550
        %552 = vrot.lane.b32.xlu0 %v546, 96
        %v553 = vpop.permute.xlu0 %552
        %554 = vrot.lane.b32.xlu0 %v547, 96
        %v555 = vpop.permute.xlu0 %554
        %vm556 = vcmask 261120
        %v559 = vsel %vm556, %v468, %v493
        %v562 = vsel %vm556, %v469, %v495
        %v565 = vsel %vm556, %v470, %v497
        %v568 = vsel %vm556, %v471, %v499
        %vm569 = vcmask 523264
        %v571 = vsel %vm569, %v559, %v521
        %v573 = vsel %vm569, %v562, %v523
        %v575 = vsel %vm569, %v565, %v525
        %v577 = vsel %vm569, %v568, %v527
        %vm578 = vcmask 785408
        %v580 = vsel %vm578, %v571, %v549
        %v583 = vsel %vm578, %v573, %v551
        %v586 = vsel %vm578, %v575, %v553
        %v589 = vsel %vm578, %v577, %v555
        %v591 = vld [vmem:[#allocation10] sm:$0xf]
        %v592 = vld [vmem:[#allocation10 + $0x4] sm:$0xf]
        %v593 = vld [vmem:[#allocation10 + $0x8] sm:$0xf]
        %v594 = vld [vmem:[#allocation10 + $0xc] sm:$0xf]
        %v595 = vld [vmem:[#allocation10 + $0x10] sm:$0xf]
        %v596 = vld [vmem:[#allocation10 + $0x14] sm:$0xf]
        %v597 = vld [vmem:[#allocation10 + $0x18] sm:$0xf]
        %v598 = vld [vmem:[#allocation10 + $0x1c] sm:$0xf]
        %v599 = vld [vmem:[#allocation10 + $0x20] sm:$0xf]
        %v600 = vld [vmem:[#allocation10 + $0x24] sm:$0xf]
        %v601 = vld [vmem:[#allocation10 + $0x28] sm:$0xf]
        %v602 = vld [vmem:[#allocation10 + $0x2c] sm:$0xf]
        %v603 = vld [vmem:[#allocation10 + $0x30] sm:$0xf]
        %v604 = vld [vmem:[#allocation10 + $0x34] sm:$0xf]
        %v605 = vld [vmem:[#allocation10 + $0x38] sm:$0xf]
        %v606 = vld [vmem:[#allocation10 + $0x3c] sm:$0xf]
        %v607 = vld [vmem:[#allocation11] sm:$0x1]
        %v609 = vlaneseq
        %v610 = vshrl.u32 %v609, 7
        %v611 = vsub.s32 0, %v610
        %v612 = vrot.slane %v607, %v611
        %v630 = vunpack.c.l.b16 %v591
        %v631 = vunpack.c.l.b16 %v592
        %v632 = vunpack.c.l.b16 %v593
        %v633 = vunpack.c.l.b16 %v594
        %v634 = vunpack.c.l.b16 %v595
        %v635 = vunpack.c.l.b16 %v596
        %v636 = vunpack.c.l.b16 %v597
        %v637 = vunpack.c.l.b16 %v598
        %v638 = vunpack.c.l.b16 %v599
        %v639 = vunpack.c.l.b16 %v600
        %v640 = vunpack.c.l.b16 %v601
        %v641 = vunpack.c.l.b16 %v602
        %v642 = vunpack.c.l.b16 %v603
        %v643 = vunpack.c.l.b16 %v604
        %v644 = vunpack.c.l.b16 %v605
        %v645 = vunpack.c.l.b16 %v606
        %v646 = vpack.c.b16 %v631, %v630
        %v647 = vpack.c.b16 %v633, %v632
        %v648 = vpack.c.b16 %v635, %v634
        %v649 = vpack.c.b16 %v637, %v636
        %v650 = vpack.c.b16 %v639, %v638
        %v651 = vpack.c.b16 %v641, %v640
        %v652 = vpack.c.b16 %v643, %v642
        %v653 = vpack.c.b16 %v645, %v644
        %662 = vmatprep.subr.bf16.mxu0 0
        %663 = vmatpush1.bf16.msra.mxu0 %v646
        %664 = vmatprep.subr.bf16.mxu0 0
        %665 = vmatpush1.bf16.msra.mxu0 %v647
        %666 = vmatprep.subr.bf16.mxu0 0
        %667 = vmatpush1.bf16.msra.mxu0 %v648
        %668 = vmatprep.subr.bf16.mxu0 0
        %669 = vmatpush1.bf16.msra.mxu0 %v649
        %670 = vmatprep.subr.bf16.mxu0 0
        %671 = vmatpush1.bf16.msra.mxu0 %v650
        %672 = vmatprep.subr.bf16.mxu0 0
        %673 = vmatpush1.bf16.msra.mxu0 %v651
        %674 = vmatprep.subr.bf16.mxu0 0
        %675 = vmatpush1.bf16.msra.mxu0 %v652
        %676 = vmatprep.subr.bf16.mxu0 0
        %677 = vmatpush1.bf16.msra.mxu0 %v653
        %678 = vmatprep.subr.bf16.mxu0 0
        %679 = vmatpush1.bf16.msra.mxu0 0
        %680 = vmatprep.subr.bf16.mxu0 0
        %681 = vmatpush1.bf16.msra.mxu0 0
        %682 = vmatprep.subr.bf16.mxu0 0
        %683 = vmatpush1.bf16.msra.mxu0 0
        %684 = vmatprep.subr.bf16.mxu0 0
        %685 = vmatpush1.bf16.msra.mxu0 0
        %686 = vmatprep.subr.bf16.mxu0 0
        %687 = vmatpush1.bf16.msra.mxu0 0
        %688 = vmatprep.subr.bf16.mxu0 0
        %689 = vmatpush1.bf16.msra.mxu0 0
        %690 = vmatprep.subr.bf16.mxu0 0
        %691 = vmatpush1.bf16.msra.mxu0 0
        %692 = vmatprep.subr.bf16.mxu0 0
        %693 = vmatpush1.bf16.msra.mxu0 0
        %694 = vmatprep.mubr.bf16.mxu0 0
        %695 = vmatmul.mubr.bf16.gmra.mrb[0].mxu0 %v580
        %v696 = vpop.f32.mrb[0].mxu0
        %v697 = vadd.f32 %v612, %v696
        %v698 = vpop.f32.mrb[0].mxu0
        %v699 = vpop.f32.mrb[0].mxu0
        %v700 = vadd.f32 %v612, %v699
        %v701 = vpop.f32.mrb[0].mxu0
        %702 = vmatprep.mubr.bf16.mxu0 0
        %703 = vmatmul.mubr.bf16.gmra.mrb[0].mxu0 %v583
        %v704 = vpop.f32.mrb[0].mxu0
        %v705 = vadd.f32 %v612, %v704
        %v706 = vpop.f32.mrb[0].mxu0
        %v707 = vpop.f32.mrb[0].mxu0
        %v708 = vadd.f32 %v612, %v707
        %v709 = vpop.f32.mrb[0].mxu0
        %710 = vmatprep.mubr.bf16.mxu0 0
        %711 = vmatmul.mubr.bf16.gmra.mrb[0].mxu0 %v586
        %v712 = vpop.f32.mrb[0].mxu0
        %v713 = vadd.f32 %v612, %v712
        %v714 = vpop.f32.mrb[0].mxu0
        %v715 = vpop.f32.mrb[0].mxu0
        %v716 = vadd.f32 %v612, %v715
        %v717 = vpop.f32.mrb[0].mxu0
        %718 = vmatprep.mubr.bf16.mxu0 0
        %719 = vmatmul.mubr.bf16.gmra.mrb[0].mxu0 %v589
        %v720 = vpop.f32.mrb[0].mxu0
        %v721 = vadd.f32 %v612, %v720
        %v722 = vpop.f32.mrb[0].mxu0
        %v723 = vpop.f32.mrb[0].mxu0
        %v724 = vadd.f32 %v612, %v723
        %v725 = vpop.f32.mrb[0].mxu0
        %726 = vdwg.mxu0
        %v727 = vmax.f32 %v697, 0.0
        %v728 = vmax.f32 %v700, 0.0
        %v729 = vmax.f32 %v705, 0.0
        %v730 = vmax.f32 %v708, 0.0
        %v731 = vmax.f32 %v713, 0.0
        %v732 = vmax.f32 %v716, 0.0
        %v733 = vmax.f32 %v721, 0.0
        %v734 = vmax.f32 %v724, 0.0
        %735 = vst.msk [vmem:[%s413] sm:$0xff] %vm556, %v727
        %736 = vst.msk [vmem:[%s413 + $0x8] sm:$0xff] %vm556, %v728
        %737 = vst.msk [vmem:[%s413 + $0x10] sm:$0xff] %vm556, %v729
        %738 = vst.msk [vmem:[%s413 + $0x18] sm:$0xff] %vm556, %v730
        %739 = vst.msk [vmem:[%s413 + $0x20] sm:$0xff] %vm556, %v731
        %740 = vst.msk [vmem:[%s413 + $0x28] sm:$0xff] %vm556, %v732
        %741 = vst.msk [vmem:[%s413 + $0x30] sm:$0xff] %vm556, %v733
        %742 = vst.msk [vmem:[%s413 + $0x38] sm:$0xff] %vm556, %v734
        %s743 = sand.u32 %s184, 1
        %s744 = scalar_lea.sflag [#allocation4], %s743
        %s745 = sand.u32 %s184, 1
        %s746 = smul.addr %s745, 64
        %s747 = scalar_lea.vmem [#allocation13], %s746
        // Predicated region
        $region69: #{multi_field_at_conv2d.13} parent=43 // pred_check
          %p748 = pneg %p194
        $region70: #{multi_field_at_conv2d.13} parent=43 // pred_check_branch
          %750 = sbr.rel (%p748) target = $region72
        $region71: #{multi_field_at_conv2d.13} parent=43 // pred_region
          %s751 = smul.u32 8, %s30
          %s753 = ssub.s32 1024, 1024
          %754 = vsyncadd %s744, %s753
          %s755 = smul.addr %s751, 128
          %s756 = scalar_lea.hbm %s6, %s755
          %s757 = sshll.u32 %s747, 4
          %s758 = int_to_ptr.vmem [resolvable:$true] %s757
          %763 = dma.vmem_to_hbm [thread:$0]  %s758, 1024, %s756, %s744, 128, 128, 8
        $region72: #{multi_field_at_conv2d.13} parent=43 // pred_fallthru
          _
      $region44: #{multi_field_at_conv2d.13} parent=5 // pred_fallthru
        _
      %p764 = scmp.le.s32.totalorder 2, %s25
      // Predicated region
      $region73: #{multi_field_at_conv2d.13} parent=5 // pred_check
        %p765 = pneg %p764
      $region74: #{multi_field_at_conv2d.13} parent=5 // pred_check_branch
        %767 = sbr.rel (%p765) target = $region76
      $region75: #{multi_field_at_conv2d.13} parent=5 // pred_region
        %s768 = ssub.s32 %s25, 2
        // Predicated region
        $region77: #{multi_field_at_conv2d.13} parent=75 // pred_check
          %p769 = pneg %p200
        $region78: #{multi_field_at_conv2d.13} parent=75 // pred_check_branch
          %771 = sbr.rel (%p769) target = $region80
        $region79: #{multi_field_at_conv2d.13} parent=75 // pred_region
          %s772 = sand.u32 %s185, 1
          %s773 = scalar_lea.sflag [#allocation4], %s772
          %s774 = sand.u32 %s185, 1
          %s775 = smul.addr %s774, 64
          %s776 = scalar_lea.vmem [#allocation13], %s775
          %777 = dma.done %s773, 1024
        $region80: #{multi_field_at_conv2d.13} parent=75 // pred_fallthru
          _
      $region76: #{multi_field_at_conv2d.13} parent=5 // pred_fallthru
        _
    $region6: #{multi_field_at_conv2d.13} parent=1 // loop_footer
      %s29 = sadd.s32 1, %s25
    $region7: #{multi_field_at_conv2d.13} parent=1 // loop_footer_branch
      %24 = sbr.rel target = $region3
    $region8: #{multi_field_at_conv2d.13} parent=1 // loop_exit
      _
    %778 = vsyncpa [#allocation3], 1
    %s779 = scalar_lea.sflag [#allocation3], 1
    %780 = vsyncpa %s779, 1
    %781 = vsyncpa [#allocation6], 1
    %s782 = scalar_lea.sflag [#allocation6], 1
    %783 = vsyncpa %s782, 1
    %784 = vsyncpa [#allocation9], 1
    %s785 = scalar_lea.sflag [#allocation9], 1
    %786 = vsyncpa %s785, 1
    %787 = vsyncpa [#allocation12], 1
    %788 = vsyncpa [#allocation4], 1
    %s789 = scalar_lea.sflag [#allocation4], 1
    %790 = vsyncpa %s789, 1

// kernel: multi_field_at_conv2d.7
$region0: #{multi_field_at_conv2d.7}
  #allocation0 [shape = 'u32[]', space=smem, size = 0x4, offset = 0x4, fixed_abs, tag = 'smem constant byte address 0x4 - core index']
  #allocation1 [shape = 'u32[144,128]{1,0:T(1,128)}', space=vmem, size = 0x12000, scoped, tag = 'internal scratch']
  %s0 = inlined_call_operand.hbm [shape: bf16[2,18,18,32], index: 0, kind: input, shape index: {}]
  %s1 = inlined_call_operand.hbm [shape: bf16[9,32,32], index: 1, kind: input, shape index: {}]
  %s2 = inlined_call_operand.hbm [shape: f32[1,32], index: 2, kind: input, shape index: {}]
  %s3 = inlined_call_operand.hbm [shape: bf16[2,256,32], index: 3, kind: output, shape index: {}]
  %s4 = sld [smem:[#allocation0]]
  $region57: #{multi_field_at_conv2d.7} parent=0
    _
  %s6 = ssub.s32 1, %s4
  %s7 = scalar_select 0, %s6, %s4
  $region1: #{multi_field_at_conv2d.7} parent=0
    #allocation2 [shape = 'u8[221184]{0}', space=vmem, size = 0x36000, scoped, tag = 'input window, operand 0']
    #allocation3 [shape = 's32[2]{0}', space=sflag, size = 0x8, scoped, tag = 'scoped memory for multi_field_at_conv2d.7']
    #allocation4 [shape = 's32[2]{0}', space=sflag, size = 0x8, scoped, tag = 'scoped memory for multi_field_at_conv2d.7']
    #allocation5 [shape = 'u8[73728]{0}', space=vmem, size = 0x12000, scoped, tag = 'input window, operand 1, single buffered']
    #allocation6 [shape = 's32[1]{0}', space=sflag, size = 0x4, scoped, tag = 'scoped memory for multi_field_at_conv2d.7']
    #allocation7 [shape = 'u8[512]{0}', space=vmem, size = 0x400, scoped, tag = 'input window, operand 2, single buffered']
    #allocation8 [shape = 'u8[131072]{0}', space=vmem, size = 0x20000, scoped, tag = 'output window, operand 0']
    %8 = vsyncpa [#allocation3], 0
    %s9 = scalar_lea.sflag [#allocation3], 1
    %10 = vsyncpa %s9, 0
    %11 = vsyncpa [#allocation6], 0
    %12 = vsyncpa [#allocation4], 0
    %s13 = scalar_lea.sflag [#allocation4], 1
    %14 = vsyncpa %s13, 0
    loop: start=0, step=1, limit=4
    $region2: #{multi_field_at_conv2d.7} parent=1 // loop_pre_header
      _
    $region3: #{multi_field_at_conv2d.7} parent=1 // loop_header
      %s16 = sphi 0, %s20
      %p17 = scmp.ge.s32.totalorder %s16, 4
      %s26 = sphi 0, %s28
      %s29 = sphi 0, %s26
      %s30 = sphi 0, %s29
      %s46 = sphi 0, %s30
      %s50 = sphi 0, %s50
      %s52 = sphi 0, %s50
      %s53 = sphi 0, %s52
      %s67 = sphi 0, %s53
      %s71 = sphi 0, %s71
      %s73 = sphi 0, %s71
      %s74 = sphi 0, %s73
      %s88 = sphi 0, %s74
      %s94 = sphi 0, %s96
      %s97 = sphi 0, %s94
      %s98 = sphi 0, %s97
      %s114 = sphi 0, %s98
    $region4: #{multi_field_at_conv2d.7} parent=1 // loop_header_branch
      %19 = sbr.rel (%p17) target = $region8
    $region5: #{multi_field_at_conv2d.7} parent=1 // loop_body
      %s21 = ssub.s32 %s16, 1
      %s22 = ssub.s32 %s16, 2
      %s23 = sadd.s32 %s16, 1
      %s24 = ssub.s32 %s16, %s23
      %p25 = scmp.eq.s32.totalorder %s24, 0
      %s27 = sadd.s32 %s26, 1
      %s28 = scalar_select %p25, %s26, %s27
      %p31 = pneg %p25
      %p32 = scmp.eq.s32.totalorder %s16, 1
      %p33 = por %p31, %p32
      %p34 = scmp.ne.s32.totalorder %s26, %s29
      %p35 = scmp.eq.s32.totalorder %s16, 0
      %p36 = por %p34, %p35
      %p37 = scmp.ne.s32.totalorder %s26, %s29
      %p38 = scmp.eq.s32.totalorder %s21, 1
      %p39 = por %p37, %p38
      %p40 = scmp.ne.s32.totalorder %s29, %s30
      %p41 = scmp.eq.s32.totalorder %s21, 0
      %p42 = por %p40, %p41
      %p43 = scmp.ne.s32.totalorder %s29, %s30
      %p44 = scmp.eq.s32.totalorder %s22, 1
      %p45 = por %p43, %p44
      %p47 = scmp.ne.s32.totalorder %s30, %s46
      %p48 = scmp.eq.s32.totalorder %s22, 0
      %p49 = por %p47, %p48
      %s51 = sadd.s32 %s50, 1
      %p54 = scmp.eq.s32.totalorder %s16, 1
      %p55 = scmp.ne.s32.totalorder %s50, %s52
      %p56 = scmp.eq.s32.totalorder %s16, 0
      %p57 = por %p55, %p56
      %p58 = scmp.ne.s32.totalorder %s50, %s52
      %p59 = scmp.eq.s32.totalorder %s21, 1
      %p60 = por %p58, %p59
      %p61 = scmp.ne.s32.totalorder %s52, %s53
      %p62 = scmp.eq.s32.totalorder %s21, 0
      %p63 = por %p61, %p62
      %p64 = scmp.ne.s32.totalorder %s52, %s53
      %p65 = scmp.eq.s32.totalorder %s22, 1
      %p66 = por %p64, %p65
      %p68 = scmp.ne.s32.totalorder %s53, %s67
      %p69 = scmp.eq.s32.totalorder %s22, 0
      %p70 = por %p68, %p69
      %s72 = sadd.s32 %s71, 1
      %p75 = scmp.eq.s32.totalorder %s16, 1
      %p76 = scmp.ne.s32.totalorder %s71, %s73
      %p77 = scmp.eq.s32.totalorder %s16, 0
      %p78 = por %p76, %p77
      %p79 = scmp.ne.s32.totalorder %s71, %s73
      %p80 = scmp.eq.s32.totalorder %s21, 1
      %p81 = por %p79, %p80
      %p82 = scmp.ne.s32.totalorder %s73, %s74
      %p83 = scmp.eq.s32.totalorder %s21, 0
      %p84 = por %p82, %p83
      %p85 = scmp.ne.s32.totalorder %s73, %s74
      %p86 = scmp.eq.s32.totalorder %s22, 1
      %p87 = por %p85, %p86
      %p89 = scmp.ne.s32.totalorder %s74, %s88
      %p90 = scmp.eq.s32.totalorder %s22, 0
      %p91 = por %p89, %p90
      %s92 = ssub.s32 %s16, %s23
      %p93 = scmp.eq.s32.totalorder %s92, 0
      %s95 = sadd.s32 %s94, 1
      %s96 = scalar_select %p93, %s94, %s95
      %p99 = pneg %p93
      %p100 = scmp.eq.s32.totalorder %s16, 1
      %p101 = por %p99, %p100
      %p102 = scmp.ne.s32.totalorder %s94, %s97
      %p103 = scmp.eq.s32.totalorder %s16, 0
      %p104 = por %p102, %p103
      %p105 = scmp.ne.s32.totalorder %s94, %s97
      %p106 = scmp.eq.s32.totalorder %s21, 1
      %p107 = por %p105, %p106
      %p108 = scmp.ne.s32.totalorder %s97, %s98
      %p109 = scmp.eq.s32.totalorder %s21, 0
      %p110 = por %p108, %p109
      %p111 = scmp.ne.s32.totalorder %s97, %s98
      %p112 = scmp.eq.s32.totalorder %s22, 1
      %p113 = por %p111, %p112
      %p115 = scmp.ne.s32.totalorder %s98, %s114
      %p116 = scmp.eq.s32.totalorder %s22, 0
      %p117 = por %p115, %p116
      %p118 = scmp.le.s32.totalorder 1, %s16
      %p119 = scmp.lt.s32.totalorder %s16, 3
      %p120 = pnand %p118, %p119
      %p121 = pneg %p120
      // Predicated region
      $region9: #{multi_field_at_conv2d.7} parent=5 // pred_check
        _
      $region10: #{multi_field_at_conv2d.7} parent=5 // pred_check_branch
        %123 = sbr.rel (%p120) target = $region12
      $region11: #{multi_field_at_conv2d.7} parent=5 // pred_region
        %s124 = ssub.s32 %s16, 1
        // Predicated region
        $region13: #{multi_field_at_conv2d.7} parent=11 // pred_check
          %p125 = pneg %p63
        $region14: #{multi_field_at_conv2d.7} parent=11 // pred_check_branch
          %127 = sbr.rel (%p125) target = $region16
        $region15: #{multi_field_at_conv2d.7} parent=11 // pred_region
          %s129 = ssub.s32 2304, 2304
          %130 = vsyncadd [#allocation6], %s129
          %s131 = sshll.u32 [#allocation5], 4
          %s132 = int_to_ptr.vmem [resolvable:$true] %s131
          %137 = dma.hbm_to_vmem [thread:$0]  %s1, 2304, %s132, [#allocation6], 64, 64, 4
        $region16: #{multi_field_at_conv2d.7} parent=11 // pred_fallthru
          _
        // Predicated region
        $region17: #{multi_field_at_conv2d.7} parent=11 // pred_check
          %p138 = pneg %p84
        $region18: #{multi_field_at_conv2d.7} parent=11 // pred_check_branch
          %140 = sbr.rel (%p138) target = $region20
        $region19: #{multi_field_at_conv2d.7} parent=11 // pred_region
          %s142 = ssub.s32 16, 16
          %143 = vsyncadd [#allocation6], %s142
          %s145 = sshll.u32 [#allocation7], 4
          %s146 = int_to_ptr.vmem [resolvable:$true] %s145
          %148 = dma.hbm_to_vmem [thread:$0]  %s2, 16, %s146, [#allocation6]
        $region20: #{multi_field_at_conv2d.7} parent=11 // pred_fallthru
          _
      $region12: #{multi_field_at_conv2d.7} parent=5 // pred_fallthru
        _
      %p149 = scmp.lt.s32.totalorder %s16, 2
      // Predicated region
      $region21: #{multi_field_at_conv2d.7} parent=5 // pred_check
        %p150 = pneg %p149
      $region22: #{multi_field_at_conv2d.7} parent=5 // pred_check_branch
        %152 = sbr.rel (%p150) target = $region24
      $region23: #{multi_field_at_conv2d.7} parent=5 // pred_region
        // Predicated region
        $region25: #{multi_field_at_conv2d.7} parent=23 // pred_check
          %p153 = pneg %p36
        $region26: #{multi_field_at_conv2d.7} parent=23 // pred_check_branch
          %155 = sbr.rel (%p153) target = $region28
        $region27: #{multi_field_at_conv2d.7} parent=23 // pred_region
          %s156 = sand.u32 %s26, 1
          %s157 = scalar_lea.sflag [#allocation3], %s156
          %s158 = sand.u32 %s26, 1
          %s159 = smul.addr %s158, 216
          %s160 = scalar_lea.vmem [#allocation2], %s159
          %s162 = ssub.s32 3456, 3456
          %163 = vsyncadd %s157, %s162
          %s164 = smul.addr %s16, 54
          %s165 = smul.addr %s164, 64
          %s166 = scalar_lea.hbm %s0, %s165
          %s167 = sshll.u32 %s160, 4
          %s168 = int_to_ptr.vmem [resolvable:$true] %s167
          %173 = dma.hbm_to_vmem [thread:$0]  %s166, 3456, %s168, %s157, 64, 64, 4
        $region28: #{multi_field_at_conv2d.7} parent=23 // pred_fallthru
          _
      $region24: #{multi_field_at_conv2d.7} parent=5 // pred_fallthru
        _
      %p174 = scmp.le.s32.totalorder 1, %s16
      %p175 = scmp.lt.s32.totalorder %s16, 3
      %p176 = pnand %p174, %p175
      %p177 = pneg %p176
      // Predicated region
      $region29: #{multi_field_at_conv2d.7} parent=5 // pred_check
        _
      $region30: #{multi_field_at_conv2d.7} parent=5 // pred_check_branch
        %179 = sbr.rel (%p176) target = $region32
      $region31: #{multi_field_at_conv2d.7} parent=5 // pred_region
        %s180 = ssub.s32 %s16, 1
        %s181 = sand.u32 %s29, 1
        %s182 = scalar_lea.sflag [#allocation3], %s181
        %s183 = sand.u32 %s29, 1
        %s184 = smul.addr %s183, 216
        %s185 = scalar_lea.vmem [#allocation2], %s184
        // Predicated region
        $region33: #{multi_field_at_conv2d.7} parent=31 // pred_check
          %p186 = pneg %p42
        $region34: #{multi_field_at_conv2d.7} parent=31 // pred_check_branch
          %188 = sbr.rel (%p186) target = $region36
        $region35: #{multi_field_at_conv2d.7} parent=31 // pred_region
          %189 = dma.done %s182, 3456
        $region36: #{multi_field_at_conv2d.7} parent=31 // pred_fallthru
          _
        // Predicated region
        $region37: #{multi_field_at_conv2d.7} parent=31 // pred_check
          %p190 = pneg %p63
        $region38: #{multi_field_at_conv2d.7} parent=31 // pred_check_branch
          %192 = sbr.rel (%p190) target = $region40
        $region39: #{multi_field_at_conv2d.7} parent=31 // pred_region
          %193 = dma.done [#allocation6], 2304
        $region40: #{multi_field_at_conv2d.7} parent=31 // pred_fallthru
          _
        // Predicated region
        $region41: #{multi_field_at_conv2d.7} parent=31 // pred_check
          %p194 = pneg %p84
        $region42: #{multi_field_at_conv2d.7} parent=31 // pred_check_branch
          %196 = sbr.rel (%p194) target = $region44
        $region43: #{multi_field_at_conv2d.7} parent=31 // pred_region
          %197 = dma.done [#allocation6], 16
        $region44: #{multi_field_at_conv2d.7} parent=31 // pred_fallthru
          _
        %s198 = sand.u32 %s29, 1
        %s199 = scalar_lea.sflag [#allocation3], %s198
        %s200 = sand.u32 %s29, 1
        %s201 = smul.addr %s200, 216
        %s202 = scalar_lea.vmem [#allocation2], %s201
        %p203 = pneg %p42
        %p204 = pneg %p39
        %p205 = pneg %p63
        %p206 = pneg %p60
        %p207 = pneg %p84
        %p208 = pneg %p81
        %p209 = pneg %p110
        %p210 = pneg %p107
        %s211 = sand.u32 %s97, 1
        %s212 = scalar_lea.sflag [#allocation4], %s211
        %s213 = sand.u32 %s97, 1
        %s214 = smul.addr %s213, 128
        %s215 = scalar_lea.vmem [#allocation8], %s214
        %v217 = vld [vmem:[%s185] sm:$0xf]
        %v218 = vld [vmem:[%s185 + $0x4] sm:$0xf]
        %v219 = vld [vmem:[%s185 + $0xc] sm:$0xf]
        %v220 = vld [vmem:[%s185 + $0x10] sm:$0xf]
        %v221 = vld [vmem:[%s185 + $0x18] sm:$0xf]
        %v222 = vld [vmem:[%s185 + $0x1c] sm:$0xf]
        %v223 = vld [vmem:[%s185 + $0x24] sm:$0xf]
        %v224 = vld [vmem:[%s185 + $0x28] sm:$0xf]
        %v225 = vld [vmem:[%s185 + $0x30] sm:$0xf]
        %v226 = vld [vmem:[%s185 + $0x34] sm:$0xf]
        %v227 = vld [vmem:[%s185 + $0x3c] sm:$0xf]
        %v228 = vld [vmem:[%s185 + $0x40] sm:$0xf]
        %v229 = vld [vmem:[%s185 + $0x48] sm:$0xf]
        %v230 = vld [vmem:[%s185 + $0x4c] sm:$0xf]
        %v231 = vld [vmem:[%s185 + $0x54] sm:$0xf]
        %v232 = vld [vmem:[%s185 + $0x58] sm:$0xf]
        %v233 = vld [vmem:[%s185 + $0x60] sm:$0xf]
        %v234 = vld [vmem:[%s185 + $0x64] sm:$0xf]
        %v235 = vld [vmem:[%s185 + $0x6c] sm:$0xf]
        %v236 = vld [vmem:[%s185 + $0x70] sm:$0xf]
        %v237 = vld [vmem:[%s185 + $0x78] sm:$0xf]
        %v238 = vld [vmem:[%s185 + $0x7c] sm:$0xf]
        %v239 = vld [vmem:[%s185 + $0x84] sm:$0xf]
        %v240 = vld [vmem:[%s185 + $0x88] sm:$0xf]
        %v241 = vld [vmem:[%s185 + $0x90] sm:$0xf]
        %v242 = vld [vmem:[%s185 + $0x94] sm:$0xf]
        %v243 = vld [vmem:[%s185 + $0x9c] sm:$0xf]
        %v244 = vld [vmem:[%s185 + $0xa0] sm:$0xf]
        %v245 = vld [vmem:[%s185 + $0xa8] sm:$0xf]
        %v246 = vld [vmem:[%s185 + $0xac] sm:$0xf]
        %v247 = vld [vmem:[%s185 + $0xb4] sm:$0xf]
        %v248 = vld [vmem:[%s185 + $0xb8] sm:$0xf]
        %v249 = vld [vmem:[#allocation5] sm:$0xf]
        %v250 = vld [vmem:[#allocation5 + $0x4] sm:$0xf]
        %v251 = vld [vmem:[#allocation5 + $0x8] sm:$0xf]
        %v252 = vld [vmem:[#allocation5 + $0xc] sm:$0xf]
        %v253 = vld [vmem:[%s185 + $0x8] sm:$0x1]
        %v254 = vld [vmem:[%s185 + $0x14] sm:$0x1]
        %v255 = vld [vmem:[%s185 + $0x20] sm:$0x1]
        %v256 = vld [vmem:[%s185 + $0x2c] sm:$0x1]
        %v257 = vld [vmem:[%s185 + $0x38] sm:$0x1]
        %v258 = vld [vmem:[%s185 + $0x44] sm:$0x1]
        %v259 = vld [vmem:[%s185 + $0x50] sm:$0x1]
        %v260 = vld [vmem:[%s185 + $0x5c] sm:$0x1]
        %v261 = vld [vmem:[%s185 + $0x68] sm:$0x1]
        %v262 = vld [vmem:[%s185 + $0x74] sm:$0x1]
        %v263 = vld [vmem:[%s185 + $0x80] sm:$0x1]
        %v264 = vld [vmem:[%s185 + $0x8c] sm:$0x1]
        %v265 = vld [vmem:[%s185 + $0x98] sm:$0x1]
        %v266 = vld [vmem:[%s185 + $0xa4] sm:$0x1]
        %v267 = vld [vmem:[%s185 + $0xb0] sm:$0x1]
        %v268 = vld [vmem:[%s185 + $0xbc] sm:$0x1]
        %vm269 = vsmask.f32 3328
        %vm270 = vsmask.f32 7440
        %vm271 = vmor %vm269, %vm270
        %v273 = vshrl.u32 %v217, 16
        %v275 = vrot.slane %v273, 4
        %v276 = vshll.u32 %v217, 16
        %v278 = vrot.slane %v276, 5
        %v279 = vor.u32 %v275, %v278
        %v280 = vrot.slane %v279, 4
        %v282 = vshll.u32 %v218, 16
        %v284 = vrot.slane %v282, 5
        %v285 = vsel %vm271, %v280, %v284
        %v286 = vshrl.u32 %v218, 16
        %v288 = vrot.slane %v286, 4
        %v289 = vor.u32 %v288, %v284
        %v290 = vrot.slane %v289, 4
        %v292 = vshll.u32 %v253, 16
        %v294 = vrot.slane %v292, 5
        %v295 = vsel %vm271, %v290, %v294
        %v297 = vshrl.u32 %v219, 16
        %v299 = vrot.slane %v297, 4
        %v300 = vshll.u32 %v219, 16
        %v302 = vrot.slane %v300, 5
        %v303 = vor.u32 %v299, %v302
        %v304 = vrot.slane %v303, 4
        %v306 = vshll.u32 %v220, 16
        %v308 = vrot.slane %v306, 5
        %v309 = vsel %vm271, %v304, %v308
        %v310 = vshrl.u32 %v220, 16
        %v312 = vrot.slane %v310, 4
        %v313 = vor.u32 %v312, %v308
        %v314 = vrot.slane %v313, 4
        %v316 = vshll.u32 %v254, 16
        %v318 = vrot.slane %v316, 5
        %v319 = vsel %vm271, %v314, %v318
        %v321 = vshrl.u32 %v221, 16
        %v323 = vrot.slane %v321, 4
        %v324 = vshll.u32 %v221, 16
        %v326 = vrot.slane %v324, 5
        %v327 = vor.u32 %v323, %v326
        %v328 = vrot.slane %v327, 4
        %v330 = vshll.u32 %v222, 16
        %v332 = vrot.slane %v330, 5
        %v333 = vsel %vm271, %v328, %v332
        %v334 = vshrl.u32 %v222, 16
        %v336 = vrot.slane %v334, 4
        %v337 = vor.u32 %v336, %v332
        %v338 = vrot.slane %v337, 4
        %v340 = vshll.u32 %v255, 16
        %v342 = vrot.slane %v340, 5
        %v343 = vsel %vm271, %v338, %v342
        %v345 = vshrl.u32 %v223, 16
        %v347 = vrot.slane %v345, 4
        %v348 = vshll.u32 %v223, 16
        %v350 = vrot.slane %v348, 5
        %v351 = vor.u32 %v347, %v350
        %v352 = vrot.slane %v351, 4
        %v354 = vshll.u32 %v224, 16
        %v356 = vrot.slane %v354, 5
        %v357 = vsel %vm271, %v352, %v356
        %v358 = vshrl.u32 %v224, 16
        %v360 = vrot.slane %v358, 4
        %v361 = vor.u32 %v360, %v356
        %v362 = vrot.slane %v361, 4
        %v364 = vshll.u32 %v256, 16
        %v366 = vrot.slane %v364, 5
        %v367 = vsel %vm271, %v362, %v366
        %v369 = vshrl.u32 %v225, 16
        %v371 = vrot.slane %v369, 4
        %v372 = vshll.u32 %v225, 16
        %v374 = vrot.slane %v372, 5
        %v375 = vor.u32 %v371, %v374
        %v376 = vrot.slane %v375, 4
        %v378 = vshll.u32 %v226, 16
        %v380 = vrot.slane %v378, 5
        %v381 = vsel %vm271, %v376, %v380
        %v382 = vshrl.u32 %v226, 16
        %v384 = vrot.slane %v382, 4
        %v385 = vor.u32 %v384, %v380
        %v386 = vrot.slane %v385, 4
        %v388 = vshll.u32 %v257, 16
        %v390 = vrot.slane %v388, 5
        %v391 = vsel %vm271, %v386, %v390
        %v393 = vshrl.u32 %v227, 16
        %v395 = vrot.slane %v393, 4
        %v396 = vshll.u32 %v227, 16
        %v398 = vrot.slane %v396, 5
        %v399 = vor.u32 %v395, %v398
        %v400 = vrot.slane %v399, 4
        %v402 = vshll.u32 %v228, 16
        %v404 = vrot.slane %v402, 5
        %v405 = vsel %vm271, %v400, %v404
        %v406 = vshrl.u32 %v228, 16
        %v408 = vrot.slane %v406, 4
        %v409 = vor.u32 %v408, %v404
        %v410 = vrot.slane %v409, 4
        %v412 = vshll.u32 %v258, 16
        %v414 = vrot.slane %v412, 5
        %v415 = vsel %vm271, %v410, %v414
        %v417 = vshrl.u32 %v229, 16
        %v419 = vrot.slane %v417, 4
        %v420 = vshll.u32 %v229, 16
        %v422 = vrot.slane %v420, 5
        %v423 = vor.u32 %v419, %v422
        %v424 = vrot.slane %v423, 4
        %v426 = vshll.u32 %v230, 16
        %v428 = vrot.slane %v426, 5
        %v429 = vsel %vm271, %v424, %v428
        %v430 = vshrl.u32 %v230, 16
        %v432 = vrot.slane %v430, 4
        %v433 = vor.u32 %v432, %v428
        %v434 = vrot.slane %v433, 4
        %v436 = vshll.u32 %v259, 16
        %v438 = vrot.slane %v436, 5
        %v439 = vsel %vm271, %v434, %v438
        %v441 = vshrl.u32 %v231, 16
        %v443 = vrot.slane %v441, 4
        %v444 = vshll.u32 %v231, 16
        %v446 = vrot.slane %v444, 5
        %v447 = vor.u32 %v443, %v446
        %v448 = vrot.slane %v447, 4
        %v450 = vshll.u32 %v232, 16
        %v452 = vrot.slane %v450, 5
        %v453 = vsel %vm271, %v448, %v452
        %v454 = vshrl.u32 %v232, 16
        %v456 = vrot.slane %v454, 4
        %v457 = vor.u32 %v456, %v452
        %v458 = vrot.slane %v457, 4
        %v460 = vshll.u32 %v260, 16
        %v462 = vrot.slane %v460, 5
        %v463 = vsel %vm271, %v458, %v462
        %v465 = vshrl.u32 %v233, 16
        %v467 = vrot.slane %v465, 4
        %v468 = vshll.u32 %v233, 16
        %v470 = vrot.slane %v468, 5
        %v471 = vor.u32 %v467, %v470
        %v472 = vrot.slane %v471, 4
        %v474 = vshll.u32 %v234, 16
        %v476 = vrot.slane %v474, 5
        %v477 = vsel %vm271, %v472, %v476
        %v478 = vshrl.u32 %v234, 16
        %v480 = vrot.slane %v478, 4
        %v481 = vor.u32 %v480, %v476
        %v482 = vrot.slane %v481, 4
        %v484 = vshll.u32 %v261, 16
        %v486 = vrot.slane %v484, 5
        %v487 = vsel %vm271, %v482, %v486
        %v489 = vshrl.u32 %v235, 16
        %v491 = vrot.slane %v489, 4
        %v492 = vshll.u32 %v235, 16
        %v494 = vrot.slane %v492, 5
        %v495 = vor.u32 %v491, %v494
        %v496 = vrot.slane %v495, 4
        %v498 = vshll.u32 %v236, 16
        %v500 = vrot.slane %v498, 5
        %v501 = vsel %vm271, %v496, %v500
        %v502 = vshrl.u32 %v236, 16
        %v504 = vrot.slane %v502, 4
        %v505 = vor.u32 %v504, %v500
        %v506 = vrot.slane %v505, 4
        %v508 = vshll.u32 %v262, 16
        %v510 = vrot.slane %v508, 5
        %v511 = vsel %vm271, %v506, %v510
        %v513 = vshrl.u32 %v237, 16
        %v515 = vrot.slane %v513, 4
        %v516 = vshll.u32 %v237, 16
        %v518 = vrot.slane %v516, 5
        %v519 = vor.u32 %v515, %v518
        %v520 = vrot.slane %v519, 4
        %v522 = vshll.u32 %v238, 16
        %v524 = vrot.slane %v522, 5
        %v525 = vsel %vm271, %v520, %v524
        %v526 = vshrl.u32 %v238, 16
        %v528 = vrot.slane %v526, 4
        %v529 = vor.u32 %v528, %v524
        %v530 = vrot.slane %v529, 4
        %v532 = vshll.u32 %v263, 16
        %v534 = vrot.slane %v532, 5
        %v535 = vsel %vm271, %v530, %v534
        %v537 = vshrl.u32 %v239, 16
        %v539 = vrot.slane %v537, 4
        %v540 = vshll.u32 %v239, 16
        %v542 = vrot.slane %v540, 5
        %v543 = vor.u32 %v539, %v542
        %v544 = vrot.slane %v543, 4
        %v546 = vshll.u32 %v240, 16
        %v548 = vrot.slane %v546, 5
        %v549 = vsel %vm271, %v544, %v548
        %v550 = vshrl.u32 %v240, 16
        %v552 = vrot.slane %v550, 4
        %v553 = vor.u32 %v552, %v548
        %v554 = vrot.slane %v553, 4
        %v556 = vshll.u32 %v264, 16
        %v558 = vrot.slane %v556, 5
        %v559 = vsel %vm271, %v554, %v558
        %v561 = vshrl.u32 %v241, 16
        %v563 = vrot.slane %v561, 4
        %v564 = vshll.u32 %v241, 16
        %v566 = vrot.slane %v564, 5
        %v567 = vor.u32 %v563, %v566
        %v568 = vrot.slane %v567, 4
        %v570 = vshll.u32 %v242, 16
        %v572 = vrot.slane %v570, 5
        %v573 = vsel %vm271, %v568, %v572
        %v574 = vshrl.u32 %v242, 16
        %v576 = vrot.slane %v574, 4
        %v577 = vor.u32 %v576, %v572
        %v578 = vrot.slane %v577, 4
        %v580 = vshll.u32 %v265, 16
        %v582 = vrot.slane %v580, 5
        %v583 = vsel %vm271, %v578, %v582
        %v585 = vshrl.u32 %v243, 16
        %v587 = vrot.slane %v585, 4
        %v588 = vshll.u32 %v243, 16
        %v590 = vrot.slane %v588, 5
        %v591 = vor.u32 %v587, %v590
        %v592 = vrot.slane %v591, 4
        %v594 = vshll.u32 %v244, 16
        %v596 = vrot.slane %v594, 5
        %v597 = vsel %vm271, %v592, %v596
        %v598 = vshrl.u32 %v244, 16
        %v600 = vrot.slane %v598, 4
        %v601 = vor.u32 %v600, %v596
        %v602 = vrot.slane %v601, 4
        %v604 = vshll.u32 %v266, 16
        %v606 = vrot.slane %v604, 5
        %v607 = vsel %vm271, %v602, %v606
        %v609 = vshrl.u32 %v245, 16
        %v611 = vrot.slane %v609, 4
        %v612 = vshll.u32 %v245, 16
        %v614 = vrot.slane %v612, 5
        %v615 = vor.u32 %v611, %v614
        %v616 = vrot.slane %v615, 4
        %v618 = vshll.u32 %v246, 16
        %v620 = vrot.slane %v618, 5
        %v621 = vsel %vm271, %v616, %v620
        %v622 = vshrl.u32 %v246, 16
        %v624 = vrot.slane %v622, 4
        %v625 = vor.u32 %v624, %v620
        %v626 = vrot.slane %v625, 4
        %v628 = vshll.u32 %v267, 16
        %v630 = vrot.slane %v628, 5
        %v631 = vsel %vm271, %v626, %v630
        %v633 = vshrl.u32 %v247, 16
        %v635 = vrot.slane %v633, 4
        %v636 = vshll.u32 %v247, 16
        %v638 = vrot.slane %v636, 5
        %v639 = vor.u32 %v635, %v638
        %v640 = vrot.slane %v639, 4
        %v642 = vshll.u32 %v248, 16
        %v644 = vrot.slane %v642, 5
        %v645 = vsel %vm271, %v640, %v644
        %v646 = vshrl.u32 %v248, 16
        %v648 = vrot.slane %v646, 4
        %v649 = vor.u32 %v648, %v644
        %v650 = vrot.slane %v649, 4
        %v652 = vshll.u32 %v268, 16
        %v654 = vrot.slane %v652, 5
        %v655 = vsel %vm271, %v650, %v654
        %s656 = scalar_lea.vmem [#allocation5], 16
        %v657 = vld [vmem:[%s656] sm:$0xf]
        %v658 = vld [vmem:[%s656 + $0x4] sm:$0xf]
        %v659 = vld [vmem:[%s656 + $0x8] sm:$0xf]
        %v660 = vld [vmem:[%s656 + $0xc] sm:$0xf]
        %v661 = vunpack.c.l.b16 %v285
        %v662 = vunpack.c.l.b16 %v295
        %v663 = vunpack.c.l.b16 %v309
        %v664 = vunpack.c.l.b16 %v319
        %v665 = vunpack.c.l.b16 %v333
        %v666 = vunpack.c.l.b16 %v343
        %v667 = vunpack.c.l.b16 %v357
        %v668 = vunpack.c.l.b16 %v367
        %v669 = vunpack.c.l.b16 %v381
        %v670 = vunpack.c.l.b16 %v391
        %v671 = vunpack.c.l.b16 %v405
        %v672 = vunpack.c.l.b16 %v415
        %v673 = vunpack.c.l.b16 %v429
        %v674 = vunpack.c.l.b16 %v439
        %v675 = vunpack.c.l.b16 %v453
        %v676 = vunpack.c.l.b16 %v463
        %v677 = vunpack.c.l.b16 %v477
        %v678 = vunpack.c.l.b16 %v487
        %v679 = vunpack.c.l.b16 %v501
        %v680 = vunpack.c.l.b16 %v511
        %v681 = vunpack.c.l.b16 %v525
        %v682 = vunpack.c.l.b16 %v535
        %v683 = vunpack.c.l.b16 %v549
        %v684 = vunpack.c.l.b16 %v559
        %v685 = vunpack.c.l.b16 %v573
        %v686 = vunpack.c.l.b16 %v583
        %v687 = vunpack.c.l.b16 %v597
        %v688 = vunpack.c.l.b16 %v607
        %v689 = vunpack.c.l.b16 %v621
        %v690 = vunpack.c.l.b16 %v631
        %v691 = vunpack.c.l.b16 %v645
        %v692 = vunpack.c.l.b16 %v655
        %v693 = vpack.c.b16 %v662, %v661
        %v694 = vpack.c.b16 %v664, %v663
        %v695 = vpack.c.b16 %v666, %v665
        %v696 = vpack.c.b16 %v668, %v667
        %v697 = vpack.c.b16 %v670, %v669
        %v698 = vpack.c.b16 %v672, %v671
        %v699 = vpack.c.b16 %v674, %v673
        %v700 = vpack.c.b16 %v676, %v675
        %v701 = vpack.c.b16 %v678, %v677
        %v702 = vpack.c.b16 %v680, %v679
        %v703 = vpack.c.b16 %v682, %v681
        %v704 = vpack.c.b16 %v684, %v683
        %v705 = vpack.c.b16 %v686, %v685
        %v706 = vpack.c.b16 %v688, %v687
        %v707 = vpack.c.b16 %v690, %v689
        %v708 = vpack.c.b16 %v692, %v691
        %v713 = vunpack.c.l.b16 %v657
        %v714 = vunpack.c.l.b16 %v658
        %v715 = vunpack.c.l.b16 %v659
        %v716 = vunpack.c.l.b16 %v660
        %v717 = vpack.c.b16 %v714, %v713
        %v718 = vpack.c.b16 %v716, %v715
        %vm721 = vcmask 261120
        %v723 = vsel %vm721, %v693, 0
        %v726 = vsel %vm721, %v694, 0
        %v729 = vsel %vm721, %v695, 0
        %v732 = vsel %vm721, %v696, 0
        %v735 = vsel %vm721, %v697, 0
        %v738 = vsel %vm721, %v698, 0
        %v741 = vsel %vm721, %v699, 0
        %v744 = vsel %vm721, %v700, 0
        %v747 = vsel %vm721, %v701, 0
        %v750 = vsel %vm721, %v702, 0
        %v753 = vsel %vm721, %v703, 0
        %v756 = vsel %vm721, %v704, 0
        %v759 = vsel %vm721, %v705, 0
        %v762 = vsel %vm721, %v706, 0
        %v765 = vsel %vm721, %v707, 0
        %v768 = vsel %vm721, %v708, 0
        %770 = vmatprep.subr.bf16.mxu0 0
        %771 = vmatpush1.bf16.msra.mxu0 %v717
        %772 = vmatprep.subr.bf16.mxu0 0
        %773 = vmatpush1.bf16.msra.mxu0 %v718
        %774 = vmatprep.subr.bf16.mxu0 0
        %775 = vmatpush1.bf16.msra.mxu0 0
        %776 = vmatprep.subr.bf16.mxu0 0
        %777 = vmatpush1.bf16.msra.mxu0 0
        %778 = vmatprep.subr.bf16.mxu0 0
        %779 = vmatpush1.bf16.msra.mxu0 0
        %780 = vmatprep.subr.bf16.mxu0 0
        %781 = vmatpush1.bf16.msra.mxu0 0
        %782 = vmatprep.subr.bf16.mxu0 0
        %783 = vmatpush1.bf16.msra.mxu0 0
        %784 = vmatprep.subr.bf16.mxu0 0
        %785 = vmatpush1.bf16.msra.mxu0 0
        %786 = vmatprep.subr.bf16.mxu0 0
        %787 = vmatpush1.bf16.msra.mxu0 0
        %788 = vmatprep.subr.bf16.mxu0 0
        %789 = vmatpush1.bf16.msra.mxu0 0
        %790 = vmatprep.subr.bf16.mxu0 0
        %791 = vmatpush1.bf16.msra.mxu0 0
        %792 = vmatprep.subr.bf16.mxu0 0
        %793 = vmatpush1.bf16.msra.mxu0 0
        %794 = vmatprep.subr.bf16.mxu0 0
        %795 = vmatpush1.bf16.msra.mxu0 0
        %796 = vmatprep.subr.bf16.mxu0 0
        %797 = vmatpush1.bf16.msra.mxu0 0
        %798 = vmatprep.subr.bf16.mxu0 0
        %799 = vmatpush1.bf16.msra.mxu0 0
        %800 = vmatprep.subr.bf16.mxu0 0
        %801 = vmatpush1.bf16.msra.mxu0 0
        %802 = vmatprep.mubr.bf16.mxu0 0
        %803 = vmatmul.mubr.bf16.gmra.mrb[0].mxu0 %v723
        %v804 = vpop.f32.mrb[0].mxu0
        %v805 = vadd.f32 0.0, %v804
        %v806 = vpop.f32.mrb[0].mxu0
        %v807 = vpop.f32.mrb[0].mxu0
        %v808 = vadd.f32 0.0, %v807
        %v809 = vpop.f32.mrb[0].mxu0
        %810 = vmatprep.mubr.bf16.mxu0 0
        %811 = vmatmul.mubr.bf16.gmra.mrb[0].mxu0 %v726
        %v812 = vpop.f32.mrb[0].mxu0
        %v813 = vadd.f32 0.0, %v812
        %v814 = vpop.f32.mrb[0].mxu0
        %v815 = vpop.f32.mrb[0].mxu0
        %v816 = vadd.f32 0.0, %v815
        %v817 = vpop.f32.mrb[0].mxu0
        %818 = vmatprep.mubr.bf16.mxu0 0
        %819 = vmatmul.mubr.bf16.gmra.mrb[0].mxu0 %v729
        %v820 = vpop.f32.mrb[0].mxu0
        %v821 = vadd.f32 0.0, %v820
        %v822 = vpop.f32.mrb[0].mxu0
        %v823 = vpop.f32.mrb[0].mxu0
        %v824 = vadd.f32 0.0, %v823
        %v825 = vpop.f32.mrb[0].mxu0
        %826 = vmatprep.mubr.bf16.mxu0 0
        %827 = vmatmul.mubr.bf16.gmra.mrb[0].mxu0 %v732
        %v828 = vpop.f32.mrb[0].mxu0
        %v829 = vadd.f32 0.0, %v828
        %v830 = vpop.f32.mrb[0].mxu0
        %v831 = vpop.f32.mrb[0].mxu0
        %v832 = vadd.f32 0.0, %v831
        %v833 = vpop.f32.mrb[0].mxu0
        %834 = vmatprep.mubr.bf16.mxu0 0
        %835 = vmatmul.mubr.bf16.gmra.mrb[0].mxu0 %v735
        %v836 = vpop.f32.mrb[0].mxu0
        %v837 = vadd.f32 0.0, %v836
        %v838 = vpop.f32.mrb[0].mxu0
        %v839 = vpop.f32.mrb[0].mxu0
        %v840 = vadd.f32 0.0, %v839
        %v841 = vpop.f32.mrb[0].mxu0
        %842 = vmatprep.mubr.bf16.mxu0 0
        %843 = vmatmul.mubr.bf16.gmra.mrb[0].mxu0 %v738
        %v844 = vpop.f32.mrb[0].mxu0
        %v845 = vadd.f32 0.0, %v844
        %v846 = vpop.f32.mrb[0].mxu0
        %v847 = vpop.f32.mrb[0].mxu0
        %v848 = vadd.f32 0.0, %v847
        %v849 = vpop.f32.mrb[0].mxu0
        %850 = vmatprep.mubr.bf16.mxu0 0
        %851 = vmatmul.mubr.bf16.gmra.mrb[0].mxu0 %v741
        %v852 = vpop.f32.mrb[0].mxu0
        %v853 = vadd.f32 0.0, %v852
        %v854 = vpop.f32.mrb[0].mxu0
        %v855 = vpop.f32.mrb[0].mxu0
        %v856 = vadd.f32 0.0, %v855
        %v857 = vpop.f32.mrb[0].mxu0
        %858 = vmatprep.mubr.bf16.mxu0 0
        %859 = vmatmul.mubr.bf16.gmra.mrb[0].mxu0 %v744
        %v860 = vpop.f32.mrb[0].mxu0
        %v861 = vadd.f32 0.0, %v860
        %v862 = vpop.f32.mrb[0].mxu0
        %v863 = vpop.f32.mrb[0].mxu0
        %v864 = vadd.f32 0.0, %v863
        %v865 = vpop.f32.mrb[0].mxu0
        %866 = vmatprep.mubr.bf16.mxu0 0
        %867 = vmatmul.mubr.bf16.gmra.mrb[0].mxu0 %v747
        %v868 = vpop.f32.mrb[0].mxu0
        %v869 = vadd.f32 0.0, %v868
        %v870 = vpop.f32.mrb[0].mxu0
        %v871 = vpop.f32.mrb[0].mxu0
        %v872 = vadd.f32 0.0, %v871
        %v873 = vpop.f32.mrb[0].mxu0
        %874 = vmatprep.mubr.bf16.mxu0 0
        %875 = vmatmul.mubr.bf16.gmra.mrb[0].mxu0 %v750
        %v876 = vpop.f32.mrb[0].mxu0
        %v877 = vadd.f32 0.0, %v876
        %v878 = vpop.f32.mrb[0].mxu0
        %v879 = vpop.f32.mrb[0].mxu0
        %v880 = vadd.f32 0.0, %v879
        %v881 = vpop.f32.mrb[0].mxu0
        %882 = vmatprep.mubr.bf16.mxu0 0
        %883 = vmatmul.mubr.bf16.gmra.mrb[0].mxu0 %v753
        %v884 = vpop.f32.mrb[0].mxu0
        %v885 = vadd.f32 0.0, %v884
        %v886 = vpop.f32.mrb[0].mxu0
        %v887 = vpop.f32.mrb[0].mxu0
        %v888 = vadd.f32 0.0, %v887
        %v889 = vpop.f32.mrb[0].mxu0
        %890 = vmatprep.mubr.bf16.mxu0 0
        %891 = vmatmul.mubr.bf16.gmra.mrb[0].mxu0 %v756
        %v892 = vpop.f32.mrb[0].mxu0
        %v893 = vadd.f32 0.0, %v892
        %v894 = vpop.f32.mrb[0].mxu0
        %v895 = vpop.f32.mrb[0].mxu0
        %v896 = vadd.f32 0.0, %v895
        %v897 = vpop.f32.mrb[0].mxu0
        %898 = vmatprep.mubr.bf16.mxu0 0
        %899 = vmatmul.mubr.bf16.gmra.mrb[0].mxu0 %v759
        %v900 = vpop.f32.mrb[0].mxu0
        %v901 = vadd.f32 0.0, %v900
        %v902 = vpop.f32.mrb[0].mxu0
        %v903 = vpop.f32.mrb[0].mxu0
        %v904 = vadd.f32 0.0, %v903
        %v905 = vpop.f32.mrb[0].mxu0
        %906 = vmatprep.mubr.bf16.mxu0 0
        %907 = vmatmul.mubr.bf16.gmra.mrb[0].mxu0 %v762
        %v908 = vpop.f32.mrb[0].mxu0
        %v909 = vadd.f32 0.0, %v908
        %v910 = vpop.f32.mrb[0].mxu0
        %v911 = vpop.f32.mrb[0].mxu0
        %v912 = vadd.f32 0.0, %v911
        %v913 = vpop.f32.mrb[0].mxu0
        %914 = vmatprep.mubr.bf16.mxu0 0
        %915 = vmatmul.mubr.bf16.gmra.mrb[0].mxu0 %v765
        %v916 = vpop.f32.mrb[0].mxu0
        %v917 = vadd.f32 0.0, %v916
        %v918 = vpop.f32.mrb[0].mxu0
        %v919 = vpop.f32.mrb[0].mxu0
        %v920 = vadd.f32 0.0, %v919
        %v921 = vpop.f32.mrb[0].mxu0
        %922 = vmatprep.mubr.bf16.mxu0 0
        %923 = vmatmul.mubr.bf16.gmra.mrb[0].mxu0 %v768
        %v924 = vpop.f32.mrb[0].mxu0
        %v925 = vadd.f32 0.0, %v924
        %v926 = vpop.f32.mrb[0].mxu0
        %v927 = vpop.f32.mrb[0].mxu0
        %v928 = vadd.f32 0.0, %v927
        %v929 = vpop.f32.mrb[0].mxu0
        %930 = vdwg.mxu0
        %v963 = vunpack.c.l.b16 %v217
        %v964 = vunpack.c.l.b16 %v218
        %v965 = vunpack.c.l.b16 %v219
        %v966 = vunpack.c.l.b16 %v220
        %v967 = vunpack.c.l.b16 %v221
        %v968 = vunpack.c.l.b16 %v222
        %v969 = vunpack.c.l.b16 %v223
        %v970 = vunpack.c.l.b16 %v224
        %v971 = vunpack.c.l.b16 %v225
        %v972 = vunpack.c.l.b16 %v226
        %v973 = vunpack.c.l.b16 %v227
        %v974 = vunpack.c.l.b16 %v228
        %v975 = vunpack.c.l.b16 %v229
        %v976 = vunpack.c.l.b16 %v230
        %v977 = vunpack.c.l.b16 %v231
        %v978 = vunpack.c.l.b16 %v232
        %v979 = vunpack.c.l.b16 %v233
        %v980 = vunpack.c.l.b16 %v234
        %v981 = vunpack.c.l.b16 %v235
        %v982 = vunpack.c.l.b16 %v236
        %v983 = vunpack.c.l.b16 %v237
        %v984 = vunpack.c.l.b16 %v238
        %v985 = vunpack.c.l.b16 %v239
        %v986 = vunpack.c.l.b16 %v240
        %v987 = vunpack.c.l.b16 %v241
        %v988 = vunpack.c.l.b16 %v242
        %v989 = vunpack.c.l.b16 %v243
        %v990 = vunpack.c.l.b16 %v244
        %v991 = vunpack.c.l.b16 %v245
        %v992 = vunpack.c.l.b16 %v246
        %v993 = vunpack.c.l.b16 %v247
        %v994 = vunpack.c.l.b16 %v248
        %v995 = vpack.c.b16 %v964, %v963
        %v996 = vpack.c.b16 %v966, %v965
        %v997 = vpack.c.b16 %v968, %v967
        %v998 = vpack.c.b16 %v970, %v969
        %v999 = vpack.c.b16 %v972, %v971
        %v1000 = vpack.c.b16 %v974, %v973
        %v1001 = vpack.c.b16 %v976, %v975
        %v1002 = vpack.c.b16 %v978, %v977
        %v1003 = vpack.c.b16 %v980, %v979
        %v1004 = vpack.c.b16 %v982, %v981
        %v1005 = vpack.c.b16 %v984, %v983
        %v1006 = vpack.c.b16 %v986, %v985
        %v1007 = vpack.c.b16 %v988, %v987
        %v1008 = vpack.c.b16 %v990, %v989
        %v1009 = vpack.c.b16 %v992, %v991
        %v1010 = vpack.c.b16 %v994, %v993
        %v1015 = vunpack.c.l.b16 %v249
        %v1016 = vunpack.c.l.b16 %v250
        %v1017 = vunpack.c.l.b16 %v251
        %v1018 = vunpack.c.l.b16 %v252
        %v1019 = vpack.c.b16 %v1016, %v1015
        %v1020 = vpack.c.b16 %v1018, %v1017
        %v1024 = vsel %vm721, %v995, 0
        %v1027 = vsel %vm721, %v996, 0
        %v1030 = vsel %vm721, %v997, 0
        %v1033 = vsel %vm721, %v998, 0
        %v1036 = vsel %vm721, %v999, 0
        %v1039 = vsel %vm721, %v1000, 0
        %v1042 = vsel %vm721, %v1001, 0
        %v1045 = vsel %vm721, %v1002, 0
        %v1048 = vsel %vm721, %v1003, 0
        %v1051 = vsel %vm721, %v1004, 0
        %v1054 = vsel %vm721, %v1005, 0
        %v1057 = vsel %vm721, %v1006, 0
        %v1060 = vsel %vm721, %v1007, 0
        %v1063 = vsel %vm721, %v1008, 0
        %v1066 = vsel %vm721, %v1009, 0
        %v1069 = vsel %vm721, %v1010, 0
        %1071 = vmatprep.subr.bf16.mxu0 0
        %1072 = vmatpush1.bf16.msra.mxu0 %v1019
        %1073 = vmatprep.subr.bf16.mxu0 0
        %1074 = vmatpush1.bf16.msra.mxu0 %v1020
        %1075 = vmatprep.subr.bf16.mxu0 0
        %1076 = vmatpush1.bf16.msra.mxu0 0
        %1077 = vmatprep.subr.bf16.mxu0 0
        %1078 = vmatpush1.bf16.msra.mxu0 0
        %1079 = vmatprep.subr.bf16.mxu0 0
        %1080 = vmatpush1.bf16.msra.mxu0 0
        %1081 = vmatprep.subr.bf16.mxu0 0
        %1082 = vmatpush1.bf16.msra.mxu0 0
        %1083 = vmatprep.subr.bf16.mxu0 0
        %1084 = vmatpush1.bf16.msra.mxu0 0
        %1085 = vmatprep.subr.bf16.mxu0 0
        %1086 = vmatpush1.bf16.msra.mxu0 0
        %1087 = vmatprep.subr.bf16.mxu0 0
        %1088 = vmatpush1.bf16.msra.mxu0 0
        %1089 = vmatprep.subr.bf16.mxu0 0
        %1090 = vmatpush1.bf16.msra.mxu0 0
        %1091 = vmatprep.subr.bf16.mxu0 0
        %1092 = vmatpush1.bf16.msra.mxu0 0
        %1093 = vmatprep.subr.bf16.mxu0 0
        %1094 = vmatpush1.bf16.msra.mxu0 0
        %1095 = vmatprep.subr.bf16.mxu0 0
        %1096 = vmatpush1.bf16.msra.mxu0 0
        %1097 = vmatprep.subr.bf16.mxu0 0
        %1098 = vmatpush1.bf16.msra.mxu0 0
        %1099 = vmatprep.subr.bf16.mxu0 0
        %1100 = vmatpush1.bf16.msra.mxu0 0
        %1101 = vmatprep.subr.bf16.mxu0 0
        %1102 = vmatpush1.bf16.msra.mxu0 0
        %1103 = vmatprep.mubr.bf16.mxu0 0
        %1104 = vmatmul.mubr.bf16.gmra.mrb[0].mxu0 %v1024
        %v1105 = vpop.f32.mrb[0].mxu0
        %v1106 = vadd.f32 %v805, %v1105
        %v1107 = vpop.f32.mrb[0].mxu0
        %v1108 = vpop.f32.mrb[0].mxu0
        %v1109 = vadd.f32 %v808, %v1108
        %v1110 = vpop.f32.mrb[0].mxu0
        %1111 = vmatprep.mubr.bf16.mxu0 0
        %1112 = vmatmul.mubr.bf16.gmra.mrb[0].mxu0 %v1027
        %v1113 = vpop.f32.mrb[0].mxu0
        %v1114 = vadd.f32 %v813, %v1113
        %v1115 = vpop.f32.mrb[0].mxu0
        %v1116 = vpop.f32.mrb[0].mxu0
        %v1117 = vadd.f32 %v816, %v1116
        %v1118 = vpop.f32.mrb[0].mxu0
        %1119 = vmatprep.mubr.bf16.mxu0 0
        %1120 = vmatmul.mubr.bf16.gmra.mrb[0].mxu0 %v1030
        %v1121 = vpop.f32.mrb[0].mxu0
        %v1122 = vadd.f32 %v821, %v1121
        %v1123 = vpop.f32.mrb[0].mxu0
        %v1124 = vpop.f32.mrb[0].mxu0
        %v1125 = vadd.f32 %v824, %v1124
        %v1126 = vpop.f32.mrb[0].mxu0
        %1127 = vmatprep.mubr.bf16.mxu0 0
        %1128 = vmatmul.mubr.bf16.gmra.mrb[0].mxu0 %v1033
        %v1129 = vpop.f32.mrb[0].mxu0
        %v1130 = vadd.f32 %v829, %v1129
        %v1131 = vpop.f32.mrb[0].mxu0
        %v1132 = vpop.f32.mrb[0].mxu0
        %v1133 = vadd.f32 %v832, %v1132
        %v1134 = vpop.f32.mrb[0].mxu0
        %1135 = vmatprep.mubr.bf16.mxu0 0
        %1136 = vmatmul.mubr.bf16.gmra.mrb[0].mxu0 %v1036
        %v1137 = vpop.f32.mrb[0].mxu0
        %v1138 = vadd.f32 %v837, %v1137
        %v1139 = vpop.f32.mrb[0].mxu0
        %v1140 = vpop.f32.mrb[0].mxu0
        %v1141 = vadd.f32 %v840, %v1140
        %v1142 = vpop.f32.mrb[0].mxu0
        %1143 = vmatprep.mubr.bf16.mxu0 0
        %1144 = vmatmul.mubr.bf16.gmra.mrb[0].mxu0 %v1039
        %v1145 = vpop.f32.mrb[0].mxu0
        %v1146 = vadd.f32 %v845, %v1145
        %v1147 = vpop.f32.mrb[0].mxu0
        %v1148 = vpop.f32.mrb[0].mxu0
        %v1149 = vadd.f32 %v848, %v1148
        %v1150 = vpop.f32.mrb[0].mxu0
        %1151 = vmatprep.mubr.bf16.mxu0 0
        %1152 = vmatmul.mubr.bf16.gmra.mrb[0].mxu0 %v1042
        %v1153 = vpop.f32.mrb[0].mxu0
        %v1154 = vadd.f32 %v853, %v1153
        %v1155 = vpop.f32.mrb[0].mxu0
        %v1156 = vpop.f32.mrb[0].mxu0
        %v1157 = vadd.f32 %v856, %v1156
        %v1158 = vpop.f32.mrb[0].mxu0
        %1159 = vmatprep.mubr.bf16.mxu0 0
        %1160 = vmatmul.mubr.bf16.gmra.mrb[0].mxu0 %v1045
        %v1161 = vpop.f32.mrb[0].mxu0
        %v1162 = vadd.f32 %v861, %v1161
        %v1163 = vpop.f32.mrb[0].mxu0
        %v1164 = vpop.f32.mrb[0].mxu0
        %v1165 = vadd.f32 %v864, %v1164
        %v1166 = vpop.f32.mrb[0].mxu0
        %1167 = vmatprep.mubr.bf16.mxu0 0
        %1168 = vmatmul.mubr.bf16.gmra.mrb[0].mxu0 %v1048
        %v1169 = vpop.f32.mrb[0].mxu0
        %v1170 = vadd.f32 %v869, %v1169
        %v1171 = vpop.f32.mrb[0].mxu0
        %v1172 = vpop.f32.mrb[0].mxu0
        %v1173 = vadd.f32 %v872, %v1172
        %v1174 = vpop.f32.mrb[0].mxu0
        %1175 = vmatprep.mubr.bf16.mxu0 0
        %1176 = vmatmul.mubr.bf16.gmra.mrb[0].mxu0 %v1051
        %v1177 = vpop.f32.mrb[0].mxu0
        %v1178 = vadd.f32 %v877, %v1177
        %v1179 = vpop.f32.mrb[0].mxu0
        %v1180 = vpop.f32.mrb[0].mxu0
        %v1181 = vadd.f32 %v880, %v1180
        %v1182 = vpop.f32.mrb[0].mxu0
        %1183 = vmatprep.mubr.bf16.mxu0 0
        %1184 = vmatmul.mubr.bf16.gmra.mrb[0].mxu0 %v1054
        %v1185 = vpop.f32.mrb[0].mxu0
        %v1186 = vadd.f32 %v885, %v1185
        %v1187 = vpop.f32.mrb[0].mxu0
        %v1188 = vpop.f32.mrb[0].mxu0
        %v1189 = vadd.f32 %v888, %v1188
        %v1190 = vpop.f32.mrb[0].mxu0
        %1191 = vmatprep.mubr.bf16.mxu0 0
        %1192 = vmatmul.mubr.bf16.gmra.mrb[0].mxu0 %v1057
        %v1193 = vpop.f32.mrb[0].mxu0
        %v1194 = vadd.f32 %v893, %v1193
        %v1195 = vpop.f32.mrb[0].mxu0
        %v1196 = vpop.f32.mrb[0].mxu0
        %v1197 = vadd.f32 %v896, %v1196
        %v1198 = vpop.f32.mrb[0].mxu0
        %1199 = vmatprep.mubr.bf16.mxu0 0
        %1200 = vmatmul.mubr.bf16.gmra.mrb[0].mxu0 %v1060
        %v1201 = vpop.f32.mrb[0].mxu0
        %v1202 = vadd.f32 %v901, %v1201
        %v1203 = vpop.f32.mrb[0].mxu0
        %v1204 = vpop.f32.mrb[0].mxu0
        %v1205 = vadd.f32 %v904, %v1204
        %v1206 = vpop.f32.mrb[0].mxu0
        %1207 = vmatprep.mubr.bf16.mxu0 0
        %1208 = vmatmul.mubr.bf16.gmra.mrb[0].mxu0 %v1063
        %v1209 = vpop.f32.mrb[0].mxu0
        %v1210 = vadd.f32 %v909, %v1209
        %v1211 = vpop.f32.mrb[0].mxu0
        %v1212 = vpop.f32.mrb[0].mxu0
        %v1213 = vadd.f32 %v912, %v1212
        %v1214 = vpop.f32.mrb[0].mxu0
        %1215 = vmatprep.mubr.bf16.mxu0 0
        %1216 = vmatmul.mubr.bf16.gmra.mrb[0].mxu0 %v1066
        %v1217 = vpop.f32.mrb[0].mxu0
        %v1218 = vadd.f32 %v917, %v1217
        %v1219 = vpop.f32.mrb[0].mxu0
        %v1220 = vpop.f32.mrb[0].mxu0
        %v1221 = vadd.f32 %v920, %v1220
        %v1222 = vpop.f32.mrb[0].mxu0
        %1223 = vmatprep.mubr.bf16.mxu0 0
        %1224 = vmatmul.mubr.bf16.gmra.mrb[0].mxu0 %v1069
        %v1225 = vpop.f32.mrb[0].mxu0
        %v1226 = vadd.f32 %v925, %v1225
        %v1227 = vpop.f32.mrb[0].mxu0
        %v1228 = vpop.f32.mrb[0].mxu0
        %v1229 = vadd.f32 %v928, %v1228
        %v1230 = vpop.f32.mrb[0].mxu0
        %1231 = vdwg.mxu0
        %v1232 = vld [vmem:[%s185] sm:$0xe]
        %v1233 = vld [vmem:[%s185 + $0xc] sm:$0xe]
        %v1234 = vld [vmem:[%s185 + $0x18] sm:$0xe]
        %v1235 = vld [vmem:[%s185 + $0x24] sm:$0xe]
        %v1236 = vld [vmem:[%s185 + $0x30] sm:$0xe]
        %v1237 = vld [vmem:[%s185 + $0x3c] sm:$0xe]
        %v1238 = vld [vmem:[%s185 + $0x48] sm:$0xe]
        %v1239 = vld [vmem:[%s185 + $0x54] sm:$0xe]
        %v1240 = vld [vmem:[%s185 + $0x60] sm:$0xe]
        %v1241 = vld [vmem:[%s185 + $0x6c] sm:$0xe]
        %v1242 = vld [vmem:[%s185 + $0x78] sm:$0xe]
        %v1243 = vld [vmem:[%s185 + $0x84] sm:$0xe]
        %v1244 = vld [vmem:[%s185 + $0x90] sm:$0xe]
        %v1245 = vld [vmem:[%s185 + $0x9c] sm:$0xe]
        %v1246 = vld [vmem:[%s185 + $0xa8] sm:$0xe]
        %v1247 = vld [vmem:[%s185 + $0xb4] sm:$0xe]
        %vm1280 = vcmask 1042432
        %vm1281 = vcmask 1046532
        %vm1282 = vmor %vm1280, %vm1281
        %v1283 = vrot.slane %v1232, 5
        %v1284 = vrot.slane %v1283, 4
        %v1285 = vrot.slane %v218, 5
        %v1286 = vsel %vm1282, %v1284, %v1285
        %v1287 = vrot.slane %v1285, 4
        %v1288 = vrot.slane %v253, 5
        %v1289 = vsel %vm1282, %v1287, %v1288
        %v1290 = vrot.slane %v1233, 5
        %v1291 = vrot.slane %v1290, 4
        %v1292 = vrot.slane %v220, 5
        %v1293 = vsel %vm1282, %v1291, %v1292
        %v1294 = vrot.slane %v1292, 4
        %v1295 = vrot.slane %v254, 5
        %v1296 = vsel %vm1282, %v1294, %v1295
        %v1297 = vrot.slane %v1234, 5
        %v1298 = vrot.slane %v1297, 4
        %v1299 = vrot.slane %v222, 5
        %v1300 = vsel %vm1282, %v1298, %v1299
        %v1301 = vrot.slane %v1299, 4
        %v1302 = vrot.slane %v255, 5
        %v1303 = vsel %vm1282, %v1301, %v1302
        %v1304 = vrot.slane %v1235, 5
        %v1305 = vrot.slane %v1304, 4
        %v1306 = vrot.slane %v224, 5
        %v1307 = vsel %vm1282, %v1305, %v1306
        %v1308 = vrot.slane %v1306, 4
        %v1309 = vrot.slane %v256, 5
        %v1310 = vsel %vm1282, %v1308, %v1309
        %v1311 = vrot.slane %v1236, 5
        %v1312 = vrot.slane %v1311, 4
        %v1313 = vrot.slane %v226, 5
        %v1314 = vsel %vm1282, %v1312, %v1313
        %v1315 = vrot.slane %v1313, 4
        %v1316 = vrot.slane %v257, 5
        %v1317 = vsel %vm1282, %v1315, %v1316
        %v1318 = vrot.slane %v1237, 5
        %v1319 = vrot.slane %v1318, 4
        %v1320 = vrot.slane %v228, 5
        %v1321 = vsel %vm1282, %v1319, %v1320
        %v1322 = vrot.slane %v1320, 4
        %v1323 = vrot.slane %v258, 5
        %v1324 = vsel %vm1282, %v1322, %v1323
        %v1325 = vrot.slane %v1238, 5
        %v1326 = vrot.slane %v1325, 4
        %v1327 = vrot.slane %v230, 5
        %v1328 = vsel %vm1282, %v1326, %v1327
        %v1329 = vrot.slane %v1327, 4
        %v1330 = vrot.slane %v259, 5
        %v1331 = vsel %vm1282, %v1329, %v1330
        %v1332 = vrot.slane %v1239, 5
        %v1333 = vrot.slane %v1332, 4
        %v1334 = vrot.slane %v232, 5
        %v1335 = vsel %vm1282, %v1333, %v1334
        %v1336 = vrot.slane %v1334, 4
        %v1337 = vrot.slane %v260, 5
        %v1338 = vsel %vm1282, %v1336, %v1337
        %v1339 = vrot.slane %v1240, 5
        %v1340 = vrot.slane %v1339, 4
        %v1341 = vrot.slane %v234, 5
        %v1342 = vsel %vm1282, %v1340, %v1341
        %v1343 = vrot.slane %v1341, 4
        %v1344 = vrot.slane %v261, 5
        %v1345 = vsel %vm1282, %v1343, %v1344
        %v1346 = vrot.slane %v1241, 5
        %v1347 = vrot.slane %v1346, 4
        %v1348 = vrot.slane %v236, 5
        %v1349 = vsel %vm1282, %v1347, %v1348
        %v1350 = vrot.slane %v1348, 4
        %v1351 = vrot.slane %v262, 5
        %v1352 = vsel %vm1282, %v1350, %v1351
        %v1353 = vrot.slane %v1242, 5
        %v1354 = vrot.slane %v1353, 4
        %v1355 = vrot.slane %v238, 5
        %v1356 = vsel %vm1282, %v1354, %v1355
        %v1357 = vrot.slane %v1355, 4
        %v1358 = vrot.slane %v263, 5
        %v1359 = vsel %vm1282, %v1357, %v1358
        %v1360 = vrot.slane %v1243, 5
        %v1361 = vrot.slane %v1360, 4
        %v1362 = vrot.slane %v240, 5
        %v1363 = vsel %vm1282, %v1361, %v1362
        %v1364 = vrot.slane %v1362, 4
        %v1365 = vrot.slane %v264, 5
        %v1366 = vsel %vm1282, %v1364, %v1365
        %v1367 = vrot.slane %v1244, 5
        %v1368 = vrot.slane %v1367, 4
        %v1369 = vrot.slane %v242, 5
        %v1370 = vsel %vm1282, %v1368, %v1369
        %v1371 = vrot.slane %v1369, 4
        %v1372 = vrot.slane %v265, 5
        %v1373 = vsel %vm1282, %v1371, %v1372
        %v1374 = vrot.slane %v1245, 5
        %v1375 = vrot.slane %v1374, 4
        %v1376 = vrot.slane %v244, 5
        %v1377 = vsel %vm1282, %v1375, %v1376
        %v1378 = vrot.slane %v1376, 4
        %v1379 = vrot.slane %v266, 5
        %v1380 = vsel %vm1282, %v1378, %v1379
        %v1381 = vrot.slane %v1246, 5
        %v1382 = vrot.slane %v1381, 4
        %v1383 = vrot.slane %v246, 5
        %v1384 = vsel %vm1282, %v1382, %v1383
        %v1385 = vrot.slane %v1383, 4
        %v1386 = vrot.slane %v267, 5
        %v1387 = vsel %vm1282, %v1385, %v1386
        %v1388 = vrot.slane %v1247, 5
        %v1389 = vrot.slane %v1388, 4
        %v1390 = vrot.slane %v248, 5
        %v1391 = vsel %vm1282, %v1389, %v1390
        %v1392 = vrot.slane %v1390, 4
        %v1393 = vrot.slane %v268, 5
        %v1394 = vsel %vm1282, %v1392, %v1393
        %s1395 = scalar_lea.vmem [#allocation5], 32
        %v1396 = vld [vmem:[%s1395] sm:$0xf]
        %v1397 = vld [vmem:[%s1395 + $0x4] sm:$0xf]
        %v1398 = vld [vmem:[%s1395 + $0x8] sm:$0xf]
        %v1399 = vld [vmem:[%s1395 + $0xc] sm:$0xf]
        %v1400 = vunpack.c.l.b16 %v1286
        %v1401 = vunpack.c.l.b16 %v1289
        %v1402 = vunpack.c.l.b16 %v1293
        %v1403 = vunpack.c.l.b16 %v1296
        %v1404 = vunpack.c.l.b16 %v1300
        %v1405 = vunpack.c.l.b16 %v1303
        %v1406 = vunpack.c.l.b16 %v1307
        %v1407 = vunpack.c.l.b16 %v1310
        %v1408 = vunpack.c.l.b16 %v1314
        %v1409 = vunpack.c.l.b16 %v1317
        %v1410 = vunpack.c.l.b16 %v1321
        %v1411 = vunpack.c.l.b16 %v1324
        %v1412 = vunpack.c.l.b16 %v1328
        %v1413 = vunpack.c.l.b16 %v1331
        %v1414 = vunpack.c.l.b16 %v1335
        %v1415 = vunpack.c.l.b16 %v1338
        %v1416 = vunpack.c.l.b16 %v1342
        %v1417 = vunpack.c.l.b16 %v1345
        %v1418 = vunpack.c.l.b16 %v1349
        %v1419 = vunpack.c.l.b16 %v1352
        %v1420 = vunpack.c.l.b16 %v1356
        %v1421 = vunpack.c.l.b16 %v1359
        %v1422 = vunpack.c.l.b16 %v1363
        %v1423 = vunpack.c.l.b16 %v1366
        %v1424 = vunpack.c.l.b16 %v1370
        %v1425 = vunpack.c.l.b16 %v1373
        %v1426 = vunpack.c.l.b16 %v1377
        %v1427 = vunpack.c.l.b16 %v1380
        %v1428 = vunpack.c.l.b16 %v1384
        %v1429 = vunpack.c.l.b16 %v1387
        %v1430 = vunpack.c.l.b16 %v1391
        %v1431 = vunpack.c.l.b16 %v1394
        %v1432 = vpack.c.b16 %v1401, %v1400
        %v1433 = vpack.c.b16 %v1403, %v1402
        %v1434 = vpack.c.b16 %v1405, %v1404
        %v1435 = vpack.c.b16 %v1407, %v1406
        %v1436 = vpack.c.b16 %v1409, %v1408
        %v1437 = vpack.c.b16 %v1411, %v1410
        %v1438 = vpack.c.b16 %v1413, %v1412
        %v1439 = vpack.c.b16 %v1415, %v1414
        %v1440 = vpack.c.b16 %v1417, %v1416
        %v1441 = vpack.c.b16 %v1419, %v1418
        %v1442 = vpack.c.b16 %v1421, %v1420
        %v1443 = vpack.c.b16 %v1423, %v1422
        %v1444 = vpack.c.b16 %v1425, %v1424
        %v1445 = vpack.c.b16 %v1427, %v1426
        %v1446 = vpack.c.b16 %v1429, %v1428
        %v1447 = vpack.c.b16 %v1431, %v1430
        %v1452 = vunpack.c.l.b16 %v1396
        %v1453 = vunpack.c.l.b16 %v1397
        %v1454 = vunpack.c.l.b16 %v1398
        %v1455 = vunpack.c.l.b16 %v1399
        %v1456 = vpack.c.b16 %v1453, %v1452
        %v1457 = vpack.c.b16 %v1455, %v1454
        %v1461 = vsel %vm721, %v1432, 0
        %v1464 = vsel %vm721, %v1433, 0
        %v1467 = vsel %vm721, %v1434, 0
        %v1470 = vsel %vm721, %v1435, 0
        %v1473 = vsel %vm721, %v1436, 0
        %v1476 = vsel %vm721, %v1437, 0
        %v1479 = vsel %vm721, %v1438, 0
        %v1482 = vsel %vm721, %v1439, 0
        %v1485 = vsel %vm721, %v1440, 0
        %v1488 = vsel %vm721, %v1441, 0
        %v1491 = vsel %vm721, %v1442, 0
        %v1494 = vsel %vm721, %v1443, 0
        %v1497 = vsel %vm721, %v1444, 0
        %v1500 = vsel %vm721, %v1445, 0
        %v1503 = vsel %vm721, %v1446, 0
        %v1506 = vsel %vm721, %v1447, 0
        %1508 = vmatprep.subr.bf16.mxu0 0
        %1509 = vmatpush1.bf16.msra.mxu0 %v1456
        %1510 = vmatprep.subr.bf16.mxu0 0
        %1511 = vmatpush1.bf16.msra.mxu0 %v1457
        %1512 = vmatprep.subr.bf16.mxu0 0
        %1513 = vmatpush1.bf16.msra.mxu0 0
        %1514 = vmatprep.subr.bf16.mxu0 0
        %1515 = vmatpush1.bf16.msra.mxu0 0
        %1516 = vmatprep.subr.bf16.mxu0 0
        %1517 = vmatpush1.bf16.msra.mxu0 0
        %1518 = vmatprep.subr.bf16.mxu0 0
        %1519 = vmatpush1.bf16.msra.mxu0 0
        %1520 = vmatprep.subr.bf16.mxu0 0
        %1521 = vmatpush1.bf16.msra.mxu0 0
        %1522 = vmatprep.subr.bf16.mxu0 0
        %1523 = vmatpush1.bf16.msra.mxu0 0
        %1524 = vmatprep.subr.bf16.mxu0 0
        %1525 = vmatpush1.bf16.msra.mxu0 0
        %1526 = vmatprep.subr.bf16.mxu0 0
        %1527 = vmatpush1.bf16.msra.mxu0 0
        %1528 = vmatprep.subr.bf16.mxu0 0
        %1529 = vmatpush1.bf16.msra.mxu0 0
        %1530 = vmatprep.subr.bf16.mxu0 0
        %1531 = vmatpush1.bf16.msra.mxu0 0
        %1532 = vmatprep.subr.bf16.mxu0 0
        %1533 = vmatpush1.bf16.msra.mxu0 0
        %1534 = vmatprep.subr.bf16.mxu0 0
        %1535 = vmatpush1.bf16.msra.mxu0 0
        %1536 = vmatprep.subr.bf16.mxu0 0
        %1537 = vmatpush1.bf16.msra.mxu0 0
        %1538 = vmatprep.subr.bf16.mxu0 0
        %1539 = vmatpush1.bf16.msra.mxu0 0
        %1540 = vmatprep.mubr.bf16.mxu0 0
        %1541 = vmatmul.mubr.bf16.gmra.mrb[0].mxu0 %v1461
        %v1542 = vpop.f32.mrb[0].mxu0
        %v1543 = vadd.f32 0.0, %v1542
        %v1544 = vpop.f32.mrb[0].mxu0
        %v1545 = vpop.f32.mrb[0].mxu0
        %v1546 = vadd.f32 0.0, %v1545
        %v1547 = vpop.f32.mrb[0].mxu0
        %1548 = vmatprep.mubr.bf16.mxu0 0
        %1549 = vmatmul.mubr.bf16.gmra.mrb[0].mxu0 %v1464
        %v1550 = vpop.f32.mrb[0].mxu0
        %v1551 = vadd.f32 0.0, %v1550
        %v1552 = vpop.f32.mrb[0].mxu0
        %v1553 = vpop.f32.mrb[0].mxu0
        %v1554 = vadd.f32 0.0, %v1553
        %v1555 = vpop.f32.mrb[0].mxu0
        %1556 = vmatprep.mubr.bf16.mxu0 0
        %1557 = vmatmul.mubr.bf16.gmra.mrb[0].mxu0 %v1467
        %v1558 = vpop.f32.mrb[0].mxu0
        %v1559 = vadd.f32 0.0, %v1558
        %v1560 = vpop.f32.mrb[0].mxu0
        %v1561 = vpop.f32.mrb[0].mxu0
        %v1562 = vadd.f32 0.0, %v1561
        %v1563 = vpop.f32.mrb[0].mxu0
        %1564 = vmatprep.mubr.bf16.mxu0 0
        %1565 = vmatmul.mubr.bf16.gmra.mrb[0].mxu0 %v1470
        %v1566 = vpop.f32.mrb[0].mxu0
        %v1567 = vadd.f32 0.0, %v1566
        %v1568 = vpop.f32.mrb[0].mxu0
        %v1569 = vpop.f32.mrb[0].mxu0
        %v1570 = vadd.f32 0.0, %v1569
        %v1571 = vpop.f32.mrb[0].mxu0
        %1572 = vmatprep.mubr.bf16.mxu0 0
        %1573 = vmatmul.mubr.bf16.gmra.mrb[0].mxu0 %v1473
        %v1574 = vpop.f32.mrb[0].mxu0
        %v1575 = vadd.f32 0.0, %v1574
        %v1576 = vpop.f32.mrb[0].mxu0
        %v1577 = vpop.f32.mrb[0].mxu0
        %v1578 = vadd.f32 0.0, %v1577
        %v1579 = vpop.f32.mrb[0].mxu0
        %1580 = vmatprep.mubr.bf16.mxu0 0
        %1581 = vmatmul.mubr.bf16.gmra.mrb[0].mxu0 %v1476
        %v1582 = vpop.f32.mrb[0].mxu0
        %v1583 = vadd.f32 0.0, %v1582
        %v1584 = vpop.f32.mrb[0].mxu0
        %v1585 = vpop.f32.mrb[0].mxu0
        %v1586 = vadd.f32 0.0, %v1585
        %v1587 = vpop.f32.mrb[0].mxu0
        %1588 = vmatprep.mubr.bf16.mxu0 0
        %1589 = vmatmul.mubr.bf16.gmra.mrb[0].mxu0 %v1479
        %v1590 = vpop.f32.mrb[0].mxu0
        %v1591 = vadd.f32 0.0, %v1590
        %v1592 = vpop.f32.mrb[0].mxu0
        %v1593 = vpop.f32.mrb[0].mxu0
        %v1594 = vadd.f32 0.0, %v1593
        %v1595 = vpop.f32.mrb[0].mxu0
        %1596 = vmatprep.mubr.bf16.mxu0 0
        %1597 = vmatmul.mubr.bf16.gmra.mrb[0].mxu0 %v1482
        %v1598 = vpop.f32.mrb[0].mxu0
        %v1599 = vadd.f32 0.0, %v1598
        %v1600 = vpop.f32.mrb[0].mxu0
        %v1601 = vpop.f32.mrb[0].mxu0
        %v1602 = vadd.f32 0.0, %v1601
        %v1603 = vpop.f32.mrb[0].mxu0
        %1604 = vmatprep.mubr.bf16.mxu0 0
        %1605 = vmatmul.mubr.bf16.gmra.mrb[0].mxu0 %v1485
        %v1606 = vpop.f32.mrb[0].mxu0
        %v1607 = vadd.f32 0.0, %v1606
        %v1608 = vpop.f32.mrb[0].mxu0
        %v1609 = vpop.f32.mrb[0].mxu0
        %v1610 = vadd.f32 0.0, %v1609
        %v1611 = vpop.f32.mrb[0].mxu0
        %1612 = vmatprep.mubr.bf16.mxu0 0
        %1613 = vmatmul.mubr.bf16.gmra.mrb[0].mxu0 %v1488
        %v1614 = vpop.f32.mrb[0].mxu0
        %v1615 = vadd.f32 0.0, %v1614
        %v1616 = vpop.f32.mrb[0].mxu0
        %v1617 = vpop.f32.mrb[0].mxu0
        %v1618 = vadd.f32 0.0, %v1617
        %v1619 = vpop.f32.mrb[0].mxu0
        %1620 = vmatprep.mubr.bf16.mxu0 0
        %1621 = vmatmul.mubr.bf16.gmra.mrb[0].mxu0 %v1491
        %v1622 = vpop.f32.mrb[0].mxu0
        %v1623 = vadd.f32 0.0, %v1622
        %v1624 = vpop.f32.mrb[0].mxu0
        %v1625 = vpop.f32.mrb[0].mxu0
        %v1626 = vadd.f32 0.0, %v1625
        %v1627 = vpop.f32.mrb[0].mxu0
        %1628 = vmatprep.mubr.bf16.mxu0 0
        %1629 = vmatmul.mubr.bf16.gmra.mrb[0].mxu0 %v1494
        %v1630 = vpop.f32.mrb[0].mxu0
        %v1631 = vadd.f32 0.0, %v1630
        %v1632 = vpop.f32.mrb[0].mxu0
        %v1633 = vpop.f32.mrb[0].mxu0
        %v1634 = vadd.f32 0.0, %v1633
        %v1635 = vpop.f32.mrb[0].mxu0
        %1636 = vmatprep.mubr.bf16.mxu0 0
        %1637 = vmatmul.mubr.bf16.gmra.mrb[0].mxu0 %v1497
        %v1638 = vpop.f32.mrb[0].mxu0
        %v1639 = vadd.f32 0.0, %v1638
        %v1640 = vpop.f32.mrb[0].mxu0
        %v1641 = vpop.f32.mrb[0].mxu0
        %v1642 = vadd.f32 0.0, %v1641
        %v1643 = vpop.f32.mrb[0].mxu0
        %1644 = vmatprep.mubr.bf16.mxu0 0
        %1645 = vmatmul.mubr.bf16.gmra.mrb[0].mxu0 %v1500
        %v1646 = vpop.f32.mrb[0].mxu0
        %v1647 = vadd.f32 0.0, %v1646
        %v1648 = vpop.f32.mrb[0].mxu0
        %v1649 = vpop.f32.mrb[0].mxu0
        %v1650 = vadd.f32 0.0, %v1649
        %v1651 = vpop.f32.mrb[0].mxu0
        %1652 = vmatprep.mubr.bf16.mxu0 0
        %1653 = vmatmul.mubr.bf16.gmra.mrb[0].mxu0 %v1503
        %v1654 = vpop.f32.mrb[0].mxu0
        %v1655 = vadd.f32 0.0, %v1654
        %v1656 = vpop.f32.mrb[0].mxu0
        %v1657 = vpop.f32.mrb[0].mxu0
        %v1658 = vadd.f32 0.0, %v1657
        %v1659 = vpop.f32.mrb[0].mxu0
        %1660 = vmatprep.mubr.bf16.mxu0 0
        %1661 = vmatmul.mubr.bf16.gmra.mrb[0].mxu0 %v1506
        %v1662 = vpop.f32.mrb[0].mxu0
        %v1663 = vadd.f32 0.0, %v1662
        %v1664 = vpop.f32.mrb[0].mxu0
        %v1665 = vpop.f32.mrb[0].mxu0
        %v1666 = vadd.f32 0.0, %v1665
        %v1667 = vpop.f32.mrb[0].mxu0
        %1668 = vdwg.mxu0
        %v1669 = vadd.f32 %v1106, %v1543
        %v1670 = vadd.f32 %v1109, %v1546
        %v1671 = vadd.f32 %v1114, %v1551
        %v1672 = vadd.f32 %v1117, %v1554
        %v1673 = vadd.f32 %v1122, %v1559
        %v1674 = vadd.f32 %v1125, %v1562
        %v1675 = vadd.f32 %v1130, %v1567
        %v1676 = vadd.f32 %v1133, %v1570
        %v1677 = vadd.f32 %v1138, %v1575
        %v1678 = vadd.f32 %v1141, %v1578
        %v1679 = vadd.f32 %v1146, %v1583
        %v1680 = vadd.f32 %v1149, %v1586
        %v1681 = vadd.f32 %v1154, %v1591
        %v1682 = vadd.f32 %v1157, %v1594
        %v1683 = vadd.f32 %v1162, %v1599
        %v1684 = vadd.f32 %v1165, %v1602
        %v1685 = vadd.f32 %v1170, %v1607
        %v1686 = vadd.f32 %v1173, %v1610
        %v1687 = vadd.f32 %v1178, %v1615
        %v1688 = vadd.f32 %v1181, %v1618
        %v1689 = vadd.f32 %v1186, %v1623
        %v1690 = vadd.f32 %v1189, %v1626
        %v1691 = vadd.f32 %v1194, %v1631
        %v1692 = vadd.f32 %v1197, %v1634
        %v1693 = vadd.f32 %v1202, %v1639
        %v1694 = vadd.f32 %v1205, %v1642
        %v1695 = vadd.f32 %v1210, %v1647
        %v1696 = vadd.f32 %v1213, %v1650
        %v1697 = vadd.f32 %v1218, %v1655
        %v1698 = vadd.f32 %v1221, %v1658
        %v1699 = vadd.f32 %v1226, %v1663
        %v1700 = vadd.f32 %v1229, %v1666
        %s1701 = scalar_lea.vmem %s185, 12 [#allocation2]
        %v1702 = vld [vmem:[%s1701] sm:$0xf]
        %v1703 = vld [vmem:[%s1701 + $0x4] sm:$0xf]
        %v1704 = vld [vmem:[%s1701 + $0xc] sm:$0xf]
        %v1705 = vld [vmem:[%s1701 + $0x10] sm:$0xf]
        %v1706 = vld [vmem:[%s1701 + $0x18] sm:$0xf]
        %v1707 = vld [vmem:[%s1701 + $0x1c] sm:$0xf]
        %v1708 = vld [vmem:[%s1701 + $0x24] sm:$0xf]
        %v1709 = vld [vmem:[%s1701 + $0x28] sm:$0xf]
        %v1710 = vld [vmem:[%s1701 + $0x30] sm:$0xf]
        %v1711 = vld [vmem:[%s1701 + $0x34] sm:$0xf]
        %v1712 = vld [vmem:[%s1701 + $0x3c] sm:$0xf]
        %v1713 = vld [vmem:[%s1701 + $0x40] sm:$0xf]
        %v1714 = vld [vmem:[%s1701 + $0x48] sm:$0xf]
        %v1715 = vld [vmem:[%s1701 + $0x4c] sm:$0xf]
        %v1716 = vld [vmem:[%s1701 + $0x54] sm:$0xf]
        %v1717 = vld [vmem:[%s1701 + $0x58] sm:$0xf]
        %v1718 = vld [vmem:[%s1701 + $0x60] sm:$0xf]
        %v1719 = vld [vmem:[%s1701 + $0x64] sm:$0xf]
        %v1720 = vld [vmem:[%s1701 + $0x6c] sm:$0xf]
        %v1721 = vld [vmem:[%s1701 + $0x70] sm:$0xf]
        %v1722 = vld [vmem:[%s1701 + $0x78] sm:$0xf]
        %v1723 = vld [vmem:[%s1701 + $0x7c] sm:$0xf]
        %v1724 = vld [vmem:[%s1701 + $0x84] sm:$0xf]
        %v1725 = vld [vmem:[%s1701 + $0x88] sm:$0xf]
        %v1726 = vld [vmem:[%s1701 + $0x90] sm:$0xf]
        %v1727 = vld [vmem:[%s1701 + $0x94] sm:$0xf]
        %v1728 = vld [vmem:[%s1701 + $0x9c] sm:$0xf]
        %v1729 = vld [vmem:[%s1701 + $0xa0] sm:$0xf]
        %v1730 = vld [vmem:[%s1701 + $0xa8] sm:$0xf]
        %v1731 = vld [vmem:[%s1701 + $0xac] sm:$0xf]
        %v1732 = vld [vmem:[%s1701 + $0xb4] sm:$0xf]
        %v1733 = vld [vmem:[%s1701 + $0xb8] sm:$0xf]
        %s1734 = scalar_lea.vmem [#allocation5], 48
        %v1735 = vld [vmem:[%s1734] sm:$0xf]
        %v1736 = vld [vmem:[%s1734 + $0x4] sm:$0xf]
        %v1737 = vld [vmem:[%s1734 + $0x8] sm:$0xf]
        %v1738 = vld [vmem:[%s1734 + $0xc] sm:$0xf]
        %v1771 = vunpack.c.l.b16 %v1702
        %v1772 = vunpack.c.l.b16 %v1703
        %v1773 = vunpack.c.l.b16 %v1704
        %v1774 = vunpack.c.l.b16 %v1705
        %v1775 = vunpack.c.l.b16 %v1706
        %v1776 = vunpack.c.l.b16 %v1707
        %v1777 = vunpack.c.l.b16 %v1708
        %v1778 = vunpack.c.l.b16 %v1709
        %v1779 = vunpack.c.l.b16 %v1710
        %v1780 = vunpack.c.l.b16 %v1711
        %v1781 = vunpack.c.l.b16 %v1712
        %v1782 = vunpack.c.l.b16 %v1713
        %v1783 = vunpack.c.l.b16 %v1714
        %v1784 = vunpack.c.l.b16 %v1715
        %v1785 = vunpack.c.l.b16 %v1716
        %v1786 = vunpack.c.l.b16 %v1717
        %v1787 = vunpack.c.l.b16 %v1718
        %v1788 = vunpack.c.l.b16 %v1719
        %v1789 = vunpack.c.l.b16 %v1720
        %v1790 = vunpack.c.l.b16 %v1721
        %v1791 = vunpack.c.l.b16 %v1722
        %v1792 = vunpack.c.l.b16 %v1723
        %v1793 = vunpack.c.l.b16 %v1724
        %v1794 = vunpack.c.l.b16 %v1725
        %v1795 = vunpack.c.l.b16 %v1726
        %v1796 = vunpack.c.l.b16 %v1727
        %v1797 = vunpack.c.l.b16 %v1728
        %v1798 = vunpack.c.l.b16 %v1729
        %v1799 = vunpack.c.l.b16 %v1730
        %v1800 = vunpack.c.l.b16 %v1731
        %v1801 = vunpack.c.l.b16 %v1732
        %v1802 = vunpack.c.l.b16 %v1733
        %v1803 = vpack.c.b16 %v1772, %v1771
        %v1804 = vpack.c.b16 %v1774, %v1773
        %v1805 = vpack.c.b16 %v1776, %v1775
        %v1806 = vpack.c.b16 %v1778, %v1777
        %v1807 = vpack.c.b16 %v1780, %v1779
        %v1808 = vpack.c.b16 %v1782, %v1781
        %v1809 = vpack.c.b16 %v1784, %v1783
        %v1810 = vpack.c.b16 %v1786, %v1785
        %v1811 = vpack.c.b16 %v1788, %v1787
        %v1812 = vpack.c.b16 %v1790, %v1789
        %v1813 = vpack.c.b16 %v1792, %v1791
        %v1814 = vpack.c.b16 %v1794, %v1793
        %v1815 = vpack.c.b16 %v1796, %v1795
        %v1816 = vpack.c.b16 %v1798, %v1797
        %v1817 = vpack.c.b16 %v1800, %v1799
        %v1818 = vpack.c.b16 %v1802, %v1801
        %v1823 = vunpack.c.l.b16 %v1735
        %v1824 = vunpack.c.l.b16 %v1736
        %v1825 = vunpack.c.l.b16 %v1737
        %v1826 = vunpack.c.l.b16 %v1738
        %v1827 = vpack.c.b16 %v1824, %v1823
        %v1828 = vpack.c.b16 %v1826, %v1825
        %v1832 = vsel %vm721, %v1803, 0
        %v1835 = vsel %vm721, %v1804, 0
        %v1838 = vsel %vm721, %v1805, 0
        %v1841 = vsel %vm721, %v1806, 0
        %v1844 = vsel %vm721, %v1807, 0
        %v1847 = vsel %vm721, %v1808, 0
        %v1850 = vsel %vm721, %v1809, 0
        %v1853 = vsel %vm721, %v1810, 0
        %v1856 = vsel %vm721, %v1811, 0
        %v1859 = vsel %vm721, %v1812, 0
        %v1862 = vsel %vm721, %v1813, 0
        %v1865 = vsel %vm721, %v1814, 0
        %v1868 = vsel %vm721, %v1815, 0
        %v1871 = vsel %vm721, %v1816, 0
        %v1874 = vsel %vm721, %v1817, 0
        %v1877 = vsel %vm721, %v1818, 0
        %1879 = vmatprep.subr.bf16.mxu0 0
        %1880 = vmatpush1.bf16.msra.mxu0 %v1827
        %1881 = vmatprep.subr.bf16.mxu0 0
        %1882 = vmatpush1.bf16.msra.mxu0 %v1828
        %1883 = vmatprep.subr.bf16.mxu0 0
        %1884 = vmatpush1.bf16.msra.mxu0 0
        %1885 = vmatprep.subr.bf16.mxu0 0
        %1886 = vmatpush1.bf16.msra.mxu0 0
        %1887 = vmatprep.subr.bf16.mxu0 0
        %1888 = vmatpush1.bf16.msra.mxu0 0
        %1889 = vmatprep.subr.bf16.mxu0 0
        %1890 = vmatpush1.bf16.msra.mxu0 0
        %1891 = vmatprep.subr.bf16.mxu0 0
        %1892 = vmatpush1.bf16.msra.mxu0 0
        %1893 = vmatprep.subr.bf16.mxu0 0
        %1894 = vmatpush1.bf16.msra.mxu0 0
        %1895 = vmatprep.subr.bf16.mxu0 0
        %1896 = vmatpush1.bf16.msra.mxu0 0
        %1897 = vmatprep.subr.bf16.mxu0 0
        %1898 = vmatpush1.bf16.msra.mxu0 0
        %1899 = vmatprep.subr.bf16.mxu0 0
        %1900 = vmatpush1.bf16.msra.mxu0 0
        %1901 = vmatprep.subr.bf16.mxu0 0
        %1902 = vmatpush1.bf16.msra.mxu0 0
        %1903 = vmatprep.subr.bf16.mxu0 0
        %1904 = vmatpush1.bf16.msra.mxu0 0
        %1905 = vmatprep.subr.bf16.mxu0 0
        %1906 = vmatpush1.bf16.msra.mxu0 0
        %1907 = vmatprep.subr.bf16.mxu0 0
        %1908 = vmatpush1.bf16.msra.mxu0 0
        %1909 = vmatprep.subr.bf16.mxu0 0
        %1910 = vmatpush1.bf16.msra.mxu0 0
        %1911 = vmatprep.mubr.bf16.mxu0 0
        %1912 = vmatmul.mubr.bf16.gmra.mrb[0].mxu0 %v1832
        %v1913 = vpop.f32.mrb[0].mxu0
        %v1914 = vadd.f32 0.0, %v1913
        %v1915 = vpop.f32.mrb[0].mxu0
        %v1916 = vpop.f32.mrb[0].mxu0
        %v1917 = vadd.f32 0.0, %v1916
        %v1918 = vpop.f32.mrb[0].mxu0
        %1919 = vmatprep.mubr.bf16.mxu0 0
        %1920 = vmatmul.mubr.bf16.gmra.mrb[0].mxu0 %v1835
        %v1921 = vpop.f32.mrb[0].mxu0
        %v1922 = vadd.f32 0.0, %v1921
        %v1923 = vpop.f32.mrb[0].mxu0
        %v1924 = vpop.f32.mrb[0].mxu0
        %v1925 = vadd.f32 0.0, %v1924
        %v1926 = vpop.f32.mrb[0].mxu0
        %1927 = vmatprep.mubr.bf16.mxu0 0
        %1928 = vmatmul.mubr.bf16.gmra.mrb[0].mxu0 %v1838
        %v1929 = vpop.f32.mrb[0].mxu0
        %v1930 = vadd.f32 0.0, %v1929
        %v1931 = vpop.f32.mrb[0].mxu0
        %v1932 = vpop.f32.mrb[0].mxu0
        %v1933 = vadd.f32 0.0, %v1932
        %v1934 = vpop.f32.mrb[0].mxu0
        %1935 = vmatprep.mubr.bf16.mxu0 0
        %1936 = vmatmul.mubr.bf16.gmra.mrb[0].mxu0 %v1841
        %v1937 = vpop.f32.mrb[0].mxu0
        %v1938 = vadd.f32 0.0, %v1937
        %v1939 = vpop.f32.mrb[0].mxu0
        %v1940 = vpop.f32.mrb[0].mxu0
        %v1941 = vadd.f32 0.0, %v1940
        %v1942 = vpop.f32.mrb[0].mxu0
        %1943 = vmatprep.mubr.bf16.mxu0 0
        %1944 = vmatmul.mubr.bf16.gmra.mrb[0].mxu0 %v1844
        %v1945 = vpop.f32.mrb[0].mxu0
        %v1946 = vadd.f32 0.0, %v1945
        %v1947 = vpop.f32.mrb[0].mxu0
        %v1948 = vpop.f32.mrb[0].mxu0
        %v1949 = vadd.f32 0.0, %v1948
        %v1950 = vpop.f32.mrb[0].mxu0
        %1951 = vmatprep.mubr.bf16.mxu0 0
        %1952 = vmatmul.mubr.bf16.gmra.mrb[0].mxu0 %v1847
        %v1953 = vpop.f32.mrb[0].mxu0
        %v1954 = vadd.f32 0.0, %v1953
        %v1955 = vpop.f32.mrb[0].mxu0
        %v1956 = vpop.f32.mrb[0].mxu0
        %v1957 = vadd.f32 0.0, %v1956
        %v1958 = vpop.f32.mrb[0].mxu0
        %1959 = vmatprep.mubr.bf16.mxu0 0
        %1960 = vmatmul.mubr.bf16.gmra.mrb[0].mxu0 %v1850
        %v1961 = vpop.f32.mrb[0].mxu0
        %v1962 = vadd.f32 0.0, %v1961
        %v1963 = vpop.f32.mrb[0].mxu0
        %v1964 = vpop.f32.mrb[0].mxu0
        %v1965 = vadd.f32 0.0, %v1964
        %v1966 = vpop.f32.mrb[0].mxu0
        %1967 = vmatprep.mubr.bf16.mxu0 0
        %1968 = vmatmul.mubr.bf16.gmra.mrb[0].mxu0 %v1853
        %v1969 = vpop.f32.mrb[0].mxu0
        %v1970 = vadd.f32 0.0, %v1969
        %v1971 = vpop.f32.mrb[0].mxu0
        %v1972 = vpop.f32.mrb[0].mxu0
        %v1973 = vadd.f32 0.0, %v1972
        %v1974 = vpop.f32.mrb[0].mxu0
        %1975 = vmatprep.mubr.bf16.mxu0 0
        %1976 = vmatmul.mubr.bf16.gmra.mrb[0].mxu0 %v1856
        %v1977 = vpop.f32.mrb[0].mxu0
        %v1978 = vadd.f32 0.0, %v1977
        %v1979 = vpop.f32.mrb[0].mxu0
        %v1980 = vpop.f32.mrb[0].mxu0
        %v1981 = vadd.f32 0.0, %v1980
        %v1982 = vpop.f32.mrb[0].mxu0
        %1983 = vmatprep.mubr.bf16.mxu0 0
        %1984 = vmatmul.mubr.bf16.gmra.mrb[0].mxu0 %v1859
        %v1985 = vpop.f32.mrb[0].mxu0
        %v1986 = vadd.f32 0.0, %v1985
        %v1987 = vpop.f32.mrb[0].mxu0
        %v1988 = vpop.f32.mrb[0].mxu0
        %v1989 = vadd.f32 0.0, %v1988
        %v1990 = vpop.f32.mrb[0].mxu0
        %1991 = vmatprep.mubr.bf16.mxu0 0
        %1992 = vmatmul.mubr.bf16.gmra.mrb[0].mxu0 %v1862
        %v1993 = vpop.f32.mrb[0].mxu0
        %v1994 = vadd.f32 0.0, %v1993
        %v1995 = vpop.f32.mrb[0].mxu0
        %v1996 = vpop.f32.mrb[0].mxu0
        %v1997 = vadd.f32 0.0, %v1996
        %v1998 = vpop.f32.mrb[0].mxu0
        %1999 = vmatprep.mubr.bf16.mxu0 0
        %2000 = vmatmul.mubr.bf16.gmra.mrb[0].mxu0 %v1865
        %v2001 = vpop.f32.mrb[0].mxu0
        %v2002 = vadd.f32 0.0, %v2001
        %v2003 = vpop.f32.mrb[0].mxu0
        %v2004 = vpop.f32.mrb[0].mxu0
        %v2005 = vadd.f32 0.0, %v2004
        %v2006 = vpop.f32.mrb[0].mxu0
        %2007 = vmatprep.mubr.bf16.mxu0 0
        %2008 = vmatmul.mubr.bf16.gmra.mrb[0].mxu0 %v1868
        %v2009 = vpop.f32.mrb[0].mxu0
        %v2010 = vadd.f32 0.0, %v2009
        %v2011 = vpop.f32.mrb[0].mxu0
        %v2012 = vpop.f32.mrb[0].mxu0
        %v2013 = vadd.f32 0.0, %v2012
        %v2014 = vpop.f32.mrb[0].mxu0
        %2015 = vmatprep.mubr.bf16.mxu0 0
        %2016 = vmatmul.mubr.bf16.gmra.mrb[0].mxu0 %v1871
        %v2017 = vpop.f32.mrb[0].mxu0
        %v2018 = vadd.f32 0.0, %v2017
        %v2019 = vpop.f32.mrb[0].mxu0
        %v2020 = vpop.f32.mrb[0].mxu0
        %v2021 = vadd.f32 0.0, %v2020
        %v2022 = vpop.f32.mrb[0].mxu0
        %2023 = vmatprep.mubr.bf16.mxu0 0
        %2024 = vmatmul.mubr.bf16.gmra.mrb[0].mxu0 %v1874
        %v2025 = vpop.f32.mrb[0].mxu0
        %v2026 = vadd.f32 0.0, %v2025
        %v2027 = vpop.f32.mrb[0].mxu0
        %v2028 = vpop.f32.mrb[0].mxu0
        %v2029 = vadd.f32 0.0, %v2028
        %v2030 = vpop.f32.mrb[0].mxu0
        %2031 = vmatprep.mubr.bf16.mxu0 0
        %2032 = vmatmul.mubr.bf16.gmra.mrb[0].mxu0 %v1877
        %v2033 = vpop.f32.mrb[0].mxu0
        %v2034 = vadd.f32 0.0, %v2033
        %v2035 = vpop.f32.mrb[0].mxu0
        %v2036 = vpop.f32.mrb[0].mxu0
        %v2037 = vadd.f32 0.0, %v2036
        %v2038 = vpop.f32.mrb[0].mxu0
        %2039 = vdwg.mxu0
        %v2040 = vadd.f32 %v1669, %v1914
        %v2041 = vadd.f32 %v1670, %v1917
        %v2042 = vadd.f32 %v1671, %v1922
        %v2043 = vadd.f32 %v1672, %v1925
        %v2044 = vadd.f32 %v1673, %v1930
        %v2045 = vadd.f32 %v1674, %v1933
        %v2046 = vadd.f32 %v1675, %v1938
        %v2047 = vadd.f32 %v1676, %v1941
        %v2048 = vadd.f32 %v1677, %v1946
        %v2049 = vadd.f32 %v1678, %v1949
        %v2050 = vadd.f32 %v1679, %v1954
        %v2051 = vadd.f32 %v1680, %v1957
        %v2052 = vadd.f32 %v1681, %v1962
        %v2053 = vadd.f32 %v1682, %v1965
        %v2054 = vadd.f32 %v1683, %v1970
        %v2055 = vadd.f32 %v1684, %v1973
        %v2056 = vadd.f32 %v1685, %v1978
        %v2057 = vadd.f32 %v1686, %v1981
        %v2058 = vadd.f32 %v1687, %v1986
        %v2059 = vadd.f32 %v1688, %v1989
        %v2060 = vadd.f32 %v1689, %v1994
        %v2061 = vadd.f32 %v1690, %v1997
        %v2062 = vadd.f32 %v1691, %v2002
        %v2063 = vadd.f32 %v1692, %v2005
        %v2064 = vadd.f32 %v1693, %v2010
        %v2065 = vadd.f32 %v1694, %v2013
        %v2066 = vadd.f32 %v1695, %v2018
        %v2067 = vadd.f32 %v1696, %v2021
        %v2068 = vadd.f32 %v1697, %v2026
        %v2069 = vadd.f32 %v1698, %v2029
        %v2070 = vadd.f32 %v1699, %v2034
        %v2071 = vadd.f32 %v1700, %v2037
        %v2072 = vld [vmem:[%s1701] sm:$0xf]
        %v2073 = vld [vmem:[%s1701 + $0x4] sm:$0xf]
        %v2074 = vld [vmem:[%s1701 + $0x8] sm:$0x1]
        %v2075 = vld [vmem:[%s1701 + $0xc] sm:$0xf]
        %v2076 = vld [vmem:[%s1701 + $0x10] sm:$0xf]
        %v2077 = vld [vmem:[%s1701 + $0x14] sm:$0x1]
        %v2078 = vld [vmem:[%s1701 + $0x18] sm:$0xf]
        %v2079 = vld [vmem:[%s1701 + $0x1c] sm:$0xf]
        %v2080 = vld [vmem:[%s1701 + $0x20] sm:$0x1]
        %v2081 = vld [vmem:[%s1701 + $0x24] sm:$0xf]
        %v2082 = vld [vmem:[%s1701 + $0x28] sm:$0xf]
        %v2083 = vld [vmem:[%s1701 + $0x2c] sm:$0x1]
        %v2084 = vld [vmem:[%s1701 + $0x30] sm:$0xf]
        %v2085 = vld [vmem:[%s1701 + $0x34] sm:$0xf]
        %v2086 = vld [vmem:[%s1701 + $0x38] sm:$0x1]
        %v2087 = vld [vmem:[%s1701 + $0x3c] sm:$0xf]
        %v2088 = vld [vmem:[%s1701 + $0x40] sm:$0xf]
        %v2089 = vld [vmem:[%s1701 + $0x44] sm:$0x1]
        %v2090 = vld [vmem:[%s1701 + $0x48] sm:$0xf]
        %v2091 = vld [vmem:[%s1701 + $0x4c] sm:$0xf]
        %v2092 = vld [vmem:[%s1701 + $0x50] sm:$0x1]
        %v2093 = vld [vmem:[%s1701 + $0x54] sm:$0xf]
        %v2094 = vld [vmem:[%s1701 + $0x58] sm:$0xf]
        %v2095 = vld [vmem:[%s1701 + $0x5c] sm:$0x1]
        %v2096 = vld [vmem:[%s1701 + $0x60] sm:$0xf]
        %v2097 = vld [vmem:[%s1701 + $0x64] sm:$0xf]
        %v2098 = vld [vmem:[%s1701 + $0x68] sm:$0x1]
        %v2099 = vld [vmem:[%s1701 + $0x6c] sm:$0xf]
        %v2100 = vld [vmem:[%s1701 + $0x70] sm:$0xf]
        %v2101 = vld [vmem:[%s1701 + $0x74] sm:$0x1]
        %v2102 = vld [vmem:[%s1701 + $0x78] sm:$0xf]
        %v2103 = vld [vmem:[%s1701 + $0x7c] sm:$0xf]
        %v2104 = vld [vmem:[%s1701 + $0x80] sm:$0x1]
        %v2105 = vld [vmem:[%s1701 + $0x84] sm:$0xf]
        %v2106 = vld [vmem:[%s1701 + $0x88] sm:$0xf]
        %v2107 = vld [vmem:[%s1701 + $0x8c] sm:$0x1]
        %v2108 = vld [vmem:[%s1701 + $0x90] sm:$0xf]
        %v2109 = vld [vmem:[%s1701 + $0x94] sm:$0xf]
        %v2110 = vld [vmem:[%s1701 + $0x98] sm:$0x1]
        %v2111 = vld [vmem:[%s1701 + $0x9c] sm:$0xf]
        %v2112 = vld [vmem:[%s1701 + $0xa0] sm:$0xf]
        %v2113 = vld [vmem:[%s1701 + $0xa4] sm:$0x1]
        %v2114 = vld [vmem:[%s1701 + $0xa8] sm:$0xf]
        %v2115 = vld [vmem:[%s1701 + $0xac] sm:$0xf]
        %v2116 = vld [vmem:[%s1701 + $0xb0] sm:$0x1]
        %v2117 = vld [vmem:[%s1701 + $0xb4] sm:$0xf]
        %v2118 = vld [vmem:[%s1701 + $0xb8] sm:$0xf]
        %v2119 = vld [vmem:[%s1701 + $0xbc] sm:$0x1]
        %v2121 = vshrl.u32 %v2072, 16
        %v2123 = vrot.slane %v2121, 4
        %v2124 = vshll.u32 %v2072, 16
        %v2126 = vrot.slane %v2124, 5
        %v2127 = vor.u32 %v2123, %v2126
        %v2128 = vrot.slane %v2127, 4
        %v2130 = vshll.u32 %v2073, 16
        %v2132 = vrot.slane %v2130, 5
        %v2133 = vsel %vm271, %v2128, %v2132
        %v2134 = vshrl.u32 %v2073, 16
        %v2136 = vrot.slane %v2134, 4
        %v2137 = vor.u32 %v2136, %v2132
        %v2138 = vrot.slane %v2137, 4
        %v2140 = vshll.u32 %v2074, 16
        %v2142 = vrot.slane %v2140, 5
        %v2143 = vsel %vm271, %v2138, %v2142
        %v2145 = vshrl.u32 %v2075, 16
        %v2147 = vrot.slane %v2145, 4
        %v2148 = vshll.u32 %v2075, 16
        %v2150 = vrot.slane %v2148, 5
        %v2151 = vor.u32 %v2147, %v2150
        %v2152 = vrot.slane %v2151, 4
        %v2154 = vshll.u32 %v2076, 16
        %v2156 = vrot.slane %v2154, 5
        %v2157 = vsel %vm271, %v2152, %v2156
        %v2158 = vshrl.u32 %v2076, 16
        %v2160 = vrot.slane %v2158, 4
        %v2161 = vor.u32 %v2160, %v2156
        %v2162 = vrot.slane %v2161, 4
        %v2164 = vshll.u32 %v2077, 16
        %v2166 = vrot.slane %v2164, 5
        %v2167 = vsel %vm271, %v2162, %v2166
        %v2169 = vshrl.u32 %v2078, 16
        %v2171 = vrot.slane %v2169, 4
        %v2172 = vshll.u32 %v2078, 16
        %v2174 = vrot.slane %v2172, 5
        %v2175 = vor.u32 %v2171, %v2174
        %v2176 = vrot.slane %v2175, 4
        %v2178 = vshll.u32 %v2079, 16
        %v2180 = vrot.slane %v2178, 5
        %v2181 = vsel %vm271, %v2176, %v2180
        %v2182 = vshrl.u32 %v2079, 16
        %v2184 = vrot.slane %v2182, 4
        %v2185 = vor.u32 %v2184, %v2180
        %v2186 = vrot.slane %v2185, 4
        %v2188 = vshll.u32 %v2080, 16
        %v2190 = vrot.slane %v2188, 5
        %v2191 = vsel %vm271, %v2186, %v2190
        %v2193 = vshrl.u32 %v2081, 16
        %v2195 = vrot.slane %v2193, 4
        %v2196 = vshll.u32 %v2081, 16
        %v2198 = vrot.slane %v2196, 5
        %v2199 = vor.u32 %v2195, %v2198
        %v2200 = vrot.slane %v2199, 4
        %v2202 = vshll.u32 %v2082, 16
        %v2204 = vrot.slane %v2202, 5
        %v2205 = vsel %vm271, %v2200, %v2204
        %v2206 = vshrl.u32 %v2082, 16
        %v2208 = vrot.slane %v2206, 4
        %v2209 = vor.u32 %v2208, %v2204
        %v2210 = vrot.slane %v2209, 4
        %v2212 = vshll.u32 %v2083, 16
        %v2214 = vrot.slane %v2212, 5
        %v2215 = vsel %vm271, %v2210, %v2214
        %v2217 = vshrl.u32 %v2084, 16
        %v2219 = vrot.slane %v2217, 4
        %v2220 = vshll.u32 %v2084, 16
        %v2222 = vrot.slane %v2220, 5
        %v2223 = vor.u32 %v2219, %v2222
        %v2224 = vrot.slane %v2223, 4
        %v2226 = vshll.u32 %v2085, 16
        %v2228 = vrot.slane %v2226, 5
        %v2229 = vsel %vm271, %v2224, %v2228
        %v2230 = vshrl.u32 %v2085, 16
        %v2232 = vrot.slane %v2230, 4
        %v2233 = vor.u32 %v2232, %v2228
        %v2234 = vrot.slane %v2233, 4
        %v2236 = vshll.u32 %v2086, 16
        %v2238 = vrot.slane %v2236, 5
        %v2239 = vsel %vm271, %v2234, %v2238
        %v2241 = vshrl.u32 %v2087, 16
        %v2243 = vrot.slane %v2241, 4
        %v2244 = vshll.u32 %v2087, 16
        %v2246 = vrot.slane %v2244, 5
        %v2247 = vor.u32 %v2243, %v2246
        %v2248 = vrot.slane %v2247, 4
        %v2250 = vshll.u32 %v2088, 16
        %v2252 = vrot.slane %v2250, 5
        %v2253 = vsel %vm271, %v2248, %v2252
        %v2254 = vshrl.u32 %v2088, 16
        %v2256 = vrot.slane %v2254, 4
        %v2257 = vor.u32 %v2256, %v2252
        %v2258 = vrot.slane %v2257, 4
        %v2260 = vshll.u32 %v2089, 16
        %v2262 = vrot.slane %v2260, 5
        %v2263 = vsel %vm271, %v2258, %v2262
        %v2265 = vshrl.u32 %v2090, 16
        %v2267 = vrot.slane %v2265, 4
        %v2268 = vshll.u32 %v2090, 16
        %v2270 = vrot.slane %v2268, 5
        %v2271 = vor.u32 %v2267, %v2270
        %v2272 = vrot.slane %v2271, 4
        %v2274 = vshll.u32 %v2091, 16
        %v2276 = vrot.slane %v2274, 5
        %v2277 = vsel %vm271, %v2272, %v2276
        %v2278 = vshrl.u32 %v2091, 16
        %v2280 = vrot.slane %v2278, 4
        %v2281 = vor.u32 %v2280, %v2276
        %v2282 = vrot.slane %v2281, 4
        %v2284 = vshll.u32 %v2092, 16
        %v2286 = vrot.slane %v2284, 5
        %v2287 = vsel %vm271, %v2282, %v2286
        %v2289 = vshrl.u32 %v2093, 16
        %v2291 = vrot.slane %v2289, 4
        %v2292 = vshll.u32 %v2093, 16
        %v2294 = vrot.slane %v2292, 5
        %v2295 = vor.u32 %v2291, %v2294
        %v2296 = vrot.slane %v2295, 4
        %v2298 = vshll.u32 %v2094, 16
        %v2300 = vrot.slane %v2298, 5
        %v2301 = vsel %vm271, %v2296, %v2300
        %v2302 = vshrl.u32 %v2094, 16
        %v2304 = vrot.slane %v2302, 4
        %v2305 = vor.u32 %v2304, %v2300
        %v2306 = vrot.slane %v2305, 4
        %v2308 = vshll.u32 %v2095, 16
        %v2310 = vrot.slane %v2308, 5
        %v2311 = vsel %vm271, %v2306, %v2310
        %v2313 = vshrl.u32 %v2096, 16
        %v2315 = vrot.slane %v2313, 4
        %v2316 = vshll.u32 %v2096, 16
        %v2318 = vrot.slane %v2316, 5
        %v2319 = vor.u32 %v2315, %v2318
        %v2320 = vrot.slane %v2319, 4
        %v2322 = vshll.u32 %v2097, 16
        %v2324 = vrot.slane %v2322, 5
        %v2325 = vsel %vm271, %v2320, %v2324
        %v2326 = vshrl.u32 %v2097, 16
        %v2328 = vrot.slane %v2326, 4
        %v2329 = vor.u32 %v2328, %v2324
        %v2330 = vrot.slane %v2329, 4
        %v2332 = vshll.u32 %v2098, 16
        %v2334 = vrot.slane %v2332, 5
        %v2335 = vsel %vm271, %v2330, %v2334
        %v2337 = vshrl.u32 %v2099, 16
        %v2339 = vrot.slane %v2337, 4
        %v2340 = vshll.u32 %v2099, 16
        %v2342 = vrot.slane %v2340, 5
        %v2343 = vor.u32 %v2339, %v2342
        %v2344 = vrot.slane %v2343, 4
        %v2346 = vshll.u32 %v2100, 16
        %v2348 = vrot.slane %v2346, 5
        %v2349 = vsel %vm271, %v2344, %v2348
        %v2350 = vshrl.u32 %v2100, 16
        %v2352 = vrot.slane %v2350, 4
        %v2353 = vor.u32 %v2352, %v2348
        %v2354 = vrot.slane %v2353, 4
        %v2356 = vshll.u32 %v2101, 16
        %v2358 = vrot.slane %v2356, 5
        %v2359 = vsel %vm271, %v2354, %v2358
        %v2361 = vshrl.u32 %v2102, 16
        %v2363 = vrot.slane %v2361, 4
        %v2364 = vshll.u32 %v2102, 16
        %v2366 = vrot.slane %v2364, 5
        %v2367 = vor.u32 %v2363, %v2366
        %v2368 = vrot.slane %v2367, 4
        %v2370 = vshll.u32 %v2103, 16
        %v2372 = vrot.slane %v2370, 5
        %v2373 = vsel %vm271, %v2368, %v2372
        %v2374 = vshrl.u32 %v2103, 16
        %v2376 = vrot.slane %v2374, 4
        %v2377 = vor.u32 %v2376, %v2372
        %v2378 = vrot.slane %v2377, 4
        %v2380 = vshll.u32 %v2104, 16
        %v2382 = vrot.slane %v2380, 5
        %v2383 = vsel %vm271, %v2378, %v2382
        %v2385 = vshrl.u32 %v2105, 16
        %v2387 = vrot.slane %v2385, 4
        %v2388 = vshll.u32 %v2105, 16
        %v2390 = vrot.slane %v2388, 5
        %v2391 = vor.u32 %v2387, %v2390
        %v2392 = vrot.slane %v2391, 4
        %v2394 = vshll.u32 %v2106, 16
        %v2396 = vrot.slane %v2394, 5
        %v2397 = vsel %vm271, %v2392, %v2396
        %v2398 = vshrl.u32 %v2106, 16
        %v2400 = vrot.slane %v2398, 4
        %v2401 = vor.u32 %v2400, %v2396
        %v2402 = vrot.slane %v2401, 4
        %v2404 = vshll.u32 %v2107, 16
        %v2406 = vrot.slane %v2404, 5
        %v2407 = vsel %vm271, %v2402, %v2406
        %v2409 = vshrl.u32 %v2108, 16
        %v2411 = vrot.slane %v2409, 4
        %v2412 = vshll.u32 %v2108, 16
        %v2414 = vrot.slane %v2412, 5
        %v2415 = vor.u32 %v2411, %v2414
        %v2416 = vrot.slane %v2415, 4
        %v2418 = vshll.u32 %v2109, 16
        %v2420 = vrot.slane %v2418, 5
        %v2421 = vsel %vm271, %v2416, %v2420
        %v2422 = vshrl.u32 %v2109, 16
        %v2424 = vrot.slane %v2422, 4
        %v2425 = vor.u32 %v2424, %v2420
        %v2426 = vrot.slane %v2425, 4
        %v2428 = vshll.u32 %v2110, 16
        %v2430 = vrot.slane %v2428, 5
        %v2431 = vsel %vm271, %v2426, %v2430
        %v2433 = vshrl.u32 %v2111, 16
        %v2435 = vrot.slane %v2433, 4
        %v2436 = vshll.u32 %v2111, 16
        %v2438 = vrot.slane %v2436, 5
        %v2439 = vor.u32 %v2435, %v2438
        %v2440 = vrot.slane %v2439, 4
        %v2442 = vshll.u32 %v2112, 16
        %v2444 = vrot.slane %v2442, 5
        %v2445 = vsel %vm271, %v2440, %v2444
        %v2446 = vshrl.u32 %v2112, 16
        %v2448 = vrot.slane %v2446, 4
        %v2449 = vor.u32 %v2448, %v2444
        %v2450 = vrot.slane %v2449, 4
        %v2452 = vshll.u32 %v2113, 16
        %v2454 = vrot.slane %v2452, 5
        %v2455 = vsel %vm271, %v2450, %v2454
        %v2457 = vshrl.u32 %v2114, 16
        %v2459 = vrot.slane %v2457, 4
        %v2460 = vshll.u32 %v2114, 16
        %v2462 = vrot.slane %v2460, 5
        %v2463 = vor.u32 %v2459, %v2462
        %v2464 = vrot.slane %v2463, 4
        %v2466 = vshll.u32 %v2115, 16
        %v2468 = vrot.slane %v2466, 5
        %v2469 = vsel %vm271, %v2464, %v2468
        %v2470 = vshrl.u32 %v2115, 16
        %v2472 = vrot.slane %v2470, 4
        %v2473 = vor.u32 %v2472, %v2468
        %v2474 = vrot.slane %v2473, 4
        %v2476 = vshll.u32 %v2116, 16
        %v2478 = vrot.slane %v2476, 5
        %v2479 = vsel %vm271, %v2474, %v2478
        %v2481 = vshrl.u32 %v2117, 16
        %v2483 = vrot.slane %v2481, 4
        %v2484 = vshll.u32 %v2117, 16
        %v2486 = vrot.slane %v2484, 5
        %v2487 = vor.u32 %v2483, %v2486
        %v2488 = vrot.slane %v2487, 4
        %v2490 = vshll.u32 %v2118, 16
        %v2492 = vrot.slane %v2490, 5
        %v2493 = vsel %vm271, %v2488, %v2492
        %v2494 = vshrl.u32 %v2118, 16
        %v2496 = vrot.slane %v2494, 4
        %v2497 = vor.u32 %v2496, %v2492
        %v2498 = vrot.slane %v2497, 4
        %v2500 = vshll.u32 %v2119, 16
        %v2502 = vrot.slane %v2500, 5
        %v2503 = vsel %vm271, %v2498, %v2502
        %s2536 = scalar_lea.vmem [#allocation5], 64
        %v2537 = vld [vmem:[%s2536] sm:$0xf]
        %v2538 = vld [vmem:[%s2536 + $0x4] sm:$0xf]
        %v2539 = vld [vmem:[%s2536 + $0x8] sm:$0xf]
        %v2540 = vld [vmem:[%s2536 + $0xc] sm:$0xf]
        %v2541 = vunpack.c.l.b16 %v2133
        %v2542 = vunpack.c.l.b16 %v2143
        %v2543 = vunpack.c.l.b16 %v2157
        %v2544 = vunpack.c.l.b16 %v2167
        %v2545 = vunpack.c.l.b16 %v2181
        %v2546 = vunpack.c.l.b16 %v2191
        %v2547 = vunpack.c.l.b16 %v2205
        %v2548 = vunpack.c.l.b16 %v2215
        %v2549 = vunpack.c.l.b16 %v2229
        %v2550 = vunpack.c.l.b16 %v2239
        %v2551 = vunpack.c.l.b16 %v2253
        %v2552 = vunpack.c.l.b16 %v2263
        %v2553 = vunpack.c.l.b16 %v2277
        %v2554 = vunpack.c.l.b16 %v2287
        %v2555 = vunpack.c.l.b16 %v2301
        %v2556 = vunpack.c.l.b16 %v2311
        %v2557 = vunpack.c.l.b16 %v2325
        %v2558 = vunpack.c.l.b16 %v2335
        %v2559 = vunpack.c.l.b16 %v2349
        %v2560 = vunpack.c.l.b16 %v2359
        %v2561 = vunpack.c.l.b16 %v2373
        %v2562 = vunpack.c.l.b16 %v2383
        %v2563 = vunpack.c.l.b16 %v2397
        %v2564 = vunpack.c.l.b16 %v2407
        %v2565 = vunpack.c.l.b16 %v2421
        %v2566 = vunpack.c.l.b16 %v2431
        %v2567 = vunpack.c.l.b16 %v2445
        %v2568 = vunpack.c.l.b16 %v2455
        %v2569 = vunpack.c.l.b16 %v2469
        %v2570 = vunpack.c.l.b16 %v2479
        %v2571 = vunpack.c.l.b16 %v2493
        %v2572 = vunpack.c.l.b16 %v2503
        %v2573 = vpack.c.b16 %v2542, %v2541
        %v2574 = vpack.c.b16 %v2544, %v2543
        %v2575 = vpack.c.b16 %v2546, %v2545
        %v2576 = vpack.c.b16 %v2548, %v2547
        %v2577 = vpack.c.b16 %v2550, %v2549
        %v2578 = vpack.c.b16 %v2552, %v2551
        %v2579 = vpack.c.b16 %v2554, %v2553
        %v2580 = vpack.c.b16 %v2556, %v2555
        %v2581 = vpack.c.b16 %v2558, %v2557
        %v2582 = vpack.c.b16 %v2560, %v2559
        %v2583 = vpack.c.b16 %v2562, %v2561
        %v2584 = vpack.c.b16 %v2564, %v2563
        %v2585 = vpack.c.b16 %v2566, %v2565
        %v2586 = vpack.c.b16 %v2568, %v2567
        %v2587 = vpack.c.b16 %v2570, %v2569
        %v2588 = vpack.c.b16 %v2572, %v2571
        %v2593 = vunpack.c.l.b16 %v2537
        %v2594 = vunpack.c.l.b16 %v2538
        %v2595 = vunpack.c.l.b16 %v2539
        %v2596 = vunpack.c.l.b16 %v2540
        %v2597 = vpack.c.b16 %v2594, %v2593
        %v2598 = vpack.c.b16 %v2596, %v2595
        %v2602 = vsel %vm721, %v2573, 0
        %v2605 = vsel %vm721, %v2574, 0
        %v2608 = vsel %vm721, %v2575, 0
        %v2611 = vsel %vm721, %v2576, 0
        %v2614 = vsel %vm721, %v2577, 0
        %v2617 = vsel %vm721, %v2578, 0
        %v2620 = vsel %vm721, %v2579, 0
        %v2623 = vsel %vm721, %v2580, 0
        %v2626 = vsel %vm721, %v2581, 0
        %v2629 = vsel %vm721, %v2582, 0
        %v2632 = vsel %vm721, %v2583, 0
        %v2635 = vsel %vm721, %v2584, 0
        %v2638 = vsel %vm721, %v2585, 0
        %v2641 = vsel %vm721, %v2586, 0
        %v2644 = vsel %vm721, %v2587, 0
        %v2647 = vsel %vm721, %v2588, 0
        %2649 = vmatprep.subr.bf16.mxu0 0
        %2650 = vmatpush1.bf16.msra.mxu0 %v2597
        %2651 = vmatprep.subr.bf16.mxu0 0
        %2652 = vmatpush1.bf16.msra.mxu0 %v2598
        %2653 = vmatprep.subr.bf16.mxu0 0
        %2654 = vmatpush1.bf16.msra.mxu0 0
        %2655 = vmatprep.subr.bf16.mxu0 0
        %2656 = vmatpush1.bf16.msra.mxu0 0
        %2657 = vmatprep.subr.bf16.mxu0 0
        %2658 = vmatpush1.bf16.msra.mxu0 0
        %2659 = vmatprep.subr.bf16.mxu0 0
        %2660 = vmatpush1.bf16.msra.mxu0 0
        %2661 = vmatprep.subr.bf16.mxu0 0
        %2662 = vmatpush1.bf16.msra.mxu0 0
        %2663 = vmatprep.subr.bf16.mxu0 0
        %2664 = vmatpush1.bf16.msra.mxu0 0
        %2665 = vmatprep.subr.bf16.mxu0 0
        %2666 = vmatpush1.bf16.msra.mxu0 0
        %2667 = vmatprep.subr.bf16.mxu0 0
        %2668 = vmatpush1.bf16.msra.mxu0 0
        %2669 = vmatprep.subr.bf16.mxu0 0
        %2670 = vmatpush1.bf16.msra.mxu0 0
        %2671 = vmatprep.subr.bf16.mxu0 0
        %2672 = vmatpush1.bf16.msra.mxu0 0
        %2673 = vmatprep.subr.bf16.mxu0 0
        %2674 = vmatpush1.bf16.msra.mxu0 0
        %2675 = vmatprep.subr.bf16.mxu0 0
        %2676 = vmatpush1.bf16.msra.mxu0 0
        %2677 = vmatprep.subr.bf16.mxu0 0
        %2678 = vmatpush1.bf16.msra.mxu0 0
        %2679 = vmatprep.subr.bf16.mxu0 0
        %2680 = vmatpush1.bf16.msra.mxu0 0
        %2681 = vmatprep.mubr.bf16.mxu0 0
        %2682 = vmatmul.mubr.bf16.gmra.mrb[0].mxu0 %v2602
        %v2683 = vpop.f32.mrb[0].mxu0
        %v2684 = vadd.f32 0.0, %v2683
        %v2685 = vpop.f32.mrb[0].mxu0
        %v2686 = vpop.f32.mrb[0].mxu0
        %v2687 = vadd.f32 0.0, %v2686
        %v2688 = vpop.f32.mrb[0].mxu0
        %2689 = vmatprep.mubr.bf16.mxu0 0
        %2690 = vmatmul.mubr.bf16.gmra.mrb[0].mxu0 %v2605
        %v2691 = vpop.f32.mrb[0].mxu0
        %v2692 = vadd.f32 0.0, %v2691
        %v2693 = vpop.f32.mrb[0].mxu0
        %v2694 = vpop.f32.mrb[0].mxu0
        %v2695 = vadd.f32 0.0, %v2694
        %v2696 = vpop.f32.mrb[0].mxu0
        %2697 = vmatprep.mubr.bf16.mxu0 0
        %2698 = vmatmul.mubr.bf16.gmra.mrb[0].mxu0 %v2608
        %v2699 = vpop.f32.mrb[0].mxu0
        %v2700 = vadd.f32 0.0, %v2699
        %v2701 = vpop.f32.mrb[0].mxu0
        %v2702 = vpop.f32.mrb[0].mxu0
        %v2703 = vadd.f32 0.0, %v2702
        %v2704 = vpop.f32.mrb[0].mxu0
        %2705 = vmatprep.mubr.bf16.mxu0 0
        %2706 = vmatmul.mubr.bf16.gmra.mrb[0].mxu0 %v2611
        %v2707 = vpop.f32.mrb[0].mxu0
        %v2708 = vadd.f32 0.0, %v2707
        %v2709 = vpop.f32.mrb[0].mxu0
        %v2710 = vpop.f32.mrb[0].mxu0
        %v2711 = vadd.f32 0.0, %v2710
        %v2712 = vpop.f32.mrb[0].mxu0
        %2713 = vmatprep.mubr.bf16.mxu0 0
        %2714 = vmatmul.mubr.bf16.gmra.mrb[0].mxu0 %v2614
        %v2715 = vpop.f32.mrb[0].mxu0
        %v2716 = vadd.f32 0.0, %v2715
        %v2717 = vpop.f32.mrb[0].mxu0
        %v2718 = vpop.f32.mrb[0].mxu0
        %v2719 = vadd.f32 0.0, %v2718
        %v2720 = vpop.f32.mrb[0].mxu0
        %2721 = vmatprep.mubr.bf16.mxu0 0
        %2722 = vmatmul.mubr.bf16.gmra.mrb[0].mxu0 %v2617
        %v2723 = vpop.f32.mrb[0].mxu0
        %v2724 = vadd.f32 0.0, %v2723
        %v2725 = vpop.f32.mrb[0].mxu0
        %v2726 = vpop.f32.mrb[0].mxu0
        %v2727 = vadd.f32 0.0, %v2726
        %v2728 = vpop.f32.mrb[0].mxu0
        %2729 = vmatprep.mubr.bf16.mxu0 0
        %2730 = vmatmul.mubr.bf16.gmra.mrb[0].mxu0 %v2620
        %v2731 = vpop.f32.mrb[0].mxu0
        %v2732 = vadd.f32 0.0, %v2731
        %v2733 = vpop.f32.mrb[0].mxu0
        %v2734 = vpop.f32.mrb[0].mxu0
        %v2735 = vadd.f32 0.0, %v2734
        %v2736 = vpop.f32.mrb[0].mxu0
        %2737 = vmatprep.mubr.bf16.mxu0 0
        %2738 = vmatmul.mubr.bf16.gmra.mrb[0].mxu0 %v2623
        %v2739 = vpop.f32.mrb[0].mxu0
        %v2740 = vadd.f32 0.0, %v2739
        %v2741 = vpop.f32.mrb[0].mxu0
        %v2742 = vpop.f32.mrb[0].mxu0
        %v2743 = vadd.f32 0.0, %v2742
        %v2744 = vpop.f32.mrb[0].mxu0
        %2745 = vmatprep.mubr.bf16.mxu0 0
        %2746 = vmatmul.mubr.bf16.gmra.mrb[0].mxu0 %v2626
        %v2747 = vpop.f32.mrb[0].mxu0
        %v2748 = vadd.f32 0.0, %v2747
        %v2749 = vpop.f32.mrb[0].mxu0
        %v2750 = vpop.f32.mrb[0].mxu0
        %v2751 = vadd.f32 0.0, %v2750
        %v2752 = vpop.f32.mrb[0].mxu0
        %2753 = vmatprep.mubr.bf16.mxu0 0
        %2754 = vmatmul.mubr.bf16.gmra.mrb[0].mxu0 %v2629
        %v2755 = vpop.f32.mrb[0].mxu0
        %v2756 = vadd.f32 0.0, %v2755
        %v2757 = vpop.f32.mrb[0].mxu0
        %v2758 = vpop.f32.mrb[0].mxu0
        %v2759 = vadd.f32 0.0, %v2758
        %v2760 = vpop.f32.mrb[0].mxu0
        %2761 = vmatprep.mubr.bf16.mxu0 0
        %2762 = vmatmul.mubr.bf16.gmra.mrb[0].mxu0 %v2632
        %v2763 = vpop.f32.mrb[0].mxu0
        %v2764 = vadd.f32 0.0, %v2763
        %v2765 = vpop.f32.mrb[0].mxu0
        %v2766 = vpop.f32.mrb[0].mxu0
        %v2767 = vadd.f32 0.0, %v2766
        %v2768 = vpop.f32.mrb[0].mxu0
        %2769 = vmatprep.mubr.bf16.mxu0 0
        %2770 = vmatmul.mubr.bf16.gmra.mrb[0].mxu0 %v2635
        %v2771 = vpop.f32.mrb[0].mxu0
        %v2772 = vadd.f32 0.0, %v2771
        %v2773 = vpop.f32.mrb[0].mxu0
        %v2774 = vpop.f32.mrb[0].mxu0
        %v2775 = vadd.f32 0.0, %v2774
        %v2776 = vpop.f32.mrb[0].mxu0
        %2777 = vmatprep.mubr.bf16.mxu0 0
        %2778 = vmatmul.mubr.bf16.gmra.mrb[0].mxu0 %v2638
        %v2779 = vpop.f32.mrb[0].mxu0
        %v2780 = vadd.f32 0.0, %v2779
        %v2781 = vpop.f32.mrb[0].mxu0
        %v2782 = vpop.f32.mrb[0].mxu0
        %v2783 = vadd.f32 0.0, %v2782
        %v2784 = vpop.f32.mrb[0].mxu0
        %2785 = vmatprep.mubr.bf16.mxu0 0
        %2786 = vmatmul.mubr.bf16.gmra.mrb[0].mxu0 %v2641
        %v2787 = vpop.f32.mrb[0].mxu0
        %v2788 = vadd.f32 0.0, %v2787
        %v2789 = vpop.f32.mrb[0].mxu0
        %v2790 = vpop.f32.mrb[0].mxu0
        %v2791 = vadd.f32 0.0, %v2790
        %v2792 = vpop.f32.mrb[0].mxu0
        %2793 = vmatprep.mubr.bf16.mxu0 0
        %2794 = vmatmul.mubr.bf16.gmra.mrb[0].mxu0 %v2644
        %v2795 = vpop.f32.mrb[0].mxu0
        %v2796 = vadd.f32 0.0, %v2795
        %v2797 = vpop.f32.mrb[0].mxu0
        %v2798 = vpop.f32.mrb[0].mxu0
        %v2799 = vadd.f32 0.0, %v2798
        %v2800 = vpop.f32.mrb[0].mxu0
        %2801 = vmatprep.mubr.bf16.mxu0 0
        %2802 = vmatmul.mubr.bf16.gmra.mrb[0].mxu0 %v2647
        %v2803 = vpop.f32.mrb[0].mxu0
        %v2804 = vadd.f32 0.0, %v2803
        %v2805 = vpop.f32.mrb[0].mxu0
        %v2806 = vpop.f32.mrb[0].mxu0
        %v2807 = vadd.f32 0.0, %v2806
        %v2808 = vpop.f32.mrb[0].mxu0
        %2809 = vdwg.mxu0
        %v2810 = vadd.f32 %v2040, %v2684
        %v2811 = vadd.f32 %v2041, %v2687
        %v2812 = vadd.f32 %v2042, %v2692
        %v2813 = vadd.f32 %v2043, %v2695
        %v2814 = vadd.f32 %v2044, %v2700
        %v2815 = vadd.f32 %v2045, %v2703
        %v2816 = vadd.f32 %v2046, %v2708
        %v2817 = vadd.f32 %v2047, %v2711
        %v2818 = vadd.f32 %v2048, %v2716
        %v2819 = vadd.f32 %v2049, %v2719
        %v2820 = vadd.f32 %v2050, %v2724
        %v2821 = vadd.f32 %v2051, %v2727
        %v2822 = vadd.f32 %v2052, %v2732
        %v2823 = vadd.f32 %v2053, %v2735
        %v2824 = vadd.f32 %v2054, %v2740
        %v2825 = vadd.f32 %v2055, %v2743
        %v2826 = vadd.f32 %v2056, %v2748
        %v2827 = vadd.f32 %v2057, %v2751
        %v2828 = vadd.f32 %v2058, %v2756
        %v2829 = vadd.f32 %v2059, %v2759
        %v2830 = vadd.f32 %v2060, %v2764
        %v2831 = vadd.f32 %v2061, %v2767
        %v2832 = vadd.f32 %v2062, %v2772
        %v2833 = vadd.f32 %v2063, %v2775
        %v2834 = vadd.f32 %v2064, %v2780
        %v2835 = vadd.f32 %v2065, %v2783
        %v2836 = vadd.f32 %v2066, %v2788
        %v2837 = vadd.f32 %v2067, %v2791
        %v2838 = vadd.f32 %v2068, %v2796
        %v2839 = vadd.f32 %v2069, %v2799
        %v2840 = vadd.f32 %v2070, %v2804
        %v2841 = vadd.f32 %v2071, %v2807
        %v2842 = vld [vmem:[%s1701] sm:$0xe]
        %v2843 = vld [vmem:[%s1701 + $0xc] sm:$0xe]
        %v2844 = vld [vmem:[%s1701 + $0x18] sm:$0xe]
        %v2845 = vld [vmem:[%s1701 + $0x24] sm:$0xe]
        %v2846 = vld [vmem:[%s1701 + $0x30] sm:$0xe]
        %v2847 = vld [vmem:[%s1701 + $0x3c] sm:$0xe]
        %v2848 = vld [vmem:[%s1701 + $0x48] sm:$0xe]
        %v2849 = vld [vmem:[%s1701 + $0x54] sm:$0xe]
        %v2850 = vld [vmem:[%s1701 + $0x60] sm:$0xe]
        %v2851 = vld [vmem:[%s1701 + $0x6c] sm:$0xe]
        %v2852 = vld [vmem:[%s1701 + $0x78] sm:$0xe]
        %v2853 = vld [vmem:[%s1701 + $0x84] sm:$0xe]
        %v2854 = vld [vmem:[%s1701 + $0x90] sm:$0xe]
        %v2855 = vld [vmem:[%s1701 + $0x9c] sm:$0xe]
        %v2856 = vld [vmem:[%s1701 + $0xa8] sm:$0xe]
        %v2857 = vld [vmem:[%s1701 + $0xb4] sm:$0xe]
        %v2906 = vrot.slane %v2842, 5
        %v2907 = vrot.slane %v2906, 4
        %v2908 = vrot.slane %v2073, 5
        %v2909 = vsel %vm1282, %v2907, %v2908
        %v2910 = vrot.slane %v2908, 4
        %v2911 = vrot.slane %v2074, 5
        %v2912 = vsel %vm1282, %v2910, %v2911
        %v2913 = vrot.slane %v2843, 5
        %v2914 = vrot.slane %v2913, 4
        %v2915 = vrot.slane %v2076, 5
        %v2916 = vsel %vm1282, %v2914, %v2915
        %v2917 = vrot.slane %v2915, 4
        %v2918 = vrot.slane %v2077, 5
        %v2919 = vsel %vm1282, %v2917, %v2918
        %v2920 = vrot.slane %v2844, 5
        %v2921 = vrot.slane %v2920, 4
        %v2922 = vrot.slane %v2079, 5
        %v2923 = vsel %vm1282, %v2921, %v2922
        %v2924 = vrot.slane %v2922, 4
        %v2925 = vrot.slane %v2080, 5
        %v2926 = vsel %vm1282, %v2924, %v2925
        %v2927 = vrot.slane %v2845, 5
        %v2928 = vrot.slane %v2927, 4
        %v2929 = vrot.slane %v2082, 5
        %v2930 = vsel %vm1282, %v2928, %v2929
        %v2931 = vrot.slane %v2929, 4
        %v2932 = vrot.slane %v2083, 5
        %v2933 = vsel %vm1282, %v2931, %v2932
        %v2934 = vrot.slane %v2846, 5
        %v2935 = vrot.slane %v2934, 4
        %v2936 = vrot.slane %v2085, 5
        %v2937 = vsel %vm1282, %v2935, %v2936
        %v2938 = vrot.slane %v2936, 4
        %v2939 = vrot.slane %v2086, 5
        %v2940 = vsel %vm1282, %v2938, %v2939
        %v2941 = vrot.slane %v2847, 5
        %v2942 = vrot.slane %v2941, 4
        %v2943 = vrot.slane %v2088, 5
        %v2944 = vsel %vm1282, %v2942, %v2943
        %v2945 = vrot.slane %v2943, 4
        %v2946 = vrot.slane %v2089, 5
        %v2947 = vsel %vm1282, %v2945, %v2946
        %v2948 = vrot.slane %v2848, 5
        %v2949 = vrot.slane %v2948, 4
        %v2950 = vrot.slane %v2091, 5
        %v2951 = vsel %vm1282, %v2949, %v2950
        %v2952 = vrot.slane %v2950, 4
        %v2953 = vrot.slane %v2092, 5
        %v2954 = vsel %vm1282, %v2952, %v2953
        %v2955 = vrot.slane %v2849, 5
        %v2956 = vrot.slane %v2955, 4
        %v2957 = vrot.slane %v2094, 5
        %v2958 = vsel %vm1282, %v2956, %v2957
        %v2959 = vrot.slane %v2957, 4
        %v2960 = vrot.slane %v2095, 5
        %v2961 = vsel %vm1282, %v2959, %v2960
        %v2962 = vrot.slane %v2850, 5
        %v2963 = vrot.slane %v2962, 4
        %v2964 = vrot.slane %v2097, 5
        %v2965 = vsel %vm1282, %v2963, %v2964
        %v2966 = vrot.slane %v2964, 4
        %v2967 = vrot.slane %v2098, 5
        %v2968 = vsel %vm1282, %v2966, %v2967
        %v2969 = vrot.slane %v2851, 5
        %v2970 = vrot.slane %v2969, 4
        %v2971 = vrot.slane %v2100, 5
        %v2972 = vsel %vm1282, %v2970, %v2971
        %v2973 = vrot.slane %v2971, 4
        %v2974 = vrot.slane %v2101, 5
        %v2975 = vsel %vm1282, %v2973, %v2974
        %v2976 = vrot.slane %v2852, 5
        %v2977 = vrot.slane %v2976, 4
        %v2978 = vrot.slane %v2103, 5
        %v2979 = vsel %vm1282, %v2977, %v2978
        %v2980 = vrot.slane %v2978, 4
        %v2981 = vrot.slane %v2104, 5
        %v2982 = vsel %vm1282, %v2980, %v2981
        %v2983 = vrot.slane %v2853, 5
        %v2984 = vrot.slane %v2983, 4
        %v2985 = vrot.slane %v2106, 5
        %v2986 = vsel %vm1282, %v2984, %v2985
        %v2987 = vrot.slane %v2985, 4
        %v2988 = vrot.slane %v2107, 5
        %v2989 = vsel %vm1282, %v2987, %v2988
        %v2990 = vrot.slane %v2854, 5
        %v2991 = vrot.slane %v2990, 4
        %v2992 = vrot.slane %v2109, 5
        %v2993 = vsel %vm1282, %v2991, %v2992
        %v2994 = vrot.slane %v2992, 4
        %v2995 = vrot.slane %v2110, 5
        %v2996 = vsel %vm1282, %v2994, %v2995
        %v2997 = vrot.slane %v2855, 5
        %v2998 = vrot.slane %v2997, 4
        %v2999 = vrot.slane %v2112, 5
        %v3000 = vsel %vm1282, %v2998, %v2999
        %v3001 = vrot.slane %v2999, 4
        %v3002 = vrot.slane %v2113, 5
        %v3003 = vsel %vm1282, %v3001, %v3002
        %v3004 = vrot.slane %v2856, 5
        %v3005 = vrot.slane %v3004, 4
        %v3006 = vrot.slane %v2115, 5
        %v3007 = vsel %vm1282, %v3005, %v3006
        %v3008 = vrot.slane %v3006, 4
        %v3009 = vrot.slane %v2116, 5
        %v3010 = vsel %vm1282, %v3008, %v3009
        %v3011 = vrot.slane %v2857, 5
        %v3012 = vrot.slane %v3011, 4
        %v3013 = vrot.slane %v2118, 5
        %v3014 = vsel %vm1282, %v3012, %v3013
        %v3015 = vrot.slane %v3013, 4
        %v3016 = vrot.slane %v2119, 5
        %v3017 = vsel %vm1282, %v3015, %v3016
        %s3018 = scalar_lea.vmem [#allocation5], 80
        %v3019 = vld [vmem:[%s3018] sm:$0xf]
        %v3020 = vld [vmem:[%s3018 + $0x4] sm:$0xf]
        %v3021 = vld [vmem:[%s3018 + $0x8] sm:$0xf]
        %v3022 = vld [vmem:[%s3018 + $0xc] sm:$0xf]
        %v3023 = vunpack.c.l.b16 %v2909
        %v3024 = vunpack.c.l.b16 %v2912
        %v3025 = vunpack.c.l.b16 %v2916
        %v3026 = vunpack.c.l.b16 %v2919
        %v3027 = vunpack.c.l.b16 %v2923
        %v3028 = vunpack.c.l.b16 %v2926
        %v3029 = vunpack.c.l.b16 %v2930
        %v3030 = vunpack.c.l.b16 %v2933
        %v3031 = vunpack.c.l.b16 %v2937
        %v3032 = vunpack.c.l.b16 %v2940
        %v3033 = vunpack.c.l.b16 %v2944
        %v3034 = vunpack.c.l.b16 %v2947
        %v3035 = vunpack.c.l.b16 %v2951
        %v3036 = vunpack.c.l.b16 %v2954
        %v3037 = vunpack.c.l.b16 %v2958
        %v3038 = vunpack.c.l.b16 %v2961
        %v3039 = vunpack.c.l.b16 %v2965
        %v3040 = vunpack.c.l.b16 %v2968
        %v3041 = vunpack.c.l.b16 %v2972
        %v3042 = vunpack.c.l.b16 %v2975
        %v3043 = vunpack.c.l.b16 %v2979
        %v3044 = vunpack.c.l.b16 %v2982
        %v3045 = vunpack.c.l.b16 %v2986
        %v3046 = vunpack.c.l.b16 %v2989
        %v3047 = vunpack.c.l.b16 %v2993
        %v3048 = vunpack.c.l.b16 %v2996
        %v3049 = vunpack.c.l.b16 %v3000
        %v3050 = vunpack.c.l.b16 %v3003
        %v3051 = vunpack.c.l.b16 %v3007
        %v3052 = vunpack.c.l.b16 %v3010
        %v3053 = vunpack.c.l.b16 %v3014
        %v3054 = vunpack.c.l.b16 %v3017
        %v3055 = vpack.c.b16 %v3024, %v3023
        %v3056 = vpack.c.b16 %v3026, %v3025
        %v3057 = vpack.c.b16 %v3028, %v3027
        %v3058 = vpack.c.b16 %v3030, %v3029
        %v3059 = vpack.c.b16 %v3032, %v3031
        %v3060 = vpack.c.b16 %v3034, %v3033
        %v3061 = vpack.c.b16 %v3036, %v3035
        %v3062 = vpack.c.b16 %v3038, %v3037
        %v3063 = vpack.c.b16 %v3040, %v3039
        %v3064 = vpack.c.b16 %v3042, %v3041
        %v3065 = vpack.c.b16 %v3044, %v3043
        %v3066 = vpack.c.b16 %v3046, %v3045
        %v3067 = vpack.c.b16 %v3048, %v3047
        %v3068 = vpack.c.b16 %v3050, %v3049
        %v3069 = vpack.c.b16 %v3052, %v3051
        %v3070 = vpack.c.b16 %v3054, %v3053
        %v3075 = vunpack.c.l.b16 %v3019
        %v3076 = vunpack.c.l.b16 %v3020
        %v3077 = vunpack.c.l.b16 %v3021
        %v3078 = vunpack.c.l.b16 %v3022
        %v3079 = vpack.c.b16 %v3076, %v3075
        %v3080 = vpack.c.b16 %v3078, %v3077
        %v3084 = vsel %vm721, %v3055, 0
        %v3087 = vsel %vm721, %v3056, 0
        %v3090 = vsel %vm721, %v3057, 0
        %v3093 = vsel %vm721, %v3058, 0
        %v3096 = vsel %vm721, %v3059, 0
        %v3099 = vsel %vm721, %v3060, 0
        %v3102 = vsel %vm721, %v3061, 0
        %v3105 = vsel %vm721, %v3062, 0
        %v3108 = vsel %vm721, %v3063, 0
        %v3111 = vsel %vm721, %v3064, 0
        %v3114 = vsel %vm721, %v3065, 0
        %v3117 = vsel %vm721, %v3066, 0
        %v3120 = vsel %vm721, %v3067, 0
        %v3123 = vsel %vm721, %v3068, 0
        %v3126 = vsel %vm721, %v3069, 0
        %v3129 = vsel %vm721, %v3070, 0
        %3131 = vmatprep.subr.bf16.mxu0 0
        %3132 = vmatpush1.bf16.msra.mxu0 %v3079
        %3133 = vmatprep.subr.bf16.mxu0 0
        %3134 = vmatpush1.bf16.msra.mxu0 %v3080
        %3135 = vmatprep.subr.bf16.mxu0 0
        %3136 = vmatpush1.bf16.msra.mxu0 0
        %3137 = vmatprep.subr.bf16.mxu0 0
        %3138 = vmatpush1.bf16.msra.mxu0 0
        %3139 = vmatprep.subr.bf16.mxu0 0
        %3140 = vmatpush1.bf16.msra.mxu0 0
        %3141 = vmatprep.subr.bf16.mxu0 0
        %3142 = vmatpush1.bf16.msra.mxu0 0
        %3143 = vmatprep.subr.bf16.mxu0 0
        %3144 = vmatpush1.bf16.msra.mxu0 0
        %3145 = vmatprep.subr.bf16.mxu0 0
        %3146 = vmatpush1.bf16.msra.mxu0 0
        %3147 = vmatprep.subr.bf16.mxu0 0
        %3148 = vmatpush1.bf16.msra.mxu0 0
        %3149 = vmatprep.subr.bf16.mxu0 0
        %3150 = vmatpush1.bf16.msra.mxu0 0
        %3151 = vmatprep.subr.bf16.mxu0 0
        %3152 = vmatpush1.bf16.msra.mxu0 0
        %3153 = vmatprep.subr.bf16.mxu0 0
        %3154 = vmatpush1.bf16.msra.mxu0 0
        %3155 = vmatprep.subr.bf16.mxu0 0
        %3156 = vmatpush1.bf16.msra.mxu0 0
        %3157 = vmatprep.subr.bf16.mxu0 0
        %3158 = vmatpush1.bf16.msra.mxu0 0
        %3159 = vmatprep.subr.bf16.mxu0 0
        %3160 = vmatpush1.bf16.msra.mxu0 0
        %3161 = vmatprep.subr.bf16.mxu0 0
        %3162 = vmatpush1.bf16.msra.mxu0 0
        %3163 = vmatprep.mubr.bf16.mxu0 0
        %3164 = vmatmul.mubr.bf16.gmra.mrb[0].mxu0 %v3084
        %v3165 = vpop.f32.mrb[0].mxu0
        %v3166 = vadd.f32 0.0, %v3165
        %v3167 = vpop.f32.mrb[0].mxu0
        %v3168 = vpop.f32.mrb[0].mxu0
        %v3169 = vadd.f32 0.0, %v3168
        %v3170 = vpop.f32.mrb[0].mxu0
        %3171 = vmatprep.mubr.bf16.mxu0 0
        %3172 = vmatmul.mubr.bf16.gmra.mrb[0].mxu0 %v3087
        %v3173 = vpop.f32.mrb[0].mxu0
        %v3174 = vadd.f32 0.0, %v3173
        %v3175 = vpop.f32.mrb[0].mxu0
        %v3176 = vpop.f32.mrb[0].mxu0
        %v3177 = vadd.f32 0.0, %v3176
        %v3178 = vpop.f32.mrb[0].mxu0
        %3179 = vmatprep.mubr.bf16.mxu0 0
        %3180 = vmatmul.mubr.bf16.gmra.mrb[0].mxu0 %v3090
        %v3181 = vpop.f32.mrb[0].mxu0
        %v3182 = vadd.f32 0.0, %v3181
        %v3183 = vpop.f32.mrb[0].mxu0
        %v3184 = vpop.f32.mrb[0].mxu0
        %v3185 = vadd.f32 0.0, %v3184
        %v3186 = vpop.f32.mrb[0].mxu0
        %3187 = vmatprep.mubr.bf16.mxu0 0
        %3188 = vmatmul.mubr.bf16.gmra.mrb[0].mxu0 %v3093
        %v3189 = vpop.f32.mrb[0].mxu0
        %v3190 = vadd.f32 0.0, %v3189
        %v3191 = vpop.f32.mrb[0].mxu0
        %v3192 = vpop.f32.mrb[0].mxu0
        %v3193 = vadd.f32 0.0, %v3192
        %v3194 = vpop.f32.mrb[0].mxu0
        %3195 = vmatprep.mubr.bf16.mxu0 0
        %3196 = vmatmul.mubr.bf16.gmra.mrb[0].mxu0 %v3096
        %v3197 = vpop.f32.mrb[0].mxu0
        %v3198 = vadd.f32 0.0, %v3197
        %v3199 = vpop.f32.mrb[0].mxu0
        %v3200 = vpop.f32.mrb[0].mxu0
        %v3201 = vadd.f32 0.0, %v3200
        %v3202 = vpop.f32.mrb[0].mxu0
        %3203 = vmatprep.mubr.bf16.mxu0 0
        %3204 = vmatmul.mubr.bf16.gmra.mrb[0].mxu0 %v3099
        %v3205 = vpop.f32.mrb[0].mxu0
        %v3206 = vadd.f32 0.0, %v3205
        %v3207 = vpop.f32.mrb[0].mxu0
        %v3208 = vpop.f32.mrb[0].mxu0
        %v3209 = vadd.f32 0.0, %v3208
        %v3210 = vpop.f32.mrb[0].mxu0
        %3211 = vmatprep.mubr.bf16.mxu0 0
        %3212 = vmatmul.mubr.bf16.gmra.mrb[0].mxu0 %v3102
        %v3213 = vpop.f32.mrb[0].mxu0
        %v3214 = vadd.f32 0.0, %v3213
        %v3215 = vpop.f32.mrb[0].mxu0
        %v3216 = vpop.f32.mrb[0].mxu0
        %v3217 = vadd.f32 0.0, %v3216
        %v3218 = vpop.f32.mrb[0].mxu0
        %3219 = vmatprep.mubr.bf16.mxu0 0
        %3220 = vmatmul.mubr.bf16.gmra.mrb[0].mxu0 %v3105
        %v3221 = vpop.f32.mrb[0].mxu0
        %v3222 = vadd.f32 0.0, %v3221
        %v3223 = vpop.f32.mrb[0].mxu0
        %v3224 = vpop.f32.mrb[0].mxu0
        %v3225 = vadd.f32 0.0, %v3224
        %v3226 = vpop.f32.mrb[0].mxu0
        %3227 = vmatprep.mubr.bf16.mxu0 0
        %3228 = vmatmul.mubr.bf16.gmra.mrb[0].mxu0 %v3108
        %v3229 = vpop.f32.mrb[0].mxu0
        %v3230 = vadd.f32 0.0, %v3229
        %v3231 = vpop.f32.mrb[0].mxu0
        %v3232 = vpop.f32.mrb[0].mxu0
        %v3233 = vadd.f32 0.0, %v3232
        %v3234 = vpop.f32.mrb[0].mxu0
        %3235 = vmatprep.mubr.bf16.mxu0 0
        %3236 = vmatmul.mubr.bf16.gmra.mrb[0].mxu0 %v3111
        %v3237 = vpop.f32.mrb[0].mxu0
        %v3238 = vadd.f32 0.0, %v3237
        %v3239 = vpop.f32.mrb[0].mxu0
        %v3240 = vpop.f32.mrb[0].mxu0
        %v3241 = vadd.f32 0.0, %v3240
        %v3242 = vpop.f32.mrb[0].mxu0
        %3243 = vmatprep.mubr.bf16.mxu0 0
        %3244 = vmatmul.mubr.bf16.gmra.mrb[0].mxu0 %v3114
        %v3245 = vpop.f32.mrb[0].mxu0
        %v3246 = vadd.f32 0.0, %v3245
        %v3247 = vpop.f32.mrb[0].mxu0
        %v3248 = vpop.f32.mrb[0].mxu0
        %v3249 = vadd.f32 0.0, %v3248
        %v3250 = vpop.f32.mrb[0].mxu0
        %3251 = vmatprep.mubr.bf16.mxu0 0
        %3252 = vmatmul.mubr.bf16.gmra.mrb[0].mxu0 %v3117
        %v3253 = vpop.f32.mrb[0].mxu0
        %v3254 = vadd.f32 0.0, %v3253
        %v3255 = vpop.f32.mrb[0].mxu0
        %v3256 = vpop.f32.mrb[0].mxu0
        %v3257 = vadd.f32 0.0, %v3256
        %v3258 = vpop.f32.mrb[0].mxu0
        %3259 = vmatprep.mubr.bf16.mxu0 0
        %3260 = vmatmul.mubr.bf16.gmra.mrb[0].mxu0 %v3120
        %v3261 = vpop.f32.mrb[0].mxu0
        %v3262 = vadd.f32 0.0, %v3261
        %v3263 = vpop.f32.mrb[0].mxu0
        %v3264 = vpop.f32.mrb[0].mxu0
        %v3265 = vadd.f32 0.0, %v3264
        %v3266 = vpop.f32.mrb[0].mxu0
        %3267 = vmatprep.mubr.bf16.mxu0 0
        %3268 = vmatmul.mubr.bf16.gmra.mrb[0].mxu0 %v3123
        %v3269 = vpop.f32.mrb[0].mxu0
        %v3270 = vadd.f32 0.0, %v3269
        %v3271 = vpop.f32.mrb[0].mxu0
        %v3272 = vpop.f32.mrb[0].mxu0
        %v3273 = vadd.f32 0.0, %v3272
        %v3274 = vpop.f32.mrb[0].mxu0
        %3275 = vmatprep.mubr.bf16.mxu0 0
        %3276 = vmatmul.mubr.bf16.gmra.mrb[0].mxu0 %v3126
        %v3277 = vpop.f32.mrb[0].mxu0
        %v3278 = vadd.f32 0.0, %v3277
        %v3279 = vpop.f32.mrb[0].mxu0
        %v3280 = vpop.f32.mrb[0].mxu0
        %v3281 = vadd.f32 0.0, %v3280
        %v3282 = vpop.f32.mrb[0].mxu0
        %3283 = vmatprep.mubr.bf16.mxu0 0
        %3284 = vmatmul.mubr.bf16.gmra.mrb[0].mxu0 %v3129
        %v3285 = vpop.f32.mrb[0].mxu0
        %v3286 = vadd.f32 0.0, %v3285
        %v3287 = vpop.f32.mrb[0].mxu0
        %v3288 = vpop.f32.mrb[0].mxu0
        %v3289 = vadd.f32 0.0, %v3288
        %v3290 = vpop.f32.mrb[0].mxu0
        %3291 = vdwg.mxu0
        %v3292 = vadd.f32 %v2810, %v3166
        %v3293 = vadd.f32 %v2811, %v3169
        %v3294 = vadd.f32 %v2812, %v3174
        %v3295 = vadd.f32 %v2813, %v3177
        %v3296 = vadd.f32 %v2814, %v3182
        %v3297 = vadd.f32 %v2815, %v3185
        %v3298 = vadd.f32 %v2816, %v3190
        %v3299 = vadd.f32 %v2817, %v3193
        %v3300 = vadd.f32 %v2818, %v3198
        %v3301 = vadd.f32 %v2819, %v3201
        %v3302 = vadd.f32 %v2820, %v3206
        %v3303 = vadd.f32 %v2821, %v3209
        %v3304 = vadd.f32 %v2822, %v3214
        %v3305 = vadd.f32 %v2823, %v3217
        %v3306 = vadd.f32 %v2824, %v3222
        %v3307 = vadd.f32 %v2825, %v3225
        %v3308 = vadd.f32 %v2826, %v3230
        %v3309 = vadd.f32 %v2827, %v3233
        %v3310 = vadd.f32 %v2828, %v3238
        %v3311 = vadd.f32 %v2829, %v3241
        %v3312 = vadd.f32 %v2830, %v3246
        %v3313 = vadd.f32 %v2831, %v3249
        %v3314 = vadd.f32 %v2832, %v3254
        %v3315 = vadd.f32 %v2833, %v3257
        %v3316 = vadd.f32 %v2834, %v3262
        %v3317 = vadd.f32 %v2835, %v3265
        %v3318 = vadd.f32 %v2836, %v3270
        %v3319 = vadd.f32 %v2837, %v3273
        %v3320 = vadd.f32 %v2838, %v3278
        %v3321 = vadd.f32 %v2839, %v3281
        %v3322 = vadd.f32 %v2840, %v3286
        %v3323 = vadd.f32 %v2841, %v3289
        %s3324 = scalar_lea.vmem %s185, 24 [#allocation2]
        %v3325 = vld [vmem:[%s3324] sm:$0xf]
        %v3326 = vld [vmem:[%s3324 + $0x4] sm:$0xf]
        %v3327 = vld [vmem:[%s3324 + $0xc] sm:$0xf]
        %v3328 = vld [vmem:[%s3324 + $0x10] sm:$0xf]
        %v3329 = vld [vmem:[%s3324 + $0x18] sm:$0xf]
        %v3330 = vld [vmem:[%s3324 + $0x1c] sm:$0xf]
        %v3331 = vld [vmem:[%s3324 + $0x24] sm:$0xf]
        %v3332 = vld [vmem:[%s3324 + $0x28] sm:$0xf]
        %v3333 = vld [vmem:[%s3324 + $0x30] sm:$0xf]
        %v3334 = vld [vmem:[%s3324 + $0x34] sm:$0xf]
        %v3335 = vld [vmem:[%s3324 + $0x3c] sm:$0xf]
        %v3336 = vld [vmem:[%s3324 + $0x40] sm:$0xf]
        %v3337 = vld [vmem:[%s3324 + $0x48] sm:$0xf]
        %v3338 = vld [vmem:[%s3324 + $0x4c] sm:$0xf]
        %v3339 = vld [vmem:[%s3324 + $0x54] sm:$0xf]
        %v3340 = vld [vmem:[%s3324 + $0x58] sm:$0xf]
        %v3341 = vld [vmem:[%s3324 + $0x60] sm:$0xf]
        %v3342 = vld [vmem:[%s3324 + $0x64] sm:$0xf]
        %v3343 = vld [vmem:[%s3324 + $0x6c] sm:$0xf]
        %v3344 = vld [vmem:[%s3324 + $0x70] sm:$0xf]
        %v3345 = vld [vmem:[%s3324 + $0x78] sm:$0xf]
        %v3346 = vld [vmem:[%s3324 + $0x7c] sm:$0xf]
        %v3347 = vld [vmem:[%s3324 + $0x84] sm:$0xf]
        %v3348 = vld [vmem:[%s3324 + $0x88] sm:$0xf]
        %v3349 = vld [vmem:[%s3324 + $0x90] sm:$0xf]
        %v3350 = vld [vmem:[%s3324 + $0x94] sm:$0xf]
        %v3351 = vld [vmem:[%s3324 + $0x9c] sm:$0xf]
        %v3352 = vld [vmem:[%s3324 + $0xa0] sm:$0xf]
        %v3353 = vld [vmem:[%s3324 + $0xa8] sm:$0xf]
        %v3354 = vld [vmem:[%s3324 + $0xac] sm:$0xf]
        %v3355 = vld [vmem:[%s3324 + $0xb4] sm:$0xf]
        %v3356 = vld [vmem:[%s3324 + $0xb8] sm:$0xf]
        %s3357 = scalar_lea.vmem [#allocation5], 96
        %v3358 = vld [vmem:[%s3357] sm:$0xf]
        %v3359 = vld [vmem:[%s3357 + $0x4] sm:$0xf]
        %v3360 = vld [vmem:[%s3357 + $0x8] sm:$0xf]
        %v3361 = vld [vmem:[%s3357 + $0xc] sm:$0xf]
        %v3394 = vunpack.c.l.b16 %v3325
        %v3395 = vunpack.c.l.b16 %v3326
        %v3396 = vunpack.c.l.b16 %v3327
        %v3397 = vunpack.c.l.b16 %v3328
        %v3398 = vunpack.c.l.b16 %v3329
        %v3399 = vunpack.c.l.b16 %v3330
        %v3400 = vunpack.c.l.b16 %v3331
        %v3401 = vunpack.c.l.b16 %v3332
        %v3402 = vunpack.c.l.b16 %v3333
        %v3403 = vunpack.c.l.b16 %v3334
        %v3404 = vunpack.c.l.b16 %v3335
        %v3405 = vunpack.c.l.b16 %v3336
        %v3406 = vunpack.c.l.b16 %v3337
        %v3407 = vunpack.c.l.b16 %v3338
        %v3408 = vunpack.c.l.b16 %v3339
        %v3409 = vunpack.c.l.b16 %v3340
        %v3410 = vunpack.c.l.b16 %v3341
        %v3411 = vunpack.c.l.b16 %v3342
        %v3412 = vunpack.c.l.b16 %v3343
        %v3413 = vunpack.c.l.b16 %v3344
        %v3414 = vunpack.c.l.b16 %v3345
        %v3415 = vunpack.c.l.b16 %v3346
        %v3416 = vunpack.c.l.b16 %v3347
        %v3417 = vunpack.c.l.b16 %v3348
        %v3418 = vunpack.c.l.b16 %v3349
        %v3419 = vunpack.c.l.b16 %v3350
        %v3420 = vunpack.c.l.b16 %v3351
        %v3421 = vunpack.c.l.b16 %v3352
        %v3422 = vunpack.c.l.b16 %v3353
        %v3423 = vunpack.c.l.b16 %v3354
        %v3424 = vunpack.c.l.b16 %v3355
        %v3425 = vunpack.c.l.b16 %v3356
        %v3426 = vpack.c.b16 %v3395, %v3394
        %v3427 = vpack.c.b16 %v3397, %v3396
        %v3428 = vpack.c.b16 %v3399, %v3398
        %v3429 = vpack.c.b16 %v3401, %v3400
        %v3430 = vpack.c.b16 %v3403, %v3402
        %v3431 = vpack.c.b16 %v3405, %v3404
        %v3432 = vpack.c.b16 %v3407, %v3406
        %v3433 = vpack.c.b16 %v3409, %v3408
        %v3434 = vpack.c.b16 %v3411, %v3410
        %v3435 = vpack.c.b16 %v3413, %v3412
        %v3436 = vpack.c.b16 %v3415, %v3414
        %v3437 = vpack.c.b16 %v3417, %v3416
        %v3438 = vpack.c.b16 %v3419, %v3418
        %v3439 = vpack.c.b16 %v3421, %v3420
        %v3440 = vpack.c.b16 %v3423, %v3422
        %v3441 = vpack.c.b16 %v3425, %v3424
        %v3446 = vunpack.c.l.b16 %v3358
        %v3447 = vunpack.c.l.b16 %v3359
        %v3448 = vunpack.c.l.b16 %v3360
        %v3449 = vunpack.c.l.b16 %v3361
        %v3450 = vpack.c.b16 %v3447, %v3446
        %v3451 = vpack.c.b16 %v3449, %v3448
        %v3455 = vsel %vm721, %v3426, 0
        %v3458 = vsel %vm721, %v3427, 0
        %v3461 = vsel %vm721, %v3428, 0
        %v3464 = vsel %vm721, %v3429, 0
        %v3467 = vsel %vm721, %v3430, 0
        %v3470 = vsel %vm721, %v3431, 0
        %v3473 = vsel %vm721, %v3432, 0
        %v3476 = vsel %vm721, %v3433, 0
        %v3479 = vsel %vm721, %v3434, 0
        %v3482 = vsel %vm721, %v3435, 0
        %v3485 = vsel %vm721, %v3436, 0
        %v3488 = vsel %vm721, %v3437, 0
        %v3491 = vsel %vm721, %v3438, 0
        %v3494 = vsel %vm721, %v3439, 0
        %v3497 = vsel %vm721, %v3440, 0
        %v3500 = vsel %vm721, %v3441, 0
        %3502 = vmatprep.subr.bf16.mxu0 0
        %3503 = vmatpush1.bf16.msra.mxu0 %v3450
        %3504 = vmatprep.subr.bf16.mxu0 0
        %3505 = vmatpush1.bf16.msra.mxu0 %v3451
        %3506 = vmatprep.subr.bf16.mxu0 0
        %3507 = vmatpush1.bf16.msra.mxu0 0
        %3508 = vmatprep.subr.bf16.mxu0 0
        %3509 = vmatpush1.bf16.msra.mxu0 0
        %3510 = vmatprep.subr.bf16.mxu0 0
        %3511 = vmatpush1.bf16.msra.mxu0 0
        %3512 = vmatprep.subr.bf16.mxu0 0
        %3513 = vmatpush1.bf16.msra.mxu0 0
        %3514 = vmatprep.subr.bf16.mxu0 0
        %3515 = vmatpush1.bf16.msra.mxu0 0
        %3516 = vmatprep.subr.bf16.mxu0 0
        %3517 = vmatpush1.bf16.msra.mxu0 0
        %3518 = vmatprep.subr.bf16.mxu0 0
        %3519 = vmatpush1.bf16.msra.mxu0 0
        %3520 = vmatprep.subr.bf16.mxu0 0
        %3521 = vmatpush1.bf16.msra.mxu0 0
        %3522 = vmatprep.subr.bf16.mxu0 0
        %3523 = vmatpush1.bf16.msra.mxu0 0
        %3524 = vmatprep.subr.bf16.mxu0 0
        %3525 = vmatpush1.bf16.msra.mxu0 0
        %3526 = vmatprep.subr.bf16.mxu0 0
        %3527 = vmatpush1.bf16.msra.mxu0 0
        %3528 = vmatprep.subr.bf16.mxu0 0
        %3529 = vmatpush1.bf16.msra.mxu0 0
        %3530 = vmatprep.subr.bf16.mxu0 0
        %3531 = vmatpush1.bf16.msra.mxu0 0
        %3532 = vmatprep.subr.bf16.mxu0 0
        %3533 = vmatpush1.bf16.msra.mxu0 0
        %3534 = vmatprep.mubr.bf16.mxu0 0
        %3535 = vmatmul.mubr.bf16.gmra.mrb[0].mxu0 %v3455
        %v3536 = vpop.f32.mrb[0].mxu0
        %v3537 = vadd.f32 0.0, %v3536
        %v3538 = vpop.f32.mrb[0].mxu0
        %v3539 = vpop.f32.mrb[0].mxu0
        %v3540 = vadd.f32 0.0, %v3539
        %v3541 = vpop.f32.mrb[0].mxu0
        %3542 = vmatprep.mubr.bf16.mxu0 0
        %3543 = vmatmul.mubr.bf16.gmra.mrb[0].mxu0 %v3458
        %v3544 = vpop.f32.mrb[0].mxu0
        %v3545 = vadd.f32 0.0, %v3544
        %v3546 = vpop.f32.mrb[0].mxu0
        %v3547 = vpop.f32.mrb[0].mxu0
        %v3548 = vadd.f32 0.0, %v3547
        %v3549 = vpop.f32.mrb[0].mxu0
        %3550 = vmatprep.mubr.bf16.mxu0 0
        %3551 = vmatmul.mubr.bf16.gmra.mrb[0].mxu0 %v3461
        %v3552 = vpop.f32.mrb[0].mxu0
        %v3553 = vadd.f32 0.0, %v3552
        %v3554 = vpop.f32.mrb[0].mxu0
        %v3555 = vpop.f32.mrb[0].mxu0
        %v3556 = vadd.f32 0.0, %v3555
        %v3557 = vpop.f32.mrb[0].mxu0
        %3558 = vmatprep.mubr.bf16.mxu0 0
        %3559 = vmatmul.mubr.bf16.gmra.mrb[0].mxu0 %v3464
        %v3560 = vpop.f32.mrb[0].mxu0
        %v3561 = vadd.f32 0.0, %v3560
        %v3562 = vpop.f32.mrb[0].mxu0
        %v3563 = vpop.f32.mrb[0].mxu0
        %v3564 = vadd.f32 0.0, %v3563
        %v3565 = vpop.f32.mrb[0].mxu0
        %3566 = vmatprep.mubr.bf16.mxu0 0
        %3567 = vmatmul.mubr.bf16.gmra.mrb[0].mxu0 %v3467
        %v3568 = vpop.f32.mrb[0].mxu0
        %v3569 = vadd.f32 0.0, %v3568
        %v3570 = vpop.f32.mrb[0].mxu0
        %v3571 = vpop.f32.mrb[0].mxu0
        %v3572 = vadd.f32 0.0, %v3571
        %v3573 = vpop.f32.mrb[0].mxu0
        %3574 = vmatprep.mubr.bf16.mxu0 0
        %3575 = vmatmul.mubr.bf16.gmra.mrb[0].mxu0 %v3470
        %v3576 = vpop.f32.mrb[0].mxu0
        %v3577 = vadd.f32 0.0, %v3576
        %v3578 = vpop.f32.mrb[0].mxu0
        %v3579 = vpop.f32.mrb[0].mxu0
        %v3580 = vadd.f32 0.0, %v3579
        %v3581 = vpop.f32.mrb[0].mxu0
        %3582 = vmatprep.mubr.bf16.mxu0 0
        %3583 = vmatmul.mubr.bf16.gmra.mrb[0].mxu0 %v3473
        %v3584 = vpop.f32.mrb[0].mxu0
        %v3585 = vadd.f32 0.0, %v3584
        %v3586 = vpop.f32.mrb[0].mxu0
        %v3587 = vpop.f32.mrb[0].mxu0
        %v3588 = vadd.f32 0.0, %v3587
        %v3589 = vpop.f32.mrb[0].mxu0
        %3590 = vmatprep.mubr.bf16.mxu0 0
        %3591 = vmatmul.mubr.bf16.gmra.mrb[0].mxu0 %v3476
        %v3592 = vpop.f32.mrb[0].mxu0
        %v3593 = vadd.f32 0.0, %v3592
        %v3594 = vpop.f32.mrb[0].mxu0
        %v3595 = vpop.f32.mrb[0].mxu0
        %v3596 = vadd.f32 0.0, %v3595
        %v3597 = vpop.f32.mrb[0].mxu0
        %3598 = vmatprep.mubr.bf16.mxu0 0
        %3599 = vmatmul.mubr.bf16.gmra.mrb[0].mxu0 %v3479
        %v3600 = vpop.f32.mrb[0].mxu0
        %v3601 = vadd.f32 0.0, %v3600
        %v3602 = vpop.f32.mrb[0].mxu0
        %v3603 = vpop.f32.mrb[0].mxu0
        %v3604 = vadd.f32 0.0, %v3603
        %v3605 = vpop.f32.mrb[0].mxu0
        %3606 = vmatprep.mubr.bf16.mxu0 0
        %3607 = vmatmul.mubr.bf16.gmra.mrb[0].mxu0 %v3482
        %v3608 = vpop.f32.mrb[0].mxu0
        %v3609 = vadd.f32 0.0, %v3608
        %v3610 = vpop.f32.mrb[0].mxu0
        %v3611 = vpop.f32.mrb[0].mxu0
        %v3612 = vadd.f32 0.0, %v3611
        %v3613 = vpop.f32.mrb[0].mxu0
        %3614 = vmatprep.mubr.bf16.mxu0 0
        %3615 = vmatmul.mubr.bf16.gmra.mrb[0].mxu0 %v3485
        %v3616 = vpop.f32.mrb[0].mxu0
        %v3617 = vadd.f32 0.0, %v3616
        %v3618 = vpop.f32.mrb[0].mxu0
        %v3619 = vpop.f32.mrb[0].mxu0
        %v3620 = vadd.f32 0.0, %v3619
        %v3621 = vpop.f32.mrb[0].mxu0
        %3622 = vmatprep.mubr.bf16.mxu0 0
        %3623 = vmatmul.mubr.bf16.gmra.mrb[0].mxu0 %v3488
        %v3624 = vpop.f32.mrb[0].mxu0
        %v3625 = vadd.f32 0.0, %v3624
        %v3626 = vpop.f32.mrb[0].mxu0
        %v3627 = vpop.f32.mrb[0].mxu0
        %v3628 = vadd.f32 0.0, %v3627
        %v3629 = vpop.f32.mrb[0].mxu0
        %3630 = vmatprep.mubr.bf16.mxu0 0
        %3631 = vmatmul.mubr.bf16.gmra.mrb[0].mxu0 %v3491
        %v3632 = vpop.f32.mrb[0].mxu0
        %v3633 = vadd.f32 0.0, %v3632
        %v3634 = vpop.f32.mrb[0].mxu0
        %v3635 = vpop.f32.mrb[0].mxu0
        %v3636 = vadd.f32 0.0, %v3635
        %v3637 = vpop.f32.mrb[0].mxu0
        %3638 = vmatprep.mubr.bf16.mxu0 0
        %3639 = vmatmul.mubr.bf16.gmra.mrb[0].mxu0 %v3494
        %v3640 = vpop.f32.mrb[0].mxu0
        %v3641 = vadd.f32 0.0, %v3640
        %v3642 = vpop.f32.mrb[0].mxu0
        %v3643 = vpop.f32.mrb[0].mxu0
        %v3644 = vadd.f32 0.0, %v3643
        %v3645 = vpop.f32.mrb[0].mxu0
        %3646 = vmatprep.mubr.bf16.mxu0 0
        %3647 = vmatmul.mubr.bf16.gmra.mrb[0].mxu0 %v3497
        %v3648 = vpop.f32.mrb[0].mxu0
        %v3649 = vadd.f32 0.0, %v3648
        %v3650 = vpop.f32.mrb[0].mxu0
        %v3651 = vpop.f32.mrb[0].mxu0
        %v3652 = vadd.f32 0.0, %v3651
        %v3653 = vpop.f32.mrb[0].mxu0
        %3654 = vmatprep.mubr.bf16.mxu0 0
        %3655 = vmatmul.mubr.bf16.gmra.mrb[0].mxu0 %v3500
        %v3656 = vpop.f32.mrb[0].mxu0
        %v3657 = vadd.f32 0.0, %v3656
        %v3658 = vpop.f32.mrb[0].mxu0
        %v3659 = vpop.f32.mrb[0].mxu0
        %v3660 = vadd.f32 0.0, %v3659
        %v3661 = vpop.f32.mrb[0].mxu0
        %3662 = vdwg.mxu0
        %v3663 = vadd.f32 %v3292, %v3537
        %v3664 = vadd.f32 %v3293, %v3540
        %v3665 = vadd.f32 %v3294, %v3545
        %v3666 = vadd.f32 %v3295, %v3548
        %v3667 = vadd.f32 %v3296, %v3553
        %v3668 = vadd.f32 %v3297, %v3556
        %v3669 = vadd.f32 %v3298, %v3561
        %v3670 = vadd.f32 %v3299, %v3564
        %v3671 = vadd.f32 %v3300, %v3569
        %v3672 = vadd.f32 %v3301, %v3572
        %v3673 = vadd.f32 %v3302, %v3577
        %v3674 = vadd.f32 %v3303, %v3580
        %v3675 = vadd.f32 %v3304, %v3585
        %v3676 = vadd.f32 %v3305, %v3588
        %v3677 = vadd.f32 %v3306, %v3593
        %v3678 = vadd.f32 %v3307, %v3596
        %v3679 = vadd.f32 %v3308, %v3601
        %v3680 = vadd.f32 %v3309, %v3604
        %v3681 = vadd.f32 %v3310, %v3609
        %v3682 = vadd.f32 %v3311, %v3612
        %v3683 = vadd.f32 %v3312, %v3617
        %v3684 = vadd.f32 %v3313, %v3620
        %v3685 = vadd.f32 %v3314, %v3625
        %v3686 = vadd.f32 %v3315, %v3628
        %v3687 = vadd.f32 %v3316, %v3633
        %v3688 = vadd.f32 %v3317, %v3636
        %v3689 = vadd.f32 %v3318, %v3641
        %v3690 = vadd.f32 %v3319, %v3644
        %v3691 = vadd.f32 %v3320, %v3649
        %v3692 = vadd.f32 %v3321, %v3652
        %v3693 = vadd.f32 %v3322, %v3657
        %v3694 = vadd.f32 %v3323, %v3660
        %v3695 = vld [vmem:[%s3324] sm:$0xf]
        %v3696 = vld [vmem:[%s3324 + $0x4] sm:$0xf]
        %v3697 = vld [vmem:[%s3324 + $0x8] sm:$0x1]
        %v3698 = vld [vmem:[%s3324 + $0xc] sm:$0xf]
        %v3699 = vld [vmem:[%s3324 + $0x10] sm:$0xf]
        %v3700 = vld [vmem:[%s3324 + $0x14] sm:$0x1]
        %v3701 = vld [vmem:[%s3324 + $0x18] sm:$0xf]
        %v3702 = vld [vmem:[%s3324 + $0x1c] sm:$0xf]
        %v3703 = vld [vmem:[%s3324 + $0x20] sm:$0x1]
        %v3704 = vld [vmem:[%s3324 + $0x24] sm:$0xf]
        %v3705 = vld [vmem:[%s3324 + $0x28] sm:$0xf]
        %v3706 = vld [vmem:[%s3324 + $0x2c] sm:$0x1]
        %v3707 = vld [vmem:[%s3324 + $0x30] sm:$0xf]
        %v3708 = vld [vmem:[%s3324 + $0x34] sm:$0xf]
        %v3709 = vld [vmem:[%s3324 + $0x38] sm:$0x1]
        %v3710 = vld [vmem:[%s3324 + $0x3c] sm:$0xf]
        %v3711 = vld [vmem:[%s3324 + $0x40] sm:$0xf]
        %v3712 = vld [vmem:[%s3324 + $0x44] sm:$0x1]
        %v3713 = vld [vmem:[%s3324 + $0x48] sm:$0xf]
        %v3714 = vld [vmem:[%s3324 + $0x4c] sm:$0xf]
        %v3715 = vld [vmem:[%s3324 + $0x50] sm:$0x1]
        %v3716 = vld [vmem:[%s3324 + $0x54] sm:$0xf]
        %v3717 = vld [vmem:[%s3324 + $0x58] sm:$0xf]
        %v3718 = vld [vmem:[%s3324 + $0x5c] sm:$0x1]
        %v3719 = vld [vmem:[%s3324 + $0x60] sm:$0xf]
        %v3720 = vld [vmem:[%s3324 + $0x64] sm:$0xf]
        %v3721 = vld [vmem:[%s3324 + $0x68] sm:$0x1]
        %v3722 = vld [vmem:[%s3324 + $0x6c] sm:$0xf]
        %v3723 = vld [vmem:[%s3324 + $0x70] sm:$0xf]
        %v3724 = vld [vmem:[%s3324 + $0x74] sm:$0x1]
        %v3725 = vld [vmem:[%s3324 + $0x78] sm:$0xf]
        %v3726 = vld [vmem:[%s3324 + $0x7c] sm:$0xf]
        %v3727 = vld [vmem:[%s3324 + $0x80] sm:$0x1]
        %v3728 = vld [vmem:[%s3324 + $0x84] sm:$0xf]
        %v3729 = vld [vmem:[%s3324 + $0x88] sm:$0xf]
        %v3730 = vld [vmem:[%s3324 + $0x8c] sm:$0x1]
        %v3731 = vld [vmem:[%s3324 + $0x90] sm:$0xf]
        %v3732 = vld [vmem:[%s3324 + $0x94] sm:$0xf]
        %v3733 = vld [vmem:[%s3324 + $0x98] sm:$0x1]
        %v3734 = vld [vmem:[%s3324 + $0x9c] sm:$0xf]
        %v3735 = vld [vmem:[%s3324 + $0xa0] sm:$0xf]
        %v3736 = vld [vmem:[%s3324 + $0xa4] sm:$0x1]
        %v3737 = vld [vmem:[%s3324 + $0xa8] sm:$0xf]
        %v3738 = vld [vmem:[%s3324 + $0xac] sm:$0xf]
        %v3739 = vld [vmem:[%s3324 + $0xb0] sm:$0x1]
        %v3740 = vld [vmem:[%s3324 + $0xb4] sm:$0xf]
        %v3741 = vld [vmem:[%s3324 + $0xb8] sm:$0xf]
        %v3742 = vld [vmem:[%s3324 + $0xbc] sm:$0x1]
        %v3744 = vshrl.u32 %v3695, 16
        %v3746 = vrot.slane %v3744, 4
        %v3747 = vshll.u32 %v3695, 16
        %v3749 = vrot.slane %v3747, 5
        %v3750 = vor.u32 %v3746, %v3749
        %v3751 = vrot.slane %v3750, 4
        %v3753 = vshll.u32 %v3696, 16
        %v3755 = vrot.slane %v3753, 5
        %v3756 = vsel %vm271, %v3751, %v3755
        %v3757 = vshrl.u32 %v3696, 16
        %v3759 = vrot.slane %v3757, 4
        %v3760 = vor.u32 %v3759, %v3755
        %v3761 = vrot.slane %v3760, 4
        %v3763 = vshll.u32 %v3697, 16
        %v3765 = vrot.slane %v3763, 5
        %v3766 = vsel %vm271, %v3761, %v3765
        %v3768 = vshrl.u32 %v3698, 16
        %v3770 = vrot.slane %v3768, 4
        %v3771 = vshll.u32 %v3698, 16
        %v3773 = vrot.slane %v3771, 5
        %v3774 = vor.u32 %v3770, %v3773
        %v3775 = vrot.slane %v3774, 4
        %v3777 = vshll.u32 %v3699, 16
        %v3779 = vrot.slane %v3777, 5
        %v3780 = vsel %vm271, %v3775, %v3779
        %v3781 = vshrl.u32 %v3699, 16
        %v3783 = vrot.slane %v3781, 4
        %v3784 = vor.u32 %v3783, %v3779
        %v3785 = vrot.slane %v3784, 4
        %v3787 = vshll.u32 %v3700, 16
        %v3789 = vrot.slane %v3787, 5
        %v3790 = vsel %vm271, %v3785, %v3789
        %v3792 = vshrl.u32 %v3701, 16
        %v3794 = vrot.slane %v3792, 4
        %v3795 = vshll.u32 %v3701, 16
        %v3797 = vrot.slane %v3795, 5
        %v3798 = vor.u32 %v3794, %v3797
        %v3799 = vrot.slane %v3798, 4
        %v3801 = vshll.u32 %v3702, 16
        %v3803 = vrot.slane %v3801, 5
        %v3804 = vsel %vm271, %v3799, %v3803
        %v3805 = vshrl.u32 %v3702, 16
        %v3807 = vrot.slane %v3805, 4
        %v3808 = vor.u32 %v3807, %v3803
        %v3809 = vrot.slane %v3808, 4
        %v3811 = vshll.u32 %v3703, 16
        %v3813 = vrot.slane %v3811, 5
        %v3814 = vsel %vm271, %v3809, %v3813
        %v3816 = vshrl.u32 %v3704, 16
        %v3818 = vrot.slane %v3816, 4
        %v3819 = vshll.u32 %v3704, 16
        %v3821 = vrot.slane %v3819, 5
        %v3822 = vor.u32 %v3818, %v3821
        %v3823 = vrot.slane %v3822, 4
        %v3825 = vshll.u32 %v3705, 16
        %v3827 = vrot.slane %v3825, 5
        %v3828 = vsel %vm271, %v3823, %v3827
        %v3829 = vshrl.u32 %v3705, 16
        %v3831 = vrot.slane %v3829, 4
        %v3832 = vor.u32 %v3831, %v3827
        %v3833 = vrot.slane %v3832, 4
        %v3835 = vshll.u32 %v3706, 16
        %v3837 = vrot.slane %v3835, 5
        %v3838 = vsel %vm271, %v3833, %v3837
        %v3840 = vshrl.u32 %v3707, 16
        %v3842 = vrot.slane %v3840, 4
        %v3843 = vshll.u32 %v3707, 16
        %v3845 = vrot.slane %v3843, 5
        %v3846 = vor.u32 %v3842, %v3845
        %v3847 = vrot.slane %v3846, 4
        %v3849 = vshll.u32 %v3708, 16
        %v3851 = vrot.slane %v3849, 5
        %v3852 = vsel %vm271, %v3847, %v3851
        %v3853 = vshrl.u32 %v3708, 16
        %v3855 = vrot.slane %v3853, 4
        %v3856 = vor.u32 %v3855, %v3851
        %v3857 = vrot.slane %v3856, 4
        %v3859 = vshll.u32 %v3709, 16
        %v3861 = vrot.slane %v3859, 5
        %v3862 = vsel %vm271, %v3857, %v3861
        %v3864 = vshrl.u32 %v3710, 16
        %v3866 = vrot.slane %v3864, 4
        %v3867 = vshll.u32 %v3710, 16
        %v3869 = vrot.slane %v3867, 5
        %v3870 = vor.u32 %v3866, %v3869
        %v3871 = vrot.slane %v3870, 4
        %v3873 = vshll.u32 %v3711, 16
        %v3875 = vrot.slane %v3873, 5
        %v3876 = vsel %vm271, %v3871, %v3875
        %v3877 = vshrl.u32 %v3711, 16
        %v3879 = vrot.slane %v3877, 4
        %v3880 = vor.u32 %v3879, %v3875
        %v3881 = vrot.slane %v3880, 4
        %v3883 = vshll.u32 %v3712, 16
        %v3885 = vrot.slane %v3883, 5
        %v3886 = vsel %vm271, %v3881, %v3885
        %v3888 = vshrl.u32 %v3713, 16
        %v3890 = vrot.slane %v3888, 4
        %v3891 = vshll.u32 %v3713, 16
        %v3893 = vrot.slane %v3891, 5
        %v3894 = vor.u32 %v3890, %v3893
        %v3895 = vrot.slane %v3894, 4
        %v3897 = vshll.u32 %v3714, 16
        %v3899 = vrot.slane %v3897, 5
        %v3900 = vsel %vm271, %v3895, %v3899
        %v3901 = vshrl.u32 %v3714, 16
        %v3903 = vrot.slane %v3901, 4
        %v3904 = vor.u32 %v3903, %v3899
        %v3905 = vrot.slane %v3904, 4
        %v3907 = vshll.u32 %v3715, 16
        %v3909 = vrot.slane %v3907, 5
        %v3910 = vsel %vm271, %v3905, %v3909
        %v3912 = vshrl.u32 %v3716, 16
        %v3914 = vrot.slane %v3912, 4
        %v3915 = vshll.u32 %v3716, 16
        %v3917 = vrot.slane %v3915, 5
        %v3918 = vor.u32 %v3914, %v3917
        %v3919 = vrot.slane %v3918, 4
        %v3921 = vshll.u32 %v3717, 16
        %v3923 = vrot.slane %v3921, 5
        %v3924 = vsel %vm271, %v3919, %v3923
        %v3925 = vshrl.u32 %v3717, 16
        %v3927 = vrot.slane %v3925, 4
        %v3928 = vor.u32 %v3927, %v3923
        %v3929 = vrot.slane %v3928, 4
        %v3931 = vshll.u32 %v3718, 16
        %v3933 = vrot.slane %v3931, 5
        %v3934 = vsel %vm271, %v3929, %v3933
        %v3936 = vshrl.u32 %v3719, 16
        %v3938 = vrot.slane %v3936, 4
        %v3939 = vshll.u32 %v3719, 16
        %v3941 = vrot.slane %v3939, 5
        %v3942 = vor.u32 %v3938, %v3941
        %v3943 = vrot.slane %v3942, 4
        %v3945 = vshll.u32 %v3720, 16
        %v3947 = vrot.slane %v3945, 5
        %v3948 = vsel %vm271, %v3943, %v3947
        %v3949 = vshrl.u32 %v3720, 16
        %v3951 = vrot.slane %v3949, 4
        %v3952 = vor.u32 %v3951, %v3947
        %v3953 = vrot.slane %v3952, 4
        %v3955 = vshll.u32 %v3721, 16
        %v3957 = vrot.slane %v3955, 5
        %v3958 = vsel %vm271, %v3953, %v3957
        %v3960 = vshrl.u32 %v3722, 16
        %v3962 = vrot.slane %v3960, 4
        %v3963 = vshll.u32 %v3722, 16
        %v3965 = vrot.slane %v3963, 5
        %v3966 = vor.u32 %v3962, %v3965
        %v3967 = vrot.slane %v3966, 4
        %v3969 = vshll.u32 %v3723, 16
        %v3971 = vrot.slane %v3969, 5
        %v3972 = vsel %vm271, %v3967, %v3971
        %v3973 = vshrl.u32 %v3723, 16
        %v3975 = vrot.slane %v3973, 4
        %v3976 = vor.u32 %v3975, %v3971
        %v3977 = vrot.slane %v3976, 4
        %v3979 = vshll.u32 %v3724, 16
        %v3981 = vrot.slane %v3979, 5
        %v3982 = vsel %vm271, %v3977, %v3981
        %v3984 = vshrl.u32 %v3725, 16
        %v3986 = vrot.slane %v3984, 4
        %v3987 = vshll.u32 %v3725, 16
        %v3989 = vrot.slane %v3987, 5
        %v3990 = vor.u32 %v3986, %v3989
        %v3991 = vrot.slane %v3990, 4
        %v3993 = vshll.u32 %v3726, 16
        %v3995 = vrot.slane %v3993, 5
        %v3996 = vsel %vm271, %v3991, %v3995
        %v3997 = vshrl.u32 %v3726, 16
        %v3999 = vrot.slane %v3997, 4
        %v4000 = vor.u32 %v3999, %v3995
        %v4001 = vrot.slane %v4000, 4
        %v4003 = vshll.u32 %v3727, 16
        %v4005 = vrot.slane %v4003, 5
        %v4006 = vsel %vm271, %v4001, %v4005
        %v4008 = vshrl.u32 %v3728, 16
        %v4010 = vrot.slane %v4008, 4
        %v4011 = vshll.u32 %v3728, 16
        %v4013 = vrot.slane %v4011, 5
        %v4014 = vor.u32 %v4010, %v4013
        %v4015 = vrot.slane %v4014, 4
        %v4017 = vshll.u32 %v3729, 16
        %v4019 = vrot.slane %v4017, 5
        %v4020 = vsel %vm271, %v4015, %v4019
        %v4021 = vshrl.u32 %v3729, 16
        %v4023 = vrot.slane %v4021, 4
        %v4024 = vor.u32 %v4023, %v4019
        %v4025 = vrot.slane %v4024, 4
        %v4027 = vshll.u32 %v3730, 16
        %v4029 = vrot.slane %v4027, 5
        %v4030 = vsel %vm271, %v4025, %v4029
        %v4032 = vshrl.u32 %v3731, 16
        %v4034 = vrot.slane %v4032, 4
        %v4035 = vshll.u32 %v3731, 16
        %v4037 = vrot.slane %v4035, 5
        %v4038 = vor.u32 %v4034, %v4037
        %v4039 = vrot.slane %v4038, 4
        %v4041 = vshll.u32 %v3732, 16
        %v4043 = vrot.slane %v4041, 5
        %v4044 = vsel %vm271, %v4039, %v4043
        %v4045 = vshrl.u32 %v3732, 16
        %v4047 = vrot.slane %v4045, 4
        %v4048 = vor.u32 %v4047, %v4043
        %v4049 = vrot.slane %v4048, 4
        %v4051 = vshll.u32 %v3733, 16
        %v4053 = vrot.slane %v4051, 5
        %v4054 = vsel %vm271, %v4049, %v4053
        %v4056 = vshrl.u32 %v3734, 16
        %v4058 = vrot.slane %v4056, 4
        %v4059 = vshll.u32 %v3734, 16
        %v4061 = vrot.slane %v4059, 5
        %v4062 = vor.u32 %v4058, %v4061
        %v4063 = vrot.slane %v4062, 4
        %v4065 = vshll.u32 %v3735, 16
        %v4067 = vrot.slane %v4065, 5
        %v4068 = vsel %vm271, %v4063, %v4067
        %v4069 = vshrl.u32 %v3735, 16
        %v4071 = vrot.slane %v4069, 4
        %v4072 = vor.u32 %v4071, %v4067
        %v4073 = vrot.slane %v4072, 4
        %v4075 = vshll.u32 %v3736, 16
        %v4077 = vrot.slane %v4075, 5
        %v4078 = vsel %vm271, %v4073, %v4077
        %v4080 = vshrl.u32 %v3737, 16
        %v4082 = vrot.slane %v4080, 4
        %v4083 = vshll.u32 %v3737, 16
        %v4085 = vrot.slane %v4083, 5
        %v4086 = vor.u32 %v4082, %v4085
        %v4087 = vrot.slane %v4086, 4
        %v4089 = vshll.u32 %v3738, 16
        %v4091 = vrot.slane %v4089, 5
        %v4092 = vsel %vm271, %v4087, %v4091
        %v4093 = vshrl.u32 %v3738, 16
        %v4095 = vrot.slane %v4093, 4
        %v4096 = vor.u32 %v4095, %v4091
        %v4097 = vrot.slane %v4096, 4
        %v4099 = vshll.u32 %v3739, 16
        %v4101 = vrot.slane %v4099, 5
        %v4102 = vsel %vm271, %v4097, %v4101
        %v4104 = vshrl.u32 %v3740, 16
        %v4106 = vrot.slane %v4104, 4
        %v4107 = vshll.u32 %v3740, 16
        %v4109 = vrot.slane %v4107, 5
        %v4110 = vor.u32 %v4106, %v4109
        %v4111 = vrot.slane %v4110, 4
        %v4113 = vshll.u32 %v3741, 16
        %v4115 = vrot.slane %v4113, 5
        %v4116 = vsel %vm271, %v4111, %v4115
        %v4117 = vshrl.u32 %v3741, 16
        %v4119 = vrot.slane %v4117, 4
        %v4120 = vor.u32 %v4119, %v4115
        %v4121 = vrot.slane %v4120, 4
        %v4123 = vshll.u32 %v3742, 16
        %v4125 = vrot.slane %v4123, 5
        %v4126 = vsel %vm271, %v4121, %v4125
        %s4127 = scalar_lea.vmem [#allocation5], 112
        %v4128 = vld [vmem:[%s4127] sm:$0xf]
        %v4129 = vld [vmem:[%s4127 + $0x4] sm:$0xf]
        %v4130 = vld [vmem:[%s4127 + $0x8] sm:$0xf]
        %v4131 = vld [vmem:[%s4127 + $0xc] sm:$0xf]
        %v4132 = vunpack.c.l.b16 %v3756
        %v4133 = vunpack.c.l.b16 %v3766
        %v4134 = vunpack.c.l.b16 %v3780
        %v4135 = vunpack.c.l.b16 %v3790
        %v4136 = vunpack.c.l.b16 %v3804
        %v4137 = vunpack.c.l.b16 %v3814
        %v4138 = vunpack.c.l.b16 %v3828
        %v4139 = vunpack.c.l.b16 %v3838
        %v4140 = vunpack.c.l.b16 %v3852
        %v4141 = vunpack.c.l.b16 %v3862
        %v4142 = vunpack.c.l.b16 %v3876
        %v4143 = vunpack.c.l.b16 %v3886
        %v4144 = vunpack.c.l.b16 %v3900
        %v4145 = vunpack.c.l.b16 %v3910
        %v4146 = vunpack.c.l.b16 %v3924
        %v4147 = vunpack.c.l.b16 %v3934
        %v4148 = vunpack.c.l.b16 %v3948
        %v4149 = vunpack.c.l.b16 %v3958
        %v4150 = vunpack.c.l.b16 %v3972
        %v4151 = vunpack.c.l.b16 %v3982
        %v4152 = vunpack.c.l.b16 %v3996
        %v4153 = vunpack.c.l.b16 %v4006
        %v4154 = vunpack.c.l.b16 %v4020
        %v4155 = vunpack.c.l.b16 %v4030
        %v4156 = vunpack.c.l.b16 %v4044
        %v4157 = vunpack.c.l.b16 %v4054
        %v4158 = vunpack.c.l.b16 %v4068
        %v4159 = vunpack.c.l.b16 %v4078
        %v4160 = vunpack.c.l.b16 %v4092
        %v4161 = vunpack.c.l.b16 %v4102
        %v4162 = vunpack.c.l.b16 %v4116
        %v4163 = vunpack.c.l.b16 %v4126
        %v4164 = vpack.c.b16 %v4133, %v4132
        %v4165 = vpack.c.b16 %v4135, %v4134
        %v4166 = vpack.c.b16 %v4137, %v4136
        %v4167 = vpack.c.b16 %v4139, %v4138
        %v4168 = vpack.c.b16 %v4141, %v4140
        %v4169 = vpack.c.b16 %v4143, %v4142
        %v4170 = vpack.c.b16 %v4145, %v4144
        %v4171 = vpack.c.b16 %v4147, %v4146
        %v4172 = vpack.c.b16 %v4149, %v4148
        %v4173 = vpack.c.b16 %v4151, %v4150
        %v4174 = vpack.c.b16 %v4153, %v4152
        %v4175 = vpack.c.b16 %v4155, %v4154
        %v4176 = vpack.c.b16 %v4157, %v4156
        %v4177 = vpack.c.b16 %v4159, %v4158
        %v4178 = vpack.c.b16 %v4161, %v4160
        %v4179 = vpack.c.b16 %v4163, %v4162
        %v4184 = vunpack.c.l.b16 %v4128
        %v4185 = vunpack.c.l.b16 %v4129
        %v4186 = vunpack.c.l.b16 %v4130
        %v4187 = vunpack.c.l.b16 %v4131
        %v4188 = vpack.c.b16 %v4185, %v4184
        %v4189 = vpack.c.b16 %v4187, %v4186
        %v4193 = vsel %vm721, %v4164, 0
        %v4196 = vsel %vm721, %v4165, 0
        %v4199 = vsel %vm721, %v4166, 0
        %v4202 = vsel %vm721, %v4167, 0
        %v4205 = vsel %vm721, %v4168, 0
        %v4208 = vsel %vm721, %v4169, 0
        %v4211 = vsel %vm721, %v4170, 0
        %v4214 = vsel %vm721, %v4171, 0
        %v4217 = vsel %vm721, %v4172, 0
        %v4220 = vsel %vm721, %v4173, 0
        %v4223 = vsel %vm721, %v4174, 0
        %v4226 = vsel %vm721, %v4175, 0
        %v4229 = vsel %vm721, %v4176, 0
        %v4232 = vsel %vm721, %v4177, 0
        %v4235 = vsel %vm721, %v4178, 0
        %v4238 = vsel %vm721, %v4179, 0
        %4240 = vmatprep.subr.bf16.mxu0 0
        %4241 = vmatpush1.bf16.msra.mxu0 %v4188
        %4242 = vmatprep.subr.bf16.mxu0 0
        %4243 = vmatpush1.bf16.msra.mxu0 %v4189
        %4244 = vmatprep.subr.bf16.mxu0 0
        %4245 = vmatpush1.bf16.msra.mxu0 0
        %4246 = vmatprep.subr.bf16.mxu0 0
        %4247 = vmatpush1.bf16.msra.mxu0 0
        %4248 = vmatprep.subr.bf16.mxu0 0
        %4249 = vmatpush1.bf16.msra.mxu0 0
        %4250 = vmatprep.subr.bf16.mxu0 0
        %4251 = vmatpush1.bf16.msra.mxu0 0
        %4252 = vmatprep.subr.bf16.mxu0 0
        %4253 = vmatpush1.bf16.msra.mxu0 0
        %4254 = vmatprep.subr.bf16.mxu0 0
        %4255 = vmatpush1.bf16.msra.mxu0 0
        %4256 = vmatprep.subr.bf16.mxu0 0
        %4257 = vmatpush1.bf16.msra.mxu0 0
        %4258 = vmatprep.subr.bf16.mxu0 0
        %4259 = vmatpush1.bf16.msra.mxu0 0
        %4260 = vmatprep.subr.bf16.mxu0 0
        %4261 = vmatpush1.bf16.msra.mxu0 0
        %4262 = vmatprep.subr.bf16.mxu0 0
        %4263 = vmatpush1.bf16.msra.mxu0 0
        %4264 = vmatprep.subr.bf16.mxu0 0
        %4265 = vmatpush1.bf16.msra.mxu0 0
        %4266 = vmatprep.subr.bf16.mxu0 0
        %4267 = vmatpush1.bf16.msra.mxu0 0
        %4268 = vmatprep.subr.bf16.mxu0 0
        %4269 = vmatpush1.bf16.msra.mxu0 0
        %4270 = vmatprep.subr.bf16.mxu0 0
        %4271 = vmatpush1.bf16.msra.mxu0 0
        %4272 = vmatprep.mubr.bf16.mxu0 0
        %4273 = vmatmul.mubr.bf16.gmra.mrb[0].mxu0 %v4193
        %v4274 = vpop.f32.mrb[0].mxu0
        %v4275 = vadd.f32 0.0, %v4274
        %v4276 = vpop.f32.mrb[0].mxu0
        %v4277 = vpop.f32.mrb[0].mxu0
        %v4278 = vadd.f32 0.0, %v4277
        %v4279 = vpop.f32.mrb[0].mxu0
        %4280 = vmatprep.mubr.bf16.mxu0 0
        %4281 = vmatmul.mubr.bf16.gmra.mrb[0].mxu0 %v4196
        %v4282 = vpop.f32.mrb[0].mxu0
        %v4283 = vadd.f32 0.0, %v4282
        %v4284 = vpop.f32.mrb[0].mxu0
        %v4285 = vpop.f32.mrb[0].mxu0
        %v4286 = vadd.f32 0.0, %v4285
        %v4287 = vpop.f32.mrb[0].mxu0
        %4288 = vmatprep.mubr.bf16.mxu0 0
        %4289 = vmatmul.mubr.bf16.gmra.mrb[0].mxu0 %v4199
        %v4290 = vpop.f32.mrb[0].mxu0
        %v4291 = vadd.f32 0.0, %v4290
        %v4292 = vpop.f32.mrb[0].mxu0
        %v4293 = vpop.f32.mrb[0].mxu0
        %v4294 = vadd.f32 0.0, %v4293
        %v4295 = vpop.f32.mrb[0].mxu0
        %4296 = vmatprep.mubr.bf16.mxu0 0
        %4297 = vmatmul.mubr.bf16.gmra.mrb[0].mxu0 %v4202
        %v4298 = vpop.f32.mrb[0].mxu0
        %v4299 = vadd.f32 0.0, %v4298
        %v4300 = vpop.f32.mrb[0].mxu0
        %v4301 = vpop.f32.mrb[0].mxu0
        %v4302 = vadd.f32 0.0, %v4301
        %v4303 = vpop.f32.mrb[0].mxu0
        %4304 = vmatprep.mubr.bf16.mxu0 0
        %4305 = vmatmul.mubr.bf16.gmra.mrb[0].mxu0 %v4205
        %v4306 = vpop.f32.mrb[0].mxu0
        %v4307 = vadd.f32 0.0, %v4306
        %v4308 = vpop.f32.mrb[0].mxu0
        %v4309 = vpop.f32.mrb[0].mxu0
        %v4310 = vadd.f32 0.0, %v4309
        %v4311 = vpop.f32.mrb[0].mxu0
        %4312 = vmatprep.mubr.bf16.mxu0 0
        %4313 = vmatmul.mubr.bf16.gmra.mrb[0].mxu0 %v4208
        %v4314 = vpop.f32.mrb[0].mxu0
        %v4315 = vadd.f32 0.0, %v4314
        %v4316 = vpop.f32.mrb[0].mxu0
        %v4317 = vpop.f32.mrb[0].mxu0
        %v4318 = vadd.f32 0.0, %v4317
        %v4319 = vpop.f32.mrb[0].mxu0
        %4320 = vmatprep.mubr.bf16.mxu0 0
        %4321 = vmatmul.mubr.bf16.gmra.mrb[0].mxu0 %v4211
        %v4322 = vpop.f32.mrb[0].mxu0
        %v4323 = vadd.f32 0.0, %v4322
        %v4324 = vpop.f32.mrb[0].mxu0
        %v4325 = vpop.f32.mrb[0].mxu0
        %v4326 = vadd.f32 0.0, %v4325
        %v4327 = vpop.f32.mrb[0].mxu0
        %4328 = vmatprep.mubr.bf16.mxu0 0
        %4329 = vmatmul.mubr.bf16.gmra.mrb[0].mxu0 %v4214
        %v4330 = vpop.f32.mrb[0].mxu0
        %v4331 = vadd.f32 0.0, %v4330
        %v4332 = vpop.f32.mrb[0].mxu0
        %v4333 = vpop.f32.mrb[0].mxu0
        %v4334 = vadd.f32 0.0, %v4333
        %v4335 = vpop.f32.mrb[0].mxu0
        %4336 = vmatprep.mubr.bf16.mxu0 0
        %4337 = vmatmul.mubr.bf16.gmra.mrb[0].mxu0 %v4217
        %v4338 = vpop.f32.mrb[0].mxu0
        %v4339 = vadd.f32 0.0, %v4338
        %v4340 = vpop.f32.mrb[0].mxu0
        %v4341 = vpop.f32.mrb[0].mxu0
        %v4342 = vadd.f32 0.0, %v4341
        %v4343 = vpop.f32.mrb[0].mxu0
        %4344 = vmatprep.mubr.bf16.mxu0 0
        %4345 = vmatmul.mubr.bf16.gmra.mrb[0].mxu0 %v4220
        %v4346 = vpop.f32.mrb[0].mxu0
        %v4347 = vadd.f32 0.0, %v4346
        %v4348 = vpop.f32.mrb[0].mxu0
        %v4349 = vpop.f32.mrb[0].mxu0
        %v4350 = vadd.f32 0.0, %v4349
        %v4351 = vpop.f32.mrb[0].mxu0
        %4352 = vmatprep.mubr.bf16.mxu0 0
        %4353 = vmatmul.mubr.bf16.gmra.mrb[0].mxu0 %v4223
        %v4354 = vpop.f32.mrb[0].mxu0
        %v4355 = vadd.f32 0.0, %v4354
        %v4356 = vpop.f32.mrb[0].mxu0
        %v4357 = vpop.f32.mrb[0].mxu0
        %v4358 = vadd.f32 0.0, %v4357
        %v4359 = vpop.f32.mrb[0].mxu0
        %4360 = vmatprep.mubr.bf16.mxu0 0
        %4361 = vmatmul.mubr.bf16.gmra.mrb[0].mxu0 %v4226
        %v4362 = vpop.f32.mrb[0].mxu0
        %v4363 = vadd.f32 0.0, %v4362
        %v4364 = vpop.f32.mrb[0].mxu0
        %v4365 = vpop.f32.mrb[0].mxu0
        %v4366 = vadd.f32 0.0, %v4365
        %v4367 = vpop.f32.mrb[0].mxu0
        %4368 = vmatprep.mubr.bf16.mxu0 0
        %4369 = vmatmul.mubr.bf16.gmra.mrb[0].mxu0 %v4229
        %v4370 = vpop.f32.mrb[0].mxu0
        %v4371 = vadd.f32 0.0, %v4370
        %v4372 = vpop.f32.mrb[0].mxu0
        %v4373 = vpop.f32.mrb[0].mxu0
        %v4374 = vadd.f32 0.0, %v4373
        %v4375 = vpop.f32.mrb[0].mxu0
        %4376 = vmatprep.mubr.bf16.mxu0 0
        %4377 = vmatmul.mubr.bf16.gmra.mrb[0].mxu0 %v4232
        %v4378 = vpop.f32.mrb[0].mxu0
        %v4379 = vadd.f32 0.0, %v4378
        %v4380 = vpop.f32.mrb[0].mxu0
        %v4381 = vpop.f32.mrb[0].mxu0
        %v4382 = vadd.f32 0.0, %v4381
        %v4383 = vpop.f32.mrb[0].mxu0
        %4384 = vmatprep.mubr.bf16.mxu0 0
        %4385 = vmatmul.mubr.bf16.gmra.mrb[0].mxu0 %v4235
        %v4386 = vpop.f32.mrb[0].mxu0
        %v4387 = vadd.f32 0.0, %v4386
        %v4388 = vpop.f32.mrb[0].mxu0
        %v4389 = vpop.f32.mrb[0].mxu0
        %v4390 = vadd.f32 0.0, %v4389
        %v4391 = vpop.f32.mrb[0].mxu0
        %4392 = vmatprep.mubr.bf16.mxu0 0
        %4393 = vmatmul.mubr.bf16.gmra.mrb[0].mxu0 %v4238
        %v4394 = vpop.f32.mrb[0].mxu0
        %v4395 = vadd.f32 0.0, %v4394
        %v4396 = vpop.f32.mrb[0].mxu0
        %v4397 = vpop.f32.mrb[0].mxu0
        %v4398 = vadd.f32 0.0, %v4397
        %v4399 = vpop.f32.mrb[0].mxu0
        %4400 = vdwg.mxu0
        %v4401 = vadd.f32 %v3663, %v4275
        %v4402 = vadd.f32 %v3664, %v4278
        %v4403 = vadd.f32 %v3665, %v4283
        %v4404 = vadd.f32 %v3666, %v4286
        %v4405 = vadd.f32 %v3667, %v4291
        %v4406 = vadd.f32 %v3668, %v4294
        %v4407 = vadd.f32 %v3669, %v4299
        %v4408 = vadd.f32 %v3670, %v4302
        %v4409 = vadd.f32 %v3671, %v4307
        %v4410 = vadd.f32 %v3672, %v4310
        %v4411 = vadd.f32 %v3673, %v4315
        %v4412 = vadd.f32 %v3674, %v4318
        %v4413 = vadd.f32 %v3675, %v4323
        %v4414 = vadd.f32 %v3676, %v4326
        %v4415 = vadd.f32 %v3677, %v4331
        %v4416 = vadd.f32 %v3678, %v4334
        %v4417 = vadd.f32 %v3679, %v4339
        %v4418 = vadd.f32 %v3680, %v4342
        %v4419 = vadd.f32 %v3681, %v4347
        %v4420 = vadd.f32 %v3682, %v4350
        %v4421 = vadd.f32 %v3683, %v4355
        %v4422 = vadd.f32 %v3684, %v4358
        %v4423 = vadd.f32 %v3685, %v4363
        %v4424 = vadd.f32 %v3686, %v4366
        %v4425 = vadd.f32 %v3687, %v4371
        %v4426 = vadd.f32 %v3688, %v4374
        %v4427 = vadd.f32 %v3689, %v4379
        %v4428 = vadd.f32 %v3690, %v4382
        %v4429 = vadd.f32 %v3691, %v4387
        %v4430 = vadd.f32 %v3692, %v4390
        %v4431 = vadd.f32 %v3693, %v4395
        %v4432 = vadd.f32 %v3694, %v4398
        %v4433 = vld [vmem:[%s3324] sm:$0xe]
        %v4434 = vld [vmem:[%s3324 + $0xc] sm:$0xe]
        %v4435 = vld [vmem:[%s3324 + $0x18] sm:$0xe]
        %v4436 = vld [vmem:[%s3324 + $0x24] sm:$0xe]
        %v4437 = vld [vmem:[%s3324 + $0x30] sm:$0xe]
        %v4438 = vld [vmem:[%s3324 + $0x3c] sm:$0xe]
        %v4439 = vld [vmem:[%s3324 + $0x48] sm:$0xe]
        %v4440 = vld [vmem:[%s3324 + $0x54] sm:$0xe]
        %v4441 = vld [vmem:[%s3324 + $0x60] sm:$0xe]
        %v4442 = vld [vmem:[%s3324 + $0x6c] sm:$0xe]
        %v4443 = vld [vmem:[%s3324 + $0x78] sm:$0xe]
        %v4444 = vld [vmem:[%s3324 + $0x84] sm:$0xe]
        %v4445 = vld [vmem:[%s3324 + $0x90] sm:$0xe]
        %v4446 = vld [vmem:[%s3324 + $0x9c] sm:$0xe]
        %v4447 = vld [vmem:[%s3324 + $0xa8] sm:$0xe]
        %v4448 = vld [vmem:[%s3324 + $0xb4] sm:$0xe]
        %v4497 = vrot.slane %v4433, 5
        %v4498 = vrot.slane %v4497, 4
        %v4499 = vrot.slane %v3696, 5
        %v4500 = vsel %vm1282, %v4498, %v4499
        %v4501 = vrot.slane %v4499, 4
        %v4502 = vrot.slane %v3697, 5
        %v4503 = vsel %vm1282, %v4501, %v4502
        %v4504 = vrot.slane %v4434, 5
        %v4505 = vrot.slane %v4504, 4
        %v4506 = vrot.slane %v3699, 5
        %v4507 = vsel %vm1282, %v4505, %v4506
        %v4508 = vrot.slane %v4506, 4
        %v4509 = vrot.slane %v3700, 5
        %v4510 = vsel %vm1282, %v4508, %v4509
        %v4511 = vrot.slane %v4435, 5
        %v4512 = vrot.slane %v4511, 4
        %v4513 = vrot.slane %v3702, 5
        %v4514 = vsel %vm1282, %v4512, %v4513
        %v4515 = vrot.slane %v4513, 4
        %v4516 = vrot.slane %v3703, 5
        %v4517 = vsel %vm1282, %v4515, %v4516
        %v4518 = vrot.slane %v4436, 5
        %v4519 = vrot.slane %v4518, 4
        %v4520 = vrot.slane %v3705, 5
        %v4521 = vsel %vm1282, %v4519, %v4520
        %v4522 = vrot.slane %v4520, 4
        %v4523 = vrot.slane %v3706, 5
        %v4524 = vsel %vm1282, %v4522, %v4523
        %v4525 = vrot.slane %v4437, 5
        %v4526 = vrot.slane %v4525, 4
        %v4527 = vrot.slane %v3708, 5
        %v4528 = vsel %vm1282, %v4526, %v4527
        %v4529 = vrot.slane %v4527, 4
        %v4530 = vrot.slane %v3709, 5
        %v4531 = vsel %vm1282, %v4529, %v4530
        %v4532 = vrot.slane %v4438, 5
        %v4533 = vrot.slane %v4532, 4
        %v4534 = vrot.slane %v3711, 5
        %v4535 = vsel %vm1282, %v4533, %v4534
        %v4536 = vrot.slane %v4534, 4
        %v4537 = vrot.slane %v3712, 5
        %v4538 = vsel %vm1282, %v4536, %v4537
        %v4539 = vrot.slane %v4439, 5
        %v4540 = vrot.slane %v4539, 4
        %v4541 = vrot.slane %v3714, 5
        %v4542 = vsel %vm1282, %v4540, %v4541
        %v4543 = vrot.slane %v4541, 4
        %v4544 = vrot.slane %v3715, 5
        %v4545 = vsel %vm1282, %v4543, %v4544
        %v4546 = vrot.slane %v4440, 5
        %v4547 = vrot.slane %v4546, 4
        %v4548 = vrot.slane %v3717, 5
        %v4549 = vsel %vm1282, %v4547, %v4548
        %v4550 = vrot.slane %v4548, 4
        %v4551 = vrot.slane %v3718, 5
        %v4552 = vsel %vm1282, %v4550, %v4551
        %v4553 = vrot.slane %v4441, 5
        %v4554 = vrot.slane %v4553, 4
        %v4555 = vrot.slane %v3720, 5
        %v4556 = vsel %vm1282, %v4554, %v4555
        %v4557 = vrot.slane %v4555, 4
        %v4558 = vrot.slane %v3721, 5
        %v4559 = vsel %vm1282, %v4557, %v4558
        %v4560 = vrot.slane %v4442, 5
        %v4561 = vrot.slane %v4560, 4
        %v4562 = vrot.slane %v3723, 5
        %v4563 = vsel %vm1282, %v4561, %v4562
        %v4564 = vrot.slane %v4562, 4
        %v4565 = vrot.slane %v3724, 5
        %v4566 = vsel %vm1282, %v4564, %v4565
        %v4567 = vrot.slane %v4443, 5
        %v4568 = vrot.slane %v4567, 4
        %v4569 = vrot.slane %v3726, 5
        %v4570 = vsel %vm1282, %v4568, %v4569
        %v4571 = vrot.slane %v4569, 4
        %v4572 = vrot.slane %v3727, 5
        %v4573 = vsel %vm1282, %v4571, %v4572
        %v4574 = vrot.slane %v4444, 5
        %v4575 = vrot.slane %v4574, 4
        %v4576 = vrot.slane %v3729, 5
        %v4577 = vsel %vm1282, %v4575, %v4576
        %v4578 = vrot.slane %v4576, 4
        %v4579 = vrot.slane %v3730, 5
        %v4580 = vsel %vm1282, %v4578, %v4579
        %v4581 = vrot.slane %v4445, 5
        %v4582 = vrot.slane %v4581, 4
        %v4583 = vrot.slane %v3732, 5
        %v4584 = vsel %vm1282, %v4582, %v4583
        %v4585 = vrot.slane %v4583, 4
        %v4586 = vrot.slane %v3733, 5
        %v4587 = vsel %vm1282, %v4585, %v4586
        %v4588 = vrot.slane %v4446, 5
        %v4589 = vrot.slane %v4588, 4
        %v4590 = vrot.slane %v3735, 5
        %v4591 = vsel %vm1282, %v4589, %v4590
        %v4592 = vrot.slane %v4590, 4
        %v4593 = vrot.slane %v3736, 5
        %v4594 = vsel %vm1282, %v4592, %v4593
        %v4595 = vrot.slane %v4447, 5
        %v4596 = vrot.slane %v4595, 4
        %v4597 = vrot.slane %v3738, 5
        %v4598 = vsel %vm1282, %v4596, %v4597
        %v4599 = vrot.slane %v4597, 4
        %v4600 = vrot.slane %v3739, 5
        %v4601 = vsel %vm1282, %v4599, %v4600
        %v4602 = vrot.slane %v4448, 5
        %v4603 = vrot.slane %v4602, 4
        %v4604 = vrot.slane %v3741, 5
        %v4605 = vsel %vm1282, %v4603, %v4604
        %v4606 = vrot.slane %v4604, 4
        %v4607 = vrot.slane %v3742, 5
        %v4608 = vsel %vm1282, %v4606, %v4607
        %s4609 = scalar_lea.vmem [#allocation5], 128
        %v4610 = vld [vmem:[%s4609] sm:$0xf]
        %v4611 = vld [vmem:[%s4609 + $0x4] sm:$0xf]
        %v4612 = vld [vmem:[%s4609 + $0x8] sm:$0xf]
        %v4613 = vld [vmem:[%s4609 + $0xc] sm:$0xf]
        %v4614 = vunpack.c.l.b16 %v4500
        %v4615 = vunpack.c.l.b16 %v4503
        %v4616 = vunpack.c.l.b16 %v4507
        %v4617 = vunpack.c.l.b16 %v4510
        %v4618 = vunpack.c.l.b16 %v4514
        %v4619 = vunpack.c.l.b16 %v4517
        %v4620 = vunpack.c.l.b16 %v4521
        %v4621 = vunpack.c.l.b16 %v4524
        %v4622 = vunpack.c.l.b16 %v4528
        %v4623 = vunpack.c.l.b16 %v4531
        %v4624 = vunpack.c.l.b16 %v4535
        %v4625 = vunpack.c.l.b16 %v4538
        %v4626 = vunpack.c.l.b16 %v4542
        %v4627 = vunpack.c.l.b16 %v4545
        %v4628 = vunpack.c.l.b16 %v4549
        %v4629 = vunpack.c.l.b16 %v4552
        %v4630 = vunpack.c.l.b16 %v4556
        %v4631 = vunpack.c.l.b16 %v4559
        %v4632 = vunpack.c.l.b16 %v4563
        %v4633 = vunpack.c.l.b16 %v4566
        %v4634 = vunpack.c.l.b16 %v4570
        %v4635 = vunpack.c.l.b16 %v4573
        %v4636 = vunpack.c.l.b16 %v4577
        %v4637 = vunpack.c.l.b16 %v4580
        %v4638 = vunpack.c.l.b16 %v4584
        %v4639 = vunpack.c.l.b16 %v4587
        %v4640 = vunpack.c.l.b16 %v4591
        %v4641 = vunpack.c.l.b16 %v4594
        %v4642 = vunpack.c.l.b16 %v4598
        %v4643 = vunpack.c.l.b16 %v4601
        %v4644 = vunpack.c.l.b16 %v4605
        %v4645 = vunpack.c.l.b16 %v4608
        %v4646 = vpack.c.b16 %v4615, %v4614
        %v4647 = vpack.c.b16 %v4617, %v4616
        %v4648 = vpack.c.b16 %v4619, %v4618
        %v4649 = vpack.c.b16 %v4621, %v4620
        %v4650 = vpack.c.b16 %v4623, %v4622
        %v4651 = vpack.c.b16 %v4625, %v4624
        %v4652 = vpack.c.b16 %v4627, %v4626
        %v4653 = vpack.c.b16 %v4629, %v4628
        %v4654 = vpack.c.b16 %v4631, %v4630
        %v4655 = vpack.c.b16 %v4633, %v4632
        %v4656 = vpack.c.b16 %v4635, %v4634
        %v4657 = vpack.c.b16 %v4637, %v4636
        %v4658 = vpack.c.b16 %v4639, %v4638
        %v4659 = vpack.c.b16 %v4641, %v4640
        %v4660 = vpack.c.b16 %v4643, %v4642
        %v4661 = vpack.c.b16 %v4645, %v4644
        %v4666 = vunpack.c.l.b16 %v4610
        %v4667 = vunpack.c.l.b16 %v4611
        %v4668 = vunpack.c.l.b16 %v4612
        %v4669 = vunpack.c.l.b16 %v4613
        %v4670 = vpack.c.b16 %v4667, %v4666
        %v4671 = vpack.c.b16 %v4669, %v4668
        %v4675 = vsel %vm721, %v4646, 0
        %v4678 = vsel %vm721, %v4647, 0
        %v4681 = vsel %vm721, %v4648, 0
        %v4684 = vsel %vm721, %v4649, 0
        %v4687 = vsel %vm721, %v4650, 0
        %v4690 = vsel %vm721, %v4651, 0
        %v4693 = vsel %vm721, %v4652, 0
        %v4696 = vsel %vm721, %v4653, 0
        %v4699 = vsel %vm721, %v4654, 0
        %v4702 = vsel %vm721, %v4655, 0
        %v4705 = vsel %vm721, %v4656, 0
        %v4708 = vsel %vm721, %v4657, 0
        %v4711 = vsel %vm721, %v4658, 0
        %v4714 = vsel %vm721, %v4659, 0
        %v4717 = vsel %vm721, %v4660, 0
        %v4720 = vsel %vm721, %v4661, 0
        %4722 = vmatprep.subr.bf16.mxu0 0
        %4723 = vmatpush1.bf16.msra.mxu0 %v4670
        %4724 = vmatprep.subr.bf16.mxu0 0
        %4725 = vmatpush1.bf16.msra.mxu0 %v4671
        %4726 = vmatprep.subr.bf16.mxu0 0
        %4727 = vmatpush1.bf16.msra.mxu0 0
        %4728 = vmatprep.subr.bf16.mxu0 0
        %4729 = vmatpush1.bf16.msra.mxu0 0
        %4730 = vmatprep.subr.bf16.mxu0 0
        %4731 = vmatpush1.bf16.msra.mxu0 0
        %4732 = vmatprep.subr.bf16.mxu0 0
        %4733 = vmatpush1.bf16.msra.mxu0 0
        %4734 = vmatprep.subr.bf16.mxu0 0
        %4735 = vmatpush1.bf16.msra.mxu0 0
        %4736 = vmatprep.subr.bf16.mxu0 0
        %4737 = vmatpush1.bf16.msra.mxu0 0
        %4738 = vmatprep.subr.bf16.mxu0 0
        %4739 = vmatpush1.bf16.msra.mxu0 0
        %4740 = vmatprep.subr.bf16.mxu0 0
        %4741 = vmatpush1.bf16.msra.mxu0 0
        %4742 = vmatprep.subr.bf16.mxu0 0
        %4743 = vmatpush1.bf16.msra.mxu0 0
        %4744 = vmatprep.subr.bf16.mxu0 0
        %4745 = vmatpush1.bf16.msra.mxu0 0
        %4746 = vmatprep.subr.bf16.mxu0 0
        %4747 = vmatpush1.bf16.msra.mxu0 0
        %4748 = vmatprep.subr.bf16.mxu0 0
        %4749 = vmatpush1.bf16.msra.mxu0 0
        %4750 = vmatprep.subr.bf16.mxu0 0
        %4751 = vmatpush1.bf16.msra.mxu0 0
        %4752 = vmatprep.subr.bf16.mxu0 0
        %4753 = vmatpush1.bf16.msra.mxu0 0
        %4754 = vmatprep.mubr.bf16.mxu0 0
        %4755 = vmatmul.mubr.bf16.gmra.mrb[0].mxu0 %v4675
        %v4756 = vpop.f32.mrb[0].mxu0
        %v4757 = vadd.f32 0.0, %v4756
        %v4758 = vpop.f32.mrb[0].mxu0
        %v4759 = vpop.f32.mrb[0].mxu0
        %v4760 = vadd.f32 0.0, %v4759
        %v4761 = vpop.f32.mrb[0].mxu0
        %4762 = vmatprep.mubr.bf16.mxu0 0
        %4763 = vmatmul.mubr.bf16.gmra.mrb[0].mxu0 %v4678
        %v4764 = vpop.f32.mrb[0].mxu0
        %v4765 = vadd.f32 0.0, %v4764
        %v4766 = vpop.f32.mrb[0].mxu0
        %v4767 = vpop.f32.mrb[0].mxu0
        %v4768 = vadd.f32 0.0, %v4767
        %v4769 = vpop.f32.mrb[0].mxu0
        %4770 = vmatprep.mubr.bf16.mxu0 0
        %4771 = vmatmul.mubr.bf16.gmra.mrb[0].mxu0 %v4681
        %v4772 = vpop.f32.mrb[0].mxu0
        %v4773 = vadd.f32 0.0, %v4772
        %v4774 = vpop.f32.mrb[0].mxu0
        %v4775 = vpop.f32.mrb[0].mxu0
        %v4776 = vadd.f32 0.0, %v4775
        %v4777 = vpop.f32.mrb[0].mxu0
        %4778 = vmatprep.mubr.bf16.mxu0 0
        %4779 = vmatmul.mubr.bf16.gmra.mrb[0].mxu0 %v4684
        %v4780 = vpop.f32.mrb[0].mxu0
        %v4781 = vadd.f32 0.0, %v4780
        %v4782 = vpop.f32.mrb[0].mxu0
        %v4783 = vpop.f32.mrb[0].mxu0
        %v4784 = vadd.f32 0.0, %v4783
        %v4785 = vpop.f32.mrb[0].mxu0
        %4786 = vmatprep.mubr.bf16.mxu0 0
        %4787 = vmatmul.mubr.bf16.gmra.mrb[0].mxu0 %v4687
        %v4788 = vpop.f32.mrb[0].mxu0
        %v4789 = vadd.f32 0.0, %v4788
        %v4790 = vpop.f32.mrb[0].mxu0
        %v4791 = vpop.f32.mrb[0].mxu0
        %v4792 = vadd.f32 0.0, %v4791
        %v4793 = vpop.f32.mrb[0].mxu0
        %4794 = vmatprep.mubr.bf16.mxu0 0
        %4795 = vmatmul.mubr.bf16.gmra.mrb[0].mxu0 %v4690
        %v4796 = vpop.f32.mrb[0].mxu0
        %v4797 = vadd.f32 0.0, %v4796
        %v4798 = vpop.f32.mrb[0].mxu0
        %v4799 = vpop.f32.mrb[0].mxu0
        %v4800 = vadd.f32 0.0, %v4799
        %v4801 = vpop.f32.mrb[0].mxu0
        %4802 = vmatprep.mubr.bf16.mxu0 0
        %4803 = vmatmul.mubr.bf16.gmra.mrb[0].mxu0 %v4693
        %v4804 = vpop.f32.mrb[0].mxu0
        %v4805 = vadd.f32 0.0, %v4804
        %v4806 = vpop.f32.mrb[0].mxu0
        %v4807 = vpop.f32.mrb[0].mxu0
        %v4808 = vadd.f32 0.0, %v4807
        %v4809 = vpop.f32.mrb[0].mxu0
        %4810 = vmatprep.mubr.bf16.mxu0 0
        %4811 = vmatmul.mubr.bf16.gmra.mrb[0].mxu0 %v4696
        %v4812 = vpop.f32.mrb[0].mxu0
        %v4813 = vadd.f32 0.0, %v4812
        %v4814 = vpop.f32.mrb[0].mxu0
        %v4815 = vpop.f32.mrb[0].mxu0
        %v4816 = vadd.f32 0.0, %v4815
        %v4817 = vpop.f32.mrb[0].mxu0
        %4818 = vmatprep.mubr.bf16.mxu0 0
        %4819 = vmatmul.mubr.bf16.gmra.mrb[0].mxu0 %v4699
        %v4820 = vpop.f32.mrb[0].mxu0
        %v4821 = vadd.f32 0.0, %v4820
        %v4822 = vpop.f32.mrb[0].mxu0
        %v4823 = vpop.f32.mrb[0].mxu0
        %v4824 = vadd.f32 0.0, %v4823
        %v4825 = vpop.f32.mrb[0].mxu0
        %4826 = vmatprep.mubr.bf16.mxu0 0
        %4827 = vmatmul.mubr.bf16.gmra.mrb[0].mxu0 %v4702
        %v4828 = vpop.f32.mrb[0].mxu0
        %v4829 = vadd.f32 0.0, %v4828
        %v4830 = vpop.f32.mrb[0].mxu0
        %v4831 = vpop.f32.mrb[0].mxu0
        %v4832 = vadd.f32 0.0, %v4831
        %v4833 = vpop.f32.mrb[0].mxu0
        %4834 = vmatprep.mubr.bf16.mxu0 0
        %4835 = vmatmul.mubr.bf16.gmra.mrb[0].mxu0 %v4705
        %v4836 = vpop.f32.mrb[0].mxu0
        %v4837 = vadd.f32 0.0, %v4836
        %v4838 = vpop.f32.mrb[0].mxu0
        %v4839 = vpop.f32.mrb[0].mxu0
        %v4840 = vadd.f32 0.0, %v4839
        %v4841 = vpop.f32.mrb[0].mxu0
        %4842 = vmatprep.mubr.bf16.mxu0 0
        %4843 = vmatmul.mubr.bf16.gmra.mrb[0].mxu0 %v4708
        %v4844 = vpop.f32.mrb[0].mxu0
        %v4845 = vadd.f32 0.0, %v4844
        %v4846 = vpop.f32.mrb[0].mxu0
        %v4847 = vpop.f32.mrb[0].mxu0
        %v4848 = vadd.f32 0.0, %v4847
        %v4849 = vpop.f32.mrb[0].mxu0
        %4850 = vmatprep.mubr.bf16.mxu0 0
        %4851 = vmatmul.mubr.bf16.gmra.mrb[0].mxu0 %v4711
        %v4852 = vpop.f32.mrb[0].mxu0
        %v4853 = vadd.f32 0.0, %v4852
        %v4854 = vpop.f32.mrb[0].mxu0
        %v4855 = vpop.f32.mrb[0].mxu0
        %v4856 = vadd.f32 0.0, %v4855
        %v4857 = vpop.f32.mrb[0].mxu0
        %4858 = vmatprep.mubr.bf16.mxu0 0
        %4859 = vmatmul.mubr.bf16.gmra.mrb[0].mxu0 %v4714
        %v4860 = vpop.f32.mrb[0].mxu0
        %v4861 = vadd.f32 0.0, %v4860
        %v4862 = vpop.f32.mrb[0].mxu0
        %v4863 = vpop.f32.mrb[0].mxu0
        %v4864 = vadd.f32 0.0, %v4863
        %v4865 = vpop.f32.mrb[0].mxu0
        %4866 = vmatprep.mubr.bf16.mxu0 0
        %4867 = vmatmul.mubr.bf16.gmra.mrb[0].mxu0 %v4717
        %v4868 = vpop.f32.mrb[0].mxu0
        %v4869 = vadd.f32 0.0, %v4868
        %v4870 = vpop.f32.mrb[0].mxu0
        %v4871 = vpop.f32.mrb[0].mxu0
        %v4872 = vadd.f32 0.0, %v4871
        %v4873 = vpop.f32.mrb[0].mxu0
        %4874 = vmatprep.mubr.bf16.mxu0 0
        %4875 = vmatmul.mubr.bf16.gmra.mrb[0].mxu0 %v4720
        %v4876 = vpop.f32.mrb[0].mxu0
        %v4877 = vadd.f32 0.0, %v4876
        %v4878 = vpop.f32.mrb[0].mxu0
        %v4879 = vpop.f32.mrb[0].mxu0
        %v4880 = vadd.f32 0.0, %v4879
        %v4881 = vpop.f32.mrb[0].mxu0
        %4882 = vdwg.mxu0
        %v4883 = vadd.f32 %v4401, %v4757
        %v4884 = vadd.f32 %v4402, %v4760
        %v4885 = vadd.f32 %v4403, %v4765
        %v4886 = vadd.f32 %v4404, %v4768
        %v4887 = vadd.f32 %v4405, %v4773
        %v4888 = vadd.f32 %v4406, %v4776
        %v4889 = vadd.f32 %v4407, %v4781
        %v4890 = vadd.f32 %v4408, %v4784
        %v4891 = vadd.f32 %v4409, %v4789
        %v4892 = vadd.f32 %v4410, %v4792
        %v4893 = vadd.f32 %v4411, %v4797
        %v4894 = vadd.f32 %v4412, %v4800
        %v4895 = vadd.f32 %v4413, %v4805
        %v4896 = vadd.f32 %v4414, %v4808
        %v4897 = vadd.f32 %v4415, %v4813
        %v4898 = vadd.f32 %v4416, %v4816
        %v4899 = vadd.f32 %v4417, %v4821
        %v4900 = vadd.f32 %v4418, %v4824
        %v4901 = vadd.f32 %v4419, %v4829
        %v4902 = vadd.f32 %v4420, %v4832
        %v4903 = vadd.f32 %v4421, %v4837
        %v4904 = vadd.f32 %v4422, %v4840
        %v4905 = vadd.f32 %v4423, %v4845
        %v4906 = vadd.f32 %v4424, %v4848
        %v4907 = vadd.f32 %v4425, %v4853
        %v4908 = vadd.f32 %v4426, %v4856
        %v4909 = vadd.f32 %v4427, %v4861
        %v4910 = vadd.f32 %v4428, %v4864
        %v4911 = vadd.f32 %v4429, %v4869
        %v4912 = vadd.f32 %v4430, %v4872
        %v4913 = vadd.f32 %v4431, %v4877
        %v4914 = vadd.f32 %v4432, %v4880
        %v4915 = vld [vmem:[#allocation7] sm:$0x1]
        %v4917 = vlaneseq
        %v4918 = vshrl.u32 %v4917, 7
        %v4919 = vsub.s32 0, %v4918
        %v4920 = vrot.slane %v4915, %v4919
        %v4922 = vadd.f32 %v4883, %v4920
        %v4923 = vadd.f32 %v4884, %v4920
        %v4924 = vadd.f32 %v4885, %v4920
        %v4925 = vadd.f32 %v4886, %v4920
        %v4926 = vadd.f32 %v4887, %v4920
        %v4927 = vadd.f32 %v4888, %v4920
        %v4928 = vadd.f32 %v4889, %v4920
        %v4929 = vadd.f32 %v4890, %v4920
        %v4930 = vadd.f32 %v4891, %v4920
        %v4931 = vadd.f32 %v4892, %v4920
        %v4932 = vadd.f32 %v4893, %v4920
        %v4933 = vadd.f32 %v4894, %v4920
        %v4934 = vadd.f32 %v4895, %v4920
        %v4935 = vadd.f32 %v4896, %v4920
        %v4936 = vadd.f32 %v4897, %v4920
        %v4937 = vadd.f32 %v4898, %v4920
        %v4938 = vadd.f32 %v4899, %v4920
        %v4939 = vadd.f32 %v4900, %v4920
        %v4940 = vadd.f32 %v4901, %v4920
        %v4941 = vadd.f32 %v4902, %v4920
        %v4942 = vadd.f32 %v4903, %v4920
        %v4943 = vadd.f32 %v4904, %v4920
        %v4944 = vadd.f32 %v4905, %v4920
        %v4945 = vadd.f32 %v4906, %v4920
        %v4946 = vadd.f32 %v4907, %v4920
        %v4947 = vadd.f32 %v4908, %v4920
        %v4948 = vadd.f32 %v4909, %v4920
        %v4949 = vadd.f32 %v4910, %v4920
        %v4950 = vadd.f32 %v4911, %v4920
        %v4951 = vadd.f32 %v4912, %v4920
        %v4952 = vadd.f32 %v4913, %v4920
        %v4953 = vadd.f32 %v4914, %v4920
        %v4954 = vsub.f32 0.0, %v4922
        %v4955 = vsub.f32 0.0, %v4923
        %v4956 = vsub.f32 0.0, %v4924
        %v4957 = vsub.f32 0.0, %v4925
        %v4958 = vsub.f32 0.0, %v4926
        %v4959 = vsub.f32 0.0, %v4927
        %v4960 = vsub.f32 0.0, %v4928
        %v4961 = vsub.f32 0.0, %v4929
        %v4962 = vsub.f32 0.0, %v4930
        %v4963 = vsub.f32 0.0, %v4931
        %v4964 = vsub.f32 0.0, %v4932
        %v4965 = vsub.f32 0.0, %v4933
        %v4966 = vsub.f32 0.0, %v4934
        %v4967 = vsub.f32 0.0, %v4935
        %v4968 = vsub.f32 0.0, %v4936
        %v4969 = vsub.f32 0.0, %v4937
        %v4970 = vsub.f32 0.0, %v4938
        %v4971 = vsub.f32 0.0, %v4939
        %v4972 = vsub.f32 0.0, %v4940
        %v4973 = vsub.f32 0.0, %v4941
        %v4974 = vsub.f32 0.0, %v4942
        %v4975 = vsub.f32 0.0, %v4943
        %v4976 = vsub.f32 0.0, %v4944
        %v4977 = vsub.f32 0.0, %v4945
        %v4978 = vsub.f32 0.0, %v4946
        %v4979 = vsub.f32 0.0, %v4947
        %v4980 = vsub.f32 0.0, %v4948
        %v4981 = vsub.f32 0.0, %v4949
        %v4982 = vsub.f32 0.0, %v4950
        %v4983 = vsub.f32 0.0, %v4951
        %v4984 = vsub.f32 0.0, %v4952
        %v4985 = vsub.f32 0.0, %v4953
        %v4986 = vmul.f32 %v4954, 1.442695
        %v4987 = vpow.pop %v4986
        %v4988 = vmul.f32 %v4955, 1.442695
        %v4989 = vpow.pop %v4988
        %v4990 = vmul.f32 %v4956, 1.442695
        %v4991 = vpow.pop %v4990
        %v4992 = vmul.f32 %v4957, 1.442695
        %v4993 = vpow.pop %v4992
        %v4994 = vmul.f32 %v4958, 1.442695
        %v4995 = vpow.pop %v4994
        %v4996 = vmul.f32 %v4959, 1.442695
        %v4997 = vpow.pop %v4996
        %v4998 = vmul.f32 %v4960, 1.442695
        %v4999 = vpow.pop %v4998
        %v5000 = vmul.f32 %v4961, 1.442695
        %v5001 = vpow.pop %v5000
        %v5002 = vmul.f32 %v4962, 1.442695
        %v5003 = vpow.pop %v5002
        %v5004 = vmul.f32 %v4963, 1.442695
        %v5005 = vpow.pop %v5004
        %v5006 = vmul.f32 %v4964, 1.442695
        %v5007 = vpow.pop %v5006
        %v5008 = vmul.f32 %v4965, 1.442695
        %v5009 = vpow.pop %v5008
        %v5010 = vmul.f32 %v4966, 1.442695
        %v5011 = vpow.pop %v5010
        %v5012 = vmul.f32 %v4967, 1.442695
        %v5013 = vpow.pop %v5012
        %v5014 = vmul.f32 %v4968, 1.442695
        %v5015 = vpow.pop %v5014
        %v5016 = vmul.f32 %v4969, 1.442695
        %v5017 = vpow.pop %v5016
        %v5018 = vmul.f32 %v4970, 1.442695
        %v5019 = vpow.pop %v5018
        %v5020 = vmul.f32 %v4971, 1.442695
        %v5021 = vpow.pop %v5020
        %v5022 = vmul.f32 %v4972, 1.442695
        %v5023 = vpow.pop %v5022
        %v5024 = vmul.f32 %v4973, 1.442695
        %v5025 = vpow.pop %v5024
        %v5026 = vmul.f32 %v4974, 1.442695
        %v5027 = vpow.pop %v5026
        %v5028 = vmul.f32 %v4975, 1.442695
        %v5029 = vpow.pop %v5028
        %v5030 = vmul.f32 %v4976, 1.442695
        %v5031 = vpow.pop %v5030
        %v5032 = vmul.f32 %v4977, 1.442695
        %v5033 = vpow.pop %v5032
        %v5034 = vmul.f32 %v4978, 1.442695
        %v5035 = vpow.pop %v5034
        %v5036 = vmul.f32 %v4979, 1.442695
        %v5037 = vpow.pop %v5036
        %v5038 = vmul.f32 %v4980, 1.442695
        %v5039 = vpow.pop %v5038
        %v5040 = vmul.f32 %v4981, 1.442695
        %v5041 = vpow.pop %v5040
        %v5042 = vmul.f32 %v4982, 1.442695
        %v5043 = vpow.pop %v5042
        %v5044 = vmul.f32 %v4983, 1.442695
        %v5045 = vpow.pop %v5044
        %v5046 = vmul.f32 %v4984, 1.442695
        %v5047 = vpow.pop %v5046
        %v5048 = vmul.f32 %v4985, 1.442695
        %v5049 = vpow.pop %v5048
        %v5050 = vadd.f32 %v4987, 1.0
        %v5051 = vadd.f32 %v4989, 1.0
        %v5052 = vadd.f32 %v4991, 1.0
        %v5053 = vadd.f32 %v4993, 1.0
        %v5054 = vadd.f32 %v4995, 1.0
        %v5055 = vadd.f32 %v4997, 1.0
        %v5056 = vadd.f32 %v4999, 1.0
        %v5057 = vadd.f32 %v5001, 1.0
        %v5058 = vadd.f32 %v5003, 1.0
        %v5059 = vadd.f32 %v5005, 1.0
        %v5060 = vadd.f32 %v5007, 1.0
        %v5061 = vadd.f32 %v5009, 1.0
        %v5062 = vadd.f32 %v5011, 1.0
        %v5063 = vadd.f32 %v5013, 1.0
        %v5064 = vadd.f32 %v5015, 1.0
        %v5065 = vadd.f32 %v5017, 1.0
        %v5066 = vadd.f32 %v5019, 1.0
        %v5067 = vadd.f32 %v5021, 1.0
        %v5068 = vadd.f32 %v5023, 1.0
        %v5069 = vadd.f32 %v5025, 1.0
        %v5070 = vadd.f32 %v5027, 1.0
        %v5071 = vadd.f32 %v5029, 1.0
        %v5072 = vadd.f32 %v5031, 1.0
        %v5073 = vadd.f32 %v5033, 1.0
        %v5074 = vadd.f32 %v5035, 1.0
        %v5075 = vadd.f32 %v5037, 1.0
        %v5076 = vadd.f32 %v5039, 1.0
        %v5077 = vadd.f32 %v5041, 1.0
        %v5078 = vadd.f32 %v5043, 1.0
        %v5079 = vadd.f32 %v5045, 1.0
        %v5080 = vadd.f32 %v5047, 1.0
        %v5081 = vadd.f32 %v5049, 1.0
        %v5082 = vrcp.pop %v5050
        %v5083 = vrcp.pop %v5051
        %v5084 = vrcp.pop %v5052
        %v5085 = vrcp.pop %v5053
        %v5086 = vrcp.pop %v5054
        %v5087 = vrcp.pop %v5055
        %v5088 = vrcp.pop %v5056
        %v5089 = vrcp.pop %v5057
        %v5090 = vrcp.pop %v5058
        %v5091 = vrcp.pop %v5059
        %v5092 = vrcp.pop %v5060
        %v5093 = vrcp.pop %v5061
        %v5094 = vrcp.pop %v5062
        %v5095 = vrcp.pop %v5063
        %v5096 = vrcp.pop %v5064
        %v5097 = vrcp.pop %v5065
        %v5098 = vrcp.pop %v5066
        %v5099 = vrcp.pop %v5067
        %v5100 = vrcp.pop %v5068
        %v5101 = vrcp.pop %v5069
        %v5102 = vrcp.pop %v5070
        %v5103 = vrcp.pop %v5071
        %v5104 = vrcp.pop %v5072
        %v5105 = vrcp.pop %v5073
        %v5106 = vrcp.pop %v5074
        %v5107 = vrcp.pop %v5075
        %v5108 = vrcp.pop %v5076
        %v5109 = vrcp.pop %v5077
        %v5110 = vrcp.pop %v5078
        %v5111 = vrcp.pop %v5079
        %v5112 = vrcp.pop %v5080
        %v5113 = vrcp.pop %v5081
        %v5114 = vunpack.c.l.bf16 %v2133
        %v5115 = vunpack.c.l.bf16 %v2143
        %v5116 = vunpack.c.l.bf16 %v2157
        %v5117 = vunpack.c.l.bf16 %v2167
        %v5118 = vunpack.c.l.bf16 %v2181
        %v5119 = vunpack.c.l.bf16 %v2191
        %v5120 = vunpack.c.l.bf16 %v2205
        %v5121 = vunpack.c.l.bf16 %v2215
        %v5122 = vunpack.c.l.bf16 %v2229
        %v5123 = vunpack.c.l.bf16 %v2239
        %v5124 = vunpack.c.l.bf16 %v2253
        %v5125 = vunpack.c.l.bf16 %v2263
        %v5126 = vunpack.c.l.bf16 %v2277
        %v5127 = vunpack.c.l.bf16 %v2287
        %v5128 = vunpack.c.l.bf16 %v2301
        %v5129 = vunpack.c.l.bf16 %v2311
        %v5130 = vunpack.c.l.bf16 %v2325
        %v5131 = vunpack.c.l.bf16 %v2335
        %v5132 = vunpack.c.l.bf16 %v2349
        %v5133 = vunpack.c.l.bf16 %v2359
        %v5134 = vunpack.c.l.bf16 %v2373
        %v5135 = vunpack.c.l.bf16 %v2383
        %v5136 = vunpack.c.l.bf16 %v2397
        %v5137 = vunpack.c.l.bf16 %v2407
        %v5138 = vunpack.c.l.bf16 %v2421
        %v5139 = vunpack.c.l.bf16 %v2431
        %v5140 = vunpack.c.l.bf16 %v2445
        %v5141 = vunpack.c.l.bf16 %v2455
        %v5142 = vunpack.c.l.bf16 %v2469
        %v5143 = vunpack.c.l.bf16 %v2479
        %v5144 = vunpack.c.l.bf16 %v2493
        %v5145 = vunpack.c.l.bf16 %v2503
        %v5146 = vmul.f32 %v5082, %v5114
        %v5147 = vmul.f32 %v5083, %v5115
        %v5148 = vmul.f32 %v5084, %v5116
        %v5149 = vmul.f32 %v5085, %v5117
        %v5150 = vmul.f32 %v5086, %v5118
        %v5151 = vmul.f32 %v5087, %v5119
        %v5152 = vmul.f32 %v5088, %v5120
        %v5153 = vmul.f32 %v5089, %v5121
        %v5154 = vmul.f32 %v5090, %v5122
        %v5155 = vmul.f32 %v5091, %v5123
        %v5156 = vmul.f32 %v5092, %v5124
        %v5157 = vmul.f32 %v5093, %v5125
        %v5158 = vmul.f32 %v5094, %v5126
        %v5159 = vmul.f32 %v5095, %v5127
        %v5160 = vmul.f32 %v5096, %v5128
        %v5161 = vmul.f32 %v5097, %v5129
        %v5162 = vmul.f32 %v5098, %v5130
        %v5163 = vmul.f32 %v5099, %v5131
        %v5164 = vmul.f32 %v5100, %v5132
        %v5165 = vmul.f32 %v5101, %v5133
        %v5166 = vmul.f32 %v5102, %v5134
        %v5167 = vmul.f32 %v5103, %v5135
        %v5168 = vmul.f32 %v5104, %v5136
        %v5169 = vmul.f32 %v5105, %v5137
        %v5170 = vmul.f32 %v5106, %v5138
        %v5171 = vmul.f32 %v5107, %v5139
        %v5172 = vmul.f32 %v5108, %v5140
        %v5173 = vmul.f32 %v5109, %v5141
        %v5174 = vmul.f32 %v5110, %v5142
        %v5175 = vmul.f32 %v5111, %v5143
        %v5176 = vmul.f32 %v5112, %v5144
        %v5177 = vmul.f32 %v5113, %v5145
        %v5178 = vadd.f32 %v5146, %v5114
        %v5179 = vadd.f32 %v5147, %v5115
        %v5180 = vadd.f32 %v5148, %v5116
        %v5181 = vadd.f32 %v5149, %v5117
        %v5182 = vadd.f32 %v5150, %v5118
        %v5183 = vadd.f32 %v5151, %v5119
        %v5184 = vadd.f32 %v5152, %v5120
        %v5185 = vadd.f32 %v5153, %v5121
        %v5186 = vadd.f32 %v5154, %v5122
        %v5187 = vadd.f32 %v5155, %v5123
        %v5188 = vadd.f32 %v5156, %v5124
        %v5189 = vadd.f32 %v5157, %v5125
        %v5190 = vadd.f32 %v5158, %v5126
        %v5191 = vadd.f32 %v5159, %v5127
        %v5192 = vadd.f32 %v5160, %v5128
        %v5193 = vadd.f32 %v5161, %v5129
        %v5194 = vadd.f32 %v5162, %v5130
        %v5195 = vadd.f32 %v5163, %v5131
        %v5196 = vadd.f32 %v5164, %v5132
        %v5197 = vadd.f32 %v5165, %v5133
        %v5198 = vadd.f32 %v5166, %v5134
        %v5199 = vadd.f32 %v5167, %v5135
        %v5200 = vadd.f32 %v5168, %v5136
        %v5201 = vadd.f32 %v5169, %v5137
        %v5202 = vadd.f32 %v5170, %v5138
        %v5203 = vadd.f32 %v5171, %v5139
        %v5204 = vadd.f32 %v5172, %v5140
        %v5205 = vadd.f32 %v5173, %v5141
        %v5206 = vadd.f32 %v5174, %v5142
        %v5207 = vadd.f32 %v5175, %v5143
        %v5208 = vadd.f32 %v5176, %v5144
        %v5209 = vadd.f32 %v5177, %v5145
        %v5210 = vpack.c.bf16 %v5179, %v5178
        %v5211 = vpack.c.bf16 %v5181, %v5180
        %v5212 = vpack.c.bf16 %v5183, %v5182
        %v5213 = vpack.c.bf16 %v5185, %v5184
        %v5214 = vpack.c.bf16 %v5187, %v5186
        %v5215 = vpack.c.bf16 %v5189, %v5188
        %v5216 = vpack.c.bf16 %v5191, %v5190
        %v5217 = vpack.c.bf16 %v5193, %v5192
        %v5218 = vpack.c.bf16 %v5195, %v5194
        %v5219 = vpack.c.bf16 %v5197, %v5196
        %v5220 = vpack.c.bf16 %v5199, %v5198
        %v5221 = vpack.c.bf16 %v5201, %v5200
        %v5222 = vpack.c.bf16 %v5203, %v5202
        %v5223 = vpack.c.bf16 %v5205, %v5204
        %v5224 = vpack.c.bf16 %v5207, %v5206
        %v5225 = vpack.c.bf16 %v5209, %v5208
        %v5242 = vunpack.c.l.b16 %v5210
        %v5243 = vunpack.c.h.b16 %v5210
        %v5244 = vunpack.c.l.b16 %v5211
        %v5245 = vunpack.c.h.b16 %v5211
        %v5246 = vunpack.c.l.b16 %v5212
        %v5247 = vunpack.c.h.b16 %v5212
        %v5248 = vunpack.c.l.b16 %v5213
        %v5249 = vunpack.c.h.b16 %v5213
        %v5250 = vunpack.c.l.b16 %v5214
        %v5251 = vunpack.c.h.b16 %v5214
        %v5252 = vunpack.c.l.b16 %v5215
        %v5253 = vunpack.c.h.b16 %v5215
        %v5254 = vunpack.c.l.b16 %v5216
        %v5255 = vunpack.c.h.b16 %v5216
        %v5256 = vunpack.c.l.b16 %v5217
        %v5257 = vunpack.c.h.b16 %v5217
        %v5258 = vunpack.c.l.b16 %v5218
        %v5259 = vunpack.c.h.b16 %v5218
        %v5260 = vunpack.c.l.b16 %v5219
        %v5261 = vunpack.c.h.b16 %v5219
        %v5262 = vunpack.c.l.b16 %v5220
        %v5263 = vunpack.c.h.b16 %v5220
        %v5264 = vunpack.c.l.b16 %v5221
        %v5265 = vunpack.c.h.b16 %v5221
        %v5266 = vunpack.c.l.b16 %v5222
        %v5267 = vunpack.c.h.b16 %v5222
        %v5268 = vunpack.c.l.b16 %v5223
        %v5269 = vunpack.c.h.b16 %v5223
        %v5270 = vunpack.c.l.b16 %v5224
        %v5271 = vunpack.c.h.b16 %v5224
        %v5272 = vunpack.c.l.b16 %v5225
        %v5273 = vunpack.c.h.b16 %v5225
        %v5274 = vpack.c.b16 %v5242, %v5242
        %v5275 = vpack.c.b16 %v5243, %v5243
        %v5276 = vpack.c.b16 %v5244, %v5244
        %v5277 = vpack.c.b16 %v5245, %v5245
        %v5278 = vpack.c.b16 %v5246, %v5246
        %v5279 = vpack.c.b16 %v5247, %v5247
        %v5280 = vpack.c.b16 %v5248, %v5248
        %v5281 = vpack.c.b16 %v5249, %v5249
        %v5282 = vpack.c.b16 %v5250, %v5250
        %v5283 = vpack.c.b16 %v5251, %v5251
        %v5284 = vpack.c.b16 %v5252, %v5252
        %v5285 = vpack.c.b16 %v5253, %v5253
        %v5286 = vpack.c.b16 %v5254, %v5254
        %v5287 = vpack.c.b16 %v5255, %v5255
        %v5288 = vpack.c.b16 %v5256, %v5256
        %v5289 = vpack.c.b16 %v5257, %v5257
        %v5290 = vpack.c.b16 %v5258, %v5258
        %v5291 = vpack.c.b16 %v5259, %v5259
        %v5292 = vpack.c.b16 %v5260, %v5260
        %v5293 = vpack.c.b16 %v5261, %v5261
        %v5294 = vpack.c.b16 %v5262, %v5262
        %v5295 = vpack.c.b16 %v5263, %v5263
        %v5296 = vpack.c.b16 %v5264, %v5264
        %v5297 = vpack.c.b16 %v5265, %v5265
        %v5298 = vpack.c.b16 %v5266, %v5266
        %v5299 = vpack.c.b16 %v5267, %v5267
        %v5300 = vpack.c.b16 %v5268, %v5268
        %v5301 = vpack.c.b16 %v5269, %v5269
        %v5302 = vpack.c.b16 %v5270, %v5270
        %v5303 = vpack.c.b16 %v5271, %v5271
        %v5304 = vpack.c.b16 %v5272, %v5272
        %v5305 = vpack.c.b16 %v5273, %v5273
        %vm5338 = vcmask 257024
        %5339 = vst.msk [vmem:[%s215] sm:$0xf] %vm5338, %v5274
        %5340 = vst.msk [vmem:[%s215 + $0x4] sm:$0xf] %vm5338, %v5275
        %5341 = vst.msk [vmem:[%s215 + $0x8] sm:$0xf] %vm5338, %v5276
        %5342 = vst.msk [vmem:[%s215 + $0xc] sm:$0xf] %vm5338, %v5277
        %5343 = vst.msk [vmem:[%s215 + $0x10] sm:$0xf] %vm5338, %v5278
        %5344 = vst.msk [vmem:[%s215 + $0x14] sm:$0xf] %vm5338, %v5279
        %5345 = vst.msk [vmem:[%s215 + $0x18] sm:$0xf] %vm5338, %v5280
        %5346 = vst.msk [vmem:[%s215 + $0x1c] sm:$0xf] %vm5338, %v5281
        %5347 = vst.msk [vmem:[%s215 + $0x20] sm:$0xf] %vm5338, %v5282
        %5348 = vst.msk [vmem:[%s215 + $0x24] sm:$0xf] %vm5338, %v5283
        %5349 = vst.msk [vmem:[%s215 + $0x28] sm:$0xf] %vm5338, %v5284
        %5350 = vst.msk [vmem:[%s215 + $0x2c] sm:$0xf] %vm5338, %v5285
        %5351 = vst.msk [vmem:[%s215 + $0x30] sm:$0xf] %vm5338, %v5286
        %5352 = vst.msk [vmem:[%s215 + $0x34] sm:$0xf] %vm5338, %v5287
        %5353 = vst.msk [vmem:[%s215 + $0x38] sm:$0xf] %vm5338, %v5288
        %5354 = vst.msk [vmem:[%s215 + $0x3c] sm:$0xf] %vm5338, %v5289
        %5355 = vst.msk [vmem:[%s215 + $0x40] sm:$0xf] %vm5338, %v5290
        %5356 = vst.msk [vmem:[%s215 + $0x44] sm:$0xf] %vm5338, %v5291
        %5357 = vst.msk [vmem:[%s215 + $0x48] sm:$0xf] %vm5338, %v5292
        %5358 = vst.msk [vmem:[%s215 + $0x4c] sm:$0xf] %vm5338, %v5293
        %5359 = vst.msk [vmem:[%s215 + $0x50] sm:$0xf] %vm5338, %v5294
        %5360 = vst.msk [vmem:[%s215 + $0x54] sm:$0xf] %vm5338, %v5295
        %5361 = vst.msk [vmem:[%s215 + $0x58] sm:$0xf] %vm5338, %v5296
        %5362 = vst.msk [vmem:[%s215 + $0x5c] sm:$0xf] %vm5338, %v5297
        %5363 = vst.msk [vmem:[%s215 + $0x60] sm:$0xf] %vm5338, %v5298
        %5364 = vst.msk [vmem:[%s215 + $0x64] sm:$0xf] %vm5338, %v5299
        %5365 = vst.msk [vmem:[%s215 + $0x68] sm:$0xf] %vm5338, %v5300
        %5366 = vst.msk [vmem:[%s215 + $0x6c] sm:$0xf] %vm5338, %v5301
        %5367 = vst.msk [vmem:[%s215 + $0x70] sm:$0xf] %vm5338, %v5302
        %5368 = vst.msk [vmem:[%s215 + $0x74] sm:$0xf] %vm5338, %v5303
        %5369 = vst.msk [vmem:[%s215 + $0x78] sm:$0xf] %vm5338, %v5304
        %5370 = vst.msk [vmem:[%s215 + $0x7c] sm:$0xf] %vm5338, %v5305
        %s5371 = sand.u32 %s97, 1
        %s5372 = scalar_lea.sflag [#allocation4], %s5371
        %s5373 = sand.u32 %s97, 1
        %s5374 = smul.addr %s5373, 128
        %s5375 = scalar_lea.vmem [#allocation8], %s5374
        // Predicated region
        $region45: #{multi_field_at_conv2d.7} parent=31 // pred_check
          %p5376 = pneg %p107
        $region46: #{multi_field_at_conv2d.7} parent=31 // pred_check_branch
          %5378 = sbr.rel (%p5376) target = $region48
        $region47: #{multi_field_at_conv2d.7} parent=31 // pred_region
          %s5380 = ssub.s32 2048, 2048
          %5381 = vsyncadd %s5372, %s5380
          %s5382 = smul.addr %s21, 32
          %s5383 = smul.addr %s5382, 64
          %s5384 = scalar_lea.hbm %s3, %s5383
          %s5385 = sshll.u32 %s5375, 4
          %s5386 = int_to_ptr.vmem [resolvable:$true] %s5385
          %5391 = dma.vmem_to_hbm [thread:$0]  %s5386, 2048, %s5384, %s5372, 64, 64, 4
        $region48: #{multi_field_at_conv2d.7} parent=31 // pred_fallthru
          _
      $region32: #{multi_field_at_conv2d.7} parent=5 // pred_fallthru
        _
      %p5392 = scmp.le.s32.totalorder 2, %s16
      // Predicated region
      $region49: #{multi_field_at_conv2d.7} parent=5 // pred_check
        %p5393 = pneg %p5392
      $region50: #{multi_field_at_conv2d.7} parent=5 // pred_check_branch
        %5395 = sbr.rel (%p5393) target = $region52
      $region51: #{multi_field_at_conv2d.7} parent=5 // pred_region
        %s5396 = ssub.s32 %s16, 2
        // Predicated region
        $region53: #{multi_field_at_conv2d.7} parent=51 // pred_check
          %p5397 = pneg %p113
        $region54: #{multi_field_at_conv2d.7} parent=51 // pred_check_branch
          %5399 = sbr.rel (%p5397) target = $region56
        $region55: #{multi_field_at_conv2d.7} parent=51 // pred_region
          %s5400 = sand.u32 %s98, 1
          %s5401 = scalar_lea.sflag [#allocation4], %s5400
          %s5402 = sand.u32 %s98, 1
          %s5403 = smul.addr %s5402, 128
          %s5404 = scalar_lea.vmem [#allocation8], %s5403
          %5405 = dma.done %s5401, 2048
        $region56: #{multi_field_at_conv2d.7} parent=51 // pred_fallthru
          _
      $region52: #{multi_field_at_conv2d.7} parent=5 // pred_fallthru
        _
    $region6: #{multi_field_at_conv2d.7} parent=1 // loop_footer
      %s20 = sadd.s32 1, %s16
    $region7: #{multi_field_at_conv2d.7} parent=1 // loop_footer_branch
      %15 = sbr.rel target = $region3
    $region8: #{multi_field_at_conv2d.7} parent=1 // loop_exit
      _
    %5406 = vsyncpa [#allocation3], 1
    %s5407 = scalar_lea.sflag [#allocation3], 1
    %5408 = vsyncpa %s5407, 1
    %5409 = vsyncpa [#allocation6], 1
    %5410 = vsyncpa [#allocation4], 1
    %s5411 = scalar_lea.sflag [#allocation4], 1
    %5412 = vsyncpa %s5411, 1

</llo_original>
